<compile_context>
chip_gen: v5e
topology: v5e:2x2
jax: 0.10.0
libtpu: 0.0.40
codegen_flags: <defaults>
</compile_context>

<pallas_src>
import math

import jax
import jax.numpy as jnp
from jax.experimental import pallas as pl
from jax.experimental.pallas import tpu as pltpu


# ------------------------------ small helpers ------------------------------ #

def _round_up(x, m):
    return ((x + m - 1) // m) * m


def _vmem_capacity_bytes():
    try:
        return int(pltpu.get_tpu_info().vmem_capacity_bytes)
    except Exception:
        return 64 * 1024 * 1024          # v7x-safe fallback


def _cap_two_tiles(t, total, unit):
    """Round t down to a multiple of `unit`; keep >= 2 grid steps (megacore
    sharding on v7x, pipeline slack) whenever the problem is big enough."""
    t = max(unit, (t // unit) * unit)
    if total >= 2 * unit:
        t = min(t, _round_up(pl.cdiv(total, 2), unit))
    return t


# ----------------------------- Pallas kernels ------------------------------ #

def _make_encoder_conv_kernel(C, W, tm, m_valid):
    """One merged matmul for all three branches + in-kernel kw taps + fused
    BatchNorm partial sums.  The (tm, 7C) matmul result columns are
        [y1 | y2_ctr | y2_w-1 | y2_w+1 | y3_ctr | y3_w-1 | y3_w+1]."""

    def kernel(a_ref, w_ref, b_ref, y1_ref, y2_ref, y3_ref, st_ref):
        a = a_ref[...]                                    # (tm, 9C) bf16
        b = b_ref[...]                                    # (1, 7C)  f32
        t = jnp.dot(a, w_ref[...], preferred_element_type=jnp.float32) + b

        # w position inside the row (tile start is a multiple of W).
        ridx = jax.lax.broadcasted_iota(jnp.int32, (tm, 1), 0)
        wpos = ridx % W
        has_prev = wpos != 0                              # w-1 tap exists
        has_next = wpos != (W - 1)                        # w+1 tap exists

        def shift_prev(v):    # out[r] = v[r-1] when w > 0 else 0
            s = jnp.concatenate([jnp.zeros_like(v[:1]), v[:-1]], axis=0)
            return jnp.where(has_prev, s, 0.0)

        def shift_next(v):    # out[r] = v[r+1] when w < W-1 else 0
            s = jnp.concatenate([v[1:], jnp.zeros_like(v[:1])], axis=0)
            return jnp.where(has_next, s, 0.0)

        y1 = t[:, 0 * C:1 * C]
        y2 = t[:, 1 * C:2 * C] + shift_prev(t[:, 2 * C:3 * C]) \
                               + shift_next(t[:, 3 * C:4 * C])
        y3 = t[:, 4 * C:5 * C] + shift_prev(t[:, 5 * C:6 * C]) \
                               + shift_next(t[:, 6 * C:7 * C])

        # BN partial sums (f32, before the bf16 downcast).  Centred on the
        # per-branch constant bias to avoid E[y^2]-E[y]^2 cancellation, and
        # masked so rows padded past M contribute nothing.
        valid = ((pl.program_id(0) * tm + ridx) < m_valid).astype(jnp.float32)
        cb1 = b[:, 0 * C:1 * C]
        cb2 = b[:, 1 * C:2 * C]
        cb3 = b[:, 4 * C:5 * C] + b[:, 5 * C:6 * C] + b[:, 6 * C:7 * C]
        c1 = (y1 - cb1) * valid
        c2 = (y2 - cb2) * valid
        c3 = (y3 - cb3) * valid
        st = jnp.concatenate(
            [jnp.sum(c1, axis=0, keepdims=True),
             jnp.sum(c1 * c1, axis=0, keepdims=True),
             jnp.sum(c2, axis=0, keepdims=True),
             jnp.sum(c2 * c2, axis=0, keepdims=True),
             jnp.sum(c3, axis=0, keepdims=True),
             jnp.sum(c3 * c3, axis=0, keepdims=True)], axis=0)
        st_ref[...] = st.reshape(1, 6, C)

        y1_ref[...] = y1.astype(jnp.bfloat16)
        y2_ref[...] = y2.astype(jnp.bfloat16)
        y3_ref[...] = y3.astype(jnp.bfloat16)

    return kernel


def fused_encoder_convs(A9, w_all, b_all, *, tm, width, m_valid):
    Mp, K = A9.shape
    C = K // 9
    n_m = Mp // tm
    cap = _vmem_capacity_bytes()
    kernel = _make_encoder_conv_kernel(C=C, W=width, tm=tm, m_valid=m_valid)
    y_out = pl.BlockSpec((tm, C), lambda i: (i, 0))
    return pl.pallas_call(
        kernel,
        out_shape=(jax.ShapeDtypeStruct((Mp, C), jnp.bfloat16),      # y1 pre-BN
                   jax.ShapeDtypeStruct((Mp, C), jnp.bfloat16),      # y2 pre-BN
                   jax.ShapeDtypeStruct((Mp, C), jnp.bfloat16),      # y3 pre-BN
                   jax.ShapeDtypeStruct((n_m, 6, C), jnp.float32)),  # BN stats
        grid=(n_m,),
        in_specs=[
            pl.BlockSpec((tm, K), lambda i: (i, 0)),        # A9 patches (bf16)
            pl.BlockSpec((K, 7 * C), lambda i: (0, 0)),     # merged weights
            pl.BlockSpec((1, 7 * C), lambda i: (0, 0)),     # merged biases
        ],
        out_specs=(y_out, y_out, y_out,
                   pl.BlockSpec((1, 6, C), lambda i: (i, 0, 0))),
        compiler_params=pltpu.CompilerParams(
            dimension_semantics=("parallel",),
            vmem_limit_bytes=min(cap * 3 // 4, 100 * 1024 * 1024)),
    )(A9, w_all, b_all)


def _combine_kernel(a_ref, x_ref, y1_ref, s1_ref, t1_ref,
                    y2_ref, s2_ref, t2_ref, y3_ref, s3_ref, t3_ref, o_ref):
    # Fused: BN affine (precomputed scale/shift) + ReLU + residual + alpha mix.
    x = x_ref[...]
    z1 = x + jnp.maximum(y1_ref[...] * s1_ref[...] + t1_ref[...], 0.0)
    z2 = x + jnp.maximum(y2_ref[...] * s2_ref[...] + t2_ref[...], 0.0)
    z3 = x + jnp.maximum(y3_ref[...] * s3_ref[...] + t3_ref[...], 0.0)
    o_ref[...] = a_ref[0] * z1 + a_ref[1] * z2 + a_ref[2] * z3


def combine(alpha_w, x, y1, s1, t1, y2, s2, t2, y3, s3, t3):
    M, C = x.shape
    lane_dense = (128 % C == 0) and ((M * C) % 128 == 0)
    if lane_dense:
        # View (M, C) as (M*C/128, 128): unmasked full-lane loads/stores.
        L = 128
        to2d = lambda v: v.reshape((M * C) // L, L)
        vec = lambda v: jnp.tile(v, L // C).reshape(1, L)
    else:
        L = C
        to2d = lambda v: v
        vec = lambda v: v.reshape(1, L)
    X, Y1, Y2, Y3 = to2d(x), to2d(y1), to2d(y2), to2d(y3)
    R = X.shape[0]
    trm = _cap_two_tiles(min(2048, _round_up(R, 8)), R, 8)
    Rp = _round_up(R, trm)
    if Rp != R:
        pad = lambda v: jnp.pad(v, ((0, Rp - R), (0, 0)))
        X, Y1, Y2, Y3 = pad(X), pad(Y1), pad(Y2), pad(Y3)
    big = pl.BlockSpec((trm, L), lambda i: (i, 0))
    small = pl.BlockSpec((1, L), lambda i: (0, 0))
    out = pl.pallas_call(
        _combine_kernel,
        out_shape=jax.ShapeDtypeStruct((Rp, L), jnp.float32),
        grid=(Rp // trm,),
        in_specs=[pl.BlockSpec(memory_space=pltpu.MemorySpace.SMEM),  # alpha (3,)
                  big, big, small, small,
                  big, small, small,
                  big, small, small],
        out_specs=big,
        compiler_params=pltpu.CompilerParams(
            dimension_semantics=("parallel",)),
    )(alpha_w, X, Y1, vec(s1), vec(t1), Y2, vec(s2), vec(t2),
      Y3, vec(s3), vec(t3))
    return out[:R].reshape(M, C)


# ------------------------------ JAX glue ----------------------------------- #

def _im2col(x, ksize, pad):
    """x: (N,D,H,W,C) -> (N*D*H*W, kd*kh*kw*C), stride 1.  Keeps x's dtype."""
    kd, kh, kw = ksize
    pd, ph, pw = pad
    N, D, H, W, C = x.shape
    xp = jnp.pad(x, ((0, 0), (pd, pd), (ph, ph), (pw, pw), (0, 0)))
    cols = []
    for a in range(kd):
        for b in range(kh):
            for c in range(kw):
                cols.append(xp[:, a:a + D, b:b + H, c:c + W, :])
    patches = jnp.concatenate(cols, axis=-1)
    return patches.reshape(N * D * H * W, kd * kh * kw * C)


def _bn_scale_shift(s, q, n, center, gamma, beta, eps=1e-5):
    """BatchNorm3d (training-mode) scale/shift from bias-centred sum/sum-sq."""
    mean_c = s / n
    var = jnp.maximum(q / n - mean_c * mean_c, 0.0)
    mean = mean_c + center
    scale = gamma * jax.lax.rsqrt(var + eps)
    shift = beta - mean * scale
    return scale, shift


def encoder_forward(x_ncdhw, p):
    xl = jnp.transpose(x_ncdhw, (0, 2, 3, 4, 1)).astype(jnp.float32)  # NDHWC
    N, D, H, W, C = xl.shape
    M = N * D * H * W
    x_flat = xl.reshape(M, C)

    # --- fold every conv of each branch into one (9C, 7C) weight matrix --- #
    # (the fold is exact in f32; the cast to bf16 happens after folding)
    W2d1 = p['b2d_w1'].reshape(9 * C, C)
    W2d2 = p['b2d_w2'].reshape(C, C)
    W3 = p['b3d_w1']                                   # (3,3,3,C,C)
    W3d2 = p['b3d_w2'].reshape(C, C)
    Wp1 = p['p3d_w1'].reshape(9 * C, C)
    Wp2 = p['p3d_w2'].reshape(3, C, C)                 # (kw, Cin, Cout)

    w_cols = [
        W2d1 @ W2d2,                                   # y1: block_2d conv1∘conv2
        W3[:, :, 1].reshape(9 * C, C) @ W3d2,          # y2 centre  (kw=1)∘conv2
        W3[:, :, 0].reshape(9 * C, C) @ W3d2,          # y2 w-1 tap (kw=0)∘conv2
        W3[:, :, 2].reshape(9 * C, C) @ W3d2,          # y2 w+1 tap (kw=2)∘conv2
        Wp1 @ Wp2[1],                                  # y3 centre  p3d conv1∘kw=1
        Wp1 @ Wp2[0],                                  # y3 w-1 tap
        Wp1 @ Wp2[2],                                  # y3 w+1 tap
    ]
    w_all = jnp.concatenate(w_cols, axis=1).astype(jnp.bfloat16)     # (9C, 7C)

    be1 = p['b2d_b1'] @ W2d2 + p['b2d_b2']
    be2 = p['b3d_b1'] @ W3d2 + p['b3d_b2']
    be3 = p['p3d_b1']
    b_cols = [be1, be2, jnp.zeros_like(be1), jnp.zeros_like(be1),
              be3 @ Wp2[1] + p['p3d_b2'], be3 @ Wp2[0], be3 @ Wp2[2]]
    b_all = jnp.concatenate(b_cols).reshape(1, 7 * C).astype(jnp.float32)
    cb3 = b_cols[4] + b_cols[5] + b_cols[6]            # interior-row bias of y3

    # --- one shared bf16 (3,3,1) im2col; the kw taps are built in-kernel --- #
    # TODO(synk): A9 still materializes 9 shifted copies of x in HBM; streaming
    # x per-plane with halo DMA would remove the remaining patch blow-up.
    A9 = _im2col(xl.astype(jnp.bfloat16), (3, 3, 1), (1, 1, 0))      # (M, 9C)

    unit = W * 8 // math.gcd(W, 8)          # M tiles: multiple of W and of 8
    cap = _vmem_capacity_bytes()
    budget_rows = max(unit, (cap * 2 // 5) // (256 * C))
    tm = _cap_two_tiles(min(2048, budget_rows), M, unit)
    Mp = _round_up(M, tm)
    if Mp != M:
        A9 = jnp.pad(A9, ((0, Mp - M), (0, 0)))

    y1, y2, y3, st = fused_encoder_convs(A9, w_all, b_all,
                                         tm=tm, width=W, m_valid=M)

    # --- BatchNorm (training-mode) statistics from fused partial sums --- #
    s1, q1 = jnp.sum(st[:, 0], axis=0), jnp.sum(st[:, 1], axis=0)
    s2, q2 = jnp.sum(st[:, 2], axis=0), jnp.sum(st[:, 3], axis=0)
    s3, q3 = jnp.sum(st[:, 4], axis=0), jnp.sum(st[:, 5], axis=0)
    sc1, sh1 = _bn_scale_shift(s1, q1, M, be1, p['b2d_gamma'], p['b2d_beta'])
    sc2, sh2 = _bn_scale_shift(s2, q2, M, be2, p['b3d_gamma'], p['b3d_beta'])
    sc3, sh3 = _bn_scale_shift(s3, q3, M, cb3, p['p3d_gamma'], p['p3d_beta'])

    # --- fused BN affine + ReLU + residual + softmax(alpha) mix --- #
    a = jax.nn.softmax(p['alpha'])          # alpha = zeros -> (1/3, 1/3, 1/3)
    x_pad = x_flat if Mp == M else jnp.pad(x_flat, ((0, Mp - M), (0, 0)))
    out_flat = combine(a, x_pad, y1, sc1, sh1, y2, sc2, sh2, y3, sc3, sh3)
    out = out_flat[:M].reshape(N, D, H, W, C)
    return jnp.transpose(out, (0, 4, 1, 2, 3))          # back to NCDHW


# --------------------------- parameter init -------------------------------- #

def init_params(key, C):
    ks = jax.random.split(key, 20)
    w = lambda k, shape: 0.1 * jax.random.normal(k, shape, jnp.float32)
    return {
        # block_2d
        'b2d_w1': w(ks[0], (3, 3, 1, C, C)), 'b2d_b1': w(ks[1], (C,)),
        'b2d_w2': w(ks[2], (1, 1, 1, C, C)), 'b2d_b2': w(ks[3], (C,)),
        'b2d_gamma': 1.0 + w(ks[4], (C,)),   'b2d_beta': w(ks[5], (C,)),
        # block_3d
        'b3d_w1': w(ks[6], (3, 3, 3, C, C)), 'b3d_b1': w(ks[7], (C,)),
        'b3d_w2': w(ks[8], (1, 1, 1, C, C)), 'b3d_b2': w(ks[9], (C,)),
        'b3d_gamma': 1.0 + w(ks[10], (C,)),  'b3d_beta': w(ks[11], (C,)),
        # block_p3d
        'p3d_w1': w(ks[12], (3, 3, 1, C, C)), 'p3d_b1': w(ks[13], (C,)),
        'p3d_w2': w(ks[14], (1, 1, 3, C, C)), 'p3d_b2': w(ks[15], (C,)),
        'p3d_gamma': 1.0 + w(ks[16], (C,)),   'p3d_beta': w(ks[17], (C,)),
        # architecture weights (PyTorch inits to zeros)
        'alpha': jnp.zeros((3,), jnp.float32),
    }


# ------------------------- pure-JAX reference ------------------------------ #

def encoder_ref(x_ncdhw, p):
    xl = jnp.transpose(x_ncdhw, (0, 2, 3, 4, 1)).astype(jnp.float32)

    def conv(h, w, b, pad):
        y = jax.lax.conv_general_dilated(
            h, w, window_strides=(1, 1, 1),
            padding=[(pad[0], pad[0]), (pad[1], pad[1]), (pad[2], pad[2])],
            dimension_numbers=('NDHWC', 'DHWIO', 'NDHWC'),
            precision=jax.lax.Precision.HIGHEST)
        return y + b

    def bn_relu(y, g, beta, eps=1e-5):
        m = y.mean(axis=(0, 1, 2, 3))
        v = jnp.mean((y - m) ** 2, axis=(0, 1, 2, 3))
        return jnp.maximum((y - m) / jnp.sqrt(v + eps) * g + beta, 0.0)

    y1 = bn_relu(conv(conv(xl, p['b2d_w1'], p['b2d_b1'], (1, 1, 0)),
                      p['b2d_w2'], p['b2d_b2'], (0, 0, 0)),
                 p['b2d_gamma'], p['b2d_beta'])
    y2 = bn_relu(conv(conv(xl, p['b3d_w1'], p['b3d_b1'], (1, 1, 1)),
                      p['b3d_w2'], p['b3d_b2'], (0, 0, 0)),
                 p['b3d_gamma'], p['b3d_beta'])
    y3 = bn_relu(conv(conv(xl, p['p3d_w1'], p['p3d_b1'], (1, 1, 0)),
                      p['p3d_w2'], p['p3d_b2'], (0, 0, 1)),
                 p['p3d_gamma'], p['p3d_beta'])
    a = jax.nn.softmax(p['alpha'])
    out = a[0] * (xl + y1) + a[1] * (xl + y2) + a[2] * (xl + y3)
    return jnp.transpose(out, (0, 4, 1, 2, 3))


# --------------------------------- main ------------------------------------ #

if __name__ == "__main__":
    key = jax.random.PRNGKey(0)
    kx, kp = jax.random.split(key)
    # residual x + block(x) requires in_c == out_c
    N, C, D, H, W = 2, 4, 8, 8, 8
    x = jax.random.normal(kx, (N, C, D, H, W), jnp.float32)
    params = init_params(kp, C)

    out = jax.jit(encoder_forward)(x, params)
    out = jax.block_until_ready(out)

    ref = encoder_ref(x, params)
    assert out.shape == (N, C, D, H, W), out.shape
    max_err = float(jnp.max(jnp.abs(out - ref)))
    # bf16 patches / folded weights / bf16-stored branch intermediates vs a
    # pure-f32 HIGHEST-precision reference -> relaxed tolerance.
    assert max_err < 5e-2, f"max abs err {max_err}"
    print("KERNEL_OK")
</pallas_src>

<mosaic_0001>
module attributes {stable_mosaic.version = 11 : i64} {
  func.func @kernel(%arg0: i32, %arg1: memref<512x36xbf16, #tpu.memory_space<vmem>>, %arg2: memref<36x28xbf16, #tpu.memory_space<vmem>>, %arg3: memref<1x28xf32, #tpu.memory_space<vmem>>, %arg4: memref<512x4xbf16, #tpu.memory_space<vmem>>, %arg5: memref<512x4xbf16, #tpu.memory_space<vmem>>, %arg6: memref<512x4xbf16, #tpu.memory_space<vmem>>, %arg7: memref<1x6x4xf32, #tpu.memory_space<vmem>>) attributes {dimension_semantics = [#tpu.dimension_semantics<parallel>], iteration_bounds = array<i64: 2>, scalar_prefetch = 0 : i64, scratch_operands = 0 : i64, tpu.core_type = #tpu.core_type<tc>, window_params = [{transform_indices = @transform_0, window_bounds = array<i64: 512, 36>}, {pipeline_mode = #tpu.pipeline_mode<synchronous>, transform_indices = @transform_1, window_bounds = array<i64: 36, 28>}, {pipeline_mode = #tpu.pipeline_mode<synchronous>, transform_indices = @transform_2, window_bounds = array<i64: 1, 28>}, {transform_indices = @transform_3, window_bounds = array<i64: 512, 4>}, {transform_indices = @transform_4, window_bounds = array<i64: 512, 4>}, {transform_indices = @transform_5, window_bounds = array<i64: 512, 4>}, {transform_indices = @transform_6, window_bounds = array<i64: 1, 6, 4>}]} {
    %c0 = arith.constant 0 : index
    %c0_0 = arith.constant 0 : index
    %0 = vector.load %arg1[%c0, %c0_0] : memref<512x36xbf16, #tpu.memory_space<vmem>>, vector<512x36xbf16>
    %c0_1 = arith.constant 0 : index
    %c0_2 = arith.constant 0 : index
    %1 = vector.load %arg3[%c0_1, %c0_2] : memref<1x28xf32, #tpu.memory_space<vmem>>, vector<1x28xf32>
    %c0_3 = arith.constant 0 : index
    %c0_4 = arith.constant 0 : index
    %2 = vector.load %arg2[%c0_3, %c0_4] : memref<36x28xbf16, #tpu.memory_space<vmem>>, vector<36x28xbf16>
    %cst = arith.constant dense<0.000000e+00> : vector<512x28xf32>
    %3 = tpu.matmul %0, %2, %cst {dimension_numbers = #tpu.dot_dimension_numbers<[1], [0], [0], [1], [0, 0, 1, 1], [], []>} : vector<512x36xbf16>, vector<36x28xbf16>, vector<512x28xf32> -> vector<512x28xf32>
    %4 = vector.broadcast %1 : vector<1x28xf32> to vector<512x28xf32>
    %5 = arith.addf %3, %4 : vector<512x28xf32>
    %6 = tpu.iota {dimensions = array<i32: 0>} : vector<512x1xi32>
    %c8_i32 = arith.constant 8 : i32
    %c0_i32 = arith.constant 0 : i32
    %7 = arith.cmpi eq, %c8_i32, %c0_i32 : i32
    %c1_i32 = arith.constant 1 : i32
    %8 = arith.select %7, %c1_i32, %c8_i32 : i32
    %9 = vector.broadcast %8 : i32 to vector<512x1xi32>
    %10 = arith.remsi %6, %9 : vector<512x1xi32>
    %c0_i32_5 = arith.constant 0 : i32
    %11 = vector.broadcast %c0_i32_5 : i32 to vector<512x1xi32>
    %12 = arith.cmpi ne, %10, %11 : vector<512x1xi32>
    %c0_i32_6 = arith.constant 0 : i32
    %13 = vector.broadcast %c0_i32_6 : i32 to vector<512x1xi32>
    %14 = arith.cmpi slt, %10, %13 : vector<512x1xi32>
    %c0_i32_7 = arith.constant 0 : i32
    %15 = arith.cmpi slt, %8, %c0_i32_7 : i32
    %16 = vector.broadcast %15 : i1 to vector<512x1xi1>
    %17 = vector.broadcast %16 : vector<512x1xi1> to vector<512x1xi1>
    %18 = arith.xori %14, %17 : vector<512x1xi1>
    %19 = arith.andi %18, %12 : vector<512x1xi1>
    %20 = vector.broadcast %8 : i32 to vector<512x1xi32>
    %21 = arith.addi %10, %20 : vector<512x1xi32>
    %22 = arith.select %19, %21, %10 : vector<512x1xi1>, vector<512x1xi32>
    %c0_i32_8 = arith.constant 0 : i32
    %23 = vector.broadcast %c0_i32_8 : i32 to vector<512x1xi32>
    %24 = arith.cmpi ne, %22, %23 : vector<512x1xi32>
    %c7_i32 = arith.constant 7 : i32
    %25 = vector.broadcast %c7_i32 : i32 to vector<512x1xi32>
    %26 = arith.cmpi ne, %22, %25 : vector<512x1xi32>
    %27 = vector.extract_strided_slice %5 {offsets = [0, 0], sizes = [512, 4], strides = [1, 1]} : vector<512x28xf32> to vector<512x4xf32>
    %28 = vector.extract_strided_slice %5 {offsets = [0, 4], sizes = [512, 4], strides = [1, 1]} : vector<512x28xf32> to vector<512x4xf32>
    %29 = vector.extract_strided_slice %5 {offsets = [0, 8], sizes = [512, 4], strides = [1, 1]} : vector<512x28xf32> to vector<512x4xf32>
    %cst_9 = arith.constant 0.000000e+00 : f32
    %30 = vector.broadcast %cst_9 : f32 to vector<1x4xf32>
    %31 = vector.extract_strided_slice %29 {offsets = [0, 0], sizes = [511, 4], strides = [1, 1]} : vector<512x4xf32> to vector<511x4xf32>
    %32 = tpu.concatenate %30, %31 in 0 : vector<1x4xf32>, vector<511x4xf32> -> vector<512x4xf32>
    %cst_10 = arith.constant 0.000000e+00 : f32
    %33 = vector.shape_cast %24 : vector<512x1xi1> to vector<512x1xi1>
    %34 = vector.broadcast %33 : vector<512x1xi1> to vector<512x4xi1>
    %35 = vector.broadcast %cst_10 : f32 to vector<512x4xf32>
    %36 = arith.select %34, %32, %35 : vector<512x4xi1>, vector<512x4xf32>
    %37 = arith.addf %28, %36 : vector<512x4xf32>
    %38 = vector.extract_strided_slice %5 {offsets = [0, 12], sizes = [512, 4], strides = [1, 1]} : vector<512x28xf32> to vector<512x4xf32>
    %39 = vector.extract_strided_slice %38 {offsets = [1, 0], sizes = [511, 4], strides = [1, 1]} : vector<512x4xf32> to vector<511x4xf32>
    %cst_11 = arith.constant 0.000000e+00 : f32
    %40 = vector.broadcast %cst_11 : f32 to vector<1x4xf32>
    %41 = tpu.concatenate %39, %40 in 0 : vector<511x4xf32>, vector<1x4xf32> -> vector<512x4xf32>
    %cst_12 = arith.constant 0.000000e+00 : f32
    %42 = vector.shape_cast %26 : vector<512x1xi1> to vector<512x1xi1>
    %43 = vector.broadcast %42 : vector<512x1xi1> to vector<512x4xi1>
    %44 = vector.broadcast %cst_12 : f32 to vector<512x4xf32>
    %45 = arith.select %43, %41, %44 : vector<512x4xi1>, vector<512x4xf32>
    %46 = arith.addf %37, %45 : vector<512x4xf32>
    %47 = vector.extract_strided_slice %5 {offsets = [0, 16], sizes = [512, 4], strides = [1, 1]} : vector<512x28xf32> to vector<512x4xf32>
    %48 = vector.extract_strided_slice %5 {offsets = [0, 20], sizes = [512, 4], strides = [1, 1]} : vector<512x28xf32> to vector<512x4xf32>
    %cst_13 = arith.constant 0.000000e+00 : f32
    %49 = vector.broadcast %cst_13 : f32 to vector<1x4xf32>
    %50 = vector.extract_strided_slice %48 {offsets = [0, 0], sizes = [511, 4], strides = [1, 1]} : vector<512x4xf32> to vector<511x4xf32>
    %51 = tpu.concatenate %49, %50 in 0 : vector<1x4xf32>, vector<511x4xf32> -> vector<512x4xf32>
    %cst_14 = arith.constant 0.000000e+00 : f32
    %52 = vector.shape_cast %24 : vector<512x1xi1> to vector<512x1xi1>
    %53 = vector.broadcast %52 : vector<512x1xi1> to vector<512x4xi1>
    %54 = vector.broadcast %cst_14 : f32 to vector<512x4xf32>
    %55 = arith.select %53, %51, %54 : vector<512x4xi1>, vector<512x4xf32>
    %56 = arith.addf %47, %55 : vector<512x4xf32>
    %57 = vector.extract_strided_slice %5 {offsets = [0, 24], sizes = [512, 4], strides = [1, 1]} : vector<512x28xf32> to vector<512x4xf32>
    %58 = vector.extract_strided_slice %57 {offsets = [1, 0], sizes = [511, 4], strides = [1, 1]} : vector<512x4xf32> to vector<511x4xf32>
    %cst_15 = arith.constant 0.000000e+00 : f32
    %59 = vector.broadcast %cst_15 : f32 to vector<1x4xf32>
    %60 = tpu.concatenate %58, %59 in 0 : vector<511x4xf32>, vector<1x4xf32> -> vector<512x4xf32>
    %cst_16 = arith.constant 0.000000e+00 : f32
    %61 = vector.shape_cast %26 : vector<512x1xi1> to vector<512x1xi1>
    %62 = vector.broadcast %61 : vector<512x1xi1> to vector<512x4xi1>
    %63 = vector.broadcast %cst_16 : f32 to vector<512x4xf32>
    %64 = arith.select %62, %60, %63 : vector<512x4xi1>, vector<512x4xf32>
    %65 = arith.addf %56, %64 : vector<512x4xf32>
    %c512_i32 = arith.constant 512 : i32
    %66 = arith.muli %arg0, %c512_i32 : i32
    %67 = vector.broadcast %66 : i32 to vector<512x1xi32>
    %68 = arith.addi %67, %6 : vector<512x1xi32>
    %c1024_i32 = arith.constant 1024 : i32
    %69 = vector.broadcast %c1024_i32 : i32 to vector<512x1xi32>
    %70 = arith.cmpi slt, %68, %69 : vector<512x1xi32>
    %71 = arith.extui %70 : vector<512x1xi1> to vector<512x1xi32>
    %72 = arith.sitofp %71 : vector<512x1xi32> to vector<512x1xf32>
    %73 = vector.extract_strided_slice %1 {offsets = [0, 0], sizes = [1, 4], strides = [1, 1]} : vector<1x28xf32> to vector<1x4xf32>
    %74 = vector.extract_strided_slice %1 {offsets = [0, 4], sizes = [1, 4], strides = [1, 1]} : vector<1x28xf32> to vector<1x4xf32>
    %75 = vector.extract_strided_slice %1 {offsets = [0, 16], sizes = [1, 4], strides = [1, 1]} : vector<1x28xf32> to vector<1x4xf32>
    %76 = vector.extract_strided_slice %1 {offsets = [0, 20], sizes = [1, 4], strides = [1, 1]} : vector<1x28xf32> to vector<1x4xf32>
    %77 = arith.addf %75, %76 : vector<1x4xf32>
    %78 = vector.extract_strided_slice %1 {offsets = [0, 24], sizes = [1, 4], strides = [1, 1]} : vector<1x28xf32> to vector<1x4xf32>
    %79 = arith.addf %77, %78 : vector<1x4xf32>
    %80 = vector.broadcast %73 : vector<1x4xf32> to vector<512x4xf32>
    %81 = arith.subf %27, %80 : vector<512x4xf32>
    %82 = vector.broadcast %72 : vector<512x1xf32> to vector<512x4xf32>
    %83 = arith.mulf %81, %82 : vector<512x4xf32>
    %84 = vector.broadcast %74 : vector<1x4xf32> to vector<512x4xf32>
    %85 = arith.subf %46, %84 : vector<512x4xf32>
    %86 = vector.broadcast %72 : vector<512x1xf32> to vector<512x4xf32>
    %87 = arith.mulf %85, %86 : vector<512x4xf32>
    %88 = vector.broadcast %79 : vector<1x4xf32> to vector<512x4xf32>
    %89 = arith.subf %65, %88 : vector<512x4xf32>
    %90 = vector.broadcast %72 : vector<512x1xf32> to vector<512x4xf32>
    %91 = arith.mulf %89, %90 : vector<512x4xf32>
    %cst_17 = arith.constant dense<0.000000e+00> : vector<4xf32>
    %92 = vector.multi_reduction <add>, %83, %cst_17 [0] : vector<512x4xf32> to vector<4xf32>
    %93 = vector.shape_cast %92 : vector<4xf32> to vector<1x4xf32>
    %94 = arith.mulf %83, %83 : vector<512x4xf32>
    %cst_18 = arith.constant dense<0.000000e+00> : vector<4xf32>
    %95 = vector.multi_reduction <add>, %94, %cst_18 [0] : vector<512x4xf32> to vector<4xf32>
    %96 = vector.shape_cast %95 : vector<4xf32> to vector<1x4xf32>
    %cst_19 = arith.constant dense<0.000000e+00> : vector<4xf32>
    %97 = vector.multi_reduction <add>, %87, %cst_19 [0] : vector<512x4xf32> to vector<4xf32>
    %98 = vector.shape_cast %97 : vector<4xf32> to vector<1x4xf32>
    %99 = arith.mulf %87, %87 : vector<512x4xf32>
    %cst_20 = arith.constant dense<0.000000e+00> : vector<4xf32>
    %100 = vector.multi_reduction <add>, %99, %cst_20 [0] : vector<512x4xf32> to vector<4xf32>
    %101 = vector.shape_cast %100 : vector<4xf32> to vector<1x4xf32>
    %cst_21 = arith.constant dense<0.000000e+00> : vector<4xf32>
    %102 = vector.multi_reduction <add>, %91, %cst_21 [0] : vector<512x4xf32> to vector<4xf32>
    %103 = vector.shape_cast %102 : vector<4xf32> to vector<1x4xf32>
    %104 = arith.mulf %91, %91 : vector<512x4xf32>
    %cst_22 = arith.constant dense<0.000000e+00> : vector<4xf32>
    %105 = vector.multi_reduction <add>, %104, %cst_22 [0] : vector<512x4xf32> to vector<4xf32>
    %106 = vector.shape_cast %105 : vector<4xf32> to vector<1x4xf32>
    %107 = tpu.concatenate %93, %96, %98, %101, %103, %106 in 0 : vector<1x4xf32>, vector<1x4xf32>, vector<1x4xf32>, vector<1x4xf32>, vector<1x4xf32>, vector<1x4xf32> -> vector<6x4xf32>
    %108 = vector.shape_cast %107 : vector<6x4xf32> to vector<1x6x4xf32>
    %c0_23 = arith.constant 0 : index
    %c0_24 = arith.constant 0 : index
    %c0_25 = arith.constant 0 : index
    %109 = vector.load %arg7[%c0_23, %c0_24, %c0_25] : memref<1x6x4xf32, #tpu.memory_space<vmem>>, vector<1x6x4xf32>
    tpu.vector_store %arg7[%c0_23, %c0_24, %c0_25], %108 {strides = array<i32>} : memref<1x6x4xf32, #tpu.memory_space<vmem>>, vector<1x6x4xf32>,
    %110 = arith.truncf %27 : vector<512x4xf32> to vector<512x4xbf16>
    %c0_26 = arith.constant 0 : index
    %c0_27 = arith.constant 0 : index
    %111 = vector.load %arg4[%c0_26, %c0_27] : memref<512x4xbf16, #tpu.memory_space<vmem>>, vector<512x4xbf16>
    tpu.vector_store %arg4[%c0_26, %c0_27], %110 {strides = array<i32>} : memref<512x4xbf16, #tpu.memory_space<vmem>>, vector<512x4xbf16>,
    %112 = arith.truncf %46 : vector<512x4xf32> to vector<512x4xbf16>
    %c0_28 = arith.constant 0 : index
    %c0_29 = arith.constant 0 : index
    %113 = vector.load %arg5[%c0_28, %c0_29] : memref<512x4xbf16, #tpu.memory_space<vmem>>, vector<512x4xbf16>
    tpu.vector_store %arg5[%c0_28, %c0_29], %112 {strides = array<i32>} : memref<512x4xbf16, #tpu.memory_space<vmem>>, vector<512x4xbf16>,
    %114 = arith.truncf %65 : vector<512x4xf32> to vector<512x4xbf16>
    %c0_30 = arith.constant 0 : index
    %c0_31 = arith.constant 0 : index
    %115 = vector.load %arg6[%c0_30, %c0_31] : memref<512x4xbf16, #tpu.memory_space<vmem>>, vector<512x4xbf16>
    tpu.vector_store %arg6[%c0_30, %c0_31], %114 {strides = array<i32>} : memref<512x4xbf16, #tpu.memory_space<vmem>>, vector<512x4xbf16>,
    return
  }
  func.func @transform_0(%arg0: i32) -> (i32, i32) {
    %c0_i32 = arith.constant 0 : i32
    %c0_i32_0 = arith.constant 0 : i32
    return %arg0, %c0_i32 : i32, i32
  }
  func.func @transform_1(%arg0: i32) -> (i32, i32) {
    %c0_i32 = arith.constant 0 : i32
    %c0_i32_0 = arith.constant 0 : i32
    %c0_i32_1 = arith.constant 0 : i32
    return %c0_i32, %c0_i32_0 : i32, i32
  }
  func.func @transform_2(%arg0: i32) -> (i32, i32) {
    %c0_i32 = arith.constant 0 : i32
    %c0_i32_0 = arith.constant 0 : i32
    %c0_i32_1 = arith.constant 0 : i32
    return %c0_i32, %c0_i32_0 : i32, i32
  }
  func.func @transform_3(%arg0: i32) -> (i32, i32) {
    %c0_i32 = arith.constant 0 : i32
    %c0_i32_0 = arith.constant 0 : i32
    return %arg0, %c0_i32 : i32, i32
  }
  func.func @transform_4(%arg0: i32) -> (i32, i32) {
    %c0_i32 = arith.constant 0 : i32
    %c0_i32_0 = arith.constant 0 : i32
    return %arg0, %c0_i32 : i32, i32
  }
  func.func @transform_5(%arg0: i32) -> (i32, i32) {
    %c0_i32 = arith.constant 0 : i32
    %c0_i32_0 = arith.constant 0 : i32
    return %arg0, %c0_i32 : i32, i32
  }
  func.func @transform_6(%arg0: i32) -> (i32, i32, i32) {
    %c0_i32 = arith.constant 0 : i32
    %c0_i32_0 = arith.constant 0 : i32
    %c0_i32_1 = arith.constant 0 : i32
    return %arg0, %c0_i32, %c0_i32_0 : i32, i32, i32
  }
}

module attributes {stable_mosaic.version = 11 : i64} {
  func.func @_combine_kernel(%arg0: i32, %arg1: memref<3xf32, #tpu.memory_space<smem>>, %arg2: memref<16x128xf32, #tpu.memory_space<vmem>>, %arg3: memref<16x128xbf16, #tpu.memory_space<vmem>>, %arg4: memref<1x128xf32, #tpu.memory_space<vmem>>, %arg5: memref<1x128xf32, #tpu.memory_space<vmem>>, %arg6: memref<16x128xbf16, #tpu.memory_space<vmem>>, %arg7: memref<1x128xf32, #tpu.memory_space<vmem>>, %arg8: memref<1x128xf32, #tpu.memory_space<vmem>>, %arg9: memref<16x128xbf16, #tpu.memory_space<vmem>>, %arg10: memref<1x128xf32, #tpu.memory_space<vmem>>, %arg11: memref<1x128xf32, #tpu.memory_space<vmem>>, %arg12: memref<16x128xf32, #tpu.memory_space<vmem>>) attributes {dimension_semantics = [#tpu.dimension_semantics<parallel>], iteration_bounds = array<i64: 2>, scalar_prefetch = 0 : i64, scratch_operands = 0 : i64, tpu.core_type = #tpu.core_type<tc>, window_params = [{transform_indices = @transform_0, window_bounds = array<i64: 3>}, {transform_indices = @transform_1, window_bounds = array<i64: 16, 128>}, {transform_indices = @transform_2, window_bounds = array<i64: 16, 128>}, {pipeline_mode = #tpu.pipeline_mode<synchronous>, transform_indices = @transform_3, window_bounds = array<i64: 1, 128>}, {pipeline_mode = #tpu.pipeline_mode<synchronous>, transform_indices = @transform_4, window_bounds = array<i64: 1, 128>}, {transform_indices = @transform_5, window_bounds = array<i64: 16, 128>}, {pipeline_mode = #tpu.pipeline_mode<synchronous>, transform_indices = @transform_6, window_bounds = array<i64: 1, 128>}, {pipeline_mode = #tpu.pipeline_mode<synchronous>, transform_indices = @transform_7, window_bounds = array<i64: 1, 128>}, {transform_indices = @transform_8, window_bounds = array<i64: 16, 128>}, {pipeline_mode = #tpu.pipeline_mode<synchronous>, transform_indices = @transform_9, window_bounds = array<i64: 1, 128>}, {pipeline_mode = #tpu.pipeline_mode<synchronous>, transform_indices = @transform_10, window_bounds = array<i64: 1, 128>}, {transform_indices = @transform_11, window_bounds = array<i64: 16, 128>}]} {
    %c0 = arith.constant 0 : index
    %c0_0 = arith.constant 0 : index
    %0 = vector.load %arg2[%c0, %c0_0] : memref<16x128xf32, #tpu.memory_space<vmem>>, vector<16x128xf32>
    %c0_1 = arith.constant 0 : index
    %c0_2 = arith.constant 0 : index
    %1 = vector.load %arg3[%c0_1, %c0_2] : memref<16x128xbf16, #tpu.memory_space<vmem>>, vector<16x128xbf16>
    %c0_3 = arith.constant 0 : index
    %c0_4 = arith.constant 0 : index
    %2 = vector.load %arg4[%c0_3, %c0_4] : memref<1x128xf32, #tpu.memory_space<vmem>>, vector<1x128xf32>
    %3 = arith.extf %1 : vector<16x128xbf16> to vector<16x128xf32>
    %4 = vector.broadcast %2 : vector<1x128xf32> to vector<16x128xf32>
    %5 = arith.mulf %3, %4 : vector<16x128xf32>
    %c0_5 = arith.constant 0 : index
    %c0_6 = arith.constant 0 : index
    %6 = vector.load %arg5[%c0_5, %c0_6] : memref<1x128xf32, #tpu.memory_space<vmem>>, vector<1x128xf32>
    %7 = vector.broadcast %6 : vector<1x128xf32> to vector<16x128xf32>
    %8 = arith.addf %5, %7 : vector<16x128xf32>
    %cst = arith.constant 0.000000e+00 : f32
    %9 = vector.broadcast %cst : f32 to vector<16x128xf32>
    %10 = arith.maximumf %8, %9 : vector<16x128xf32>
    %11 = arith.addf %0, %10 : vector<16x128xf32>
    %c0_7 = arith.constant 0 : index
    %c0_8 = arith.constant 0 : index
    %12 = vector.load %arg6[%c0_7, %c0_8] : memref<16x128xbf16, #tpu.memory_space<vmem>>, vector<16x128xbf16>
    %c0_9 = arith.constant 0 : index
    %c0_10 = arith.constant 0 : index
    %13 = vector.load %arg7[%c0_9, %c0_10] : memref<1x128xf32, #tpu.memory_space<vmem>>, vector<1x128xf32>
    %14 = arith.extf %12 : vector<16x128xbf16> to vector<16x128xf32>
    %15 = vector.broadcast %13 : vector<1x128xf32> to vector<16x128xf32>
    %16 = arith.mulf %14, %15 : vector<16x128xf32>
    %c0_11 = arith.constant 0 : index
    %c0_12 = arith.constant 0 : index
    %17 = vector.load %arg8[%c0_11, %c0_12] : memref<1x128xf32, #tpu.memory_space<vmem>>, vector<1x128xf32>
    %18 = vector.broadcast %17 : vector<1x128xf32> to vector<16x128xf32>
    %19 = arith.addf %16, %18 : vector<16x128xf32>
    %cst_13 = arith.constant 0.000000e+00 : f32
    %20 = vector.broadcast %cst_13 : f32 to vector<16x128xf32>
    %21 = arith.maximumf %19, %20 : vector<16x128xf32>
    %22 = arith.addf %0, %21 : vector<16x128xf32>
    %c0_14 = arith.constant 0 : index
    %c0_15 = arith.constant 0 : index
    %23 = vector.load %arg9[%c0_14, %c0_15] : memref<16x128xbf16, #tpu.memory_space<vmem>>, vector<16x128xbf16>
    %c0_16 = arith.constant 0 : index
    %c0_17 = arith.constant 0 : index
    %24 = vector.load %arg10[%c0_16, %c0_17] : memref<1x128xf32, #tpu.memory_space<vmem>>, vector<1x128xf32>
    %25 = arith.extf %23 : vector<16x128xbf16> to vector<16x128xf32>
    %26 = vector.broadcast %24 : vector<1x128xf32> to vector<16x128xf32>
    %27 = arith.mulf %25, %26 : vector<16x128xf32>
    %c0_18 = arith.constant 0 : index
    %c0_19 = arith.constant 0 : index
    %28 = vector.load %arg11[%c0_18, %c0_19] : memref<1x128xf32, #tpu.memory_space<vmem>>, vector<1x128xf32>
    %29 = vector.broadcast %28 : vector<1x128xf32> to vector<16x128xf32>
    %30 = arith.addf %27, %29 : vector<16x128xf32>
    %cst_20 = arith.constant 0.000000e+00 : f32
    %31 = vector.broadcast %cst_20 : f32 to vector<16x128xf32>
    %32 = arith.maximumf %30, %31 : vector<16x128xf32>
    %33 = arith.addf %0, %32 : vector<16x128xf32>
    %c0_21 = arith.constant 0 : index
    %34 = memref.load %arg1[%c0_21] : memref<3xf32, #tpu.memory_space<smem>>
    %35 = vector.broadcast %34 : f32 to vector<16x128xf32>
    %36 = arith.mulf %35, %11 : vector<16x128xf32>
    %c1 = arith.constant 1 : index
    %37 = memref.load %arg1[%c1] : memref<3xf32, #tpu.memory_space<smem>>
    %38 = vector.broadcast %37 : f32 to vector<16x128xf32>
    %39 = arith.mulf %38, %22 : vector<16x128xf32>
    %40 = arith.addf %36, %39 : vector<16x128xf32>
    %c2 = arith.constant 2 : index
    %41 = memref.load %arg1[%c2] : memref<3xf32, #tpu.memory_space<smem>>
    %42 = vector.broadcast %41 : f32 to vector<16x128xf32>
    %43 = arith.mulf %42, %33 : vector<16x128xf32>
    %44 = arith.addf %40, %43 : vector<16x128xf32>
    %c0_22 = arith.constant 0 : index
    %c0_23 = arith.constant 0 : index
    %45 = vector.load %arg12[%c0_22, %c0_23] : memref<16x128xf32, #tpu.memory_space<vmem>>, vector<16x128xf32>
    tpu.vector_store %arg12[%c0_22, %c0_23], %44 {strides = array<i32>} : memref<16x128xf32, #tpu.memory_space<vmem>>, vector<16x128xf32>,
    return
  }
  func.func @transform_0(%arg0: i32) -> i32 {
    %c0_i32 = arith.constant 0 : i32
    %c0_i32_0 = arith.constant 0 : i32
    return %c0_i32 : i32
  }
  func.func @transform_1(%arg0: i32) -> (i32, i32) {
    %c0_i32 = arith.constant 0 : i32
    %c0_i32_0 = arith.constant 0 : i32
    return %arg0, %c0_i32 : i32, i32
  }
  func.func @transform_2(%arg0: i32) -> (i32, i32) {
    %c0_i32 = arith.constant 0 : i32
    %c0_i32_0 = arith.constant 0 : i32
    return %arg0, %c0_i32 : i32, i32
  }
  func.func @transform_3(%arg0: i32) -> (i32, i32) {
    %c0_i32 = arith.constant 0 : i32
    %c0_i32_0 = arith.constant 0 : i32
    %c0_i32_1 = arith.constant 0 : i32
    return %c0_i32, %c0_i32_0 : i32, i32
  }
  func.func @transform_4(%arg0: i32) -> (i32, i32) {
    %c0_i32 = arith.constant 0 : i32
    %c0_i32_0 = arith.constant 0 : i32
    %c0_i32_1 = arith.constant 0 : i32
    return %c0_i32, %c0_i32_0 : i32, i32
  }
  func.func @transform_5(%arg0: i32) -> (i32, i32) {
    %c0_i32 = arith.constant 0 : i32
    %c0_i32_0 = arith.constant 0 : i32
    return %arg0, %c0_i32 : i32, i32
  }
  func.func @transform_6(%arg0: i32) -> (i32, i32) {
    %c0_i32 = arith.constant 0 : i32
    %c0_i32_0 = arith.constant 0 : i32
    %c0_i32_1 = arith.constant 0 : i32
    return %c0_i32, %c0_i32_0 : i32, i32
  }
  func.func @transform_7(%arg0: i32) -> (i32, i32) {
    %c0_i32 = arith.constant 0 : i32
    %c0_i32_0 = arith.constant 0 : i32
    %c0_i32_1 = arith.constant 0 : i32
    return %c0_i32, %c0_i32_0 : i32, i32
  }
  func.func @transform_8(%arg0: i32) -> (i32, i32) {
    %c0_i32 = arith.constant 0 : i32
    %c0_i32_0 = arith.constant 0 : i32
    return %arg0, %c0_i32 : i32, i32
  }
  func.func @transform_9(%arg0: i32) -> (i32, i32) {
    %c0_i32 = arith.constant 0 : i32
    %c0_i32_0 = arith.constant 0 : i32
    %c0_i32_1 = arith.constant 0 : i32
    return %c0_i32, %c0_i32_0 : i32, i32
  }
  func.func @transform_10(%arg0: i32) -> (i32, i32) {
    %c0_i32 = arith.constant 0 : i32
    %c0_i32_0 = arith.constant 0 : i32
    %c0_i32_1 = arith.constant 0 : i32
    return %c0_i32, %c0_i32_0 : i32, i32
  }
  func.func @transform_11(%arg0: i32) -> (i32, i32) {
    %c0_i32 = arith.constant 0 : i32
    %c0_i32_0 = arith.constant 0 : i32
    return %arg0, %c0_i32 : i32, i32
  }
}

</mosaic_0001>

<llo_original>
// kernel: tile.33
$region0: #{tile.33}
  #allocation0 [shape = 's32[1]{0}', space=sflag, size = 0x4, scoped, tag = 'scoped memory for tile.33']
  %s0 = inlined_call_operand.vmem [shape: f32[4], index: 0, kind: input, shape index: {}]
  %s1 = inlined_call_operand.vmem [shape: f32[32,4], index: 1, kind: output, shape index: {}]
  // Predicated region
  $region2: #{tile.33} parent=0 // pred_check
    _
  $region3: #{tile.33} parent=0 // pred_check_branch
    %3 = sbr.rel (0) target = $region5
  $region4: #{tile.33} parent=0 // pred_region
    _
  $region5: #{tile.33} parent=0 // pred_fallthru
    _
  %v4 = vld [vmem:[%s0] ss:$0 sm:$0xff]
  %5 = vst [vmem:[%s1] sm:$0xff] %v4
  %s6 = scalar_lea.vmem %s1, 8
  %7 = vst [vmem:[%s6] sm:$0xff] %v4
  %s8 = scalar_lea.vmem %s1, 16
  %9 = vst [vmem:[%s8] sm:$0xff] %v4
  %s10 = scalar_lea.vmem %s1, 24
  %11 = vst [vmem:[%s10] sm:$0xff] %v4

// kernel: tile.34
$region0: #{tile.34}
  %s0 = inlined_call_operand.vmem [shape: f32[32,4], index: 0, kind: input, shape index: {}]
  %s1 = inlined_call_operand.vmem [shape: f32[1,128], index: 1, kind: output, shape index: {}]
  $region1: #{tile.34} parent=0
    #allocation0 [shape = 'u8[4096]{0}', space=vmem, size = 0x1000, scoped, tag = 'scoped mem for output reshape']
    %v2 = vld [vmem:[%s0] sm:$0x1]
    %vm3 = vcmask 31744
    %4 = vst.msk [vmem:[#allocation0] sm:$0x1] %vm3, %v2
    %s5 = scalar_lea.vmem %s0, 31
    %v6 = vld [vmem:[%s5] sm:$0x1]
    %7 = vrot.lane.b32.xlu0 %v6, 124
    %v8 = vpop.permute.xlu0 %7
    %vm9 = vcmask 1048544
    %10 = vst.msk [vmem:[#allocation0] sm:$0x1] %vm9, %v8
    %s11 = scalar_lea.vmem %s0, 30
    %v12 = vld [vmem:[%s11] sm:$0x1]
    %13 = vrot.lane.b32.xlu0 %v12, 120
    %v14 = vpop.permute.xlu0 %13
    %vm15 = vcmask 1015744
    %16 = vst.msk [vmem:[#allocation0] sm:$0x1] %vm15, %v14
    %s17 = scalar_lea.vmem %s0, 29
    %v18 = vld [vmem:[%s17] sm:$0x1]
    %19 = vrot.lane.b32.xlu0 %v18, 116
    %v20 = vpop.permute.xlu0 %19
    %vm21 = vcmask 982944
    %22 = vst.msk [vmem:[#allocation0] sm:$0x1] %vm21, %v20
    %s23 = scalar_lea.vmem %s0, 28
    %v24 = vld [vmem:[%s23] sm:$0x1]
    %25 = vrot.lane.b32.xlu0 %v24, 112
    %v26 = vpop.permute.xlu0 %25
    %vm27 = vcmask 950144
    %28 = vst.msk [vmem:[#allocation0] sm:$0x1] %vm27, %v26
    %s29 = scalar_lea.vmem %s0, 27
    %v30 = vld [vmem:[%s29] sm:$0x1]
    %31 = vrot.lane.b32.xlu0 %v30, 108
    %v32 = vpop.permute.xlu0 %31
    %vm33 = vcmask 917344
    %34 = vst.msk [vmem:[#allocation0] sm:$0x1] %vm33, %v32
    %s35 = scalar_lea.vmem %s0, 26
    %v36 = vld [vmem:[%s35] sm:$0x1]
    %37 = vrot.lane.b32.xlu0 %v36, 104
    %v38 = vpop.permute.xlu0 %37
    %vm39 = vcmask 884544
    %40 = vst.msk [vmem:[#allocation0] sm:$0x1] %vm39, %v38
    %s41 = scalar_lea.vmem %s0, 25
    %v42 = vld [vmem:[%s41] sm:$0x1]
    %43 = vrot.lane.b32.xlu0 %v42, 100
    %v44 = vpop.permute.xlu0 %43
    %vm45 = vcmask 851744
    %46 = vst.msk [vmem:[#allocation0] sm:$0x1] %vm45, %v44
    %s47 = scalar_lea.vmem %s0, 24
    %v48 = vld [vmem:[%s47] sm:$0x1]
    %49 = vrot.lane.b32.xlu0 %v48, 96
    %v50 = vpop.permute.xlu0 %49
    %vm51 = vcmask 818944
    %52 = vst.msk [vmem:[#allocation0] sm:$0x1] %vm51, %v50
    %s53 = scalar_lea.vmem %s0, 23
    %v54 = vld [vmem:[%s53] sm:$0x1]
    %55 = vrot.lane.b32.xlu0 %v54, 92
    %v56 = vpop.permute.xlu0 %55
    %vm57 = vcmask 786144
    %58 = vst.msk [vmem:[#allocation0] sm:$0x1] %vm57, %v56
    %s59 = scalar_lea.vmem %s0, 22
    %v60 = vld [vmem:[%s59] sm:$0x1]
    %61 = vrot.lane.b32.xlu0 %v60, 88
    %v62 = vpop.permute.xlu0 %61
    %vm63 = vcmask 753344
    %64 = vst.msk [vmem:[#allocation0] sm:$0x1] %vm63, %v62
    %s65 = scalar_lea.vmem %s0, 21
    %v66 = vld [vmem:[%s65] sm:$0x1]
    %67 = vrot.lane.b32.xlu0 %v66, 84
    %v68 = vpop.permute.xlu0 %67
    %vm69 = vcmask 720544
    %70 = vst.msk [vmem:[#allocation0] sm:$0x1] %vm69, %v68
    %s71 = scalar_lea.vmem %s0, 20
    %v72 = vld [vmem:[%s71] sm:$0x1]
    %73 = vrot.lane.b32.xlu0 %v72, 80
    %v74 = vpop.permute.xlu0 %73
    %vm75 = vcmask 687744
    %76 = vst.msk [vmem:[#allocation0] sm:$0x1] %vm75, %v74
    %s77 = scalar_lea.vmem %s0, 19
    %v78 = vld [vmem:[%s77] sm:$0x1]
    %79 = vrot.lane.b32.xlu0 %v78, 76
    %v80 = vpop.permute.xlu0 %79
    %vm81 = vcmask 654944
    %82 = vst.msk [vmem:[#allocation0] sm:$0x1] %vm81, %v80
    %s83 = scalar_lea.vmem %s0, 18
    %v84 = vld [vmem:[%s83] sm:$0x1]
    %85 = vrot.lane.b32.xlu0 %v84, 72
    %v86 = vpop.permute.xlu0 %85
    %vm87 = vcmask 622144
    %88 = vst.msk [vmem:[#allocation0] sm:$0x1] %vm87, %v86
    %s89 = scalar_lea.vmem %s0, 17
    %v90 = vld [vmem:[%s89] sm:$0x1]
    %91 = vrot.lane.b32.xlu0 %v90, 68
    %v92 = vpop.permute.xlu0 %91
    %vm93 = vcmask 589344
    %94 = vst.msk [vmem:[#allocation0] sm:$0x1] %vm93, %v92
    %s95 = scalar_lea.vmem %s0, 16
    %v96 = vld [vmem:[%s95] sm:$0x1]
    %97 = vrot.lane.b32.xlu0 %v96, 64
    %v98 = vpop.permute.xlu0 %97
    %vm99 = vcmask 556544
    %100 = vst.msk [vmem:[#allocation0] sm:$0x1] %vm99, %v98
    %s101 = scalar_lea.vmem %s0, 15
    %v102 = vld [vmem:[%s101] sm:$0x1]
    %103 = vrot.lane.b32.xlu0 %v102, 60
    %v104 = vpop.permute.xlu0 %103
    %vm105 = vcmask 523744
    %106 = vst.msk [vmem:[#allocation0] sm:$0x1] %vm105, %v104
    %s107 = scalar_lea.vmem %s0, 14
    %v108 = vld [vmem:[%s107] sm:$0x1]
    %109 = vrot.lane.b32.xlu0 %v108, 56
    %v110 = vpop.permute.xlu0 %109
    %vm111 = vcmask 490944
    %112 = vst.msk [vmem:[#allocation0] sm:$0x1] %vm111, %v110
    %s113 = scalar_lea.vmem %s0, 13
    %v114 = vld [vmem:[%s113] sm:$0x1]
    %115 = vrot.lane.b32.xlu0 %v114, 52
    %v116 = vpop.permute.xlu0 %115
    %vm117 = vcmask 458144
    %118 = vst.msk [vmem:[#allocation0] sm:$0x1] %vm117, %v116
    %s119 = scalar_lea.vmem %s0, 12
    %v120 = vld [vmem:[%s119] sm:$0x1]
    %121 = vrot.lane.b32.xlu0 %v120, 48
    %v122 = vpop.permute.xlu0 %121
    %vm123 = vcmask 425344
    %124 = vst.msk [vmem:[#allocation0] sm:$0x1] %vm123, %v122
    %s125 = scalar_lea.vmem %s0, 11
    %v126 = vld [vmem:[%s125] sm:$0x1]
    %127 = vrot.lane.b32.xlu0 %v126, 44
    %v128 = vpop.permute.xlu0 %127
    %vm129 = vcmask 392544
    %130 = vst.msk [vmem:[#allocation0] sm:$0x1] %vm129, %v128
    %s131 = scalar_lea.vmem %s0, 10
    %v132 = vld [vmem:[%s131] sm:$0x1]
    %133 = vrot.lane.b32.xlu0 %v132, 40
    %v134 = vpop.permute.xlu0 %133
    %vm135 = vcmask 359744
    %136 = vst.msk [vmem:[#allocation0] sm:$0x1] %vm135, %v134
    %s137 = scalar_lea.vmem %s0, 9
    %v138 = vld [vmem:[%s137] sm:$0x1]
    %139 = vrot.lane.b32.xlu0 %v138, 36
    %v140 = vpop.permute.xlu0 %139
    %vm141 = vcmask 326944
    %142 = vst.msk [vmem:[#allocation0] sm:$0x1] %vm141, %v140
    %s143 = scalar_lea.vmem %s0, 8
    %v144 = vld [vmem:[%s143] sm:$0x1]
    %145 = vrot.lane.b32.xlu0 %v144, 32
    %v146 = vpop.permute.xlu0 %145
    %vm147 = vcmask 294144
    %148 = vst.msk [vmem:[#allocation0] sm:$0x1] %vm147, %v146
    %s149 = scalar_lea.vmem %s0, 7
    %v150 = vld [vmem:[%s149] sm:$0x1]
    %151 = vrot.lane.b32.xlu0 %v150, 28
    %v152 = vpop.permute.xlu0 %151
    %vm153 = vcmask 261344
    %154 = vst.msk [vmem:[#allocation0] sm:$0x1] %vm153, %v152
    %s155 = scalar_lea.vmem %s0, 6
    %v156 = vld [vmem:[%s155] sm:$0x1]
    %157 = vrot.lane.b32.xlu0 %v156, 24
    %v158 = vpop.permute.xlu0 %157
    %vm159 = vcmask 228544
    %160 = vst.msk [vmem:[#allocation0] sm:$0x1] %vm159, %v158
    %s161 = scalar_lea.vmem %s0, 5
    %v162 = vld [vmem:[%s161] sm:$0x1]
    %163 = vrot.lane.b32.xlu0 %v162, 20
    %v164 = vpop.permute.xlu0 %163
    %vm165 = vcmask 195744
    %166 = vst.msk [vmem:[#allocation0] sm:$0x1] %vm165, %v164
    %s167 = scalar_lea.vmem %s0, 4
    %v168 = vld [vmem:[%s167] sm:$0x1]
    %169 = vrot.lane.b32.xlu0 %v168, 16
    %v170 = vpop.permute.xlu0 %169
    %vm171 = vcmask 162944
    %172 = vst.msk [vmem:[#allocation0] sm:$0x1] %vm171, %v170
    %s173 = scalar_lea.vmem %s0, 3
    %v174 = vld [vmem:[%s173] sm:$0x1]
    %175 = vrot.lane.b32.xlu0 %v174, 12
    %v176 = vpop.permute.xlu0 %175
    %vm177 = vcmask 130144
    %178 = vst.msk [vmem:[#allocation0] sm:$0x1] %vm177, %v176
    %s179 = scalar_lea.vmem %s0, 2
    %v180 = vld [vmem:[%s179] sm:$0x1]
    %181 = vrot.lane.b32.xlu0 %v180, 8
    %v182 = vpop.permute.xlu0 %181
    %vm183 = vcmask 97344
    %184 = vst.msk [vmem:[#allocation0] sm:$0x1] %vm183, %v182
    %s185 = scalar_lea.vmem %s0, 1
    %v186 = vld [vmem:[%s185] sm:$0x1]
    %187 = vrot.lane.b32.xlu0 %v186, 4
    %v188 = vpop.permute.xlu0 %187
    %vm189 = vcmask 64544
    %190 = vst.msk [vmem:[#allocation0] sm:$0x1] %vm189, %v188
    %s192 = ssub.s32 2, 1
    %v193 = vld [vmem:[#allocation0] sm:%s192]
    %s195 = ssub.s32 2, 1
    %196 = vst [vmem:[%s1] sm:%s195] %v193

// kernel: encoder_forward.3
$region0: #{encoder_forward.3}
  #allocation0 [shape = 'u32[]', space=smem, size = 0x4, offset = 0x4, fixed_abs, tag = 'smem constant byte address 0x4 - core index']
  #allocation1 [shape = 'u32[72,128]{1,0:T(1,128)}', space=vmem, size = 0x9000, scoped, tag = 'internal scratch']
  %s0 = inlined_call_operand.vmem [shape: f32[3], index: 0, kind: input, shape index: {}]
  %s1 = inlined_call_operand.vmem [shape: f32[32,128], index: 1, kind: input, shape index: {}]
  %s2 = inlined_call_operand.vmem [shape: bf16[32,128], index: 2, kind: input, shape index: {}]
  %s3 = inlined_call_operand.vmem [shape: f32[1,128], index: 3, kind: input, shape index: {}]
  %s4 = inlined_call_operand.vmem [shape: f32[1,128], index: 4, kind: input, shape index: {}]
  %s5 = inlined_call_operand.vmem [shape: bf16[32,128], index: 5, kind: input, shape index: {}]
  %s6 = inlined_call_operand.vmem [shape: f32[1,128], index: 6, kind: input, shape index: {}]
  %s7 = inlined_call_operand.vmem [shape: f32[1,128], index: 7, kind: input, shape index: {}]
  %s8 = inlined_call_operand.vmem [shape: bf16[32,128], index: 8, kind: input, shape index: {}]
  %s9 = inlined_call_operand.vmem [shape: f32[1,128], index: 9, kind: input, shape index: {}]
  %s10 = inlined_call_operand.vmem [shape: f32[1,128], index: 10, kind: input, shape index: {}]
  %s11 = inlined_call_operand.vmem [shape: f32[32,128], index: 11, kind: output, shape index: {}]
  %s12 = sld [smem:[#allocation0]]
  $region81: #{encoder_forward.3} parent=0
    _
  %s14 = ssub.s32 1, %s12
  %s15 = scalar_select 0, %s14, %s12
  $region1: #{encoder_forward.3} parent=0
    #allocation2 [shape = 'u8[512]{0}', space=smem, size = 0x200, scoped, tag = 'input window, operand 0, single buffered']
    #allocation3 [shape = 's32[2]{0}', space=sflag, size = 0x8, scoped, tag = 'scoped memory for encoder_forward.3']
    %16 = vsyncpa [#allocation3], 0
    loop: start=0, step=1, limit=4
    $region2: #{encoder_forward.3} parent=1 // loop_pre_header
      _
    $region3: #{encoder_forward.3} parent=1 // loop_header
      %s18 = sphi 0, %s22
      %p19 = scmp.ge.s32.totalorder %s18, 4
      %s26 = sphi 0, %s26
      %s28 = sphi 0, %s26
      %s29 = sphi 0, %s28
      %s43 = sphi 0, %s29
      %s49 = sphi 0, %s51
      %s52 = sphi 0, %s49
      %s53 = sphi 0, %s52
      %s69 = sphi 0, %s53
      %s75 = sphi 0, %s77
      %s78 = sphi 0, %s75
      %s79 = sphi 0, %s78
      %s95 = sphi 0, %s79
      %s99 = sphi 0, %s99
      %s101 = sphi 0, %s99
      %s102 = sphi 0, %s101
      %s116 = sphi 0, %s102
      %s120 = sphi 0, %s120
      %s122 = sphi 0, %s120
      %s123 = sphi 0, %s122
      %s137 = sphi 0, %s123
      %s143 = sphi 0, %s145
      %s146 = sphi 0, %s143
      %s147 = sphi 0, %s146
      %s163 = sphi 0, %s147
      %s167 = sphi 0, %s167
      %s169 = sphi 0, %s167
      %s170 = sphi 0, %s169
      %s184 = sphi 0, %s170
      %s188 = sphi 0, %s188
      %s190 = sphi 0, %s188
      %s191 = sphi 0, %s190
      %s205 = sphi 0, %s191
      %s211 = sphi 0, %s213
      %s214 = sphi 0, %s211
      %s215 = sphi 0, %s214
      %s231 = sphi 0, %s215
      %s235 = sphi 0, %s235
      %s237 = sphi 0, %s235
      %s238 = sphi 0, %s237
      %s252 = sphi 0, %s238
      %s256 = sphi 0, %s256
      %s258 = sphi 0, %s256
      %s259 = sphi 0, %s258
      %s273 = sphi 0, %s259
      %s279 = sphi 0, %s281
      %s282 = sphi 0, %s279
      %s283 = sphi 0, %s282
      %s299 = sphi 0, %s283
    $region4: #{encoder_forward.3} parent=1 // loop_header_branch
      %21 = sbr.rel (%p19) target = $region8
    $region5: #{encoder_forward.3} parent=1 // loop_body
      %s23 = ssub.s32 %s18, 1
      %s24 = ssub.s32 %s18, 2
      %s25 = sadd.s32 %s18, 1
      %s27 = sadd.s32 %s26, 1
      %p30 = scmp.eq.s32.totalorder %s18, 1
      %p31 = scmp.ne.s32.totalorder %s26, %s28
      %p32 = scmp.eq.s32.totalorder %s18, 0
      %p33 = por %p31, %p32
      %p34 = scmp.ne.s32.totalorder %s26, %s28
      %p35 = scmp.eq.s32.totalorder %s23, 1
      %p36 = por %p34, %p35
      %p37 = scmp.ne.s32.totalorder %s28, %s29
      %p38 = scmp.eq.s32.totalorder %s23, 0
      %p39 = por %p37, %p38
      %p40 = scmp.ne.s32.totalorder %s28, %s29
      %p41 = scmp.eq.s32.totalorder %s24, 1
      %p42 = por %p40, %p41
      %p44 = scmp.ne.s32.totalorder %s29, %s43
      %p45 = scmp.eq.s32.totalorder %s24, 0
      %p46 = por %p44, %p45
      %s47 = ssub.s32 %s18, %s25
      %p48 = scmp.eq.s32.totalorder %s47, 0
      %s50 = sadd.s32 %s49, 1
      %s51 = scalar_select %p48, %s49, %s50
      %p54 = pneg %p48
      %p55 = scmp.eq.s32.totalorder %s18, 1
      %p56 = por %p54, %p55
      %p57 = scmp.ne.s32.totalorder %s49, %s52
      %p58 = scmp.eq.s32.totalorder %s18, 0
      %p59 = por %p57, %p58
      %p60 = scmp.ne.s32.totalorder %s49, %s52
      %p61 = scmp.eq.s32.totalorder %s23, 1
      %p62 = por %p60, %p61
      %p63 = scmp.ne.s32.totalorder %s52, %s53
      %p64 = scmp.eq.s32.totalorder %s23, 0
      %p65 = por %p63, %p64
      %p66 = scmp.ne.s32.totalorder %s52, %s53
      %p67 = scmp.eq.s32.totalorder %s24, 1
      %p68 = por %p66, %p67
      %p70 = scmp.ne.s32.totalorder %s53, %s69
      %p71 = scmp.eq.s32.totalorder %s24, 0
      %p72 = por %p70, %p71
      %s73 = ssub.s32 %s18, %s25
      %p74 = scmp.eq.s32.totalorder %s73, 0
      %s76 = sadd.s32 %s75, 1
      %s77 = scalar_select %p74, %s75, %s76
      %p80 = pneg %p74
      %p81 = scmp.eq.s32.totalorder %s18, 1
      %p82 = por %p80, %p81
      %p83 = scmp.ne.s32.totalorder %s75, %s78
      %p84 = scmp.eq.s32.totalorder %s18, 0
      %p85 = por %p83, %p84
      %p86 = scmp.ne.s32.totalorder %s75, %s78
      %p87 = scmp.eq.s32.totalorder %s23, 1
      %p88 = por %p86, %p87
      %p89 = scmp.ne.s32.totalorder %s78, %s79
      %p90 = scmp.eq.s32.totalorder %s23, 0
      %p91 = por %p89, %p90
      %p92 = scmp.ne.s32.totalorder %s78, %s79
      %p93 = scmp.eq.s32.totalorder %s24, 1
      %p94 = por %p92, %p93
      %p96 = scmp.ne.s32.totalorder %s79, %s95
      %p97 = scmp.eq.s32.totalorder %s24, 0
      %p98 = por %p96, %p97
      %s100 = sadd.s32 %s99, 1
      %p103 = scmp.eq.s32.totalorder %s18, 1
      %p104 = scmp.ne.s32.totalorder %s99, %s101
      %p105 = scmp.eq.s32.totalorder %s18, 0
      %p106 = por %p104, %p105
      %p107 = scmp.ne.s32.totalorder %s99, %s101
      %p108 = scmp.eq.s32.totalorder %s23, 1
      %p109 = por %p107, %p108
      %p110 = scmp.ne.s32.totalorder %s101, %s102
      %p111 = scmp.eq.s32.totalorder %s23, 0
      %p112 = por %p110, %p111
      %p113 = scmp.ne.s32.totalorder %s101, %s102
      %p114 = scmp.eq.s32.totalorder %s24, 1
      %p115 = por %p113, %p114
      %p117 = scmp.ne.s32.totalorder %s102, %s116
      %p118 = scmp.eq.s32.totalorder %s24, 0
      %p119 = por %p117, %p118
      %s121 = sadd.s32 %s120, 1
      %p124 = scmp.eq.s32.totalorder %s18, 1
      %p125 = scmp.ne.s32.totalorder %s120, %s122
      %p126 = scmp.eq.s32.totalorder %s18, 0
      %p127 = por %p125, %p126
      %p128 = scmp.ne.s32.totalorder %s120, %s122
      %p129 = scmp.eq.s32.totalorder %s23, 1
      %p130 = por %p128, %p129
      %p131 = scmp.ne.s32.totalorder %s122, %s123
      %p132 = scmp.eq.s32.totalorder %s23, 0
      %p133 = por %p131, %p132
      %p134 = scmp.ne.s32.totalorder %s122, %s123
      %p135 = scmp.eq.s32.totalorder %s24, 1
      %p136 = por %p134, %p135
      %p138 = scmp.ne.s32.totalorder %s123, %s137
      %p139 = scmp.eq.s32.totalorder %s24, 0
      %p140 = por %p138, %p139
      %s141 = ssub.s32 %s18, %s25
      %p142 = scmp.eq.s32.totalorder %s141, 0
      %s144 = sadd.s32 %s143, 1
      %s145 = scalar_select %p142, %s143, %s144
      %p148 = pneg %p142
      %p149 = scmp.eq.s32.totalorder %s18, 1
      %p150 = por %p148, %p149
      %p151 = scmp.ne.s32.totalorder %s143, %s146
      %p152 = scmp.eq.s32.totalorder %s18, 0
      %p153 = por %p151, %p152
      %p154 = scmp.ne.s32.totalorder %s143, %s146
      %p155 = scmp.eq.s32.totalorder %s23, 1
      %p156 = por %p154, %p155
      %p157 = scmp.ne.s32.totalorder %s146, %s147
      %p158 = scmp.eq.s32.totalorder %s23, 0
      %p159 = por %p157, %p158
      %p160 = scmp.ne.s32.totalorder %s146, %s147
      %p161 = scmp.eq.s32.totalorder %s24, 1
      %p162 = por %p160, %p161
      %p164 = scmp.ne.s32.totalorder %s147, %s163
      %p165 = scmp.eq.s32.totalorder %s24, 0
      %p166 = por %p164, %p165
      %s168 = sadd.s32 %s167, 1
      %p171 = scmp.eq.s32.totalorder %s18, 1
      %p172 = scmp.ne.s32.totalorder %s167, %s169
      %p173 = scmp.eq.s32.totalorder %s18, 0
      %p174 = por %p172, %p173
      %p175 = scmp.ne.s32.totalorder %s167, %s169
      %p176 = scmp.eq.s32.totalorder %s23, 1
      %p177 = por %p175, %p176
      %p178 = scmp.ne.s32.totalorder %s169, %s170
      %p179 = scmp.eq.s32.totalorder %s23, 0
      %p180 = por %p178, %p179
      %p181 = scmp.ne.s32.totalorder %s169, %s170
      %p182 = scmp.eq.s32.totalorder %s24, 1
      %p183 = por %p181, %p182
      %p185 = scmp.ne.s32.totalorder %s170, %s184
      %p186 = scmp.eq.s32.totalorder %s24, 0
      %p187 = por %p185, %p186
      %s189 = sadd.s32 %s188, 1
      %p192 = scmp.eq.s32.totalorder %s18, 1
      %p193 = scmp.ne.s32.totalorder %s188, %s190
      %p194 = scmp.eq.s32.totalorder %s18, 0
      %p195 = por %p193, %p194
      %p196 = scmp.ne.s32.totalorder %s188, %s190
      %p197 = scmp.eq.s32.totalorder %s23, 1
      %p198 = por %p196, %p197
      %p199 = scmp.ne.s32.totalorder %s190, %s191
      %p200 = scmp.eq.s32.totalorder %s23, 0
      %p201 = por %p199, %p200
      %p202 = scmp.ne.s32.totalorder %s190, %s191
      %p203 = scmp.eq.s32.totalorder %s24, 1
      %p204 = por %p202, %p203
      %p206 = scmp.ne.s32.totalorder %s191, %s205
      %p207 = scmp.eq.s32.totalorder %s24, 0
      %p208 = por %p206, %p207
      %s209 = ssub.s32 %s18, %s25
      %p210 = scmp.eq.s32.totalorder %s209, 0
      %s212 = sadd.s32 %s211, 1
      %s213 = scalar_select %p210, %s211, %s212
      %p216 = pneg %p210
      %p217 = scmp.eq.s32.totalorder %s18, 1
      %p218 = por %p216, %p217
      %p219 = scmp.ne.s32.totalorder %s211, %s214
      %p220 = scmp.eq.s32.totalorder %s18, 0
      %p221 = por %p219, %p220
      %p222 = scmp.ne.s32.totalorder %s211, %s214
      %p223 = scmp.eq.s32.totalorder %s23, 1
      %p224 = por %p222, %p223
      %p225 = scmp.ne.s32.totalorder %s214, %s215
      %p226 = scmp.eq.s32.totalorder %s23, 0
      %p227 = por %p225, %p226
      %p228 = scmp.ne.s32.totalorder %s214, %s215
      %p229 = scmp.eq.s32.totalorder %s24, 1
      %p230 = por %p228, %p229
      %p232 = scmp.ne.s32.totalorder %s215, %s231
      %p233 = scmp.eq.s32.totalorder %s24, 0
      %p234 = por %p232, %p233
      %s236 = sadd.s32 %s235, 1
      %p239 = scmp.eq.s32.totalorder %s18, 1
      %p240 = scmp.ne.s32.totalorder %s235, %s237
      %p241 = scmp.eq.s32.totalorder %s18, 0
      %p242 = por %p240, %p241
      %p243 = scmp.ne.s32.totalorder %s235, %s237
      %p244 = scmp.eq.s32.totalorder %s23, 1
      %p245 = por %p243, %p244
      %p246 = scmp.ne.s32.totalorder %s237, %s238
      %p247 = scmp.eq.s32.totalorder %s23, 0
      %p248 = por %p246, %p247
      %p249 = scmp.ne.s32.totalorder %s237, %s238
      %p250 = scmp.eq.s32.totalorder %s24, 1
      %p251 = por %p249, %p250
      %p253 = scmp.ne.s32.totalorder %s238, %s252
      %p254 = scmp.eq.s32.totalorder %s24, 0
      %p255 = por %p253, %p254
      %s257 = sadd.s32 %s256, 1
      %p260 = scmp.eq.s32.totalorder %s18, 1
      %p261 = scmp.ne.s32.totalorder %s256, %s258
      %p262 = scmp.eq.s32.totalorder %s18, 0
      %p263 = por %p261, %p262
      %p264 = scmp.ne.s32.totalorder %s256, %s258
      %p265 = scmp.eq.s32.totalorder %s23, 1
      %p266 = por %p264, %p265
      %p267 = scmp.ne.s32.totalorder %s258, %s259
      %p268 = scmp.eq.s32.totalorder %s23, 0
      %p269 = por %p267, %p268
      %p270 = scmp.ne.s32.totalorder %s258, %s259
      %p271 = scmp.eq.s32.totalorder %s24, 1
      %p272 = por %p270, %p271
      %p274 = scmp.ne.s32.totalorder %s259, %s273
      %p275 = scmp.eq.s32.totalorder %s24, 0
      %p276 = por %p274, %p275
      %s277 = ssub.s32 %s18, %s25
      %p278 = scmp.eq.s32.totalorder %s277, 0
      %s280 = sadd.s32 %s279, 1
      %s281 = scalar_select %p278, %s279, %s280
      %p284 = pneg %p278
      %p285 = scmp.eq.s32.totalorder %s18, 1
      %p286 = por %p284, %p285
      %p287 = scmp.ne.s32.totalorder %s279, %s282
      %p288 = scmp.eq.s32.totalorder %s18, 0
      %p289 = por %p287, %p288
      %p290 = scmp.ne.s32.totalorder %s279, %s282
      %p291 = scmp.eq.s32.totalorder %s23, 1
      %p292 = por %p290, %p291
      %p293 = scmp.ne.s32.totalorder %s282, %s283
      %p294 = scmp.eq.s32.totalorder %s23, 0
      %p295 = por %p293, %p294
      %p296 = scmp.ne.s32.totalorder %s282, %s283
      %p297 = scmp.eq.s32.totalorder %s24, 1
      %p298 = por %p296, %p297
      %p300 = scmp.ne.s32.totalorder %s283, %s299
      %p301 = scmp.eq.s32.totalorder %s24, 0
      %p302 = por %p300, %p301
      %p303 = scmp.le.s32.totalorder 1, %s18
      %p304 = scmp.lt.s32.totalorder %s18, 3
      %p305 = pnand %p303, %p304
      %p306 = pneg %p305
      // Predicated region
      $region9: #{encoder_forward.3} parent=5 // pred_check
        _
      $region10: #{encoder_forward.3} parent=5 // pred_check_branch
        %308 = sbr.rel (%p305) target = $region12
      $region11: #{encoder_forward.3} parent=5 // pred_region
        %s309 = ssub.s32 %s18, 1
        // Predicated region
        $region13: #{encoder_forward.3} parent=11 // pred_check
          %p310 = pneg %p39
        $region14: #{encoder_forward.3} parent=11 // pred_check_branch
          %312 = sbr.rel (%p310) target = $region16
        $region15: #{encoder_forward.3} parent=11 // pred_region
          %314 = vsyncadd [#allocation3], 0
          %s316 = sshll.u32 %s0, 4
          %s317 = int_to_ptr.vmem [resolvable:$true] %s316
          %319 = dma.vmem_to_smem %s317, 16, [#allocation2], [#allocation3]
        $region16: #{encoder_forward.3} parent=11 // pred_fallthru
          _
        // Predicated region
        $region17: #{encoder_forward.3} parent=11 // pred_check
          %p320 = pneg %p112
        $region18: #{encoder_forward.3} parent=11 // pred_check_branch
          %322 = sbr.rel (%p320) target = $region20
        $region19: #{encoder_forward.3} parent=11 // pred_region
          _
        $region20: #{encoder_forward.3} parent=11 // pred_fallthru
          _
        // Predicated region
        $region21: #{encoder_forward.3} parent=11 // pred_check
          %p323 = pneg %p133
        $region22: #{encoder_forward.3} parent=11 // pred_check_branch
          %325 = sbr.rel (%p323) target = $region24
        $region23: #{encoder_forward.3} parent=11 // pred_region
          _
        $region24: #{encoder_forward.3} parent=11 // pred_fallthru
          _
        // Predicated region
        $region25: #{encoder_forward.3} parent=11 // pred_check
          %p326 = pneg %p180
        $region26: #{encoder_forward.3} parent=11 // pred_check_branch
          %328 = sbr.rel (%p326) target = $region28
        $region27: #{encoder_forward.3} parent=11 // pred_region
          _
        $region28: #{encoder_forward.3} parent=11 // pred_fallthru
          _
        // Predicated region
        $region29: #{encoder_forward.3} parent=11 // pred_check
          %p329 = pneg %p201
        $region30: #{encoder_forward.3} parent=11 // pred_check_branch
          %331 = sbr.rel (%p329) target = $region32
        $region31: #{encoder_forward.3} parent=11 // pred_region
          _
        $region32: #{encoder_forward.3} parent=11 // pred_fallthru
          _
        // Predicated region
        $region33: #{encoder_forward.3} parent=11 // pred_check
          %p332 = pneg %p248
        $region34: #{encoder_forward.3} parent=11 // pred_check_branch
          %334 = sbr.rel (%p332) target = $region36
        $region35: #{encoder_forward.3} parent=11 // pred_region
          _
        $region36: #{encoder_forward.3} parent=11 // pred_fallthru
          _
        // Predicated region
        $region37: #{encoder_forward.3} parent=11 // pred_check
          %p335 = pneg %p269
        $region38: #{encoder_forward.3} parent=11 // pred_check_branch
          %337 = sbr.rel (%p335) target = $region40
        $region39: #{encoder_forward.3} parent=11 // pred_region
          _
        $region40: #{encoder_forward.3} parent=11 // pred_fallthru
          _
      $region12: #{encoder_forward.3} parent=5 // pred_fallthru
        _
      %p338 = scmp.lt.s32.totalorder %s18, 2
      // Predicated region
      $region41: #{encoder_forward.3} parent=5 // pred_check
        %p339 = pneg %p338
      $region42: #{encoder_forward.3} parent=5 // pred_check_branch
        %341 = sbr.rel (%p339) target = $region44
      $region43: #{encoder_forward.3} parent=5 // pred_region
        // Predicated region
        $region45: #{encoder_forward.3} parent=43 // pred_check
          %p342 = pneg %p59
        $region46: #{encoder_forward.3} parent=43 // pred_check_branch
          %344 = sbr.rel (%p342) target = $region48
        $region47: #{encoder_forward.3} parent=43 // pred_region
          %s345 = smul.u32 2, %s18
          %p346 = scmp.lt.s32.totalorder %s345, 3
          %s347 = scalar_select %p346, %s345, 3
          %s348 = smul.addr %s347, 8
          %s349 = scalar_lea.vmem %s1, %s348
          %s350 = smul.u32 2, %s18
        $region48: #{encoder_forward.3} parent=43 // pred_fallthru
          _
        // Predicated region
        $region49: #{encoder_forward.3} parent=43 // pred_check
          %p351 = pneg %p85
        $region50: #{encoder_forward.3} parent=43 // pred_check_branch
          %353 = sbr.rel (%p351) target = $region52
        $region51: #{encoder_forward.3} parent=43 // pred_region
          %s354 = smul.u32 2, %s18
          %p355 = scmp.lt.s32.totalorder %s354, 3
          %s356 = scalar_select %p355, %s354, 3
          %s357 = smul.addr %s356, 4
          %s358 = scalar_lea.vmem %s2, %s357
          %s359 = smul.u32 2, %s18
        $region52: #{encoder_forward.3} parent=43 // pred_fallthru
          _
        // Predicated region
        $region53: #{encoder_forward.3} parent=43 // pred_check
          %p360 = pneg %p153
        $region54: #{encoder_forward.3} parent=43 // pred_check_branch
          %362 = sbr.rel (%p360) target = $region56
        $region55: #{encoder_forward.3} parent=43 // pred_region
          %s363 = smul.u32 2, %s18
          %p364 = scmp.lt.s32.totalorder %s363, 3
          %s365 = scalar_select %p364, %s363, 3
          %s366 = smul.addr %s365, 4
          %s367 = scalar_lea.vmem %s5, %s366
          %s368 = smul.u32 2, %s18
        $region56: #{encoder_forward.3} parent=43 // pred_fallthru
          _
        // Predicated region
        $region57: #{encoder_forward.3} parent=43 // pred_check
          %p369 = pneg %p221
        $region58: #{encoder_forward.3} parent=43 // pred_check_branch
          %371 = sbr.rel (%p369) target = $region60
        $region59: #{encoder_forward.3} parent=43 // pred_region
          %s372 = smul.u32 2, %s18
          %p373 = scmp.lt.s32.totalorder %s372, 3
          %s374 = scalar_select %p373, %s372, 3
          %s375 = smul.addr %s374, 4
          %s376 = scalar_lea.vmem %s8, %s375
          %s377 = smul.u32 2, %s18
        $region60: #{encoder_forward.3} parent=43 // pred_fallthru
          _
      $region44: #{encoder_forward.3} parent=5 // pred_fallthru
        _
      %p378 = scmp.le.s32.totalorder 1, %s18
      %p379 = scmp.lt.s32.totalorder %s18, 3
      %p380 = pnand %p378, %p379
      %p381 = pneg %p380
      // Predicated region
      $region61: #{encoder_forward.3} parent=5 // pred_check
        _
      $region62: #{encoder_forward.3} parent=5 // pred_check_branch
        %383 = sbr.rel (%p380) target = $region64
      $region63: #{encoder_forward.3} parent=5 // pred_region
        %s384 = ssub.s32 %s18, 1
        // Predicated region
        $region65: #{encoder_forward.3} parent=63 // pred_check
          %p385 = pneg %p39
        $region66: #{encoder_forward.3} parent=63 // pred_check_branch
          %387 = sbr.rel (%p385) target = $region68
        $region67: #{encoder_forward.3} parent=63 // pred_region
          %389 = dma.done [#allocation3], 16
        $region68: #{encoder_forward.3} parent=63 // pred_fallthru
          _
        %390 = sfence
        %p391 = pneg %p39
        %p392 = pneg %p36
        %s393 = smul.u32 2, %s23
        %p394 = scmp.lt.s32.totalorder %s393, 3
        %s395 = scalar_select %p394, %s393, 3
        %s396 = smul.addr %s395, 8
        %s397 = scalar_lea.vmem %s1, %s396
        %p398 = pneg %p65
        %p399 = pneg %p62
        %s400 = smul.u32 2, %s23
        %p401 = scmp.lt.s32.totalorder %s400, 3
        %s402 = scalar_select %p401, %s400, 3
        %s403 = smul.addr %s402, 4
        %s404 = scalar_lea.vmem %s2, %s403
        %p405 = pneg %p91
        %p406 = pneg %p88
        %p407 = pneg %p112
        %p408 = pneg %p109
        %p409 = pneg %p133
        %p410 = pneg %p130
        %s411 = smul.u32 2, %s23
        %p412 = scmp.lt.s32.totalorder %s411, 3
        %s413 = scalar_select %p412, %s411, 3
        %s414 = smul.addr %s413, 4
        %s415 = scalar_lea.vmem %s5, %s414
        %p416 = pneg %p159
        %p417 = pneg %p156
        %p418 = pneg %p180
        %p419 = pneg %p177
        %p420 = pneg %p201
        %p421 = pneg %p198
        %s422 = smul.u32 2, %s23
        %p423 = scmp.lt.s32.totalorder %s422, 3
        %s424 = scalar_select %p423, %s422, 3
        %s425 = smul.addr %s424, 4
        %s426 = scalar_lea.vmem %s8, %s425
        %p427 = pneg %p227
        %p428 = pneg %p224
        %p429 = pneg %p248
        %p430 = pneg %p245
        %p431 = pneg %p269
        %p432 = pneg %p266
        %p433 = pneg %p295
        %p434 = pneg %p292
        %s435 = smul.u32 2, %s23
        %p436 = scmp.lt.s32.totalorder %s435, 3
        %s437 = scalar_select %p436, %s435, 3
        %s438 = smul.addr %s437, 8
        %s439 = scalar_lea.vmem %s11, %s438
        %s440 = smul.u32 2, %s23
        %p441 = scmp.lt.s32.totalorder %s440, 3
        %s442 = scalar_select %p441, %s440, 3
        %s443 = smul.addr %s442, 8
        %s444 = scalar_lea.vmem %s1, %s443
        %s445 = smul.u32 2, %s23
        %s446 = smul.u32 2, %s23
        %p447 = scmp.lt.s32.totalorder %s446, 3
        %s448 = scalar_select %p447, %s446, 3
        %s449 = smul.addr %s448, 4
        %s450 = scalar_lea.vmem %s2, %s449
        %s451 = smul.u32 2, %s23
        %s452 = smul.u32 2, %s23
        %p453 = scmp.lt.s32.totalorder %s452, 3
        %s454 = scalar_select %p453, %s452, 3
        %s455 = smul.addr %s454, 4
        %s456 = scalar_lea.vmem %s5, %s455
        %s457 = smul.u32 2, %s23
        %s458 = smul.u32 2, %s23
        %p459 = scmp.lt.s32.totalorder %s458, 3
        %s460 = scalar_select %p459, %s458, 3
        %s461 = smul.addr %s460, 4
        %s462 = scalar_lea.vmem %s8, %s461
        %s463 = smul.u32 2, %s23
        %s464 = smul.u32 2, %s23
        %p465 = scmp.lt.s32.totalorder %s464, 3
        %s466 = scalar_select %p465, %s464, 3
        %s467 = smul.addr %s466, 8
        %s468 = scalar_lea.vmem %s11, %s467
        %s469 = smul.u32 2, %s23
        %v470 = vld [vmem:[%s444] sm:$0xff]
        %v471 = vld [vmem:[%s444 + $0x8] sm:$0xff]
        %v472 = vld [vmem:[%s450] sm:$0xf]
        %v473 = vld [vmem:[%s450 + $0x4] sm:$0xf]
        %v474 = vld [vmem:[%s3] sm:$0x1]
        %v475 = vunpack.c.l.bf16 %v472
        %v476 = vunpack.c.l.bf16 %v473
        %v478 = vperm.slane %v474, 0
        %v480 = vmul.f32 %v475, %v478
        %v481 = vmul.f32 %v476, %v478
        %v482 = vld [vmem:[%s4] sm:$0x1]
        %v484 = vperm.slane %v482, 0
        %v486 = vadd.f32 %v480, %v484
        %v487 = vadd.f32 %v481, %v484
        %v488 = vmax.f32 %v486, 0.0
        %v489 = vmax.f32 %v487, 0.0
        %v490 = vadd.f32 %v470, %v488
        %v491 = vadd.f32 %v471, %v489
        %v492 = vld [vmem:[%s456] sm:$0xf]
        %v493 = vld [vmem:[%s456 + $0x4] sm:$0xf]
        %v494 = vld [vmem:[%s6] sm:$0x1]
        %v495 = vunpack.c.l.bf16 %v492
        %v496 = vunpack.c.l.bf16 %v493
        %v498 = vperm.slane %v494, 0
        %v500 = vmul.f32 %v495, %v498
        %v501 = vmul.f32 %v496, %v498
        %v502 = vld [vmem:[%s7] sm:$0x1]
        %v504 = vperm.slane %v502, 0
        %v506 = vadd.f32 %v500, %v504
        %v507 = vadd.f32 %v501, %v504
        %v508 = vmax.f32 %v506, 0.0
        %v509 = vmax.f32 %v507, 0.0
        %v510 = vadd.f32 %v470, %v508
        %v511 = vadd.f32 %v471, %v509
        %v512 = vld [vmem:[%s462] sm:$0xf]
        %v513 = vld [vmem:[%s462 + $0x4] sm:$0xf]
        %v514 = vld [vmem:[%s9] sm:$0x1]
        %v515 = vunpack.c.l.bf16 %v512
        %v516 = vunpack.c.l.bf16 %v513
        %v518 = vperm.slane %v514, 0
        %v520 = vmul.f32 %v515, %v518
        %v521 = vmul.f32 %v516, %v518
        %v522 = vld [vmem:[%s10] sm:$0x1]
        %v524 = vperm.slane %v522, 0
        %v526 = vadd.f32 %v520, %v524
        %v527 = vadd.f32 %v521, %v524
        %v528 = vmax.f32 %v526, 0.0
        %v529 = vmax.f32 %v527, 0.0
        %v530 = vadd.f32 %v470, %v528
        %v531 = vadd.f32 %v471, %v529
        %s532 = sld [smem:[#allocation2]]
        %v533 = vstv %s532
        %v534 = vmul.f32 %v533, %v490
        %v535 = vmul.f32 %v533, %v491
        %s536 = sld [smem:[#allocation2 + $0x1]]
        %v537 = vstv %s536
        %v538 = vmul.f32 %v537, %v510
        %v539 = vmul.f32 %v537, %v511
        %v540 = vadd.f32 %v534, %v538
        %v541 = vadd.f32 %v535, %v539
        %s542 = sld [smem:[#allocation2 + $0x2]]
        %v543 = vstv %s542
        %v544 = vmul.f32 %v543, %v530
        %v545 = vmul.f32 %v543, %v531
        %v546 = vadd.f32 %v540, %v544
        %v547 = vadd.f32 %v541, %v545
        %548 = vst [vmem:[%s468] sm:$0xff] %v546
        %549 = vst [vmem:[%s468 + $0x8] sm:$0xff] %v547
        %s550 = smul.u32 2, %s23
        %p551 = scmp.lt.s32.totalorder %s550, 3
        %s552 = scalar_select %p551, %s550, 3
        %s553 = smul.addr %s552, 8
        %s554 = scalar_lea.vmem %s11, %s553
        // Predicated region
        $region69: #{encoder_forward.3} parent=63 // pred_check
          %p555 = pneg %p292
        $region70: #{encoder_forward.3} parent=63 // pred_check_branch
          %557 = sbr.rel (%p555) target = $region72
        $region71: #{encoder_forward.3} parent=63 // pred_region
          %s558 = smul.u32 2, %s23
        $region72: #{encoder_forward.3} parent=63 // pred_fallthru
          _
      $region64: #{encoder_forward.3} parent=5 // pred_fallthru
        _
      %p559 = scmp.le.s32.totalorder 2, %s18
      // Predicated region
      $region73: #{encoder_forward.3} parent=5 // pred_check
        %p560 = pneg %p559
      $region74: #{encoder_forward.3} parent=5 // pred_check_branch
        %562 = sbr.rel (%p560) target = $region76
      $region75: #{encoder_forward.3} parent=5 // pred_region
        %s563 = ssub.s32 %s18, 2
        // Predicated region
        $region77: #{encoder_forward.3} parent=75 // pred_check
          %p564 = pneg %p298
        $region78: #{encoder_forward.3} parent=75 // pred_check_branch
          %566 = sbr.rel (%p564) target = $region80
        $region79: #{encoder_forward.3} parent=75 // pred_region
          %s567 = smul.u32 2, %s24
          %p568 = scmp.lt.s32.totalorder %s567, 3
          %s569 = scalar_select %p568, %s567, 3
          %s570 = smul.addr %s569, 8
          %s571 = scalar_lea.vmem %s11, %s570
        $region80: #{encoder_forward.3} parent=75 // pred_fallthru
          _
      $region76: #{encoder_forward.3} parent=5 // pred_fallthru
        _
    $region6: #{encoder_forward.3} parent=1 // loop_footer
      %s22 = sadd.s32 1, %s18
    $region7: #{encoder_forward.3} parent=1 // loop_footer_branch
      %17 = sbr.rel target = $region3
    $region8: #{encoder_forward.3} parent=1 // loop_exit
      _
    %572 = vsyncpa [#allocation3], 1
    %s573 = scalar_lea.sflag [#allocation3], 1
    %574 = vsyncpa %s573, 1

// kernel: encoder_forward.2
$region0: #{encoder_forward.2}
  #allocation0 [shape = 'u32[]', space=smem, size = 0x4, offset = 0x4, fixed_abs, tag = 'smem constant byte address 0x4 - core index']
  #allocation1 [shape = 'u32[72,128]{1,0:T(1,128)}', space=vmem, size = 0x9000, scoped, tag = 'internal scratch']
  %s0 = inlined_call_operand.vmem [shape: bf16[1024,36], index: 0, kind: input, shape index: {}]
  %s1 = inlined_call_operand.vmem [shape: bf16[36,28], index: 1, kind: input, shape index: {}]
  %s2 = inlined_call_operand.vmem [shape: f32[1,28], index: 2, kind: input, shape index: {}]
  %s3 = inlined_call_operand.vmem [shape: bf16[1024,4], index: 3, kind: output, shape index: {0}]
  %s4 = inlined_call_operand.vmem [shape: bf16[1024,4], index: 4, kind: output, shape index: {1}]
  %s5 = inlined_call_operand.vmem [shape: bf16[1024,4], index: 5, kind: output, shape index: {2}]
  %s6 = inlined_call_operand.vmem [shape: f32[2,6,4], index: 6, kind: output, shape index: {3}]
  %7 = xla_tuple %s3, %s4, %s5, %s6
  %s8 = sld [smem:[#allocation0]]
  $region69: #{encoder_forward.2} parent=0
    _
  %s10 = ssub.s32 1, %s8
  %s11 = scalar_select 0, %s10, %s8
  loop: start=0, step=1, limit=4
  $region2: #{encoder_forward.2} parent=0 // loop_pre_header
    _
  $region3: #{encoder_forward.2} parent=0 // loop_header
    %s13 = sphi 0, %s17
    %p14 = scmp.ge.s32.totalorder %s13, 4
    %s23 = sphi 0, %s25
    %s26 = sphi 0, %s23
    %s27 = sphi 0, %s26
    %s43 = sphi 0, %s27
    %s47 = sphi 0, %s47
    %s49 = sphi 0, %s47
    %s50 = sphi 0, %s49
    %s64 = sphi 0, %s50
    %s68 = sphi 0, %s68
    %s70 = sphi 0, %s68
    %s71 = sphi 0, %s70
    %s85 = sphi 0, %s71
    %s91 = sphi 0, %s93
    %s94 = sphi 0, %s91
    %s95 = sphi 0, %s94
    %s111 = sphi 0, %s95
    %s117 = sphi 0, %s119
    %s120 = sphi 0, %s117
    %s121 = sphi 0, %s120
    %s137 = sphi 0, %s121
    %s143 = sphi 0, %s145
    %s146 = sphi 0, %s143
    %s147 = sphi 0, %s146
    %s163 = sphi 0, %s147
    %s169 = sphi 0, %s171
    %s172 = sphi 0, %s169
    %s173 = sphi 0, %s172
    %s189 = sphi 0, %s173
  $region4: #{encoder_forward.2} parent=0 // loop_header_branch
    %16 = sbr.rel (%p14) target = $region8
  $region5: #{encoder_forward.2} parent=0 // loop_body
    %s18 = ssub.s32 %s13, 1
    %s19 = ssub.s32 %s13, 2
    %s20 = sadd.s32 %s13, 1
    %s21 = ssub.s32 %s13, %s20
    %p22 = scmp.eq.s32.totalorder %s21, 0
    %s24 = sadd.s32 %s23, 1
    %s25 = scalar_select %p22, %s23, %s24
    %p28 = pneg %p22
    %p29 = scmp.eq.s32.totalorder %s13, 1
    %p30 = por %p28, %p29
    %p31 = scmp.ne.s32.totalorder %s23, %s26
    %p32 = scmp.eq.s32.totalorder %s13, 0
    %p33 = por %p31, %p32
    %p34 = scmp.ne.s32.totalorder %s23, %s26
    %p35 = scmp.eq.s32.totalorder %s18, 1
    %p36 = por %p34, %p35
    %p37 = scmp.ne.s32.totalorder %s26, %s27
    %p38 = scmp.eq.s32.totalorder %s18, 0
    %p39 = por %p37, %p38
    %p40 = scmp.ne.s32.totalorder %s26, %s27
    %p41 = scmp.eq.s32.totalorder %s19, 1
    %p42 = por %p40, %p41
    %p44 = scmp.ne.s32.totalorder %s27, %s43
    %p45 = scmp.eq.s32.totalorder %s19, 0
    %p46 = por %p44, %p45
    %s48 = sadd.s32 %s47, 1
    %p51 = scmp.eq.s32.totalorder %s13, 1
    %p52 = scmp.ne.s32.totalorder %s47, %s49
    %p53 = scmp.eq.s32.totalorder %s13, 0
    %p54 = por %p52, %p53
    %p55 = scmp.ne.s32.totalorder %s47, %s49
    %p56 = scmp.eq.s32.totalorder %s18, 1
    %p57 = por %p55, %p56
    %p58 = scmp.ne.s32.totalorder %s49, %s50
    %p59 = scmp.eq.s32.totalorder %s18, 0
    %p60 = por %p58, %p59
    %p61 = scmp.ne.s32.totalorder %s49, %s50
    %p62 = scmp.eq.s32.totalorder %s19, 1
    %p63 = por %p61, %p62
    %p65 = scmp.ne.s32.totalorder %s50, %s64
    %p66 = scmp.eq.s32.totalorder %s19, 0
    %p67 = por %p65, %p66
    %s69 = sadd.s32 %s68, 1
    %p72 = scmp.eq.s32.totalorder %s13, 1
    %p73 = scmp.ne.s32.totalorder %s68, %s70
    %p74 = scmp.eq.s32.totalorder %s13, 0
    %p75 = por %p73, %p74
    %p76 = scmp.ne.s32.totalorder %s68, %s70
    %p77 = scmp.eq.s32.totalorder %s18, 1
    %p78 = por %p76, %p77
    %p79 = scmp.ne.s32.totalorder %s70, %s71
    %p80 = scmp.eq.s32.totalorder %s18, 0
    %p81 = por %p79, %p80
    %p82 = scmp.ne.s32.totalorder %s70, %s71
    %p83 = scmp.eq.s32.totalorder %s19, 1
    %p84 = por %p82, %p83
    %p86 = scmp.ne.s32.totalorder %s71, %s85
    %p87 = scmp.eq.s32.totalorder %s19, 0
    %p88 = por %p86, %p87
    %s89 = ssub.s32 %s13, %s20
    %p90 = scmp.eq.s32.totalorder %s89, 0
    %s92 = sadd.s32 %s91, 1
    %s93 = scalar_select %p90, %s91, %s92
    %p96 = pneg %p90
    %p97 = scmp.eq.s32.totalorder %s13, 1
    %p98 = por %p96, %p97
    %p99 = scmp.ne.s32.totalorder %s91, %s94
    %p100 = scmp.eq.s32.totalorder %s13, 0
    %p101 = por %p99, %p100
    %p102 = scmp.ne.s32.totalorder %s91, %s94
    %p103 = scmp.eq.s32.totalorder %s18, 1
    %p104 = por %p102, %p103
    %p105 = scmp.ne.s32.totalorder %s94, %s95
    %p106 = scmp.eq.s32.totalorder %s18, 0
    %p107 = por %p105, %p106
    %p108 = scmp.ne.s32.totalorder %s94, %s95
    %p109 = scmp.eq.s32.totalorder %s19, 1
    %p110 = por %p108, %p109
    %p112 = scmp.ne.s32.totalorder %s95, %s111
    %p113 = scmp.eq.s32.totalorder %s19, 0
    %p114 = por %p112, %p113
    %s115 = ssub.s32 %s13, %s20
    %p116 = scmp.eq.s32.totalorder %s115, 0
    %s118 = sadd.s32 %s117, 1
    %s119 = scalar_select %p116, %s117, %s118
    %p122 = pneg %p116
    %p123 = scmp.eq.s32.totalorder %s13, 1
    %p124 = por %p122, %p123
    %p125 = scmp.ne.s32.totalorder %s117, %s120
    %p126 = scmp.eq.s32.totalorder %s13, 0
    %p127 = por %p125, %p126
    %p128 = scmp.ne.s32.totalorder %s117, %s120
    %p129 = scmp.eq.s32.totalorder %s18, 1
    %p130 = por %p128, %p129
    %p131 = scmp.ne.s32.totalorder %s120, %s121
    %p132 = scmp.eq.s32.totalorder %s18, 0
    %p133 = por %p131, %p132
    %p134 = scmp.ne.s32.totalorder %s120, %s121
    %p135 = scmp.eq.s32.totalorder %s19, 1
    %p136 = por %p134, %p135
    %p138 = scmp.ne.s32.totalorder %s121, %s137
    %p139 = scmp.eq.s32.totalorder %s19, 0
    %p140 = por %p138, %p139
    %s141 = ssub.s32 %s13, %s20
    %p142 = scmp.eq.s32.totalorder %s141, 0
    %s144 = sadd.s32 %s143, 1
    %s145 = scalar_select %p142, %s143, %s144
    %p148 = pneg %p142
    %p149 = scmp.eq.s32.totalorder %s13, 1
    %p150 = por %p148, %p149
    %p151 = scmp.ne.s32.totalorder %s143, %s146
    %p152 = scmp.eq.s32.totalorder %s13, 0
    %p153 = por %p151, %p152
    %p154 = scmp.ne.s32.totalorder %s143, %s146
    %p155 = scmp.eq.s32.totalorder %s18, 1
    %p156 = por %p154, %p155
    %p157 = scmp.ne.s32.totalorder %s146, %s147
    %p158 = scmp.eq.s32.totalorder %s18, 0
    %p159 = por %p157, %p158
    %p160 = scmp.ne.s32.totalorder %s146, %s147
    %p161 = scmp.eq.s32.totalorder %s19, 1
    %p162 = por %p160, %p161
    %p164 = scmp.ne.s32.totalorder %s147, %s163
    %p165 = scmp.eq.s32.totalorder %s19, 0
    %p166 = por %p164, %p165
    %s167 = ssub.s32 %s13, %s20
    %p168 = scmp.eq.s32.totalorder %s167, 0
    %s170 = sadd.s32 %s169, 1
    %s171 = scalar_select %p168, %s169, %s170
    %p174 = pneg %p168
    %p175 = scmp.eq.s32.totalorder %s13, 1
    %p176 = por %p174, %p175
    %p177 = scmp.ne.s32.totalorder %s169, %s172
    %p178 = scmp.eq.s32.totalorder %s13, 0
    %p179 = por %p177, %p178
    %p180 = scmp.ne.s32.totalorder %s169, %s172
    %p181 = scmp.eq.s32.totalorder %s18, 1
    %p182 = por %p180, %p181
    %p183 = scmp.ne.s32.totalorder %s172, %s173
    %p184 = scmp.eq.s32.totalorder %s18, 0
    %p185 = por %p183, %p184
    %p186 = scmp.ne.s32.totalorder %s172, %s173
    %p187 = scmp.eq.s32.totalorder %s19, 1
    %p188 = por %p186, %p187
    %p190 = scmp.ne.s32.totalorder %s173, %s189
    %p191 = scmp.eq.s32.totalorder %s19, 0
    %p192 = por %p190, %p191
    %p193 = scmp.le.s32.totalorder 1, %s13
    %p194 = scmp.lt.s32.totalorder %s13, 3
    %p195 = pnand %p193, %p194
    %p196 = pneg %p195
    // Predicated region
    $region9: #{encoder_forward.2} parent=5 // pred_check
      _
    $region10: #{encoder_forward.2} parent=5 // pred_check_branch
      %198 = sbr.rel (%p195) target = $region12
    $region11: #{encoder_forward.2} parent=5 // pred_region
      %s199 = ssub.s32 %s13, 1
      // Predicated region
      $region13: #{encoder_forward.2} parent=11 // pred_check
        %p200 = pneg %p60
      $region14: #{encoder_forward.2} parent=11 // pred_check_branch
        %202 = sbr.rel (%p200) target = $region16
      $region15: #{encoder_forward.2} parent=11 // pred_region
        _
      $region16: #{encoder_forward.2} parent=11 // pred_fallthru
        _
      // Predicated region
      $region17: #{encoder_forward.2} parent=11 // pred_check
        %p203 = pneg %p81
      $region18: #{encoder_forward.2} parent=11 // pred_check_branch
        %205 = sbr.rel (%p203) target = $region20
      $region19: #{encoder_forward.2} parent=11 // pred_region
        _
      $region20: #{encoder_forward.2} parent=11 // pred_fallthru
        _
    $region12: #{encoder_forward.2} parent=5 // pred_fallthru
      _
    %p206 = scmp.lt.s32.totalorder %s13, 2
    // Predicated region
    $region21: #{encoder_forward.2} parent=5 // pred_check
      %p207 = pneg %p206
    $region22: #{encoder_forward.2} parent=5 // pred_check_branch
      %209 = sbr.rel (%p207) target = $region24
    $region23: #{encoder_forward.2} parent=5 // pred_region
      // Predicated region
      $region25: #{encoder_forward.2} parent=23 // pred_check
        %p210 = pneg %p33
      $region26: #{encoder_forward.2} parent=23 // pred_check_branch
        %212 = sbr.rel (%p210) target = $region28
      $region27: #{encoder_forward.2} parent=23 // pred_region
        %s213 = smul.u32 64, %s13
        %p214 = scmp.lt.s32.totalorder %s213, 127
        %s215 = scalar_select %p214, %s213, 127
        %s216 = smul.addr %s215, 4
        %s217 = scalar_lea.vmem %s0, %s216
        %s218 = smul.u32 64, %s13
      $region28: #{encoder_forward.2} parent=23 // pred_fallthru
        _
    $region24: #{encoder_forward.2} parent=5 // pred_fallthru
      _
    %p219 = scmp.le.s32.totalorder 1, %s13
    %p220 = scmp.lt.s32.totalorder %s13, 3
    %p221 = pnand %p219, %p220
    %p222 = pneg %p221
    // Predicated region
    $region29: #{encoder_forward.2} parent=5 // pred_check
      _
    $region30: #{encoder_forward.2} parent=5 // pred_check_branch
      %224 = sbr.rel (%p221) target = $region32
    $region31: #{encoder_forward.2} parent=5 // pred_region
      %s225 = ssub.s32 %s13, 1
      %s226 = smul.u32 64, %s18
      %p227 = scmp.lt.s32.totalorder %s226, 127
      %s228 = scalar_select %p227, %s226, 127
      %s229 = smul.addr %s228, 4
      %s230 = scalar_lea.vmem %s0, %s229
      %p231 = pneg %p39
      %p232 = pneg %p36
      %p233 = pneg %p60
      %p234 = pneg %p57
      %p235 = pneg %p81
      %p236 = pneg %p78
      %p237 = pneg %p107
      %p238 = pneg %p104
      %s239 = smul.u32 64, %s18
      %p240 = scmp.lt.s32.totalorder %s239, 127
      %s241 = scalar_select %p240, %s239, 127
      %s242 = smul.addr %s241, 4
      %s243 = scalar_lea.vmem %s3, %s242
      %p244 = pneg %p133
      %p245 = pneg %p130
      %s246 = smul.u32 64, %s18
      %p247 = scmp.lt.s32.totalorder %s246, 127
      %s248 = scalar_select %p247, %s246, 127
      %s249 = smul.addr %s248, 4
      %s250 = scalar_lea.vmem %s4, %s249
      %p251 = pneg %p159
      %p252 = pneg %p156
      %s253 = smul.u32 64, %s18
      %p254 = scmp.lt.s32.totalorder %s253, 127
      %s255 = scalar_select %p254, %s253, 127
      %s256 = smul.addr %s255, 4
      %s257 = scalar_lea.vmem %s5, %s256
      %p258 = pneg %p185
      %p259 = pneg %p182
      %p260 = scmp.lt.s32.totalorder %s18, 1
      %s261 = scalar_select %p260, %s18, 1
      %s262 = smul.addr %s261, 8
      %s263 = scalar_lea.vmem %s6, %s262
      %s264 = smul.u32 64, %s18
      %p265 = scmp.lt.s32.totalorder %s264, 127
      %s266 = scalar_select %p265, %s264, 127
      %s267 = smul.addr %s266, 4
      %s268 = scalar_lea.vmem %s0, %s267
      %s269 = smul.u32 64, %s18
      %s270 = smul.u32 64, %s18
      %p271 = scmp.lt.s32.totalorder %s270, 127
      %s272 = scalar_select %p271, %s270, 127
      %s273 = smul.addr %s272, 4
      %s274 = scalar_lea.vmem %s3, %s273
      %s275 = smul.u32 64, %s18
      %s276 = smul.u32 64, %s18
      %p277 = scmp.lt.s32.totalorder %s276, 127
      %s278 = scalar_select %p277, %s276, 127
      %s279 = smul.addr %s278, 4
      %s280 = scalar_lea.vmem %s4, %s279
      %s281 = smul.u32 64, %s18
      %s282 = smul.u32 64, %s18
      %p283 = scmp.lt.s32.totalorder %s282, 127
      %s284 = scalar_select %p283, %s282, 127
      %s285 = smul.addr %s284, 4
      %s286 = scalar_lea.vmem %s5, %s285
      %s287 = smul.u32 64, %s18
      %p288 = scmp.lt.s32.totalorder %s18, 1
      %s289 = scalar_select %p288, %s18, 1
      %s290 = smul.addr %s289, 8
      %s291 = scalar_lea.vmem %s6, %s290
      %v293 = vld [vmem:[%s268] sm:$0xf]
      %v294 = vld [vmem:[%s268 + $0x4] sm:$0xf]
      %v295 = vld [vmem:[%s268 + $0x8] sm:$0xf]
      %v296 = vld [vmem:[%s268 + $0xc] sm:$0xf]
      %v297 = vld [vmem:[%s268 + $0x10] sm:$0xf]
      %v298 = vld [vmem:[%s268 + $0x14] sm:$0xf]
      %v299 = vld [vmem:[%s268 + $0x18] sm:$0xf]
      %v300 = vld [vmem:[%s268 + $0x1c] sm:$0xf]
      %v301 = vld [vmem:[%s268 + $0x20] sm:$0xf]
      %v302 = vld [vmem:[%s268 + $0x24] sm:$0xf]
      %v303 = vld [vmem:[%s268 + $0x28] sm:$0xf]
      %v304 = vld [vmem:[%s268 + $0x2c] sm:$0xf]
      %v305 = vld [vmem:[%s268 + $0x30] sm:$0xf]
      %v306 = vld [vmem:[%s268 + $0x34] sm:$0xf]
      %v307 = vld [vmem:[%s268 + $0x38] sm:$0xf]
      %v308 = vld [vmem:[%s268 + $0x3c] sm:$0xf]
      %v309 = vld [vmem:[%s268 + $0x40] sm:$0xf]
      %v310 = vld [vmem:[%s268 + $0x44] sm:$0xf]
      %v311 = vld [vmem:[%s268 + $0x48] sm:$0xf]
      %v312 = vld [vmem:[%s268 + $0x4c] sm:$0xf]
      %v313 = vld [vmem:[%s268 + $0x50] sm:$0xf]
      %v314 = vld [vmem:[%s268 + $0x54] sm:$0xf]
      %v315 = vld [vmem:[%s268 + $0x58] sm:$0xf]
      %v316 = vld [vmem:[%s268 + $0x5c] sm:$0xf]
      %v317 = vld [vmem:[%s268 + $0x60] sm:$0xf]
      %v318 = vld [vmem:[%s268 + $0x64] sm:$0xf]
      %v319 = vld [vmem:[%s268 + $0x68] sm:$0xf]
      %v320 = vld [vmem:[%s268 + $0x6c] sm:$0xf]
      %v321 = vld [vmem:[%s268 + $0x70] sm:$0xf]
      %v322 = vld [vmem:[%s268 + $0x74] sm:$0xf]
      %v323 = vld [vmem:[%s268 + $0x78] sm:$0xf]
      %v324 = vld [vmem:[%s268 + $0x7c] sm:$0xf]
      %v325 = vld [vmem:[%s268 + $0x80] sm:$0xf]
      %v326 = vld [vmem:[%s268 + $0x84] sm:$0xf]
      %v327 = vld [vmem:[%s268 + $0x88] sm:$0xf]
      %v328 = vld [vmem:[%s268 + $0x8c] sm:$0xf]
      %v329 = vld [vmem:[%s268 + $0x90] sm:$0xf]
      %v330 = vld [vmem:[%s268 + $0x94] sm:$0xf]
      %v331 = vld [vmem:[%s268 + $0x98] sm:$0xf]
      %v332 = vld [vmem:[%s268 + $0x9c] sm:$0xf]
      %v333 = vld [vmem:[%s268 + $0xa0] sm:$0xf]
      %v334 = vld [vmem:[%s268 + $0xa4] sm:$0xf]
      %v335 = vld [vmem:[%s268 + $0xa8] sm:$0xf]
      %v336 = vld [vmem:[%s268 + $0xac] sm:$0xf]
      %v337 = vld [vmem:[%s268 + $0xb0] sm:$0xf]
      %v338 = vld [vmem:[%s268 + $0xb4] sm:$0xf]
      %v339 = vld [vmem:[%s268 + $0xb8] sm:$0xf]
      %v340 = vld [vmem:[%s268 + $0xbc] sm:$0xf]
      %v341 = vld [vmem:[%s268 + $0xc0] sm:$0xf]
      %v342 = vld [vmem:[%s268 + $0xc4] sm:$0xf]
      %v343 = vld [vmem:[%s268 + $0xc8] sm:$0xf]
      %v344 = vld [vmem:[%s268 + $0xcc] sm:$0xf]
      %v345 = vld [vmem:[%s268 + $0xd0] sm:$0xf]
      %v346 = vld [vmem:[%s268 + $0xd4] sm:$0xf]
      %v347 = vld [vmem:[%s268 + $0xd8] sm:$0xf]
      %v348 = vld [vmem:[%s268 + $0xdc] sm:$0xf]
      %v349 = vld [vmem:[%s268 + $0xe0] sm:$0xf]
      %v350 = vld [vmem:[%s268 + $0xe4] sm:$0xf]
      %v351 = vld [vmem:[%s268 + $0xe8] sm:$0xf]
      %v352 = vld [vmem:[%s268 + $0xec] sm:$0xf]
      %v353 = vld [vmem:[%s268 + $0xf0] sm:$0xf]
      %v354 = vld [vmem:[%s268 + $0xf4] sm:$0xf]
      %v355 = vld [vmem:[%s268 + $0xf8] sm:$0xf]
      %v356 = vld [vmem:[%s268 + $0xfc] sm:$0xf]
      %v357 = vld [vmem:[%s2] sm:$0x1]
      %v358 = vld [vmem:[%s1] sm:$0xf]
      %v359 = vld [vmem:[%s1 + $0x4] sm:$0xf]
      %v360 = vld [vmem:[%s1 + $0x8] sm:$0xf]
      %v361 = vld [vmem:[%s1 + $0xc] sm:$0xf]
      %v362 = vld [vmem:[%s1 + $0x10] sm:$0x3]
      %v364 = vperm.slane %v357, 0
      %v430 = vunpack.c.l.b16 %v293
      %v431 = vunpack.c.l.b16 %v294
      %v432 = vunpack.c.l.b16 %v295
      %v433 = vunpack.c.l.b16 %v296
      %v434 = vunpack.c.l.b16 %v297
      %v435 = vunpack.c.l.b16 %v298
      %v436 = vunpack.c.l.b16 %v299
      %v437 = vunpack.c.l.b16 %v300
      %v438 = vunpack.c.l.b16 %v301
      %v439 = vunpack.c.l.b16 %v302
      %v440 = vunpack.c.l.b16 %v303
      %v441 = vunpack.c.l.b16 %v304
      %v442 = vunpack.c.l.b16 %v305
      %v443 = vunpack.c.l.b16 %v306
      %v444 = vunpack.c.l.b16 %v307
      %v445 = vunpack.c.l.b16 %v308
      %v446 = vunpack.c.l.b16 %v309
      %v447 = vunpack.c.l.b16 %v310
      %v448 = vunpack.c.l.b16 %v311
      %v449 = vunpack.c.l.b16 %v312
      %v450 = vunpack.c.l.b16 %v313
      %v451 = vunpack.c.l.b16 %v314
      %v452 = vunpack.c.l.b16 %v315
      %v453 = vunpack.c.l.b16 %v316
      %v454 = vunpack.c.l.b16 %v317
      %v455 = vunpack.c.l.b16 %v318
      %v456 = vunpack.c.l.b16 %v319
      %v457 = vunpack.c.l.b16 %v320
      %v458 = vunpack.c.l.b16 %v321
      %v459 = vunpack.c.l.b16 %v322
      %v460 = vunpack.c.l.b16 %v323
      %v461 = vunpack.c.l.b16 %v324
      %v462 = vunpack.c.l.b16 %v325
      %v463 = vunpack.c.l.b16 %v326
      %v464 = vunpack.c.l.b16 %v327
      %v465 = vunpack.c.l.b16 %v328
      %v466 = vunpack.c.l.b16 %v329
      %v467 = vunpack.c.l.b16 %v330
      %v468 = vunpack.c.l.b16 %v331
      %v469 = vunpack.c.l.b16 %v332
      %v470 = vunpack.c.l.b16 %v333
      %v471 = vunpack.c.l.b16 %v334
      %v472 = vunpack.c.l.b16 %v335
      %v473 = vunpack.c.l.b16 %v336
      %v474 = vunpack.c.l.b16 %v337
      %v475 = vunpack.c.l.b16 %v338
      %v476 = vunpack.c.l.b16 %v339
      %v477 = vunpack.c.l.b16 %v340
      %v478 = vunpack.c.l.b16 %v341
      %v479 = vunpack.c.l.b16 %v342
      %v480 = vunpack.c.l.b16 %v343
      %v481 = vunpack.c.l.b16 %v344
      %v482 = vunpack.c.l.b16 %v345
      %v483 = vunpack.c.l.b16 %v346
      %v484 = vunpack.c.l.b16 %v347
      %v485 = vunpack.c.l.b16 %v348
      %v486 = vunpack.c.l.b16 %v349
      %v487 = vunpack.c.l.b16 %v350
      %v488 = vunpack.c.l.b16 %v351
      %v489 = vunpack.c.l.b16 %v352
      %v490 = vunpack.c.l.b16 %v353
      %v491 = vunpack.c.l.b16 %v354
      %v492 = vunpack.c.l.b16 %v355
      %v493 = vunpack.c.l.b16 %v356
      %v494 = vpack.c.b16 %v431, %v430
      %v495 = vpack.c.b16 %v433, %v432
      %v496 = vpack.c.b16 %v435, %v434
      %v497 = vpack.c.b16 %v437, %v436
      %v498 = vpack.c.b16 %v439, %v438
      %v499 = vpack.c.b16 %v441, %v440
      %v500 = vpack.c.b16 %v443, %v442
      %v501 = vpack.c.b16 %v445, %v444
      %v502 = vpack.c.b16 %v447, %v446
      %v503 = vpack.c.b16 %v449, %v448
      %v504 = vpack.c.b16 %v451, %v450
      %v505 = vpack.c.b16 %v453, %v452
      %v506 = vpack.c.b16 %v455, %v454
      %v507 = vpack.c.b16 %v457, %v456
      %v508 = vpack.c.b16 %v459, %v458
      %v509 = vpack.c.b16 %v461, %v460
      %v510 = vpack.c.b16 %v463, %v462
      %v511 = vpack.c.b16 %v465, %v464
      %v512 = vpack.c.b16 %v467, %v466
      %v513 = vpack.c.b16 %v469, %v468
      %v514 = vpack.c.b16 %v471, %v470
      %v515 = vpack.c.b16 %v473, %v472
      %v516 = vpack.c.b16 %v475, %v474
      %v517 = vpack.c.b16 %v477, %v476
      %v518 = vpack.c.b16 %v479, %v478
      %v519 = vpack.c.b16 %v481, %v480
      %v520 = vpack.c.b16 %v483, %v482
      %v521 = vpack.c.b16 %v485, %v484
      %v522 = vpack.c.b16 %v487, %v486
      %v523 = vpack.c.b16 %v489, %v488
      %v524 = vpack.c.b16 %v491, %v490
      %v525 = vpack.c.b16 %v493, %v492
      %v531 = vunpack.c.l.b16 %v358
      %v532 = vunpack.c.l.b16 %v359
      %v533 = vunpack.c.l.b16 %v360
      %v534 = vunpack.c.l.b16 %v361
      %v535 = vunpack.c.l.b16 %v362
      %v536 = vpack.c.b16 %v532, %v531
      %v537 = vpack.c.b16 %v534, %v533
      %v538 = vpack.c.b16 %v535, %v535
      %vm541 = vcmask 293888
      %v543 = vsel %vm541, %v494, 0
      %v546 = vsel %vm541, %v495, 0
      %v549 = vsel %vm541, %v496, 0
      %v552 = vsel %vm541, %v497, 0
      %v555 = vsel %vm541, %v498, 0
      %v558 = vsel %vm541, %v499, 0
      %v561 = vsel %vm541, %v500, 0
      %v564 = vsel %vm541, %v501, 0
      %v567 = vsel %vm541, %v502, 0
      %v570 = vsel %vm541, %v503, 0
      %v573 = vsel %vm541, %v504, 0
      %v576 = vsel %vm541, %v505, 0
      %v579 = vsel %vm541, %v506, 0
      %v582 = vsel %vm541, %v507, 0
      %v585 = vsel %vm541, %v508, 0
      %v588 = vsel %vm541, %v509, 0
      %v591 = vsel %vm541, %v510, 0
      %v594 = vsel %vm541, %v511, 0
      %v597 = vsel %vm541, %v512, 0
      %v600 = vsel %vm541, %v513, 0
      %v603 = vsel %vm541, %v514, 0
      %v606 = vsel %vm541, %v515, 0
      %v609 = vsel %vm541, %v516, 0
      %v612 = vsel %vm541, %v517, 0
      %v615 = vsel %vm541, %v518, 0
      %v618 = vsel %vm541, %v519, 0
      %v621 = vsel %vm541, %v520, 0
      %v624 = vsel %vm541, %v521, 0
      %v627 = vsel %vm541, %v522, 0
      %v630 = vsel %vm541, %v523, 0
      %v633 = vsel %vm541, %v524, 0
      %v636 = vsel %vm541, %v525, 0
      %vm638 = vcmask 1041408
      %v640 = vsel %vm638, %v538, 0
      %642 = vmatpush.bf16.msra.mxu0 0
      %643 = vmatpush.bf16.msra.mxu0 0
      %644 = vmatpush.bf16.msra.mxu0 0
      %645 = vmatpush.bf16.msra.mxu0 0
      %646 = vmatpush.bf16.msra.mxu0 0
      %647 = vmatpush.bf16.msra.mxu0 %v640
      %648 = vmatpush.bf16.msra.mxu0 %v537
      %649 = vmatpush.bf16.msra.mxu0 %v536
      %650 = vmatmul.bf16.gmra.mxu0 %v543
      %v651 = vpop.f32.mrf.mxu0
      %v652 = vadd.f32 %v364, %v651
      %v653 = vpop.f32.mrf.mxu0
      %v654 = vadd.f32 %v364, %v653
      %655 = vmatmul.bf16.gmra.mxu0 %v546
      %v656 = vpop.f32.mrf.mxu0
      %v657 = vadd.f32 %v364, %v656
      %v658 = vpop.f32.mrf.mxu0
      %v659 = vadd.f32 %v364, %v658
      %660 = vmatmul.bf16.gmra.mxu0 %v549
      %v661 = vpop.f32.mrf.mxu0
      %v662 = vadd.f32 %v364, %v661
      %v663 = vpop.f32.mrf.mxu0
      %v664 = vadd.f32 %v364, %v663
      %665 = vmatmul.bf16.gmra.mxu0 %v552
      %v666 = vpop.f32.mrf.mxu0
      %v667 = vadd.f32 %v364, %v666
      %v668 = vpop.f32.mrf.mxu0
      %v669 = vadd.f32 %v364, %v668
      %670 = vmatmul.bf16.gmra.mxu0 %v555
      %v671 = vpop.f32.mrf.mxu0
      %v672 = vadd.f32 %v364, %v671
      %v673 = vpop.f32.mrf.mxu0
      %v674 = vadd.f32 %v364, %v673
      %675 = vmatmul.bf16.gmra.mxu0 %v558
      %v676 = vpop.f32.mrf.mxu0
      %v677 = vadd.f32 %v364, %v676
      %v678 = vpop.f32.mrf.mxu0
      %v679 = vadd.f32 %v364, %v678
      %680 = vmatmul.bf16.gmra.mxu0 %v561
      %v681 = vpop.f32.mrf.mxu0
      %v682 = vadd.f32 %v364, %v681
      %v683 = vpop.f32.mrf.mxu0
      %v684 = vadd.f32 %v364, %v683
      %685 = vmatmul.bf16.gmra.mxu0 %v564
      %v686 = vpop.f32.mrf.mxu0
      %v687 = vadd.f32 %v364, %v686
      %v688 = vpop.f32.mrf.mxu0
      %v689 = vadd.f32 %v364, %v688
      %690 = vmatmul.bf16.gmra.mxu0 %v567
      %v691 = vpop.f32.mrf.mxu0
      %v692 = vadd.f32 %v364, %v691
      %v693 = vpop.f32.mrf.mxu0
      %v694 = vadd.f32 %v364, %v693
      %695 = vmatmul.bf16.gmra.mxu0 %v570
      %v696 = vpop.f32.mrf.mxu0
      %v697 = vadd.f32 %v364, %v696
      %v698 = vpop.f32.mrf.mxu0
      %v699 = vadd.f32 %v364, %v698
      %700 = vmatmul.bf16.gmra.mxu0 %v573
      %v701 = vpop.f32.mrf.mxu0
      %v702 = vadd.f32 %v364, %v701
      %v703 = vpop.f32.mrf.mxu0
      %v704 = vadd.f32 %v364, %v703
      %705 = vmatmul.bf16.gmra.mxu0 %v576
      %v706 = vpop.f32.mrf.mxu0
      %v707 = vadd.f32 %v364, %v706
      %v708 = vpop.f32.mrf.mxu0
      %v709 = vadd.f32 %v364, %v708
      %710 = vmatmul.bf16.gmra.mxu0 %v579
      %v711 = vpop.f32.mrf.mxu0
      %v712 = vadd.f32 %v364, %v711
      %v713 = vpop.f32.mrf.mxu0
      %v714 = vadd.f32 %v364, %v713
      %715 = vmatmul.bf16.gmra.mxu0 %v582
      %v716 = vpop.f32.mrf.mxu0
      %v717 = vadd.f32 %v364, %v716
      %v718 = vpop.f32.mrf.mxu0
      %v719 = vadd.f32 %v364, %v718
      %720 = vmatmul.bf16.gmra.mxu0 %v585
      %v721 = vpop.f32.mrf.mxu0
      %v722 = vadd.f32 %v364, %v721
      %v723 = vpop.f32.mrf.mxu0
      %v724 = vadd.f32 %v364, %v723
      %725 = vmatmul.bf16.gmra.mxu0 %v588
      %v726 = vpop.f32.mrf.mxu0
      %v727 = vadd.f32 %v364, %v726
      %v728 = vpop.f32.mrf.mxu0
      %v729 = vadd.f32 %v364, %v728
      %730 = vmatmul.bf16.gmra.mxu0 %v591
      %v731 = vpop.f32.mrf.mxu0
      %v732 = vadd.f32 %v364, %v731
      %v733 = vpop.f32.mrf.mxu0
      %v734 = vadd.f32 %v364, %v733
      %735 = vmatmul.bf16.gmra.mxu0 %v594
      %v736 = vpop.f32.mrf.mxu0
      %v737 = vadd.f32 %v364, %v736
      %v738 = vpop.f32.mrf.mxu0
      %v739 = vadd.f32 %v364, %v738
      %740 = vmatmul.bf16.gmra.mxu0 %v597
      %v741 = vpop.f32.mrf.mxu0
      %v742 = vadd.f32 %v364, %v741
      %v743 = vpop.f32.mrf.mxu0
      %v744 = vadd.f32 %v364, %v743
      %745 = vmatmul.bf16.gmra.mxu0 %v600
      %v746 = vpop.f32.mrf.mxu0
      %v747 = vadd.f32 %v364, %v746
      %v748 = vpop.f32.mrf.mxu0
      %v749 = vadd.f32 %v364, %v748
      %750 = vmatmul.bf16.gmra.mxu0 %v603
      %v751 = vpop.f32.mrf.mxu0
      %v752 = vadd.f32 %v364, %v751
      %v753 = vpop.f32.mrf.mxu0
      %v754 = vadd.f32 %v364, %v753
      %755 = vmatmul.bf16.gmra.mxu0 %v606
      %v756 = vpop.f32.mrf.mxu0
      %v757 = vadd.f32 %v364, %v756
      %v758 = vpop.f32.mrf.mxu0
      %v759 = vadd.f32 %v364, %v758
      %760 = vmatmul.bf16.gmra.mxu0 %v609
      %v761 = vpop.f32.mrf.mxu0
      %v762 = vadd.f32 %v364, %v761
      %v763 = vpop.f32.mrf.mxu0
      %v764 = vadd.f32 %v364, %v763
      %765 = vmatmul.bf16.gmra.mxu0 %v612
      %v766 = vpop.f32.mrf.mxu0
      %v767 = vadd.f32 %v364, %v766
      %v768 = vpop.f32.mrf.mxu0
      %v769 = vadd.f32 %v364, %v768
      %770 = vmatmul.bf16.gmra.mxu0 %v615
      %v771 = vpop.f32.mrf.mxu0
      %v772 = vadd.f32 %v364, %v771
      %v773 = vpop.f32.mrf.mxu0
      %v774 = vadd.f32 %v364, %v773
      %775 = vmatmul.bf16.gmra.mxu0 %v618
      %v776 = vpop.f32.mrf.mxu0
      %v777 = vadd.f32 %v364, %v776
      %v778 = vpop.f32.mrf.mxu0
      %v779 = vadd.f32 %v364, %v778
      %780 = vmatmul.bf16.gmra.mxu0 %v621
      %v781 = vpop.f32.mrf.mxu0
      %v782 = vadd.f32 %v364, %v781
      %v783 = vpop.f32.mrf.mxu0
      %v784 = vadd.f32 %v364, %v783
      %785 = vmatmul.bf16.gmra.mxu0 %v624
      %v786 = vpop.f32.mrf.mxu0
      %v787 = vadd.f32 %v364, %v786
      %v788 = vpop.f32.mrf.mxu0
      %v789 = vadd.f32 %v364, %v788
      %790 = vmatmul.bf16.gmra.mxu0 %v627
      %v791 = vpop.f32.mrf.mxu0
      %v792 = vadd.f32 %v364, %v791
      %v793 = vpop.f32.mrf.mxu0
      %v794 = vadd.f32 %v364, %v793
      %795 = vmatmul.bf16.gmra.mxu0 %v630
      %v796 = vpop.f32.mrf.mxu0
      %v797 = vadd.f32 %v364, %v796
      %v798 = vpop.f32.mrf.mxu0
      %v799 = vadd.f32 %v364, %v798
      %800 = vmatmul.bf16.gmra.mxu0 %v633
      %v801 = vpop.f32.mrf.mxu0
      %v802 = vadd.f32 %v364, %v801
      %v803 = vpop.f32.mrf.mxu0
      %v804 = vadd.f32 %v364, %v803
      %805 = vmatmul.bf16.gmra.mxu0 %v636
      %v806 = vpop.f32.mrf.mxu0
      %v807 = vadd.f32 %v364, %v806
      %v808 = vpop.f32.mrf.mxu0
      %v809 = vadd.f32 %v364, %v808
      %810 = vdwg.mxu0
      %v811 = vlaneseq
      %v812 = vshrl.u32 %v811, 7
      %v813 = vadd.s32 %v812, 8
      %v814 = vadd.s32 %v812, 16
      %v815 = vadd.s32 %v812, 24
      %v816 = vadd.s32 %v812, 32
      %v817 = vadd.s32 %v812, 40
      %v818 = vadd.s32 %v812, 48
      %v819 = vadd.s32 %v812, 56
      %v820 = vadd.s32 %v812, 64
      %v821 = vadd.s32 %v812, 72
      %v822 = vadd.s32 %v812, 80
      %v823 = vadd.s32 %v812, 88
      %v824 = vadd.s32 %v812, 96
      %v825 = vadd.s32 %v812, 104
      %v826 = vadd.s32 %v812, 112
      %v827 = vadd.s32 %v812, 120
      %v828 = vadd.s32 %v812, 128
      %v829 = vadd.s32 %v812, 136
      %v830 = vadd.s32 %v812, 144
      %v831 = vadd.s32 %v812, 152
      %v832 = vadd.s32 %v812, 160
      %v833 = vadd.s32 %v812, 168
      %v834 = vadd.s32 %v812, 176
      %v835 = vadd.s32 %v812, 184
      %v836 = vadd.s32 %v812, 192
      %v837 = vadd.s32 %v812, 200
      %v838 = vadd.s32 %v812, 208
      %v839 = vadd.s32 %v812, 216
      %v840 = vadd.s32 %v812, 224
      %v841 = vadd.s32 %v812, 232
      %v842 = vadd.s32 %v812, 240
      %v843 = vadd.s32 %v812, 248
      %v844 = vadd.s32 %v812, 256
      %v845 = vadd.s32 %v812, 264
      %v846 = vadd.s32 %v812, 272
      %v847 = vadd.s32 %v812, 280
      %v848 = vadd.s32 %v812, 288
      %v849 = vadd.s32 %v812, 296
      %v850 = vadd.s32 %v812, 304
      %v851 = vadd.s32 %v812, 312
      %v852 = vadd.s32 %v812, 320
      %v853 = vadd.s32 %v812, 328
      %v854 = vadd.s32 %v812, 336
      %v855 = vadd.s32 %v812, 344
      %v856 = vadd.s32 %v812, 352
      %v857 = vadd.s32 %v812, 360
      %v858 = vadd.s32 %v812, 368
      %v859 = vadd.s32 %v812, 376
      %v860 = vadd.s32 %v812, 384
      %v861 = vadd.s32 %v812, 392
      %v862 = vadd.s32 %v812, 400
      %v863 = vadd.s32 %v812, 408
      %v864 = vadd.s32 %v812, 416
      %v865 = vadd.s32 %v812, 424
      %v866 = vadd.s32 %v812, 432
      %v867 = vadd.s32 %v812, 440
      %v868 = vadd.s32 %v812, 448
      %v869 = vadd.s32 %v812, 456
      %v870 = vadd.s32 %v812, 464
      %v871 = vadd.s32 %v812, 472
      %v872 = vadd.s32 %v812, 480
      %v873 = vadd.s32 %v812, 488
      %v874 = vadd.s32 %v812, 496
      %v875 = vadd.s32 %v812, 504
      %vm876 = vcmp.lt.s32.totalorder %v812, 0
      %v877 = vsub.s32 0, %v812
      %v878 = vsel %vm876, %v877, %v812
      %v879 = vshrl.u32 %v878, 3
      %v880 = vand.u32 %v878, 7
      %v881 = vsub.s32 0, %v880
      %v882 = vsel %vm876, %v881, %v880
      %vm883 = vcmp.lt.s32.totalorder %v813, 0
      %v884 = vsub.s32 0, %v813
      %v885 = vsel %vm883, %v884, %v813
      %v886 = vshrl.u32 %v885, 3
      %v887 = vand.u32 %v885, 7
      %v888 = vsub.s32 0, %v887
      %v889 = vsel %vm883, %v888, %v887
      %vm890 = vcmp.lt.s32.totalorder %v814, 0
      %v891 = vsub.s32 0, %v814
      %v892 = vsel %vm890, %v891, %v814
      %v893 = vshrl.u32 %v892, 3
      %v894 = vand.u32 %v892, 7
      %v895 = vsub.s32 0, %v894
      %v896 = vsel %vm890, %v895, %v894
      %vm897 = vcmp.lt.s32.totalorder %v815, 0
      %v898 = vsub.s32 0, %v815
      %v899 = vsel %vm897, %v898, %v815
      %v900 = vshrl.u32 %v899, 3
      %v901 = vand.u32 %v899, 7
      %v902 = vsub.s32 0, %v901
      %v903 = vsel %vm897, %v902, %v901
      %vm904 = vcmp.lt.s32.totalorder %v816, 0
      %v905 = vsub.s32 0, %v816
      %v906 = vsel %vm904, %v905, %v816
      %v907 = vshrl.u32 %v906, 3
      %v908 = vand.u32 %v906, 7
      %v909 = vsub.s32 0, %v908
      %v910 = vsel %vm904, %v909, %v908
      %vm911 = vcmp.lt.s32.totalorder %v817, 0
      %v912 = vsub.s32 0, %v817
      %v913 = vsel %vm911, %v912, %v817
      %v914 = vshrl.u32 %v913, 3
      %v915 = vand.u32 %v913, 7
      %v916 = vsub.s32 0, %v915
      %v917 = vsel %vm911, %v916, %v915
      %vm918 = vcmp.lt.s32.totalorder %v818, 0
      %v919 = vsub.s32 0, %v818
      %v920 = vsel %vm918, %v919, %v818
      %v921 = vshrl.u32 %v920, 3
      %v922 = vand.u32 %v920, 7
      %v923 = vsub.s32 0, %v922
      %v924 = vsel %vm918, %v923, %v922
      %vm925 = vcmp.lt.s32.totalorder %v819, 0
      %v926 = vsub.s32 0, %v819
      %v927 = vsel %vm925, %v926, %v819
      %v928 = vshrl.u32 %v927, 3
      %v929 = vand.u32 %v927, 7
      %v930 = vsub.s32 0, %v929
      %v931 = vsel %vm925, %v930, %v929
      %vm932 = vcmp.lt.s32.totalorder %v820, 0
      %v933 = vsub.s32 0, %v820
      %v934 = vsel %vm932, %v933, %v820
      %v935 = vshrl.u32 %v934, 3
      %v936 = vand.u32 %v934, 7
      %v937 = vsub.s32 0, %v936
      %v938 = vsel %vm932, %v937, %v936
      %vm939 = vcmp.lt.s32.totalorder %v821, 0
      %v940 = vsub.s32 0, %v821
      %v941 = vsel %vm939, %v940, %v821
      %v942 = vshrl.u32 %v941, 3
      %v943 = vand.u32 %v941, 7
      %v944 = vsub.s32 0, %v943
      %v945 = vsel %vm939, %v944, %v943
      %vm946 = vcmp.lt.s32.totalorder %v822, 0
      %v947 = vsub.s32 0, %v822
      %v948 = vsel %vm946, %v947, %v822
      %v949 = vshrl.u32 %v948, 3
      %v950 = vand.u32 %v948, 7
      %v951 = vsub.s32 0, %v950
      %v952 = vsel %vm946, %v951, %v950
      %vm953 = vcmp.lt.s32.totalorder %v823, 0
      %v954 = vsub.s32 0, %v823
      %v955 = vsel %vm953, %v954, %v823
      %v956 = vshrl.u32 %v955, 3
      %v957 = vand.u32 %v955, 7
      %v958 = vsub.s32 0, %v957
      %v959 = vsel %vm953, %v958, %v957
      %vm960 = vcmp.lt.s32.totalorder %v824, 0
      %v961 = vsub.s32 0, %v824
      %v962 = vsel %vm960, %v961, %v824
      %v963 = vshrl.u32 %v962, 3
      %v964 = vand.u32 %v962, 7
      %v965 = vsub.s32 0, %v964
      %v966 = vsel %vm960, %v965, %v964
      %vm967 = vcmp.lt.s32.totalorder %v825, 0
      %v968 = vsub.s32 0, %v825
      %v969 = vsel %vm967, %v968, %v825
      %v970 = vshrl.u32 %v969, 3
      %v971 = vand.u32 %v969, 7
      %v972 = vsub.s32 0, %v971
      %v973 = vsel %vm967, %v972, %v971
      %vm974 = vcmp.lt.s32.totalorder %v826, 0
      %v975 = vsub.s32 0, %v826
      %v976 = vsel %vm974, %v975, %v826
      %v977 = vshrl.u32 %v976, 3
      %v978 = vand.u32 %v976, 7
      %v979 = vsub.s32 0, %v978
      %v980 = vsel %vm974, %v979, %v978
      %vm981 = vcmp.lt.s32.totalorder %v827, 0
      %v982 = vsub.s32 0, %v827
      %v983 = vsel %vm981, %v982, %v827
      %v984 = vshrl.u32 %v983, 3
      %v985 = vand.u32 %v983, 7
      %v986 = vsub.s32 0, %v985
      %v987 = vsel %vm981, %v986, %v985
      %vm988 = vcmp.lt.s32.totalorder %v828, 0
      %v989 = vsub.s32 0, %v828
      %v990 = vsel %vm988, %v989, %v828
      %v991 = vshrl.u32 %v990, 3
      %v992 = vand.u32 %v990, 7
      %v993 = vsub.s32 0, %v992
      %v994 = vsel %vm988, %v993, %v992
      %vm995 = vcmp.lt.s32.totalorder %v829, 0
      %v996 = vsub.s32 0, %v829
      %v997 = vsel %vm995, %v996, %v829
      %v998 = vshrl.u32 %v997, 3
      %v999 = vand.u32 %v997, 7
      %v1000 = vsub.s32 0, %v999
      %v1001 = vsel %vm995, %v1000, %v999
      %vm1002 = vcmp.lt.s32.totalorder %v830, 0
      %v1003 = vsub.s32 0, %v830
      %v1004 = vsel %vm1002, %v1003, %v830
      %v1005 = vshrl.u32 %v1004, 3
      %v1006 = vand.u32 %v1004, 7
      %v1007 = vsub.s32 0, %v1006
      %v1008 = vsel %vm1002, %v1007, %v1006
      %vm1009 = vcmp.lt.s32.totalorder %v831, 0
      %v1010 = vsub.s32 0, %v831
      %v1011 = vsel %vm1009, %v1010, %v831
      %v1012 = vshrl.u32 %v1011, 3
      %v1013 = vand.u32 %v1011, 7
      %v1014 = vsub.s32 0, %v1013
      %v1015 = vsel %vm1009, %v1014, %v1013
      %vm1016 = vcmp.lt.s32.totalorder %v832, 0
      %v1017 = vsub.s32 0, %v832
      %v1018 = vsel %vm1016, %v1017, %v832
      %v1019 = vshrl.u32 %v1018, 3
      %v1020 = vand.u32 %v1018, 7
      %v1021 = vsub.s32 0, %v1020
      %v1022 = vsel %vm1016, %v1021, %v1020
      %vm1023 = vcmp.lt.s32.totalorder %v833, 0
      %v1024 = vsub.s32 0, %v833
      %v1025 = vsel %vm1023, %v1024, %v833
      %v1026 = vshrl.u32 %v1025, 3
      %v1027 = vand.u32 %v1025, 7
      %v1028 = vsub.s32 0, %v1027
      %v1029 = vsel %vm1023, %v1028, %v1027
      %vm1030 = vcmp.lt.s32.totalorder %v834, 0
      %v1031 = vsub.s32 0, %v834
      %v1032 = vsel %vm1030, %v1031, %v834
      %v1033 = vshrl.u32 %v1032, 3
      %v1034 = vand.u32 %v1032, 7
      %v1035 = vsub.s32 0, %v1034
      %v1036 = vsel %vm1030, %v1035, %v1034
      %vm1037 = vcmp.lt.s32.totalorder %v835, 0
      %v1038 = vsub.s32 0, %v835
      %v1039 = vsel %vm1037, %v1038, %v835
      %v1040 = vshrl.u32 %v1039, 3
      %v1041 = vand.u32 %v1039, 7
      %v1042 = vsub.s32 0, %v1041
      %v1043 = vsel %vm1037, %v1042, %v1041
      %vm1044 = vcmp.lt.s32.totalorder %v836, 0
      %v1045 = vsub.s32 0, %v836
      %v1046 = vsel %vm1044, %v1045, %v836
      %v1047 = vshrl.u32 %v1046, 3
      %v1048 = vand.u32 %v1046, 7
      %v1049 = vsub.s32 0, %v1048
      %v1050 = vsel %vm1044, %v1049, %v1048
      %vm1051 = vcmp.lt.s32.totalorder %v837, 0
      %v1052 = vsub.s32 0, %v837
      %v1053 = vsel %vm1051, %v1052, %v837
      %v1054 = vshrl.u32 %v1053, 3
      %v1055 = vand.u32 %v1053, 7
      %v1056 = vsub.s32 0, %v1055
      %v1057 = vsel %vm1051, %v1056, %v1055
      %vm1058 = vcmp.lt.s32.totalorder %v838, 0
      %v1059 = vsub.s32 0, %v838
      %v1060 = vsel %vm1058, %v1059, %v838
      %v1061 = vshrl.u32 %v1060, 3
      %v1062 = vand.u32 %v1060, 7
      %v1063 = vsub.s32 0, %v1062
      %v1064 = vsel %vm1058, %v1063, %v1062
      %vm1065 = vcmp.lt.s32.totalorder %v839, 0
      %v1066 = vsub.s32 0, %v839
      %v1067 = vsel %vm1065, %v1066, %v839
      %v1068 = vshrl.u32 %v1067, 3
      %v1069 = vand.u32 %v1067, 7
      %v1070 = vsub.s32 0, %v1069
      %v1071 = vsel %vm1065, %v1070, %v1069
      %vm1072 = vcmp.lt.s32.totalorder %v840, 0
      %v1073 = vsub.s32 0, %v840
      %v1074 = vsel %vm1072, %v1073, %v840
      %v1075 = vshrl.u32 %v1074, 3
      %v1076 = vand.u32 %v1074, 7
      %v1077 = vsub.s32 0, %v1076
      %v1078 = vsel %vm1072, %v1077, %v1076
      %vm1079 = vcmp.lt.s32.totalorder %v841, 0
      %v1080 = vsub.s32 0, %v841
      %v1081 = vsel %vm1079, %v1080, %v841
      %v1082 = vshrl.u32 %v1081, 3
      %v1083 = vand.u32 %v1081, 7
      %v1084 = vsub.s32 0, %v1083
      %v1085 = vsel %vm1079, %v1084, %v1083
      %vm1086 = vcmp.lt.s32.totalorder %v842, 0
      %v1087 = vsub.s32 0, %v842
      %v1088 = vsel %vm1086, %v1087, %v842
      %v1089 = vshrl.u32 %v1088, 3
      %v1090 = vand.u32 %v1088, 7
      %v1091 = vsub.s32 0, %v1090
      %v1092 = vsel %vm1086, %v1091, %v1090
      %vm1093 = vcmp.lt.s32.totalorder %v843, 0
      %v1094 = vsub.s32 0, %v843
      %v1095 = vsel %vm1093, %v1094, %v843
      %v1096 = vshrl.u32 %v1095, 3
      %v1097 = vand.u32 %v1095, 7
      %v1098 = vsub.s32 0, %v1097
      %v1099 = vsel %vm1093, %v1098, %v1097
      %vm1100 = vcmp.lt.s32.totalorder %v844, 0
      %v1101 = vsub.s32 0, %v844
      %v1102 = vsel %vm1100, %v1101, %v844
      %v1103 = vshrl.u32 %v1102, 3
      %v1104 = vand.u32 %v1102, 7
      %v1105 = vsub.s32 0, %v1104
      %v1106 = vsel %vm1100, %v1105, %v1104
      %vm1107 = vcmp.lt.s32.totalorder %v845, 0
      %v1108 = vsub.s32 0, %v845
      %v1109 = vsel %vm1107, %v1108, %v845
      %v1110 = vshrl.u32 %v1109, 3
      %v1111 = vand.u32 %v1109, 7
      %v1112 = vsub.s32 0, %v1111
      %v1113 = vsel %vm1107, %v1112, %v1111
      %vm1114 = vcmp.lt.s32.totalorder %v846, 0
      %v1115 = vsub.s32 0, %v846
      %v1116 = vsel %vm1114, %v1115, %v846
      %v1117 = vshrl.u32 %v1116, 3
      %v1118 = vand.u32 %v1116, 7
      %v1119 = vsub.s32 0, %v1118
      %v1120 = vsel %vm1114, %v1119, %v1118
      %vm1121 = vcmp.lt.s32.totalorder %v847, 0
      %v1122 = vsub.s32 0, %v847
      %v1123 = vsel %vm1121, %v1122, %v847
      %v1124 = vshrl.u32 %v1123, 3
      %v1125 = vand.u32 %v1123, 7
      %v1126 = vsub.s32 0, %v1125
      %v1127 = vsel %vm1121, %v1126, %v1125
      %vm1128 = vcmp.lt.s32.totalorder %v848, 0
      %v1129 = vsub.s32 0, %v848
      %v1130 = vsel %vm1128, %v1129, %v848
      %v1131 = vshrl.u32 %v1130, 3
      %v1132 = vand.u32 %v1130, 7
      %v1133 = vsub.s32 0, %v1132
      %v1134 = vsel %vm1128, %v1133, %v1132
      %vm1135 = vcmp.lt.s32.totalorder %v849, 0
      %v1136 = vsub.s32 0, %v849
      %v1137 = vsel %vm1135, %v1136, %v849
      %v1138 = vshrl.u32 %v1137, 3
      %v1139 = vand.u32 %v1137, 7
      %v1140 = vsub.s32 0, %v1139
      %v1141 = vsel %vm1135, %v1140, %v1139
      %vm1142 = vcmp.lt.s32.totalorder %v850, 0
      %v1143 = vsub.s32 0, %v850
      %v1144 = vsel %vm1142, %v1143, %v850
      %v1145 = vshrl.u32 %v1144, 3
      %v1146 = vand.u32 %v1144, 7
      %v1147 = vsub.s32 0, %v1146
      %v1148 = vsel %vm1142, %v1147, %v1146
      %vm1149 = vcmp.lt.s32.totalorder %v851, 0
      %v1150 = vsub.s32 0, %v851
      %v1151 = vsel %vm1149, %v1150, %v851
      %v1152 = vshrl.u32 %v1151, 3
      %v1153 = vand.u32 %v1151, 7
      %v1154 = vsub.s32 0, %v1153
      %v1155 = vsel %vm1149, %v1154, %v1153
      %vm1156 = vcmp.lt.s32.totalorder %v852, 0
      %v1157 = vsub.s32 0, %v852
      %v1158 = vsel %vm1156, %v1157, %v852
      %v1159 = vshrl.u32 %v1158, 3
      %v1160 = vand.u32 %v1158, 7
      %v1161 = vsub.s32 0, %v1160
      %v1162 = vsel %vm1156, %v1161, %v1160
      %vm1163 = vcmp.lt.s32.totalorder %v853, 0
      %v1164 = vsub.s32 0, %v853
      %v1165 = vsel %vm1163, %v1164, %v853
      %v1166 = vshrl.u32 %v1165, 3
      %v1167 = vand.u32 %v1165, 7
      %v1168 = vsub.s32 0, %v1167
      %v1169 = vsel %vm1163, %v1168, %v1167
      %vm1170 = vcmp.lt.s32.totalorder %v854, 0
      %v1171 = vsub.s32 0, %v854
      %v1172 = vsel %vm1170, %v1171, %v854
      %v1173 = vshrl.u32 %v1172, 3
      %v1174 = vand.u32 %v1172, 7
      %v1175 = vsub.s32 0, %v1174
      %v1176 = vsel %vm1170, %v1175, %v1174
      %vm1177 = vcmp.lt.s32.totalorder %v855, 0
      %v1178 = vsub.s32 0, %v855
      %v1179 = vsel %vm1177, %v1178, %v855
      %v1180 = vshrl.u32 %v1179, 3
      %v1181 = vand.u32 %v1179, 7
      %v1182 = vsub.s32 0, %v1181
      %v1183 = vsel %vm1177, %v1182, %v1181
      %vm1184 = vcmp.lt.s32.totalorder %v856, 0
      %v1185 = vsub.s32 0, %v856
      %v1186 = vsel %vm1184, %v1185, %v856
      %v1187 = vshrl.u32 %v1186, 3
      %v1188 = vand.u32 %v1186, 7
      %v1189 = vsub.s32 0, %v1188
      %v1190 = vsel %vm1184, %v1189, %v1188
      %vm1191 = vcmp.lt.s32.totalorder %v857, 0
      %v1192 = vsub.s32 0, %v857
      %v1193 = vsel %vm1191, %v1192, %v857
      %v1194 = vshrl.u32 %v1193, 3
      %v1195 = vand.u32 %v1193, 7
      %v1196 = vsub.s32 0, %v1195
      %v1197 = vsel %vm1191, %v1196, %v1195
      %vm1198 = vcmp.lt.s32.totalorder %v858, 0
      %v1199 = vsub.s32 0, %v858
      %v1200 = vsel %vm1198, %v1199, %v858
      %v1201 = vshrl.u32 %v1200, 3
      %v1202 = vand.u32 %v1200, 7
      %v1203 = vsub.s32 0, %v1202
      %v1204 = vsel %vm1198, %v1203, %v1202
      %vm1205 = vcmp.lt.s32.totalorder %v859, 0
      %v1206 = vsub.s32 0, %v859
      %v1207 = vsel %vm1205, %v1206, %v859
      %v1208 = vshrl.u32 %v1207, 3
      %v1209 = vand.u32 %v1207, 7
      %v1210 = vsub.s32 0, %v1209
      %v1211 = vsel %vm1205, %v1210, %v1209
      %vm1212 = vcmp.lt.s32.totalorder %v860, 0
      %v1213 = vsub.s32 0, %v860
      %v1214 = vsel %vm1212, %v1213, %v860
      %v1215 = vshrl.u32 %v1214, 3
      %v1216 = vand.u32 %v1214, 7
      %v1217 = vsub.s32 0, %v1216
      %v1218 = vsel %vm1212, %v1217, %v1216
      %vm1219 = vcmp.lt.s32.totalorder %v861, 0
      %v1220 = vsub.s32 0, %v861
      %v1221 = vsel %vm1219, %v1220, %v861
      %v1222 = vshrl.u32 %v1221, 3
      %v1223 = vand.u32 %v1221, 7
      %v1224 = vsub.s32 0, %v1223
      %v1225 = vsel %vm1219, %v1224, %v1223
      %vm1226 = vcmp.lt.s32.totalorder %v862, 0
      %v1227 = vsub.s32 0, %v862
      %v1228 = vsel %vm1226, %v1227, %v862
      %v1229 = vshrl.u32 %v1228, 3
      %v1230 = vand.u32 %v1228, 7
      %v1231 = vsub.s32 0, %v1230
      %v1232 = vsel %vm1226, %v1231, %v1230
      %vm1233 = vcmp.lt.s32.totalorder %v863, 0
      %v1234 = vsub.s32 0, %v863
      %v1235 = vsel %vm1233, %v1234, %v863
      %v1236 = vshrl.u32 %v1235, 3
      %v1237 = vand.u32 %v1235, 7
      %v1238 = vsub.s32 0, %v1237
      %v1239 = vsel %vm1233, %v1238, %v1237
      %vm1240 = vcmp.lt.s32.totalorder %v864, 0
      %v1241 = vsub.s32 0, %v864
      %v1242 = vsel %vm1240, %v1241, %v864
      %v1243 = vshrl.u32 %v1242, 3
      %v1244 = vand.u32 %v1242, 7
      %v1245 = vsub.s32 0, %v1244
      %v1246 = vsel %vm1240, %v1245, %v1244
      %vm1247 = vcmp.lt.s32.totalorder %v865, 0
      %v1248 = vsub.s32 0, %v865
      %v1249 = vsel %vm1247, %v1248, %v865
      %v1250 = vshrl.u32 %v1249, 3
      %v1251 = vand.u32 %v1249, 7
      %v1252 = vsub.s32 0, %v1251
      %v1253 = vsel %vm1247, %v1252, %v1251
      %vm1254 = vcmp.lt.s32.totalorder %v866, 0
      %v1255 = vsub.s32 0, %v866
      %v1256 = vsel %vm1254, %v1255, %v866
      %v1257 = vshrl.u32 %v1256, 3
      %v1258 = vand.u32 %v1256, 7
      %v1259 = vsub.s32 0, %v1258
      %v1260 = vsel %vm1254, %v1259, %v1258
      %vm1261 = vcmp.lt.s32.totalorder %v867, 0
      %v1262 = vsub.s32 0, %v867
      %v1263 = vsel %vm1261, %v1262, %v867
      %v1264 = vshrl.u32 %v1263, 3
      %v1265 = vand.u32 %v1263, 7
      %v1266 = vsub.s32 0, %v1265
      %v1267 = vsel %vm1261, %v1266, %v1265
      %vm1268 = vcmp.lt.s32.totalorder %v868, 0
      %v1269 = vsub.s32 0, %v868
      %v1270 = vsel %vm1268, %v1269, %v868
      %v1271 = vshrl.u32 %v1270, 3
      %v1272 = vand.u32 %v1270, 7
      %v1273 = vsub.s32 0, %v1272
      %v1274 = vsel %vm1268, %v1273, %v1272
      %vm1275 = vcmp.lt.s32.totalorder %v869, 0
      %v1276 = vsub.s32 0, %v869
      %v1277 = vsel %vm1275, %v1276, %v869
      %v1278 = vshrl.u32 %v1277, 3
      %v1279 = vand.u32 %v1277, 7
      %v1280 = vsub.s32 0, %v1279
      %v1281 = vsel %vm1275, %v1280, %v1279
      %vm1282 = vcmp.lt.s32.totalorder %v870, 0
      %v1283 = vsub.s32 0, %v870
      %v1284 = vsel %vm1282, %v1283, %v870
      %v1285 = vshrl.u32 %v1284, 3
      %v1286 = vand.u32 %v1284, 7
      %v1287 = vsub.s32 0, %v1286
      %v1288 = vsel %vm1282, %v1287, %v1286
      %vm1289 = vcmp.lt.s32.totalorder %v871, 0
      %v1290 = vsub.s32 0, %v871
      %v1291 = vsel %vm1289, %v1290, %v871
      %v1292 = vshrl.u32 %v1291, 3
      %v1293 = vand.u32 %v1291, 7
      %v1294 = vsub.s32 0, %v1293
      %v1295 = vsel %vm1289, %v1294, %v1293
      %vm1296 = vcmp.lt.s32.totalorder %v872, 0
      %v1297 = vsub.s32 0, %v872
      %v1298 = vsel %vm1296, %v1297, %v872
      %v1299 = vshrl.u32 %v1298, 3
      %v1300 = vand.u32 %v1298, 7
      %v1301 = vsub.s32 0, %v1300
      %v1302 = vsel %vm1296, %v1301, %v1300
      %vm1303 = vcmp.lt.s32.totalorder %v873, 0
      %v1304 = vsub.s32 0, %v873
      %v1305 = vsel %vm1303, %v1304, %v873
      %v1306 = vshrl.u32 %v1305, 3
      %v1307 = vand.u32 %v1305, 7
      %v1308 = vsub.s32 0, %v1307
      %v1309 = vsel %vm1303, %v1308, %v1307
      %vm1310 = vcmp.lt.s32.totalorder %v874, 0
      %v1311 = vsub.s32 0, %v874
      %v1312 = vsel %vm1310, %v1311, %v874
      %v1313 = vshrl.u32 %v1312, 3
      %v1314 = vand.u32 %v1312, 7
      %v1315 = vsub.s32 0, %v1314
      %v1316 = vsel %vm1310, %v1315, %v1314
      %vm1317 = vcmp.lt.s32.totalorder %v875, 0
      %v1318 = vsub.s32 0, %v875
      %v1319 = vsel %vm1317, %v1318, %v875
      %v1320 = vshrl.u32 %v1319, 3
      %v1321 = vand.u32 %v1319, 7
      %v1322 = vsub.s32 0, %v1321
      %v1323 = vsel %vm1317, %v1322, %v1321
      %vm1324 = vcmp.ne.s32.totalorder %v882, 0
      %vm1325 = vcmp.ne.s32.totalorder %v889, 0
      %vm1326 = vcmp.ne.s32.totalorder %v896, 0
      %vm1327 = vcmp.ne.s32.totalorder %v903, 0
      %vm1328 = vcmp.ne.s32.totalorder %v910, 0
      %vm1329 = vcmp.ne.s32.totalorder %v917, 0
      %vm1330 = vcmp.ne.s32.totalorder %v924, 0
      %vm1331 = vcmp.ne.s32.totalorder %v931, 0
      %vm1332 = vcmp.ne.s32.totalorder %v938, 0
      %vm1333 = vcmp.ne.s32.totalorder %v945, 0
      %vm1334 = vcmp.ne.s32.totalorder %v952, 0
      %vm1335 = vcmp.ne.s32.totalorder %v959, 0
      %vm1336 = vcmp.ne.s32.totalorder %v966, 0
      %vm1337 = vcmp.ne.s32.totalorder %v973, 0
      %vm1338 = vcmp.ne.s32.totalorder %v980, 0
      %vm1339 = vcmp.ne.s32.totalorder %v987, 0
      %vm1340 = vcmp.ne.s32.totalorder %v994, 0
      %vm1341 = vcmp.ne.s32.totalorder %v1001, 0
      %vm1342 = vcmp.ne.s32.totalorder %v1008, 0
      %vm1343 = vcmp.ne.s32.totalorder %v1015, 0
      %vm1344 = vcmp.ne.s32.totalorder %v1022, 0
      %vm1345 = vcmp.ne.s32.totalorder %v1029, 0
      %vm1346 = vcmp.ne.s32.totalorder %v1036, 0
      %vm1347 = vcmp.ne.s32.totalorder %v1043, 0
      %vm1348 = vcmp.ne.s32.totalorder %v1050, 0
      %vm1349 = vcmp.ne.s32.totalorder %v1057, 0
      %vm1350 = vcmp.ne.s32.totalorder %v1064, 0
      %vm1351 = vcmp.ne.s32.totalorder %v1071, 0
      %vm1352 = vcmp.ne.s32.totalorder %v1078, 0
      %vm1353 = vcmp.ne.s32.totalorder %v1085, 0
      %vm1354 = vcmp.ne.s32.totalorder %v1092, 0
      %vm1355 = vcmp.ne.s32.totalorder %v1099, 0
      %vm1356 = vcmp.ne.s32.totalorder %v1106, 0
      %vm1357 = vcmp.ne.s32.totalorder %v1113, 0
      %vm1358 = vcmp.ne.s32.totalorder %v1120, 0
      %vm1359 = vcmp.ne.s32.totalorder %v1127, 0
      %vm1360 = vcmp.ne.s32.totalorder %v1134, 0
      %vm1361 = vcmp.ne.s32.totalorder %v1141, 0
      %vm1362 = vcmp.ne.s32.totalorder %v1148, 0
      %vm1363 = vcmp.ne.s32.totalorder %v1155, 0
      %vm1364 = vcmp.ne.s32.totalorder %v1162, 0
      %vm1365 = vcmp.ne.s32.totalorder %v1169, 0
      %vm1366 = vcmp.ne.s32.totalorder %v1176, 0
      %vm1367 = vcmp.ne.s32.totalorder %v1183, 0
      %vm1368 = vcmp.ne.s32.totalorder %v1190, 0
      %vm1369 = vcmp.ne.s32.totalorder %v1197, 0
      %vm1370 = vcmp.ne.s32.totalorder %v1204, 0
      %vm1371 = vcmp.ne.s32.totalorder %v1211, 0
      %vm1372 = vcmp.ne.s32.totalorder %v1218, 0
      %vm1373 = vcmp.ne.s32.totalorder %v1225, 0
      %vm1374 = vcmp.ne.s32.totalorder %v1232, 0
      %vm1375 = vcmp.ne.s32.totalorder %v1239, 0
      %vm1376 = vcmp.ne.s32.totalorder %v1246, 0
      %vm1377 = vcmp.ne.s32.totalorder %v1253, 0
      %vm1378 = vcmp.ne.s32.totalorder %v1260, 0
      %vm1379 = vcmp.ne.s32.totalorder %v1267, 0
      %vm1380 = vcmp.ne.s32.totalorder %v1274, 0
      %vm1381 = vcmp.ne.s32.totalorder %v1281, 0
      %vm1382 = vcmp.ne.s32.totalorder %v1288, 0
      %vm1383 = vcmp.ne.s32.totalorder %v1295, 0
      %vm1384 = vcmp.ne.s32.totalorder %v1302, 0
      %vm1385 = vcmp.ne.s32.totalorder %v1309, 0
      %vm1386 = vcmp.ne.s32.totalorder %v1316, 0
      %vm1387 = vcmp.ne.s32.totalorder %v1323, 0
      %vm1388 = vcmp.lt.s32.totalorder %v882, 0
      %vm1389 = vcmp.lt.s32.totalorder %v889, 0
      %vm1390 = vcmp.lt.s32.totalorder %v896, 0
      %vm1391 = vcmp.lt.s32.totalorder %v903, 0
      %vm1392 = vcmp.lt.s32.totalorder %v910, 0
      %vm1393 = vcmp.lt.s32.totalorder %v917, 0
      %vm1394 = vcmp.lt.s32.totalorder %v924, 0
      %vm1395 = vcmp.lt.s32.totalorder %v931, 0
      %vm1396 = vcmp.lt.s32.totalorder %v938, 0
      %vm1397 = vcmp.lt.s32.totalorder %v945, 0
      %vm1398 = vcmp.lt.s32.totalorder %v952, 0
      %vm1399 = vcmp.lt.s32.totalorder %v959, 0
      %vm1400 = vcmp.lt.s32.totalorder %v966, 0
      %vm1401 = vcmp.lt.s32.totalorder %v973, 0
      %vm1402 = vcmp.lt.s32.totalorder %v980, 0
      %vm1403 = vcmp.lt.s32.totalorder %v987, 0
      %vm1404 = vcmp.lt.s32.totalorder %v994, 0
      %vm1405 = vcmp.lt.s32.totalorder %v1001, 0
      %vm1406 = vcmp.lt.s32.totalorder %v1008, 0
      %vm1407 = vcmp.lt.s32.totalorder %v1015, 0
      %vm1408 = vcmp.lt.s32.totalorder %v1022, 0
      %vm1409 = vcmp.lt.s32.totalorder %v1029, 0
      %vm1410 = vcmp.lt.s32.totalorder %v1036, 0
      %vm1411 = vcmp.lt.s32.totalorder %v1043, 0
      %vm1412 = vcmp.lt.s32.totalorder %v1050, 0
      %vm1413 = vcmp.lt.s32.totalorder %v1057, 0
      %vm1414 = vcmp.lt.s32.totalorder %v1064, 0
      %vm1415 = vcmp.lt.s32.totalorder %v1071, 0
      %vm1416 = vcmp.lt.s32.totalorder %v1078, 0
      %vm1417 = vcmp.lt.s32.totalorder %v1085, 0
      %vm1418 = vcmp.lt.s32.totalorder %v1092, 0
      %vm1419 = vcmp.lt.s32.totalorder %v1099, 0
      %vm1420 = vcmp.lt.s32.totalorder %v1106, 0
      %vm1421 = vcmp.lt.s32.totalorder %v1113, 0
      %vm1422 = vcmp.lt.s32.totalorder %v1120, 0
      %vm1423 = vcmp.lt.s32.totalorder %v1127, 0
      %vm1424 = vcmp.lt.s32.totalorder %v1134, 0
      %vm1425 = vcmp.lt.s32.totalorder %v1141, 0
      %vm1426 = vcmp.lt.s32.totalorder %v1148, 0
      %vm1427 = vcmp.lt.s32.totalorder %v1155, 0
      %vm1428 = vcmp.lt.s32.totalorder %v1162, 0
      %vm1429 = vcmp.lt.s32.totalorder %v1169, 0
      %vm1430 = vcmp.lt.s32.totalorder %v1176, 0
      %vm1431 = vcmp.lt.s32.totalorder %v1183, 0
      %vm1432 = vcmp.lt.s32.totalorder %v1190, 0
      %vm1433 = vcmp.lt.s32.totalorder %v1197, 0
      %vm1434 = vcmp.lt.s32.totalorder %v1204, 0
      %vm1435 = vcmp.lt.s32.totalorder %v1211, 0
      %vm1436 = vcmp.lt.s32.totalorder %v1218, 0
      %vm1437 = vcmp.lt.s32.totalorder %v1225, 0
      %vm1438 = vcmp.lt.s32.totalorder %v1232, 0
      %vm1439 = vcmp.lt.s32.totalorder %v1239, 0
      %vm1440 = vcmp.lt.s32.totalorder %v1246, 0
      %vm1441 = vcmp.lt.s32.totalorder %v1253, 0
      %vm1442 = vcmp.lt.s32.totalorder %v1260, 0
      %vm1443 = vcmp.lt.s32.totalorder %v1267, 0
      %vm1444 = vcmp.lt.s32.totalorder %v1274, 0
      %vm1445 = vcmp.lt.s32.totalorder %v1281, 0
      %vm1446 = vcmp.lt.s32.totalorder %v1288, 0
      %vm1447 = vcmp.lt.s32.totalorder %v1295, 0
      %vm1448 = vcmp.lt.s32.totalorder %v1302, 0
      %vm1449 = vcmp.lt.s32.totalorder %v1309, 0
      %vm1450 = vcmp.lt.s32.totalorder %v1316, 0
      %vm1451 = vcmp.lt.s32.totalorder %v1323, 0
      %vm1452 = vmand %vm1388, %vm1324
      %vm1453 = vmand %vm1389, %vm1325
      %vm1454 = vmand %vm1390, %vm1326
      %vm1455 = vmand %vm1391, %vm1327
      %vm1456 = vmand %vm1392, %vm1328
      %vm1457 = vmand %vm1393, %vm1329
      %vm1458 = vmand %vm1394, %vm1330
      %vm1459 = vmand %vm1395, %vm1331
      %vm1460 = vmand %vm1396, %vm1332
      %vm1461 = vmand %vm1397, %vm1333
      %vm1462 = vmand %vm1398, %vm1334
      %vm1463 = vmand %vm1399, %vm1335
      %vm1464 = vmand %vm1400, %vm1336
      %vm1465 = vmand %vm1401, %vm1337
      %vm1466 = vmand %vm1402, %vm1338
      %vm1467 = vmand %vm1403, %vm1339
      %vm1468 = vmand %vm1404, %vm1340
      %vm1469 = vmand %vm1405, %vm1341
      %vm1470 = vmand %vm1406, %vm1342
      %vm1471 = vmand %vm1407, %vm1343
      %vm1472 = vmand %vm1408, %vm1344
      %vm1473 = vmand %vm1409, %vm1345
      %vm1474 = vmand %vm1410, %vm1346
      %vm1475 = vmand %vm1411, %vm1347
      %vm1476 = vmand %vm1412, %vm1348
      %vm1477 = vmand %vm1413, %vm1349
      %vm1478 = vmand %vm1414, %vm1350
      %vm1479 = vmand %vm1415, %vm1351
      %vm1480 = vmand %vm1416, %vm1352
      %vm1481 = vmand %vm1417, %vm1353
      %vm1482 = vmand %vm1418, %vm1354
      %vm1483 = vmand %vm1419, %vm1355
      %vm1484 = vmand %vm1420, %vm1356
      %vm1485 = vmand %vm1421, %vm1357
      %vm1486 = vmand %vm1422, %vm1358
      %vm1487 = vmand %vm1423, %vm1359
      %vm1488 = vmand %vm1424, %vm1360
      %vm1489 = vmand %vm1425, %vm1361
      %vm1490 = vmand %vm1426, %vm1362
      %vm1491 = vmand %vm1427, %vm1363
      %vm1492 = vmand %vm1428, %vm1364
      %vm1493 = vmand %vm1429, %vm1365
      %vm1494 = vmand %vm1430, %vm1366
      %vm1495 = vmand %vm1431, %vm1367
      %vm1496 = vmand %vm1432, %vm1368
      %vm1497 = vmand %vm1433, %vm1369
      %vm1498 = vmand %vm1434, %vm1370
      %vm1499 = vmand %vm1435, %vm1371
      %vm1500 = vmand %vm1436, %vm1372
      %vm1501 = vmand %vm1437, %vm1373
      %vm1502 = vmand %vm1438, %vm1374
      %vm1503 = vmand %vm1439, %vm1375
      %vm1504 = vmand %vm1440, %vm1376
      %vm1505 = vmand %vm1441, %vm1377
      %vm1506 = vmand %vm1442, %vm1378
      %vm1507 = vmand %vm1443, %vm1379
      %vm1508 = vmand %vm1444, %vm1380
      %vm1509 = vmand %vm1445, %vm1381
      %vm1510 = vmand %vm1446, %vm1382
      %vm1511 = vmand %vm1447, %vm1383
      %vm1512 = vmand %vm1448, %vm1384
      %vm1513 = vmand %vm1449, %vm1385
      %vm1514 = vmand %vm1450, %vm1386
      %vm1515 = vmand %vm1451, %vm1387
      %v1516 = vadd.s32 %v882, 8
      %v1517 = vadd.s32 %v889, 8
      %v1518 = vadd.s32 %v896, 8
      %v1519 = vadd.s32 %v903, 8
      %v1520 = vadd.s32 %v910, 8
      %v1521 = vadd.s32 %v917, 8
      %v1522 = vadd.s32 %v924, 8
      %v1523 = vadd.s32 %v931, 8
      %v1524 = vadd.s32 %v938, 8
      %v1525 = vadd.s32 %v945, 8
      %v1526 = vadd.s32 %v952, 8
      %v1527 = vadd.s32 %v959, 8
      %v1528 = vadd.s32 %v966, 8
      %v1529 = vadd.s32 %v973, 8
      %v1530 = vadd.s32 %v980, 8
      %v1531 = vadd.s32 %v987, 8
      %v1532 = vadd.s32 %v994, 8
      %v1533 = vadd.s32 %v1001, 8
      %v1534 = vadd.s32 %v1008, 8
      %v1535 = vadd.s32 %v1015, 8
      %v1536 = vadd.s32 %v1022, 8
      %v1537 = vadd.s32 %v1029, 8
      %v1538 = vadd.s32 %v1036, 8
      %v1539 = vadd.s32 %v1043, 8
      %v1540 = vadd.s32 %v1050, 8
      %v1541 = vadd.s32 %v1057, 8
      %v1542 = vadd.s32 %v1064, 8
      %v1543 = vadd.s32 %v1071, 8
      %v1544 = vadd.s32 %v1078, 8
      %v1545 = vadd.s32 %v1085, 8
      %v1546 = vadd.s32 %v1092, 8
      %v1547 = vadd.s32 %v1099, 8
      %v1548 = vadd.s32 %v1106, 8
      %v1549 = vadd.s32 %v1113, 8
      %v1550 = vadd.s32 %v1120, 8
      %v1551 = vadd.s32 %v1127, 8
      %v1552 = vadd.s32 %v1134, 8
      %v1553 = vadd.s32 %v1141, 8
      %v1554 = vadd.s32 %v1148, 8
      %v1555 = vadd.s32 %v1155, 8
      %v1556 = vadd.s32 %v1162, 8
      %v1557 = vadd.s32 %v1169, 8
      %v1558 = vadd.s32 %v1176, 8
      %v1559 = vadd.s32 %v1183, 8
      %v1560 = vadd.s32 %v1190, 8
      %v1561 = vadd.s32 %v1197, 8
      %v1562 = vadd.s32 %v1204, 8
      %v1563 = vadd.s32 %v1211, 8
      %v1564 = vadd.s32 %v1218, 8
      %v1565 = vadd.s32 %v1225, 8
      %v1566 = vadd.s32 %v1232, 8
      %v1567 = vadd.s32 %v1239, 8
      %v1568 = vadd.s32 %v1246, 8
      %v1569 = vadd.s32 %v1253, 8
      %v1570 = vadd.s32 %v1260, 8
      %v1571 = vadd.s32 %v1267, 8
      %v1572 = vadd.s32 %v1274, 8
      %v1573 = vadd.s32 %v1281, 8
      %v1574 = vadd.s32 %v1288, 8
      %v1575 = vadd.s32 %v1295, 8
      %v1576 = vadd.s32 %v1302, 8
      %v1577 = vadd.s32 %v1309, 8
      %v1578 = vadd.s32 %v1316, 8
      %v1579 = vadd.s32 %v1323, 8
      %v1580 = vsel %vm1452, %v1516, %v882
      %v1581 = vsel %vm1453, %v1517, %v889
      %v1582 = vsel %vm1454, %v1518, %v896
      %v1583 = vsel %vm1455, %v1519, %v903
      %v1584 = vsel %vm1456, %v1520, %v910
      %v1585 = vsel %vm1457, %v1521, %v917
      %v1586 = vsel %vm1458, %v1522, %v924
      %v1587 = vsel %vm1459, %v1523, %v931
      %v1588 = vsel %vm1460, %v1524, %v938
      %v1589 = vsel %vm1461, %v1525, %v945
      %v1590 = vsel %vm1462, %v1526, %v952
      %v1591 = vsel %vm1463, %v1527, %v959
      %v1592 = vsel %vm1464, %v1528, %v966
      %v1593 = vsel %vm1465, %v1529, %v973
      %v1594 = vsel %vm1466, %v1530, %v980
      %v1595 = vsel %vm1467, %v1531, %v987
      %v1596 = vsel %vm1468, %v1532, %v994
      %v1597 = vsel %vm1469, %v1533, %v1001
      %v1598 = vsel %vm1470, %v1534, %v1008
      %v1599 = vsel %vm1471, %v1535, %v1015
      %v1600 = vsel %vm1472, %v1536, %v1022
      %v1601 = vsel %vm1473, %v1537, %v1029
      %v1602 = vsel %vm1474, %v1538, %v1036
      %v1603 = vsel %vm1475, %v1539, %v1043
      %v1604 = vsel %vm1476, %v1540, %v1050
      %v1605 = vsel %vm1477, %v1541, %v1057
      %v1606 = vsel %vm1478, %v1542, %v1064
      %v1607 = vsel %vm1479, %v1543, %v1071
      %v1608 = vsel %vm1480, %v1544, %v1078
      %v1609 = vsel %vm1481, %v1545, %v1085
      %v1610 = vsel %vm1482, %v1546, %v1092
      %v1611 = vsel %vm1483, %v1547, %v1099
      %v1612 = vsel %vm1484, %v1548, %v1106
      %v1613 = vsel %vm1485, %v1549, %v1113
      %v1614 = vsel %vm1486, %v1550, %v1120
      %v1615 = vsel %vm1487, %v1551, %v1127
      %v1616 = vsel %vm1488, %v1552, %v1134
      %v1617 = vsel %vm1489, %v1553, %v1141
      %v1618 = vsel %vm1490, %v1554, %v1148
      %v1619 = vsel %vm1491, %v1555, %v1155
      %v1620 = vsel %vm1492, %v1556, %v1162
      %v1621 = vsel %vm1493, %v1557, %v1169
      %v1622 = vsel %vm1494, %v1558, %v1176
      %v1623 = vsel %vm1495, %v1559, %v1183
      %v1624 = vsel %vm1496, %v1560, %v1190
      %v1625 = vsel %vm1497, %v1561, %v1197
      %v1626 = vsel %vm1498, %v1562, %v1204
      %v1627 = vsel %vm1499, %v1563, %v1211
      %v1628 = vsel %vm1500, %v1564, %v1218
      %v1629 = vsel %vm1501, %v1565, %v1225
      %v1630 = vsel %vm1502, %v1566, %v1232
      %v1631 = vsel %vm1503, %v1567, %v1239
      %v1632 = vsel %vm1504, %v1568, %v1246
      %v1633 = vsel %vm1505, %v1569, %v1253
      %v1634 = vsel %vm1506, %v1570, %v1260
      %v1635 = vsel %vm1507, %v1571, %v1267
      %v1636 = vsel %vm1508, %v1572, %v1274
      %v1637 = vsel %vm1509, %v1573, %v1281
      %v1638 = vsel %vm1510, %v1574, %v1288
      %v1639 = vsel %vm1511, %v1575, %v1295
      %v1640 = vsel %vm1512, %v1576, %v1302
      %v1641 = vsel %vm1513, %v1577, %v1309
      %v1642 = vsel %vm1514, %v1578, %v1316
      %v1643 = vsel %vm1515, %v1579, %v1323
      %vm1644 = vcmp.ne.s32.totalorder %v1580, 0
      %vm1645 = vcmp.ne.s32.totalorder %v1581, 0
      %vm1646 = vcmp.ne.s32.totalorder %v1582, 0
      %vm1647 = vcmp.ne.s32.totalorder %v1583, 0
      %vm1648 = vcmp.ne.s32.totalorder %v1584, 0
      %vm1649 = vcmp.ne.s32.totalorder %v1585, 0
      %vm1650 = vcmp.ne.s32.totalorder %v1586, 0
      %vm1651 = vcmp.ne.s32.totalorder %v1587, 0
      %vm1652 = vcmp.ne.s32.totalorder %v1588, 0
      %vm1653 = vcmp.ne.s32.totalorder %v1589, 0
      %vm1654 = vcmp.ne.s32.totalorder %v1590, 0
      %vm1655 = vcmp.ne.s32.totalorder %v1591, 0
      %vm1656 = vcmp.ne.s32.totalorder %v1592, 0
      %vm1657 = vcmp.ne.s32.totalorder %v1593, 0
      %vm1658 = vcmp.ne.s32.totalorder %v1594, 0
      %vm1659 = vcmp.ne.s32.totalorder %v1595, 0
      %vm1660 = vcmp.ne.s32.totalorder %v1596, 0
      %vm1661 = vcmp.ne.s32.totalorder %v1597, 0
      %vm1662 = vcmp.ne.s32.totalorder %v1598, 0
      %vm1663 = vcmp.ne.s32.totalorder %v1599, 0
      %vm1664 = vcmp.ne.s32.totalorder %v1600, 0
      %vm1665 = vcmp.ne.s32.totalorder %v1601, 0
      %vm1666 = vcmp.ne.s32.totalorder %v1602, 0
      %vm1667 = vcmp.ne.s32.totalorder %v1603, 0
      %vm1668 = vcmp.ne.s32.totalorder %v1604, 0
      %vm1669 = vcmp.ne.s32.totalorder %v1605, 0
      %vm1670 = vcmp.ne.s32.totalorder %v1606, 0
      %vm1671 = vcmp.ne.s32.totalorder %v1607, 0
      %vm1672 = vcmp.ne.s32.totalorder %v1608, 0
      %vm1673 = vcmp.ne.s32.totalorder %v1609, 0
      %vm1674 = vcmp.ne.s32.totalorder %v1610, 0
      %vm1675 = vcmp.ne.s32.totalorder %v1611, 0
      %vm1676 = vcmp.ne.s32.totalorder %v1612, 0
      %vm1677 = vcmp.ne.s32.totalorder %v1613, 0
      %vm1678 = vcmp.ne.s32.totalorder %v1614, 0
      %vm1679 = vcmp.ne.s32.totalorder %v1615, 0
      %vm1680 = vcmp.ne.s32.totalorder %v1616, 0
      %vm1681 = vcmp.ne.s32.totalorder %v1617, 0
      %vm1682 = vcmp.ne.s32.totalorder %v1618, 0
      %vm1683 = vcmp.ne.s32.totalorder %v1619, 0
      %vm1684 = vcmp.ne.s32.totalorder %v1620, 0
      %vm1685 = vcmp.ne.s32.totalorder %v1621, 0
      %vm1686 = vcmp.ne.s32.totalorder %v1622, 0
      %vm1687 = vcmp.ne.s32.totalorder %v1623, 0
      %vm1688 = vcmp.ne.s32.totalorder %v1624, 0
      %vm1689 = vcmp.ne.s32.totalorder %v1625, 0
      %vm1690 = vcmp.ne.s32.totalorder %v1626, 0
      %vm1691 = vcmp.ne.s32.totalorder %v1627, 0
      %vm1692 = vcmp.ne.s32.totalorder %v1628, 0
      %vm1693 = vcmp.ne.s32.totalorder %v1629, 0
      %vm1694 = vcmp.ne.s32.totalorder %v1630, 0
      %vm1695 = vcmp.ne.s32.totalorder %v1631, 0
      %vm1696 = vcmp.ne.s32.totalorder %v1632, 0
      %vm1697 = vcmp.ne.s32.totalorder %v1633, 0
      %vm1698 = vcmp.ne.s32.totalorder %v1634, 0
      %vm1699 = vcmp.ne.s32.totalorder %v1635, 0
      %vm1700 = vcmp.ne.s32.totalorder %v1636, 0
      %vm1701 = vcmp.ne.s32.totalorder %v1637, 0
      %vm1702 = vcmp.ne.s32.totalorder %v1638, 0
      %vm1703 = vcmp.ne.s32.totalorder %v1639, 0
      %vm1704 = vcmp.ne.s32.totalorder %v1640, 0
      %vm1705 = vcmp.ne.s32.totalorder %v1641, 0
      %vm1706 = vcmp.ne.s32.totalorder %v1642, 0
      %vm1707 = vcmp.ne.s32.totalorder %v1643, 0
      %vm1708 = vcmp.ne.s32.totalorder %v1580, 7
      %vm1709 = vcmp.ne.s32.totalorder %v1581, 7
      %vm1710 = vcmp.ne.s32.totalorder %v1582, 7
      %vm1711 = vcmp.ne.s32.totalorder %v1583, 7
      %vm1712 = vcmp.ne.s32.totalorder %v1584, 7
      %vm1713 = vcmp.ne.s32.totalorder %v1585, 7
      %vm1714 = vcmp.ne.s32.totalorder %v1586, 7
      %vm1715 = vcmp.ne.s32.totalorder %v1587, 7
      %vm1716 = vcmp.ne.s32.totalorder %v1588, 7
      %vm1717 = vcmp.ne.s32.totalorder %v1589, 7
      %vm1718 = vcmp.ne.s32.totalorder %v1590, 7
      %vm1719 = vcmp.ne.s32.totalorder %v1591, 7
      %vm1720 = vcmp.ne.s32.totalorder %v1592, 7
      %vm1721 = vcmp.ne.s32.totalorder %v1593, 7
      %vm1722 = vcmp.ne.s32.totalorder %v1594, 7
      %vm1723 = vcmp.ne.s32.totalorder %v1595, 7
      %vm1724 = vcmp.ne.s32.totalorder %v1596, 7
      %vm1725 = vcmp.ne.s32.totalorder %v1597, 7
      %vm1726 = vcmp.ne.s32.totalorder %v1598, 7
      %vm1727 = vcmp.ne.s32.totalorder %v1599, 7
      %vm1728 = vcmp.ne.s32.totalorder %v1600, 7
      %vm1729 = vcmp.ne.s32.totalorder %v1601, 7
      %vm1730 = vcmp.ne.s32.totalorder %v1602, 7
      %vm1731 = vcmp.ne.s32.totalorder %v1603, 7
      %vm1732 = vcmp.ne.s32.totalorder %v1604, 7
      %vm1733 = vcmp.ne.s32.totalorder %v1605, 7
      %vm1734 = vcmp.ne.s32.totalorder %v1606, 7
      %vm1735 = vcmp.ne.s32.totalorder %v1607, 7
      %vm1736 = vcmp.ne.s32.totalorder %v1608, 7
      %vm1737 = vcmp.ne.s32.totalorder %v1609, 7
      %vm1738 = vcmp.ne.s32.totalorder %v1610, 7
      %vm1739 = vcmp.ne.s32.totalorder %v1611, 7
      %vm1740 = vcmp.ne.s32.totalorder %v1612, 7
      %vm1741 = vcmp.ne.s32.totalorder %v1613, 7
      %vm1742 = vcmp.ne.s32.totalorder %v1614, 7
      %vm1743 = vcmp.ne.s32.totalorder %v1615, 7
      %vm1744 = vcmp.ne.s32.totalorder %v1616, 7
      %vm1745 = vcmp.ne.s32.totalorder %v1617, 7
      %vm1746 = vcmp.ne.s32.totalorder %v1618, 7
      %vm1747 = vcmp.ne.s32.totalorder %v1619, 7
      %vm1748 = vcmp.ne.s32.totalorder %v1620, 7
      %vm1749 = vcmp.ne.s32.totalorder %v1621, 7
      %vm1750 = vcmp.ne.s32.totalorder %v1622, 7
      %vm1751 = vcmp.ne.s32.totalorder %v1623, 7
      %vm1752 = vcmp.ne.s32.totalorder %v1624, 7
      %vm1753 = vcmp.ne.s32.totalorder %v1625, 7
      %vm1754 = vcmp.ne.s32.totalorder %v1626, 7
      %vm1755 = vcmp.ne.s32.totalorder %v1627, 7
      %vm1756 = vcmp.ne.s32.totalorder %v1628, 7
      %vm1757 = vcmp.ne.s32.totalorder %v1629, 7
      %vm1758 = vcmp.ne.s32.totalorder %v1630, 7
      %vm1759 = vcmp.ne.s32.totalorder %v1631, 7
      %vm1760 = vcmp.ne.s32.totalorder %v1632, 7
      %vm1761 = vcmp.ne.s32.totalorder %v1633, 7
      %vm1762 = vcmp.ne.s32.totalorder %v1634, 7
      %vm1763 = vcmp.ne.s32.totalorder %v1635, 7
      %vm1764 = vcmp.ne.s32.totalorder %v1636, 7
      %vm1765 = vcmp.ne.s32.totalorder %v1637, 7
      %vm1766 = vcmp.ne.s32.totalorder %v1638, 7
      %vm1767 = vcmp.ne.s32.totalorder %v1639, 7
      %vm1768 = vcmp.ne.s32.totalorder %v1640, 7
      %vm1769 = vcmp.ne.s32.totalorder %v1641, 7
      %vm1770 = vcmp.ne.s32.totalorder %v1642, 7
      %vm1771 = vcmp.ne.s32.totalorder %v1643, 7
      %vm1836 = vcmask 1040384
      %v1837 = vrot.slane %v652, 7
      %v1838 = vrot.slane %v654, 7
      %v1839 = vsel %vm1836, %v1837, %v1838
      %v1840 = vrot.slane %v657, 7
      %v1841 = vsel %vm1836, %v1838, %v1840
      %v1842 = vrot.slane %v659, 7
      %v1843 = vsel %vm1836, %v1840, %v1842
      %v1844 = vrot.slane %v662, 7
      %v1845 = vsel %vm1836, %v1842, %v1844
      %v1846 = vrot.slane %v664, 7
      %v1847 = vsel %vm1836, %v1844, %v1846
      %v1848 = vrot.slane %v667, 7
      %v1849 = vsel %vm1836, %v1846, %v1848
      %v1850 = vrot.slane %v669, 7
      %v1851 = vsel %vm1836, %v1848, %v1850
      %v1852 = vrot.slane %v672, 7
      %v1853 = vsel %vm1836, %v1850, %v1852
      %v1854 = vrot.slane %v674, 7
      %v1855 = vsel %vm1836, %v1852, %v1854
      %v1856 = vrot.slane %v677, 7
      %v1857 = vsel %vm1836, %v1854, %v1856
      %v1858 = vrot.slane %v679, 7
      %v1859 = vsel %vm1836, %v1856, %v1858
      %v1860 = vrot.slane %v682, 7
      %v1861 = vsel %vm1836, %v1858, %v1860
      %v1862 = vrot.slane %v684, 7
      %v1863 = vsel %vm1836, %v1860, %v1862
      %v1864 = vrot.slane %v687, 7
      %v1865 = vsel %vm1836, %v1862, %v1864
      %v1866 = vrot.slane %v689, 7
      %v1867 = vsel %vm1836, %v1864, %v1866
      %v1868 = vrot.slane %v692, 7
      %v1869 = vsel %vm1836, %v1866, %v1868
      %v1870 = vrot.slane %v694, 7
      %v1871 = vsel %vm1836, %v1868, %v1870
      %v1872 = vrot.slane %v697, 7
      %v1873 = vsel %vm1836, %v1870, %v1872
      %v1874 = vrot.slane %v699, 7
      %v1875 = vsel %vm1836, %v1872, %v1874
      %v1876 = vrot.slane %v702, 7
      %v1877 = vsel %vm1836, %v1874, %v1876
      %v1878 = vrot.slane %v704, 7
      %v1879 = vsel %vm1836, %v1876, %v1878
      %v1880 = vrot.slane %v707, 7
      %v1881 = vsel %vm1836, %v1878, %v1880
      %v1882 = vrot.slane %v709, 7
      %v1883 = vsel %vm1836, %v1880, %v1882
      %v1884 = vrot.slane %v712, 7
      %v1885 = vsel %vm1836, %v1882, %v1884
      %v1886 = vrot.slane %v714, 7
      %v1887 = vsel %vm1836, %v1884, %v1886
      %v1888 = vrot.slane %v717, 7
      %v1889 = vsel %vm1836, %v1886, %v1888
      %v1890 = vrot.slane %v719, 7
      %v1891 = vsel %vm1836, %v1888, %v1890
      %v1892 = vrot.slane %v722, 7
      %v1893 = vsel %vm1836, %v1890, %v1892
      %v1894 = vrot.slane %v724, 7
      %v1895 = vsel %vm1836, %v1892, %v1894
      %v1896 = vrot.slane %v727, 7
      %v1897 = vsel %vm1836, %v1894, %v1896
      %v1898 = vrot.slane %v729, 7
      %v1899 = vsel %vm1836, %v1896, %v1898
      %v1900 = vrot.slane %v732, 7
      %v1901 = vsel %vm1836, %v1898, %v1900
      %v1902 = vrot.slane %v734, 7
      %v1903 = vsel %vm1836, %v1900, %v1902
      %v1904 = vrot.slane %v737, 7
      %v1905 = vsel %vm1836, %v1902, %v1904
      %v1906 = vrot.slane %v739, 7
      %v1907 = vsel %vm1836, %v1904, %v1906
      %v1908 = vrot.slane %v742, 7
      %v1909 = vsel %vm1836, %v1906, %v1908
      %v1910 = vrot.slane %v744, 7
      %v1911 = vsel %vm1836, %v1908, %v1910
      %v1912 = vrot.slane %v747, 7
      %v1913 = vsel %vm1836, %v1910, %v1912
      %v1914 = vrot.slane %v749, 7
      %v1915 = vsel %vm1836, %v1912, %v1914
      %v1916 = vrot.slane %v752, 7
      %v1917 = vsel %vm1836, %v1914, %v1916
      %v1918 = vrot.slane %v754, 7
      %v1919 = vsel %vm1836, %v1916, %v1918
      %v1920 = vrot.slane %v757, 7
      %v1921 = vsel %vm1836, %v1918, %v1920
      %v1922 = vrot.slane %v759, 7
      %v1923 = vsel %vm1836, %v1920, %v1922
      %v1924 = vrot.slane %v762, 7
      %v1925 = vsel %vm1836, %v1922, %v1924
      %v1926 = vrot.slane %v764, 7
      %v1927 = vsel %vm1836, %v1924, %v1926
      %v1928 = vrot.slane %v767, 7
      %v1929 = vsel %vm1836, %v1926, %v1928
      %v1930 = vrot.slane %v769, 7
      %v1931 = vsel %vm1836, %v1928, %v1930
      %v1932 = vrot.slane %v772, 7
      %v1933 = vsel %vm1836, %v1930, %v1932
      %v1934 = vrot.slane %v774, 7
      %v1935 = vsel %vm1836, %v1932, %v1934
      %v1936 = vrot.slane %v777, 7
      %v1937 = vsel %vm1836, %v1934, %v1936
      %v1938 = vrot.slane %v779, 7
      %v1939 = vsel %vm1836, %v1936, %v1938
      %v1940 = vrot.slane %v782, 7
      %v1941 = vsel %vm1836, %v1938, %v1940
      %v1942 = vrot.slane %v784, 7
      %v1943 = vsel %vm1836, %v1940, %v1942
      %v1944 = vrot.slane %v787, 7
      %v1945 = vsel %vm1836, %v1942, %v1944
      %v1946 = vrot.slane %v789, 7
      %v1947 = vsel %vm1836, %v1944, %v1946
      %v1948 = vrot.slane %v792, 7
      %v1949 = vsel %vm1836, %v1946, %v1948
      %v1950 = vrot.slane %v794, 7
      %v1951 = vsel %vm1836, %v1948, %v1950
      %v1952 = vrot.slane %v797, 7
      %v1953 = vsel %vm1836, %v1950, %v1952
      %v1954 = vrot.slane %v799, 7
      %v1955 = vsel %vm1836, %v1952, %v1954
      %v1956 = vrot.slane %v802, 7
      %v1957 = vsel %vm1836, %v1954, %v1956
      %v1958 = vrot.slane %v804, 7
      %v1959 = vsel %vm1836, %v1956, %v1958
      %v1960 = vrot.slane %v807, 7
      %v1961 = vsel %vm1836, %v1958, %v1960
      %v1962 = vrot.slane %v809, 7
      %v1963 = vsel %vm1836, %v1960, %v1962
      %1964 = vrot.lane.b32.xlu0 %v1837, 120
      %v1965 = vpop.permute.xlu0 %1964
      %1966 = vrot.lane.b32.xlu0 %v1839, 120
      %v1967 = vpop.permute.xlu0 %1966
      %1968 = vrot.lane.b32.xlu0 %v1841, 120
      %v1969 = vpop.permute.xlu0 %1968
      %1970 = vrot.lane.b32.xlu0 %v1843, 120
      %v1971 = vpop.permute.xlu0 %1970
      %1972 = vrot.lane.b32.xlu0 %v1845, 120
      %v1973 = vpop.permute.xlu0 %1972
      %1974 = vrot.lane.b32.xlu0 %v1847, 120
      %v1975 = vpop.permute.xlu0 %1974
      %1976 = vrot.lane.b32.xlu0 %v1849, 120
      %v1977 = vpop.permute.xlu0 %1976
      %1978 = vrot.lane.b32.xlu0 %v1851, 120
      %v1979 = vpop.permute.xlu0 %1978
      %1980 = vrot.lane.b32.xlu0 %v1853, 120
      %v1981 = vpop.permute.xlu0 %1980
      %1982 = vrot.lane.b32.xlu0 %v1855, 120
      %v1983 = vpop.permute.xlu0 %1982
      %1984 = vrot.lane.b32.xlu0 %v1857, 120
      %v1985 = vpop.permute.xlu0 %1984
      %1986 = vrot.lane.b32.xlu0 %v1859, 120
      %v1987 = vpop.permute.xlu0 %1986
      %1988 = vrot.lane.b32.xlu0 %v1861, 120
      %v1989 = vpop.permute.xlu0 %1988
      %1990 = vrot.lane.b32.xlu0 %v1863, 120
      %v1991 = vpop.permute.xlu0 %1990
      %1992 = vrot.lane.b32.xlu0 %v1865, 120
      %v1993 = vpop.permute.xlu0 %1992
      %1994 = vrot.lane.b32.xlu0 %v1867, 120
      %v1995 = vpop.permute.xlu0 %1994
      %1996 = vrot.lane.b32.xlu0 %v1869, 120
      %v1997 = vpop.permute.xlu0 %1996
      %1998 = vrot.lane.b32.xlu0 %v1871, 120
      %v1999 = vpop.permute.xlu0 %1998
      %2000 = vrot.lane.b32.xlu0 %v1873, 120
      %v2001 = vpop.permute.xlu0 %2000
      %2002 = vrot.lane.b32.xlu0 %v1875, 120
      %v2003 = vpop.permute.xlu0 %2002
      %2004 = vrot.lane.b32.xlu0 %v1877, 120
      %v2005 = vpop.permute.xlu0 %2004
      %2006 = vrot.lane.b32.xlu0 %v1879, 120
      %v2007 = vpop.permute.xlu0 %2006
      %2008 = vrot.lane.b32.xlu0 %v1881, 120
      %v2009 = vpop.permute.xlu0 %2008
      %2010 = vrot.lane.b32.xlu0 %v1883, 120
      %v2011 = vpop.permute.xlu0 %2010
      %2012 = vrot.lane.b32.xlu0 %v1885, 120
      %v2013 = vpop.permute.xlu0 %2012
      %2014 = vrot.lane.b32.xlu0 %v1887, 120
      %v2015 = vpop.permute.xlu0 %2014
      %2016 = vrot.lane.b32.xlu0 %v1889, 120
      %v2017 = vpop.permute.xlu0 %2016
      %2018 = vrot.lane.b32.xlu0 %v1891, 120
      %v2019 = vpop.permute.xlu0 %2018
      %2020 = vrot.lane.b32.xlu0 %v1893, 120
      %v2021 = vpop.permute.xlu0 %2020
      %2022 = vrot.lane.b32.xlu0 %v1895, 120
      %v2023 = vpop.permute.xlu0 %2022
      %2024 = vrot.lane.b32.xlu0 %v1897, 120
      %v2025 = vpop.permute.xlu0 %2024
      %2026 = vrot.lane.b32.xlu0 %v1899, 120
      %v2027 = vpop.permute.xlu0 %2026
      %2028 = vrot.lane.b32.xlu0 %v1901, 120
      %v2029 = vpop.permute.xlu0 %2028
      %2030 = vrot.lane.b32.xlu0 %v1903, 120
      %v2031 = vpop.permute.xlu0 %2030
      %2032 = vrot.lane.b32.xlu0 %v1905, 120
      %v2033 = vpop.permute.xlu0 %2032
      %2034 = vrot.lane.b32.xlu0 %v1907, 120
      %v2035 = vpop.permute.xlu0 %2034
      %2036 = vrot.lane.b32.xlu0 %v1909, 120
      %v2037 = vpop.permute.xlu0 %2036
      %2038 = vrot.lane.b32.xlu0 %v1911, 120
      %v2039 = vpop.permute.xlu0 %2038
      %2040 = vrot.lane.b32.xlu0 %v1913, 120
      %v2041 = vpop.permute.xlu0 %2040
      %2042 = vrot.lane.b32.xlu0 %v1915, 120
      %v2043 = vpop.permute.xlu0 %2042
      %2044 = vrot.lane.b32.xlu0 %v1917, 120
      %v2045 = vpop.permute.xlu0 %2044
      %2046 = vrot.lane.b32.xlu0 %v1919, 120
      %v2047 = vpop.permute.xlu0 %2046
      %2048 = vrot.lane.b32.xlu0 %v1921, 120
      %v2049 = vpop.permute.xlu0 %2048
      %2050 = vrot.lane.b32.xlu0 %v1923, 120
      %v2051 = vpop.permute.xlu0 %2050
      %2052 = vrot.lane.b32.xlu0 %v1925, 120
      %v2053 = vpop.permute.xlu0 %2052
      %2054 = vrot.lane.b32.xlu0 %v1927, 120
      %v2055 = vpop.permute.xlu0 %2054
      %2056 = vrot.lane.b32.xlu0 %v1929, 120
      %v2057 = vpop.permute.xlu0 %2056
      %2058 = vrot.lane.b32.xlu0 %v1931, 120
      %v2059 = vpop.permute.xlu0 %2058
      %2060 = vrot.lane.b32.xlu0 %v1933, 120
      %v2061 = vpop.permute.xlu0 %2060
      %2062 = vrot.lane.b32.xlu0 %v1935, 120
      %v2063 = vpop.permute.xlu0 %2062
      %2064 = vrot.lane.b32.xlu0 %v1937, 120
      %v2065 = vpop.permute.xlu0 %2064
      %2066 = vrot.lane.b32.xlu0 %v1939, 120
      %v2067 = vpop.permute.xlu0 %2066
      %2068 = vrot.lane.b32.xlu0 %v1941, 120
      %v2069 = vpop.permute.xlu0 %2068
      %2070 = vrot.lane.b32.xlu0 %v1943, 120
      %v2071 = vpop.permute.xlu0 %2070
      %2072 = vrot.lane.b32.xlu0 %v1945, 120
      %v2073 = vpop.permute.xlu0 %2072
      %2074 = vrot.lane.b32.xlu0 %v1947, 120
      %v2075 = vpop.permute.xlu0 %2074
      %2076 = vrot.lane.b32.xlu0 %v1949, 120
      %v2077 = vpop.permute.xlu0 %2076
      %2078 = vrot.lane.b32.xlu0 %v1951, 120
      %v2079 = vpop.permute.xlu0 %2078
      %2080 = vrot.lane.b32.xlu0 %v1953, 120
      %v2081 = vpop.permute.xlu0 %2080
      %2082 = vrot.lane.b32.xlu0 %v1955, 120
      %v2083 = vpop.permute.xlu0 %2082
      %2084 = vrot.lane.b32.xlu0 %v1957, 120
      %v2085 = vpop.permute.xlu0 %2084
      %2086 = vrot.lane.b32.xlu0 %v1959, 120
      %v2087 = vpop.permute.xlu0 %2086
      %2088 = vrot.lane.b32.xlu0 %v1961, 120
      %v2089 = vpop.permute.xlu0 %2088
      %2090 = vrot.lane.b32.xlu0 %v1963, 120
      %v2091 = vpop.permute.xlu0 %2090
      %v2156 = vsel %vm1836, 0.0, %v1965
      %v2157 = vsel %vm1644, 1, 0
      %v2158 = vsel %vm1645, 1, 0
      %v2159 = vsel %vm1646, 1, 0
      %v2160 = vsel %vm1647, 1, 0
      %v2161 = vsel %vm1648, 1, 0
      %v2162 = vsel %vm1649, 1, 0
      %v2163 = vsel %vm1650, 1, 0
      %v2164 = vsel %vm1651, 1, 0
      %v2165 = vsel %vm1652, 1, 0
      %v2166 = vsel %vm1653, 1, 0
      %v2167 = vsel %vm1654, 1, 0
      %v2168 = vsel %vm1655, 1, 0
      %v2169 = vsel %vm1656, 1, 0
      %v2170 = vsel %vm1657, 1, 0
      %v2171 = vsel %vm1658, 1, 0
      %v2172 = vsel %vm1659, 1, 0
      %v2173 = vsel %vm1660, 1, 0
      %v2174 = vsel %vm1661, 1, 0
      %v2175 = vsel %vm1662, 1, 0
      %v2176 = vsel %vm1663, 1, 0
      %v2177 = vsel %vm1664, 1, 0
      %v2178 = vsel %vm1665, 1, 0
      %v2179 = vsel %vm1666, 1, 0
      %v2180 = vsel %vm1667, 1, 0
      %v2181 = vsel %vm1668, 1, 0
      %v2182 = vsel %vm1669, 1, 0
      %v2183 = vsel %vm1670, 1, 0
      %v2184 = vsel %vm1671, 1, 0
      %v2185 = vsel %vm1672, 1, 0
      %v2186 = vsel %vm1673, 1, 0
      %v2187 = vsel %vm1674, 1, 0
      %v2188 = vsel %vm1675, 1, 0
      %v2189 = vsel %vm1676, 1, 0
      %v2190 = vsel %vm1677, 1, 0
      %v2191 = vsel %vm1678, 1, 0
      %v2192 = vsel %vm1679, 1, 0
      %v2193 = vsel %vm1680, 1, 0
      %v2194 = vsel %vm1681, 1, 0
      %v2195 = vsel %vm1682, 1, 0
      %v2196 = vsel %vm1683, 1, 0
      %v2197 = vsel %vm1684, 1, 0
      %v2198 = vsel %vm1685, 1, 0
      %v2199 = vsel %vm1686, 1, 0
      %v2200 = vsel %vm1687, 1, 0
      %v2201 = vsel %vm1688, 1, 0
      %v2202 = vsel %vm1689, 1, 0
      %v2203 = vsel %vm1690, 1, 0
      %v2204 = vsel %vm1691, 1, 0
      %v2205 = vsel %vm1692, 1, 0
      %v2206 = vsel %vm1693, 1, 0
      %v2207 = vsel %vm1694, 1, 0
      %v2208 = vsel %vm1695, 1, 0
      %v2209 = vsel %vm1696, 1, 0
      %v2210 = vsel %vm1697, 1, 0
      %v2211 = vsel %vm1698, 1, 0
      %v2212 = vsel %vm1699, 1, 0
      %v2213 = vsel %vm1700, 1, 0
      %v2214 = vsel %vm1701, 1, 0
      %v2215 = vsel %vm1702, 1, 0
      %v2216 = vsel %vm1703, 1, 0
      %v2217 = vsel %vm1704, 1, 0
      %v2218 = vsel %vm1705, 1, 0
      %v2219 = vsel %vm1706, 1, 0
      %v2220 = vsel %vm1707, 1, 0
      %vm2221 = vcmp.eq.s32.totalorder %v2157, 1
      %vm2222 = vcmp.eq.s32.totalorder %v2158, 1
      %vm2223 = vcmp.eq.s32.totalorder %v2159, 1
      %vm2224 = vcmp.eq.s32.totalorder %v2160, 1
      %vm2225 = vcmp.eq.s32.totalorder %v2161, 1
      %vm2226 = vcmp.eq.s32.totalorder %v2162, 1
      %vm2227 = vcmp.eq.s32.totalorder %v2163, 1
      %vm2228 = vcmp.eq.s32.totalorder %v2164, 1
      %vm2229 = vcmp.eq.s32.totalorder %v2165, 1
      %vm2230 = vcmp.eq.s32.totalorder %v2166, 1
      %vm2231 = vcmp.eq.s32.totalorder %v2167, 1
      %vm2232 = vcmp.eq.s32.totalorder %v2168, 1
      %vm2233 = vcmp.eq.s32.totalorder %v2169, 1
      %vm2234 = vcmp.eq.s32.totalorder %v2170, 1
      %vm2235 = vcmp.eq.s32.totalorder %v2171, 1
      %vm2236 = vcmp.eq.s32.totalorder %v2172, 1
      %vm2237 = vcmp.eq.s32.totalorder %v2173, 1
      %vm2238 = vcmp.eq.s32.totalorder %v2174, 1
      %vm2239 = vcmp.eq.s32.totalorder %v2175, 1
      %vm2240 = vcmp.eq.s32.totalorder %v2176, 1
      %vm2241 = vcmp.eq.s32.totalorder %v2177, 1
      %vm2242 = vcmp.eq.s32.totalorder %v2178, 1
      %vm2243 = vcmp.eq.s32.totalorder %v2179, 1
      %vm2244 = vcmp.eq.s32.totalorder %v2180, 1
      %vm2245 = vcmp.eq.s32.totalorder %v2181, 1
      %vm2246 = vcmp.eq.s32.totalorder %v2182, 1
      %vm2247 = vcmp.eq.s32.totalorder %v2183, 1
      %vm2248 = vcmp.eq.s32.totalorder %v2184, 1
      %vm2249 = vcmp.eq.s32.totalorder %v2185, 1
      %vm2250 = vcmp.eq.s32.totalorder %v2186, 1
      %vm2251 = vcmp.eq.s32.totalorder %v2187, 1
      %vm2252 = vcmp.eq.s32.totalorder %v2188, 1
      %vm2253 = vcmp.eq.s32.totalorder %v2189, 1
      %vm2254 = vcmp.eq.s32.totalorder %v2190, 1
      %vm2255 = vcmp.eq.s32.totalorder %v2191, 1
      %vm2256 = vcmp.eq.s32.totalorder %v2192, 1
      %vm2257 = vcmp.eq.s32.totalorder %v2193, 1
      %vm2258 = vcmp.eq.s32.totalorder %v2194, 1
      %vm2259 = vcmp.eq.s32.totalorder %v2195, 1
      %vm2260 = vcmp.eq.s32.totalorder %v2196, 1
      %vm2261 = vcmp.eq.s32.totalorder %v2197, 1
      %vm2262 = vcmp.eq.s32.totalorder %v2198, 1
      %vm2263 = vcmp.eq.s32.totalorder %v2199, 1
      %vm2264 = vcmp.eq.s32.totalorder %v2200, 1
      %vm2265 = vcmp.eq.s32.totalorder %v2201, 1
      %vm2266 = vcmp.eq.s32.totalorder %v2202, 1
      %vm2267 = vcmp.eq.s32.totalorder %v2203, 1
      %vm2268 = vcmp.eq.s32.totalorder %v2204, 1
      %vm2269 = vcmp.eq.s32.totalorder %v2205, 1
      %vm2270 = vcmp.eq.s32.totalorder %v2206, 1
      %vm2271 = vcmp.eq.s32.totalorder %v2207, 1
      %vm2272 = vcmp.eq.s32.totalorder %v2208, 1
      %vm2273 = vcmp.eq.s32.totalorder %v2209, 1
      %vm2274 = vcmp.eq.s32.totalorder %v2210, 1
      %vm2275 = vcmp.eq.s32.totalorder %v2211, 1
      %vm2276 = vcmp.eq.s32.totalorder %v2212, 1
      %vm2277 = vcmp.eq.s32.totalorder %v2213, 1
      %vm2278 = vcmp.eq.s32.totalorder %v2214, 1
      %vm2279 = vcmp.eq.s32.totalorder %v2215, 1
      %vm2280 = vcmp.eq.s32.totalorder %v2216, 1
      %vm2281 = vcmp.eq.s32.totalorder %v2217, 1
      %vm2282 = vcmp.eq.s32.totalorder %v2218, 1
      %vm2283 = vcmp.eq.s32.totalorder %v2219, 1
      %vm2284 = vcmp.eq.s32.totalorder %v2220, 1
      %v2285 = vsel %vm2221, %v2156, 0.0
      %v2286 = vsel %vm2222, %v1967, 0.0
      %v2287 = vsel %vm2223, %v1969, 0.0
      %v2288 = vsel %vm2224, %v1971, 0.0
      %v2289 = vsel %vm2225, %v1973, 0.0
      %v2290 = vsel %vm2226, %v1975, 0.0
      %v2291 = vsel %vm2227, %v1977, 0.0
      %v2292 = vsel %vm2228, %v1979, 0.0
      %v2293 = vsel %vm2229, %v1981, 0.0
      %v2294 = vsel %vm2230, %v1983, 0.0
      %v2295 = vsel %vm2231, %v1985, 0.0
      %v2296 = vsel %vm2232, %v1987, 0.0
      %v2297 = vsel %vm2233, %v1989, 0.0
      %v2298 = vsel %vm2234, %v1991, 0.0
      %v2299 = vsel %vm2235, %v1993, 0.0
      %v2300 = vsel %vm2236, %v1995, 0.0
      %v2301 = vsel %vm2237, %v1997, 0.0
      %v2302 = vsel %vm2238, %v1999, 0.0
      %v2303 = vsel %vm2239, %v2001, 0.0
      %v2304 = vsel %vm2240, %v2003, 0.0
      %v2305 = vsel %vm2241, %v2005, 0.0
      %v2306 = vsel %vm2242, %v2007, 0.0
      %v2307 = vsel %vm2243, %v2009, 0.0
      %v2308 = vsel %vm2244, %v2011, 0.0
      %v2309 = vsel %vm2245, %v2013, 0.0
      %v2310 = vsel %vm2246, %v2015, 0.0
      %v2311 = vsel %vm2247, %v2017, 0.0
      %v2312 = vsel %vm2248, %v2019, 0.0
      %v2313 = vsel %vm2249, %v2021, 0.0
      %v2314 = vsel %vm2250, %v2023, 0.0
      %v2315 = vsel %vm2251, %v2025, 0.0
      %v2316 = vsel %vm2252, %v2027, 0.0
      %v2317 = vsel %vm2253, %v2029, 0.0
      %v2318 = vsel %vm2254, %v2031, 0.0
      %v2319 = vsel %vm2255, %v2033, 0.0
      %v2320 = vsel %vm2256, %v2035, 0.0
      %v2321 = vsel %vm2257, %v2037, 0.0
      %v2322 = vsel %vm2258, %v2039, 0.0
      %v2323 = vsel %vm2259, %v2041, 0.0
      %v2324 = vsel %vm2260, %v2043, 0.0
      %v2325 = vsel %vm2261, %v2045, 0.0
      %v2326 = vsel %vm2262, %v2047, 0.0
      %v2327 = vsel %vm2263, %v2049, 0.0
      %v2328 = vsel %vm2264, %v2051, 0.0
      %v2329 = vsel %vm2265, %v2053, 0.0
      %v2330 = vsel %vm2266, %v2055, 0.0
      %v2331 = vsel %vm2267, %v2057, 0.0
      %v2332 = vsel %vm2268, %v2059, 0.0
      %v2333 = vsel %vm2269, %v2061, 0.0
      %v2334 = vsel %vm2270, %v2063, 0.0
      %v2335 = vsel %vm2271, %v2065, 0.0
      %v2336 = vsel %vm2272, %v2067, 0.0
      %v2337 = vsel %vm2273, %v2069, 0.0
      %v2338 = vsel %vm2274, %v2071, 0.0
      %v2339 = vsel %vm2275, %v2073, 0.0
      %v2340 = vsel %vm2276, %v2075, 0.0
      %v2341 = vsel %vm2277, %v2077, 0.0
      %v2342 = vsel %vm2278, %v2079, 0.0
      %v2343 = vsel %vm2279, %v2081, 0.0
      %v2344 = vsel %vm2280, %v2083, 0.0
      %v2345 = vsel %vm2281, %v2085, 0.0
      %v2346 = vsel %vm2282, %v2087, 0.0
      %v2347 = vsel %vm2283, %v2089, 0.0
      %v2348 = vsel %vm2284, %v2091, 0.0
      %2413 = vrot.lane.b32.xlu0 %v2285, 4
      %v2414 = vpop.permute.xlu0 %2413
      %2415 = vrot.lane.b32.xlu0 %v2286, 4
      %v2416 = vpop.permute.xlu0 %2415
      %2417 = vrot.lane.b32.xlu0 %v2287, 4
      %v2418 = vpop.permute.xlu0 %2417
      %2419 = vrot.lane.b32.xlu0 %v2288, 4
      %v2420 = vpop.permute.xlu0 %2419
      %2421 = vrot.lane.b32.xlu0 %v2289, 4
      %v2422 = vpop.permute.xlu0 %2421
      %2423 = vrot.lane.b32.xlu0 %v2290, 4
      %v2424 = vpop.permute.xlu0 %2423
      %2425 = vrot.lane.b32.xlu0 %v2291, 4
      %v2426 = vpop.permute.xlu0 %2425
      %2427 = vrot.lane.b32.xlu0 %v2292, 4
      %v2428 = vpop.permute.xlu0 %2427
      %2429 = vrot.lane.b32.xlu0 %v2293, 4
      %v2430 = vpop.permute.xlu0 %2429
      %2431 = vrot.lane.b32.xlu0 %v2294, 4
      %v2432 = vpop.permute.xlu0 %2431
      %2433 = vrot.lane.b32.xlu0 %v2295, 4
      %v2434 = vpop.permute.xlu0 %2433
      %2435 = vrot.lane.b32.xlu0 %v2296, 4
      %v2436 = vpop.permute.xlu0 %2435
      %2437 = vrot.lane.b32.xlu0 %v2297, 4
      %v2438 = vpop.permute.xlu0 %2437
      %2439 = vrot.lane.b32.xlu0 %v2298, 4
      %v2440 = vpop.permute.xlu0 %2439
      %2441 = vrot.lane.b32.xlu0 %v2299, 4
      %v2442 = vpop.permute.xlu0 %2441
      %2443 = vrot.lane.b32.xlu0 %v2300, 4
      %v2444 = vpop.permute.xlu0 %2443
      %2445 = vrot.lane.b32.xlu0 %v2301, 4
      %v2446 = vpop.permute.xlu0 %2445
      %2447 = vrot.lane.b32.xlu0 %v2302, 4
      %v2448 = vpop.permute.xlu0 %2447
      %2449 = vrot.lane.b32.xlu0 %v2303, 4
      %v2450 = vpop.permute.xlu0 %2449
      %2451 = vrot.lane.b32.xlu0 %v2304, 4
      %v2452 = vpop.permute.xlu0 %2451
      %2453 = vrot.lane.b32.xlu0 %v2305, 4
      %v2454 = vpop.permute.xlu0 %2453
      %2455 = vrot.lane.b32.xlu0 %v2306, 4
      %v2456 = vpop.permute.xlu0 %2455
      %2457 = vrot.lane.b32.xlu0 %v2307, 4
      %v2458 = vpop.permute.xlu0 %2457
      %2459 = vrot.lane.b32.xlu0 %v2308, 4
      %v2460 = vpop.permute.xlu0 %2459
      %2461 = vrot.lane.b32.xlu0 %v2309, 4
      %v2462 = vpop.permute.xlu0 %2461
      %2463 = vrot.lane.b32.xlu0 %v2310, 4
      %v2464 = vpop.permute.xlu0 %2463
      %2465 = vrot.lane.b32.xlu0 %v2311, 4
      %v2466 = vpop.permute.xlu0 %2465
      %2467 = vrot.lane.b32.xlu0 %v2312, 4
      %v2468 = vpop.permute.xlu0 %2467
      %2469 = vrot.lane.b32.xlu0 %v2313, 4
      %v2470 = vpop.permute.xlu0 %2469
      %2471 = vrot.lane.b32.xlu0 %v2314, 4
      %v2472 = vpop.permute.xlu0 %2471
      %2473 = vrot.lane.b32.xlu0 %v2315, 4
      %v2474 = vpop.permute.xlu0 %2473
      %2475 = vrot.lane.b32.xlu0 %v2316, 4
      %v2476 = vpop.permute.xlu0 %2475
      %2477 = vrot.lane.b32.xlu0 %v2317, 4
      %v2478 = vpop.permute.xlu0 %2477
      %2479 = vrot.lane.b32.xlu0 %v2318, 4
      %v2480 = vpop.permute.xlu0 %2479
      %2481 = vrot.lane.b32.xlu0 %v2319, 4
      %v2482 = vpop.permute.xlu0 %2481
      %2483 = vrot.lane.b32.xlu0 %v2320, 4
      %v2484 = vpop.permute.xlu0 %2483
      %2485 = vrot.lane.b32.xlu0 %v2321, 4
      %v2486 = vpop.permute.xlu0 %2485
      %2487 = vrot.lane.b32.xlu0 %v2322, 4
      %v2488 = vpop.permute.xlu0 %2487
      %2489 = vrot.lane.b32.xlu0 %v2323, 4
      %v2490 = vpop.permute.xlu0 %2489
      %2491 = vrot.lane.b32.xlu0 %v2324, 4
      %v2492 = vpop.permute.xlu0 %2491
      %2493 = vrot.lane.b32.xlu0 %v2325, 4
      %v2494 = vpop.permute.xlu0 %2493
      %2495 = vrot.lane.b32.xlu0 %v2326, 4
      %v2496 = vpop.permute.xlu0 %2495
      %2497 = vrot.lane.b32.xlu0 %v2327, 4
      %v2498 = vpop.permute.xlu0 %2497
      %2499 = vrot.lane.b32.xlu0 %v2328, 4
      %v2500 = vpop.permute.xlu0 %2499
      %2501 = vrot.lane.b32.xlu0 %v2329, 4
      %v2502 = vpop.permute.xlu0 %2501
      %2503 = vrot.lane.b32.xlu0 %v2330, 4
      %v2504 = vpop.permute.xlu0 %2503
      %2505 = vrot.lane.b32.xlu0 %v2331, 4
      %v2506 = vpop.permute.xlu0 %2505
      %2507 = vrot.lane.b32.xlu0 %v2332, 4
      %v2508 = vpop.permute.xlu0 %2507
      %2509 = vrot.lane.b32.xlu0 %v2333, 4
      %v2510 = vpop.permute.xlu0 %2509
      %2511 = vrot.lane.b32.xlu0 %v2334, 4
      %v2512 = vpop.permute.xlu0 %2511
      %2513 = vrot.lane.b32.xlu0 %v2335, 4
      %v2514 = vpop.permute.xlu0 %2513
      %2515 = vrot.lane.b32.xlu0 %v2336, 4
      %v2516 = vpop.permute.xlu0 %2515
      %2517 = vrot.lane.b32.xlu0 %v2337, 4
      %v2518 = vpop.permute.xlu0 %2517
      %2519 = vrot.lane.b32.xlu0 %v2338, 4
      %v2520 = vpop.permute.xlu0 %2519
      %2521 = vrot.lane.b32.xlu0 %v2339, 4
      %v2522 = vpop.permute.xlu0 %2521
      %2523 = vrot.lane.b32.xlu0 %v2340, 4
      %v2524 = vpop.permute.xlu0 %2523
      %2525 = vrot.lane.b32.xlu0 %v2341, 4
      %v2526 = vpop.permute.xlu0 %2525
      %2527 = vrot.lane.b32.xlu0 %v2342, 4
      %v2528 = vpop.permute.xlu0 %2527
      %2529 = vrot.lane.b32.xlu0 %v2343, 4
      %v2530 = vpop.permute.xlu0 %2529
      %2531 = vrot.lane.b32.xlu0 %v2344, 4
      %v2532 = vpop.permute.xlu0 %2531
      %2533 = vrot.lane.b32.xlu0 %v2345, 4
      %v2534 = vpop.permute.xlu0 %2533
      %2535 = vrot.lane.b32.xlu0 %v2346, 4
      %v2536 = vpop.permute.xlu0 %2535
      %2537 = vrot.lane.b32.xlu0 %v2347, 4
      %v2538 = vpop.permute.xlu0 %2537
      %2539 = vrot.lane.b32.xlu0 %v2348, 4
      %v2540 = vpop.permute.xlu0 %2539
      %v2605 = vadd.f32 %v652, %v2414
      %v2606 = vadd.f32 %v654, %v2416
      %v2607 = vadd.f32 %v657, %v2418
      %v2608 = vadd.f32 %v659, %v2420
      %v2609 = vadd.f32 %v662, %v2422
      %v2610 = vadd.f32 %v664, %v2424
      %v2611 = vadd.f32 %v667, %v2426
      %v2612 = vadd.f32 %v669, %v2428
      %v2613 = vadd.f32 %v672, %v2430
      %v2614 = vadd.f32 %v674, %v2432
      %v2615 = vadd.f32 %v677, %v2434
      %v2616 = vadd.f32 %v679, %v2436
      %v2617 = vadd.f32 %v682, %v2438
      %v2618 = vadd.f32 %v684, %v2440
      %v2619 = vadd.f32 %v687, %v2442
      %v2620 = vadd.f32 %v689, %v2444
      %v2621 = vadd.f32 %v692, %v2446
      %v2622 = vadd.f32 %v694, %v2448
      %v2623 = vadd.f32 %v697, %v2450
      %v2624 = vadd.f32 %v699, %v2452
      %v2625 = vadd.f32 %v702, %v2454
      %v2626 = vadd.f32 %v704, %v2456
      %v2627 = vadd.f32 %v707, %v2458
      %v2628 = vadd.f32 %v709, %v2460
      %v2629 = vadd.f32 %v712, %v2462
      %v2630 = vadd.f32 %v714, %v2464
      %v2631 = vadd.f32 %v717, %v2466
      %v2632 = vadd.f32 %v719, %v2468
      %v2633 = vadd.f32 %v722, %v2470
      %v2634 = vadd.f32 %v724, %v2472
      %v2635 = vadd.f32 %v727, %v2474
      %v2636 = vadd.f32 %v729, %v2476
      %v2637 = vadd.f32 %v732, %v2478
      %v2638 = vadd.f32 %v734, %v2480
      %v2639 = vadd.f32 %v737, %v2482
      %v2640 = vadd.f32 %v739, %v2484
      %v2641 = vadd.f32 %v742, %v2486
      %v2642 = vadd.f32 %v744, %v2488
      %v2643 = vadd.f32 %v747, %v2490
      %v2644 = vadd.f32 %v749, %v2492
      %v2645 = vadd.f32 %v752, %v2494
      %v2646 = vadd.f32 %v754, %v2496
      %v2647 = vadd.f32 %v757, %v2498
      %v2648 = vadd.f32 %v759, %v2500
      %v2649 = vadd.f32 %v762, %v2502
      %v2650 = vadd.f32 %v764, %v2504
      %v2651 = vadd.f32 %v767, %v2506
      %v2652 = vadd.f32 %v769, %v2508
      %v2653 = vadd.f32 %v772, %v2510
      %v2654 = vadd.f32 %v774, %v2512
      %v2655 = vadd.f32 %v777, %v2514
      %v2656 = vadd.f32 %v779, %v2516
      %v2657 = vadd.f32 %v782, %v2518
      %v2658 = vadd.f32 %v784, %v2520
      %v2659 = vadd.f32 %v787, %v2522
      %v2660 = vadd.f32 %v789, %v2524
      %v2661 = vadd.f32 %v792, %v2526
      %v2662 = vadd.f32 %v794, %v2528
      %v2663 = vadd.f32 %v797, %v2530
      %v2664 = vadd.f32 %v799, %v2532
      %v2665 = vadd.f32 %v802, %v2534
      %v2666 = vadd.f32 %v804, %v2536
      %v2667 = vadd.f32 %v807, %v2538
      %v2668 = vadd.f32 %v809, %v2540
      %vm2669 = vcmask 1046528
      %v2670 = vrot.slane %v652, 1
      %v2671 = vrot.slane %v654, 1
      %v2672 = vsel %vm2669, %v2670, %v2671
      %v2673 = vrot.slane %v657, 1
      %v2674 = vsel %vm2669, %v2671, %v2673
      %v2675 = vrot.slane %v659, 1
      %v2676 = vsel %vm2669, %v2673, %v2675
      %v2677 = vrot.slane %v662, 1
      %v2678 = vsel %vm2669, %v2675, %v2677
      %v2679 = vrot.slane %v664, 1
      %v2680 = vsel %vm2669, %v2677, %v2679
      %v2681 = vrot.slane %v667, 1
      %v2682 = vsel %vm2669, %v2679, %v2681
      %v2683 = vrot.slane %v669, 1
      %v2684 = vsel %vm2669, %v2681, %v2683
      %v2685 = vrot.slane %v672, 1
      %v2686 = vsel %vm2669, %v2683, %v2685
      %v2687 = vrot.slane %v674, 1
      %v2688 = vsel %vm2669, %v2685, %v2687
      %v2689 = vrot.slane %v677, 1
      %v2690 = vsel %vm2669, %v2687, %v2689
      %v2691 = vrot.slane %v679, 1
      %v2692 = vsel %vm2669, %v2689, %v2691
      %v2693 = vrot.slane %v682, 1
      %v2694 = vsel %vm2669, %v2691, %v2693
      %v2695 = vrot.slane %v684, 1
      %v2696 = vsel %vm2669, %v2693, %v2695
      %v2697 = vrot.slane %v687, 1
      %v2698 = vsel %vm2669, %v2695, %v2697
      %v2699 = vrot.slane %v689, 1
      %v2700 = vsel %vm2669, %v2697, %v2699
      %v2701 = vrot.slane %v692, 1
      %v2702 = vsel %vm2669, %v2699, %v2701
      %v2703 = vrot.slane %v694, 1
      %v2704 = vsel %vm2669, %v2701, %v2703
      %v2705 = vrot.slane %v697, 1
      %v2706 = vsel %vm2669, %v2703, %v2705
      %v2707 = vrot.slane %v699, 1
      %v2708 = vsel %vm2669, %v2705, %v2707
      %v2709 = vrot.slane %v702, 1
      %v2710 = vsel %vm2669, %v2707, %v2709
      %v2711 = vrot.slane %v704, 1
      %v2712 = vsel %vm2669, %v2709, %v2711
      %v2713 = vrot.slane %v707, 1
      %v2714 = vsel %vm2669, %v2711, %v2713
      %v2715 = vrot.slane %v709, 1
      %v2716 = vsel %vm2669, %v2713, %v2715
      %v2717 = vrot.slane %v712, 1
      %v2718 = vsel %vm2669, %v2715, %v2717
      %v2719 = vrot.slane %v714, 1
      %v2720 = vsel %vm2669, %v2717, %v2719
      %v2721 = vrot.slane %v717, 1
      %v2722 = vsel %vm2669, %v2719, %v2721
      %v2723 = vrot.slane %v719, 1
      %v2724 = vsel %vm2669, %v2721, %v2723
      %v2725 = vrot.slane %v722, 1
      %v2726 = vsel %vm2669, %v2723, %v2725
      %v2727 = vrot.slane %v724, 1
      %v2728 = vsel %vm2669, %v2725, %v2727
      %v2729 = vrot.slane %v727, 1
      %v2730 = vsel %vm2669, %v2727, %v2729
      %v2731 = vrot.slane %v729, 1
      %v2732 = vsel %vm2669, %v2729, %v2731
      %v2733 = vrot.slane %v732, 1
      %v2734 = vsel %vm2669, %v2731, %v2733
      %v2735 = vrot.slane %v734, 1
      %v2736 = vsel %vm2669, %v2733, %v2735
      %v2737 = vrot.slane %v737, 1
      %v2738 = vsel %vm2669, %v2735, %v2737
      %v2739 = vrot.slane %v739, 1
      %v2740 = vsel %vm2669, %v2737, %v2739
      %v2741 = vrot.slane %v742, 1
      %v2742 = vsel %vm2669, %v2739, %v2741
      %v2743 = vrot.slane %v744, 1
      %v2744 = vsel %vm2669, %v2741, %v2743
      %v2745 = vrot.slane %v747, 1
      %v2746 = vsel %vm2669, %v2743, %v2745
      %v2747 = vrot.slane %v749, 1
      %v2748 = vsel %vm2669, %v2745, %v2747
      %v2749 = vrot.slane %v752, 1
      %v2750 = vsel %vm2669, %v2747, %v2749
      %v2751 = vrot.slane %v754, 1
      %v2752 = vsel %vm2669, %v2749, %v2751
      %v2753 = vrot.slane %v757, 1
      %v2754 = vsel %vm2669, %v2751, %v2753
      %v2755 = vrot.slane %v759, 1
      %v2756 = vsel %vm2669, %v2753, %v2755
      %v2757 = vrot.slane %v762, 1
      %v2758 = vsel %vm2669, %v2755, %v2757
      %v2759 = vrot.slane %v764, 1
      %v2760 = vsel %vm2669, %v2757, %v2759
      %v2761 = vrot.slane %v767, 1
      %v2762 = vsel %vm2669, %v2759, %v2761
      %v2763 = vrot.slane %v769, 1
      %v2764 = vsel %vm2669, %v2761, %v2763
      %v2765 = vrot.slane %v772, 1
      %v2766 = vsel %vm2669, %v2763, %v2765
      %v2767 = vrot.slane %v774, 1
      %v2768 = vsel %vm2669, %v2765, %v2767
      %v2769 = vrot.slane %v777, 1
      %v2770 = vsel %vm2669, %v2767, %v2769
      %v2771 = vrot.slane %v779, 1
      %v2772 = vsel %vm2669, %v2769, %v2771
      %v2773 = vrot.slane %v782, 1
      %v2774 = vsel %vm2669, %v2771, %v2773
      %v2775 = vrot.slane %v784, 1
      %v2776 = vsel %vm2669, %v2773, %v2775
      %v2777 = vrot.slane %v787, 1
      %v2778 = vsel %vm2669, %v2775, %v2777
      %v2779 = vrot.slane %v789, 1
      %v2780 = vsel %vm2669, %v2777, %v2779
      %v2781 = vrot.slane %v792, 1
      %v2782 = vsel %vm2669, %v2779, %v2781
      %v2783 = vrot.slane %v794, 1
      %v2784 = vsel %vm2669, %v2781, %v2783
      %v2785 = vrot.slane %v797, 1
      %v2786 = vsel %vm2669, %v2783, %v2785
      %v2787 = vrot.slane %v799, 1
      %v2788 = vsel %vm2669, %v2785, %v2787
      %v2789 = vrot.slane %v802, 1
      %v2790 = vsel %vm2669, %v2787, %v2789
      %v2791 = vrot.slane %v804, 1
      %v2792 = vsel %vm2669, %v2789, %v2791
      %v2793 = vrot.slane %v807, 1
      %v2794 = vsel %vm2669, %v2791, %v2793
      %v2795 = vrot.slane %v809, 1
      %v2796 = vsel %vm2669, %v2793, %v2795
      %v2861 = vsel %vm2669, %v2795, 0.0
      %v2862 = vsel %vm1708, 1, 0
      %v2863 = vsel %vm1709, 1, 0
      %v2864 = vsel %vm1710, 1, 0
      %v2865 = vsel %vm1711, 1, 0
      %v2866 = vsel %vm1712, 1, 0
      %v2867 = vsel %vm1713, 1, 0
      %v2868 = vsel %vm1714, 1, 0
      %v2869 = vsel %vm1715, 1, 0
      %v2870 = vsel %vm1716, 1, 0
      %v2871 = vsel %vm1717, 1, 0
      %v2872 = vsel %vm1718, 1, 0
      %v2873 = vsel %vm1719, 1, 0
      %v2874 = vsel %vm1720, 1, 0
      %v2875 = vsel %vm1721, 1, 0
      %v2876 = vsel %vm1722, 1, 0
      %v2877 = vsel %vm1723, 1, 0
      %v2878 = vsel %vm1724, 1, 0
      %v2879 = vsel %vm1725, 1, 0
      %v2880 = vsel %vm1726, 1, 0
      %v2881 = vsel %vm1727, 1, 0
      %v2882 = vsel %vm1728, 1, 0
      %v2883 = vsel %vm1729, 1, 0
      %v2884 = vsel %vm1730, 1, 0
      %v2885 = vsel %vm1731, 1, 0
      %v2886 = vsel %vm1732, 1, 0
      %v2887 = vsel %vm1733, 1, 0
      %v2888 = vsel %vm1734, 1, 0
      %v2889 = vsel %vm1735, 1, 0
      %v2890 = vsel %vm1736, 1, 0
      %v2891 = vsel %vm1737, 1, 0
      %v2892 = vsel %vm1738, 1, 0
      %v2893 = vsel %vm1739, 1, 0
      %v2894 = vsel %vm1740, 1, 0
      %v2895 = vsel %vm1741, 1, 0
      %v2896 = vsel %vm1742, 1, 0
      %v2897 = vsel %vm1743, 1, 0
      %v2898 = vsel %vm1744, 1, 0
      %v2899 = vsel %vm1745, 1, 0
      %v2900 = vsel %vm1746, 1, 0
      %v2901 = vsel %vm1747, 1, 0
      %v2902 = vsel %vm1748, 1, 0
      %v2903 = vsel %vm1749, 1, 0
      %v2904 = vsel %vm1750, 1, 0
      %v2905 = vsel %vm1751, 1, 0
      %v2906 = vsel %vm1752, 1, 0
      %v2907 = vsel %vm1753, 1, 0
      %v2908 = vsel %vm1754, 1, 0
      %v2909 = vsel %vm1755, 1, 0
      %v2910 = vsel %vm1756, 1, 0
      %v2911 = vsel %vm1757, 1, 0
      %v2912 = vsel %vm1758, 1, 0
      %v2913 = vsel %vm1759, 1, 0
      %v2914 = vsel %vm1760, 1, 0
      %v2915 = vsel %vm1761, 1, 0
      %v2916 = vsel %vm1762, 1, 0
      %v2917 = vsel %vm1763, 1, 0
      %v2918 = vsel %vm1764, 1, 0
      %v2919 = vsel %vm1765, 1, 0
      %v2920 = vsel %vm1766, 1, 0
      %v2921 = vsel %vm1767, 1, 0
      %v2922 = vsel %vm1768, 1, 0
      %v2923 = vsel %vm1769, 1, 0
      %v2924 = vsel %vm1770, 1, 0
      %v2925 = vsel %vm1771, 1, 0
      %vm2926 = vcmp.eq.s32.totalorder %v2862, 1
      %vm2927 = vcmp.eq.s32.totalorder %v2863, 1
      %vm2928 = vcmp.eq.s32.totalorder %v2864, 1
      %vm2929 = vcmp.eq.s32.totalorder %v2865, 1
      %vm2930 = vcmp.eq.s32.totalorder %v2866, 1
      %vm2931 = vcmp.eq.s32.totalorder %v2867, 1
      %vm2932 = vcmp.eq.s32.totalorder %v2868, 1
      %vm2933 = vcmp.eq.s32.totalorder %v2869, 1
      %vm2934 = vcmp.eq.s32.totalorder %v2870, 1
      %vm2935 = vcmp.eq.s32.totalorder %v2871, 1
      %vm2936 = vcmp.eq.s32.totalorder %v2872, 1
      %vm2937 = vcmp.eq.s32.totalorder %v2873, 1
      %vm2938 = vcmp.eq.s32.totalorder %v2874, 1
      %vm2939 = vcmp.eq.s32.totalorder %v2875, 1
      %vm2940 = vcmp.eq.s32.totalorder %v2876, 1
      %vm2941 = vcmp.eq.s32.totalorder %v2877, 1
      %vm2942 = vcmp.eq.s32.totalorder %v2878, 1
      %vm2943 = vcmp.eq.s32.totalorder %v2879, 1
      %vm2944 = vcmp.eq.s32.totalorder %v2880, 1
      %vm2945 = vcmp.eq.s32.totalorder %v2881, 1
      %vm2946 = vcmp.eq.s32.totalorder %v2882, 1
      %vm2947 = vcmp.eq.s32.totalorder %v2883, 1
      %vm2948 = vcmp.eq.s32.totalorder %v2884, 1
      %vm2949 = vcmp.eq.s32.totalorder %v2885, 1
      %vm2950 = vcmp.eq.s32.totalorder %v2886, 1
      %vm2951 = vcmp.eq.s32.totalorder %v2887, 1
      %vm2952 = vcmp.eq.s32.totalorder %v2888, 1
      %vm2953 = vcmp.eq.s32.totalorder %v2889, 1
      %vm2954 = vcmp.eq.s32.totalorder %v2890, 1
      %vm2955 = vcmp.eq.s32.totalorder %v2891, 1
      %vm2956 = vcmp.eq.s32.totalorder %v2892, 1
      %vm2957 = vcmp.eq.s32.totalorder %v2893, 1
      %vm2958 = vcmp.eq.s32.totalorder %v2894, 1
      %vm2959 = vcmp.eq.s32.totalorder %v2895, 1
      %vm2960 = vcmp.eq.s32.totalorder %v2896, 1
      %vm2961 = vcmp.eq.s32.totalorder %v2897, 1
      %vm2962 = vcmp.eq.s32.totalorder %v2898, 1
      %vm2963 = vcmp.eq.s32.totalorder %v2899, 1
      %vm2964 = vcmp.eq.s32.totalorder %v2900, 1
      %vm2965 = vcmp.eq.s32.totalorder %v2901, 1
      %vm2966 = vcmp.eq.s32.totalorder %v2902, 1
      %vm2967 = vcmp.eq.s32.totalorder %v2903, 1
      %vm2968 = vcmp.eq.s32.totalorder %v2904, 1
      %vm2969 = vcmp.eq.s32.totalorder %v2905, 1
      %vm2970 = vcmp.eq.s32.totalorder %v2906, 1
      %vm2971 = vcmp.eq.s32.totalorder %v2907, 1
      %vm2972 = vcmp.eq.s32.totalorder %v2908, 1
      %vm2973 = vcmp.eq.s32.totalorder %v2909, 1
      %vm2974 = vcmp.eq.s32.totalorder %v2910, 1
      %vm2975 = vcmp.eq.s32.totalorder %v2911, 1
      %vm2976 = vcmp.eq.s32.totalorder %v2912, 1
      %vm2977 = vcmp.eq.s32.totalorder %v2913, 1
      %vm2978 = vcmp.eq.s32.totalorder %v2914, 1
      %vm2979 = vcmp.eq.s32.totalorder %v2915, 1
      %vm2980 = vcmp.eq.s32.totalorder %v2916, 1
      %vm2981 = vcmp.eq.s32.totalorder %v2917, 1
      %vm2982 = vcmp.eq.s32.totalorder %v2918, 1
      %vm2983 = vcmp.eq.s32.totalorder %v2919, 1
      %vm2984 = vcmp.eq.s32.totalorder %v2920, 1
      %vm2985 = vcmp.eq.s32.totalorder %v2921, 1
      %vm2986 = vcmp.eq.s32.totalorder %v2922, 1
      %vm2987 = vcmp.eq.s32.totalorder %v2923, 1
      %vm2988 = vcmp.eq.s32.totalorder %v2924, 1
      %vm2989 = vcmp.eq.s32.totalorder %v2925, 1
      %v2990 = vsel %vm2926, %v2672, 0.0
      %v2991 = vsel %vm2927, %v2674, 0.0
      %v2992 = vsel %vm2928, %v2676, 0.0
      %v2993 = vsel %vm2929, %v2678, 0.0
      %v2994 = vsel %vm2930, %v2680, 0.0
      %v2995 = vsel %vm2931, %v2682, 0.0
      %v2996 = vsel %vm2932, %v2684, 0.0
      %v2997 = vsel %vm2933, %v2686, 0.0
      %v2998 = vsel %vm2934, %v2688, 0.0
      %v2999 = vsel %vm2935, %v2690, 0.0
      %v3000 = vsel %vm2936, %v2692, 0.0
      %v3001 = vsel %vm2937, %v2694, 0.0
      %v3002 = vsel %vm2938, %v2696, 0.0
      %v3003 = vsel %vm2939, %v2698, 0.0
      %v3004 = vsel %vm2940, %v2700, 0.0
      %v3005 = vsel %vm2941, %v2702, 0.0
      %v3006 = vsel %vm2942, %v2704, 0.0
      %v3007 = vsel %vm2943, %v2706, 0.0
      %v3008 = vsel %vm2944, %v2708, 0.0
      %v3009 = vsel %vm2945, %v2710, 0.0
      %v3010 = vsel %vm2946, %v2712, 0.0
      %v3011 = vsel %vm2947, %v2714, 0.0
      %v3012 = vsel %vm2948, %v2716, 0.0
      %v3013 = vsel %vm2949, %v2718, 0.0
      %v3014 = vsel %vm2950, %v2720, 0.0
      %v3015 = vsel %vm2951, %v2722, 0.0
      %v3016 = vsel %vm2952, %v2724, 0.0
      %v3017 = vsel %vm2953, %v2726, 0.0
      %v3018 = vsel %vm2954, %v2728, 0.0
      %v3019 = vsel %vm2955, %v2730, 0.0
      %v3020 = vsel %vm2956, %v2732, 0.0
      %v3021 = vsel %vm2957, %v2734, 0.0
      %v3022 = vsel %vm2958, %v2736, 0.0
      %v3023 = vsel %vm2959, %v2738, 0.0
      %v3024 = vsel %vm2960, %v2740, 0.0
      %v3025 = vsel %vm2961, %v2742, 0.0
      %v3026 = vsel %vm2962, %v2744, 0.0
      %v3027 = vsel %vm2963, %v2746, 0.0
      %v3028 = vsel %vm2964, %v2748, 0.0
      %v3029 = vsel %vm2965, %v2750, 0.0
      %v3030 = vsel %vm2966, %v2752, 0.0
      %v3031 = vsel %vm2967, %v2754, 0.0
      %v3032 = vsel %vm2968, %v2756, 0.0
      %v3033 = vsel %vm2969, %v2758, 0.0
      %v3034 = vsel %vm2970, %v2760, 0.0
      %v3035 = vsel %vm2971, %v2762, 0.0
      %v3036 = vsel %vm2972, %v2764, 0.0
      %v3037 = vsel %vm2973, %v2766, 0.0
      %v3038 = vsel %vm2974, %v2768, 0.0
      %v3039 = vsel %vm2975, %v2770, 0.0
      %v3040 = vsel %vm2976, %v2772, 0.0
      %v3041 = vsel %vm2977, %v2774, 0.0
      %v3042 = vsel %vm2978, %v2776, 0.0
      %v3043 = vsel %vm2979, %v2778, 0.0
      %v3044 = vsel %vm2980, %v2780, 0.0
      %v3045 = vsel %vm2981, %v2782, 0.0
      %v3046 = vsel %vm2982, %v2784, 0.0
      %v3047 = vsel %vm2983, %v2786, 0.0
      %v3048 = vsel %vm2984, %v2788, 0.0
      %v3049 = vsel %vm2985, %v2790, 0.0
      %v3050 = vsel %vm2986, %v2792, 0.0
      %v3051 = vsel %vm2987, %v2794, 0.0
      %v3052 = vsel %vm2988, %v2796, 0.0
      %v3053 = vsel %vm2989, %v2861, 0.0
      %3118 = vrot.lane.b32.xlu0 %v2990, 120
      %v3119 = vpop.permute.xlu0 %3118
      %3120 = vrot.lane.b32.xlu0 %v2991, 120
      %v3121 = vpop.permute.xlu0 %3120
      %3122 = vrot.lane.b32.xlu0 %v2992, 120
      %v3123 = vpop.permute.xlu0 %3122
      %3124 = vrot.lane.b32.xlu0 %v2993, 120
      %v3125 = vpop.permute.xlu0 %3124
      %3126 = vrot.lane.b32.xlu0 %v2994, 120
      %v3127 = vpop.permute.xlu0 %3126
      %3128 = vrot.lane.b32.xlu0 %v2995, 120
      %v3129 = vpop.permute.xlu0 %3128
      %3130 = vrot.lane.b32.xlu0 %v2996, 120
      %v3131 = vpop.permute.xlu0 %3130
      %3132 = vrot.lane.b32.xlu0 %v2997, 120
      %v3133 = vpop.permute.xlu0 %3132
      %3134 = vrot.lane.b32.xlu0 %v2998, 120
      %v3135 = vpop.permute.xlu0 %3134
      %3136 = vrot.lane.b32.xlu0 %v2999, 120
      %v3137 = vpop.permute.xlu0 %3136
      %3138 = vrot.lane.b32.xlu0 %v3000, 120
      %v3139 = vpop.permute.xlu0 %3138
      %3140 = vrot.lane.b32.xlu0 %v3001, 120
      %v3141 = vpop.permute.xlu0 %3140
      %3142 = vrot.lane.b32.xlu0 %v3002, 120
      %v3143 = vpop.permute.xlu0 %3142
      %3144 = vrot.lane.b32.xlu0 %v3003, 120
      %v3145 = vpop.permute.xlu0 %3144
      %3146 = vrot.lane.b32.xlu0 %v3004, 120
      %v3147 = vpop.permute.xlu0 %3146
      %3148 = vrot.lane.b32.xlu0 %v3005, 120
      %v3149 = vpop.permute.xlu0 %3148
      %3150 = vrot.lane.b32.xlu0 %v3006, 120
      %v3151 = vpop.permute.xlu0 %3150
      %3152 = vrot.lane.b32.xlu0 %v3007, 120
      %v3153 = vpop.permute.xlu0 %3152
      %3154 = vrot.lane.b32.xlu0 %v3008, 120
      %v3155 = vpop.permute.xlu0 %3154
      %3156 = vrot.lane.b32.xlu0 %v3009, 120
      %v3157 = vpop.permute.xlu0 %3156
      %3158 = vrot.lane.b32.xlu0 %v3010, 120
      %v3159 = vpop.permute.xlu0 %3158
      %3160 = vrot.lane.b32.xlu0 %v3011, 120
      %v3161 = vpop.permute.xlu0 %3160
      %3162 = vrot.lane.b32.xlu0 %v3012, 120
      %v3163 = vpop.permute.xlu0 %3162
      %3164 = vrot.lane.b32.xlu0 %v3013, 120
      %v3165 = vpop.permute.xlu0 %3164
      %3166 = vrot.lane.b32.xlu0 %v3014, 120
      %v3167 = vpop.permute.xlu0 %3166
      %3168 = vrot.lane.b32.xlu0 %v3015, 120
      %v3169 = vpop.permute.xlu0 %3168
      %3170 = vrot.lane.b32.xlu0 %v3016, 120
      %v3171 = vpop.permute.xlu0 %3170
      %3172 = vrot.lane.b32.xlu0 %v3017, 120
      %v3173 = vpop.permute.xlu0 %3172
      %3174 = vrot.lane.b32.xlu0 %v3018, 120
      %v3175 = vpop.permute.xlu0 %3174
      %3176 = vrot.lane.b32.xlu0 %v3019, 120
      %v3177 = vpop.permute.xlu0 %3176
      %3178 = vrot.lane.b32.xlu0 %v3020, 120
      %v3179 = vpop.permute.xlu0 %3178
      %3180 = vrot.lane.b32.xlu0 %v3021, 120
      %v3181 = vpop.permute.xlu0 %3180
      %3182 = vrot.lane.b32.xlu0 %v3022, 120
      %v3183 = vpop.permute.xlu0 %3182
      %3184 = vrot.lane.b32.xlu0 %v3023, 120
      %v3185 = vpop.permute.xlu0 %3184
      %3186 = vrot.lane.b32.xlu0 %v3024, 120
      %v3187 = vpop.permute.xlu0 %3186
      %3188 = vrot.lane.b32.xlu0 %v3025, 120
      %v3189 = vpop.permute.xlu0 %3188
      %3190 = vrot.lane.b32.xlu0 %v3026, 120
      %v3191 = vpop.permute.xlu0 %3190
      %3192 = vrot.lane.b32.xlu0 %v3027, 120
      %v3193 = vpop.permute.xlu0 %3192
      %3194 = vrot.lane.b32.xlu0 %v3028, 120
      %v3195 = vpop.permute.xlu0 %3194
      %3196 = vrot.lane.b32.xlu0 %v3029, 120
      %v3197 = vpop.permute.xlu0 %3196
      %3198 = vrot.lane.b32.xlu0 %v3030, 120
      %v3199 = vpop.permute.xlu0 %3198
      %3200 = vrot.lane.b32.xlu0 %v3031, 120
      %v3201 = vpop.permute.xlu0 %3200
      %3202 = vrot.lane.b32.xlu0 %v3032, 120
      %v3203 = vpop.permute.xlu0 %3202
      %3204 = vrot.lane.b32.xlu0 %v3033, 120
      %v3205 = vpop.permute.xlu0 %3204
      %3206 = vrot.lane.b32.xlu0 %v3034, 120
      %v3207 = vpop.permute.xlu0 %3206
      %3208 = vrot.lane.b32.xlu0 %v3035, 120
      %v3209 = vpop.permute.xlu0 %3208
      %3210 = vrot.lane.b32.xlu0 %v3036, 120
      %v3211 = vpop.permute.xlu0 %3210
      %3212 = vrot.lane.b32.xlu0 %v3037, 120
      %v3213 = vpop.permute.xlu0 %3212
      %3214 = vrot.lane.b32.xlu0 %v3038, 120
      %v3215 = vpop.permute.xlu0 %3214
      %3216 = vrot.lane.b32.xlu0 %v3039, 120
      %v3217 = vpop.permute.xlu0 %3216
      %3218 = vrot.lane.b32.xlu0 %v3040, 120
      %v3219 = vpop.permute.xlu0 %3218
      %3220 = vrot.lane.b32.xlu0 %v3041, 120
      %v3221 = vpop.permute.xlu0 %3220
      %3222 = vrot.lane.b32.xlu0 %v3042, 120
      %v3223 = vpop.permute.xlu0 %3222
      %3224 = vrot.lane.b32.xlu0 %v3043, 120
      %v3225 = vpop.permute.xlu0 %3224
      %3226 = vrot.lane.b32.xlu0 %v3044, 120
      %v3227 = vpop.permute.xlu0 %3226
      %3228 = vrot.lane.b32.xlu0 %v3045, 120
      %v3229 = vpop.permute.xlu0 %3228
      %3230 = vrot.lane.b32.xlu0 %v3046, 120
      %v3231 = vpop.permute.xlu0 %3230
      %3232 = vrot.lane.b32.xlu0 %v3047, 120
      %v3233 = vpop.permute.xlu0 %3232
      %3234 = vrot.lane.b32.xlu0 %v3048, 120
      %v3235 = vpop.permute.xlu0 %3234
      %3236 = vrot.lane.b32.xlu0 %v3049, 120
      %v3237 = vpop.permute.xlu0 %3236
      %3238 = vrot.lane.b32.xlu0 %v3050, 120
      %v3239 = vpop.permute.xlu0 %3238
      %3240 = vrot.lane.b32.xlu0 %v3051, 120
      %v3241 = vpop.permute.xlu0 %3240
      %3242 = vrot.lane.b32.xlu0 %v3052, 120
      %v3243 = vpop.permute.xlu0 %3242
      %3244 = vrot.lane.b32.xlu0 %v3053, 120
      %v3245 = vpop.permute.xlu0 %3244
      %v3310 = vadd.f32 %v2605, %v3119
      %v3311 = vadd.f32 %v2606, %v3121
      %v3312 = vadd.f32 %v2607, %v3123
      %v3313 = vadd.f32 %v2608, %v3125
      %v3314 = vadd.f32 %v2609, %v3127
      %v3315 = vadd.f32 %v2610, %v3129
      %v3316 = vadd.f32 %v2611, %v3131
      %v3317 = vadd.f32 %v2612, %v3133
      %v3318 = vadd.f32 %v2613, %v3135
      %v3319 = vadd.f32 %v2614, %v3137
      %v3320 = vadd.f32 %v2615, %v3139
      %v3321 = vadd.f32 %v2616, %v3141
      %v3322 = vadd.f32 %v2617, %v3143
      %v3323 = vadd.f32 %v2618, %v3145
      %v3324 = vadd.f32 %v2619, %v3147
      %v3325 = vadd.f32 %v2620, %v3149
      %v3326 = vadd.f32 %v2621, %v3151
      %v3327 = vadd.f32 %v2622, %v3153
      %v3328 = vadd.f32 %v2623, %v3155
      %v3329 = vadd.f32 %v2624, %v3157
      %v3330 = vadd.f32 %v2625, %v3159
      %v3331 = vadd.f32 %v2626, %v3161
      %v3332 = vadd.f32 %v2627, %v3163
      %v3333 = vadd.f32 %v2628, %v3165
      %v3334 = vadd.f32 %v2629, %v3167
      %v3335 = vadd.f32 %v2630, %v3169
      %v3336 = vadd.f32 %v2631, %v3171
      %v3337 = vadd.f32 %v2632, %v3173
      %v3338 = vadd.f32 %v2633, %v3175
      %v3339 = vadd.f32 %v2634, %v3177
      %v3340 = vadd.f32 %v2635, %v3179
      %v3341 = vadd.f32 %v2636, %v3181
      %v3342 = vadd.f32 %v2637, %v3183
      %v3343 = vadd.f32 %v2638, %v3185
      %v3344 = vadd.f32 %v2639, %v3187
      %v3345 = vadd.f32 %v2640, %v3189
      %v3346 = vadd.f32 %v2641, %v3191
      %v3347 = vadd.f32 %v2642, %v3193
      %v3348 = vadd.f32 %v2643, %v3195
      %v3349 = vadd.f32 %v2644, %v3197
      %v3350 = vadd.f32 %v2645, %v3199
      %v3351 = vadd.f32 %v2646, %v3201
      %v3352 = vadd.f32 %v2647, %v3203
      %v3353 = vadd.f32 %v2648, %v3205
      %v3354 = vadd.f32 %v2649, %v3207
      %v3355 = vadd.f32 %v2650, %v3209
      %v3356 = vadd.f32 %v2651, %v3211
      %v3357 = vadd.f32 %v2652, %v3213
      %v3358 = vadd.f32 %v2653, %v3215
      %v3359 = vadd.f32 %v2654, %v3217
      %v3360 = vadd.f32 %v2655, %v3219
      %v3361 = vadd.f32 %v2656, %v3221
      %v3362 = vadd.f32 %v2657, %v3223
      %v3363 = vadd.f32 %v2658, %v3225
      %v3364 = vadd.f32 %v2659, %v3227
      %v3365 = vadd.f32 %v2660, %v3229
      %v3366 = vadd.f32 %v2661, %v3231
      %v3367 = vadd.f32 %v2662, %v3233
      %v3368 = vadd.f32 %v2663, %v3235
      %v3369 = vadd.f32 %v2664, %v3237
      %v3370 = vadd.f32 %v2665, %v3239
      %v3371 = vadd.f32 %v2666, %v3241
      %v3372 = vadd.f32 %v2667, %v3243
      %v3373 = vadd.f32 %v2668, %v3245
      %3374 = vrot.lane.b32.xlu0 %v1837, 108
      %v3375 = vpop.permute.xlu0 %3374
      %3376 = vrot.lane.b32.xlu0 %v1839, 108
      %v3377 = vpop.permute.xlu0 %3376
      %3378 = vrot.lane.b32.xlu0 %v1841, 108
      %v3379 = vpop.permute.xlu0 %3378
      %3380 = vrot.lane.b32.xlu0 %v1843, 108
      %v3381 = vpop.permute.xlu0 %3380
      %3382 = vrot.lane.b32.xlu0 %v1845, 108
      %v3383 = vpop.permute.xlu0 %3382
      %3384 = vrot.lane.b32.xlu0 %v1847, 108
      %v3385 = vpop.permute.xlu0 %3384
      %3386 = vrot.lane.b32.xlu0 %v1849, 108
      %v3387 = vpop.permute.xlu0 %3386
      %3388 = vrot.lane.b32.xlu0 %v1851, 108
      %v3389 = vpop.permute.xlu0 %3388
      %3390 = vrot.lane.b32.xlu0 %v1853, 108
      %v3391 = vpop.permute.xlu0 %3390
      %3392 = vrot.lane.b32.xlu0 %v1855, 108
      %v3393 = vpop.permute.xlu0 %3392
      %3394 = vrot.lane.b32.xlu0 %v1857, 108
      %v3395 = vpop.permute.xlu0 %3394
      %3396 = vrot.lane.b32.xlu0 %v1859, 108
      %v3397 = vpop.permute.xlu0 %3396
      %3398 = vrot.lane.b32.xlu0 %v1861, 108
      %v3399 = vpop.permute.xlu0 %3398
      %3400 = vrot.lane.b32.xlu0 %v1863, 108
      %v3401 = vpop.permute.xlu0 %3400
      %3402 = vrot.lane.b32.xlu0 %v1865, 108
      %v3403 = vpop.permute.xlu0 %3402
      %3404 = vrot.lane.b32.xlu0 %v1867, 108
      %v3405 = vpop.permute.xlu0 %3404
      %3406 = vrot.lane.b32.xlu0 %v1869, 108
      %v3407 = vpop.permute.xlu0 %3406
      %3408 = vrot.lane.b32.xlu0 %v1871, 108
      %v3409 = vpop.permute.xlu0 %3408
      %3410 = vrot.lane.b32.xlu0 %v1873, 108
      %v3411 = vpop.permute.xlu0 %3410
      %3412 = vrot.lane.b32.xlu0 %v1875, 108
      %v3413 = vpop.permute.xlu0 %3412
      %3414 = vrot.lane.b32.xlu0 %v1877, 108
      %v3415 = vpop.permute.xlu0 %3414
      %3416 = vrot.lane.b32.xlu0 %v1879, 108
      %v3417 = vpop.permute.xlu0 %3416
      %3418 = vrot.lane.b32.xlu0 %v1881, 108
      %v3419 = vpop.permute.xlu0 %3418
      %3420 = vrot.lane.b32.xlu0 %v1883, 108
      %v3421 = vpop.permute.xlu0 %3420
      %3422 = vrot.lane.b32.xlu0 %v1885, 108
      %v3423 = vpop.permute.xlu0 %3422
      %3424 = vrot.lane.b32.xlu0 %v1887, 108
      %v3425 = vpop.permute.xlu0 %3424
      %3426 = vrot.lane.b32.xlu0 %v1889, 108
      %v3427 = vpop.permute.xlu0 %3426
      %3428 = vrot.lane.b32.xlu0 %v1891, 108
      %v3429 = vpop.permute.xlu0 %3428
      %3430 = vrot.lane.b32.xlu0 %v1893, 108
      %v3431 = vpop.permute.xlu0 %3430
      %3432 = vrot.lane.b32.xlu0 %v1895, 108
      %v3433 = vpop.permute.xlu0 %3432
      %3434 = vrot.lane.b32.xlu0 %v1897, 108
      %v3435 = vpop.permute.xlu0 %3434
      %3436 = vrot.lane.b32.xlu0 %v1899, 108
      %v3437 = vpop.permute.xlu0 %3436
      %3438 = vrot.lane.b32.xlu0 %v1901, 108
      %v3439 = vpop.permute.xlu0 %3438
      %3440 = vrot.lane.b32.xlu0 %v1903, 108
      %v3441 = vpop.permute.xlu0 %3440
      %3442 = vrot.lane.b32.xlu0 %v1905, 108
      %v3443 = vpop.permute.xlu0 %3442
      %3444 = vrot.lane.b32.xlu0 %v1907, 108
      %v3445 = vpop.permute.xlu0 %3444
      %3446 = vrot.lane.b32.xlu0 %v1909, 108
      %v3447 = vpop.permute.xlu0 %3446
      %3448 = vrot.lane.b32.xlu0 %v1911, 108
      %v3449 = vpop.permute.xlu0 %3448
      %3450 = vrot.lane.b32.xlu0 %v1913, 108
      %v3451 = vpop.permute.xlu0 %3450
      %3452 = vrot.lane.b32.xlu0 %v1915, 108
      %v3453 = vpop.permute.xlu0 %3452
      %3454 = vrot.lane.b32.xlu0 %v1917, 108
      %v3455 = vpop.permute.xlu0 %3454
      %3456 = vrot.lane.b32.xlu0 %v1919, 108
      %v3457 = vpop.permute.xlu0 %3456
      %3458 = vrot.lane.b32.xlu0 %v1921, 108
      %v3459 = vpop.permute.xlu0 %3458
      %3460 = vrot.lane.b32.xlu0 %v1923, 108
      %v3461 = vpop.permute.xlu0 %3460
      %3462 = vrot.lane.b32.xlu0 %v1925, 108
      %v3463 = vpop.permute.xlu0 %3462
      %3464 = vrot.lane.b32.xlu0 %v1927, 108
      %v3465 = vpop.permute.xlu0 %3464
      %3466 = vrot.lane.b32.xlu0 %v1929, 108
      %v3467 = vpop.permute.xlu0 %3466
      %3468 = vrot.lane.b32.xlu0 %v1931, 108
      %v3469 = vpop.permute.xlu0 %3468
      %3470 = vrot.lane.b32.xlu0 %v1933, 108
      %v3471 = vpop.permute.xlu0 %3470
      %3472 = vrot.lane.b32.xlu0 %v1935, 108
      %v3473 = vpop.permute.xlu0 %3472
      %3474 = vrot.lane.b32.xlu0 %v1937, 108
      %v3475 = vpop.permute.xlu0 %3474
      %3476 = vrot.lane.b32.xlu0 %v1939, 108
      %v3477 = vpop.permute.xlu0 %3476
      %3478 = vrot.lane.b32.xlu0 %v1941, 108
      %v3479 = vpop.permute.xlu0 %3478
      %3480 = vrot.lane.b32.xlu0 %v1943, 108
      %v3481 = vpop.permute.xlu0 %3480
      %3482 = vrot.lane.b32.xlu0 %v1945, 108
      %v3483 = vpop.permute.xlu0 %3482
      %3484 = vrot.lane.b32.xlu0 %v1947, 108
      %v3485 = vpop.permute.xlu0 %3484
      %3486 = vrot.lane.b32.xlu0 %v1949, 108
      %v3487 = vpop.permute.xlu0 %3486
      %3488 = vrot.lane.b32.xlu0 %v1951, 108
      %v3489 = vpop.permute.xlu0 %3488
      %3490 = vrot.lane.b32.xlu0 %v1953, 108
      %v3491 = vpop.permute.xlu0 %3490
      %3492 = vrot.lane.b32.xlu0 %v1955, 108
      %v3493 = vpop.permute.xlu0 %3492
      %3494 = vrot.lane.b32.xlu0 %v1957, 108
      %v3495 = vpop.permute.xlu0 %3494
      %3496 = vrot.lane.b32.xlu0 %v1959, 108
      %v3497 = vpop.permute.xlu0 %3496
      %3498 = vrot.lane.b32.xlu0 %v1961, 108
      %v3499 = vpop.permute.xlu0 %3498
      %3500 = vrot.lane.b32.xlu0 %v1963, 108
      %v3501 = vpop.permute.xlu0 %3500
      %v3566 = vsel %vm1836, 0.0, %v3375
      %v3567 = vsel %vm2221, %v3566, 0.0
      %v3568 = vsel %vm2222, %v3377, 0.0
      %v3569 = vsel %vm2223, %v3379, 0.0
      %v3570 = vsel %vm2224, %v3381, 0.0
      %v3571 = vsel %vm2225, %v3383, 0.0
      %v3572 = vsel %vm2226, %v3385, 0.0
      %v3573 = vsel %vm2227, %v3387, 0.0
      %v3574 = vsel %vm2228, %v3389, 0.0
      %v3575 = vsel %vm2229, %v3391, 0.0
      %v3576 = vsel %vm2230, %v3393, 0.0
      %v3577 = vsel %vm2231, %v3395, 0.0
      %v3578 = vsel %vm2232, %v3397, 0.0
      %v3579 = vsel %vm2233, %v3399, 0.0
      %v3580 = vsel %vm2234, %v3401, 0.0
      %v3581 = vsel %vm2235, %v3403, 0.0
      %v3582 = vsel %vm2236, %v3405, 0.0
      %v3583 = vsel %vm2237, %v3407, 0.0
      %v3584 = vsel %vm2238, %v3409, 0.0
      %v3585 = vsel %vm2239, %v3411, 0.0
      %v3586 = vsel %vm2240, %v3413, 0.0
      %v3587 = vsel %vm2241, %v3415, 0.0
      %v3588 = vsel %vm2242, %v3417, 0.0
      %v3589 = vsel %vm2243, %v3419, 0.0
      %v3590 = vsel %vm2244, %v3421, 0.0
      %v3591 = vsel %vm2245, %v3423, 0.0
      %v3592 = vsel %vm2246, %v3425, 0.0
      %v3593 = vsel %vm2247, %v3427, 0.0
      %v3594 = vsel %vm2248, %v3429, 0.0
      %v3595 = vsel %vm2249, %v3431, 0.0
      %v3596 = vsel %vm2250, %v3433, 0.0
      %v3597 = vsel %vm2251, %v3435, 0.0
      %v3598 = vsel %vm2252, %v3437, 0.0
      %v3599 = vsel %vm2253, %v3439, 0.0
      %v3600 = vsel %vm2254, %v3441, 0.0
      %v3601 = vsel %vm2255, %v3443, 0.0
      %v3602 = vsel %vm2256, %v3445, 0.0
      %v3603 = vsel %vm2257, %v3447, 0.0
      %v3604 = vsel %vm2258, %v3449, 0.0
      %v3605 = vsel %vm2259, %v3451, 0.0
      %v3606 = vsel %vm2260, %v3453, 0.0
      %v3607 = vsel %vm2261, %v3455, 0.0
      %v3608 = vsel %vm2262, %v3457, 0.0
      %v3609 = vsel %vm2263, %v3459, 0.0
      %v3610 = vsel %vm2264, %v3461, 0.0
      %v3611 = vsel %vm2265, %v3463, 0.0
      %v3612 = vsel %vm2266, %v3465, 0.0
      %v3613 = vsel %vm2267, %v3467, 0.0
      %v3614 = vsel %vm2268, %v3469, 0.0
      %v3615 = vsel %vm2269, %v3471, 0.0
      %v3616 = vsel %vm2270, %v3473, 0.0
      %v3617 = vsel %vm2271, %v3475, 0.0
      %v3618 = vsel %vm2272, %v3477, 0.0
      %v3619 = vsel %vm2273, %v3479, 0.0
      %v3620 = vsel %vm2274, %v3481, 0.0
      %v3621 = vsel %vm2275, %v3483, 0.0
      %v3622 = vsel %vm2276, %v3485, 0.0
      %v3623 = vsel %vm2277, %v3487, 0.0
      %v3624 = vsel %vm2278, %v3489, 0.0
      %v3625 = vsel %vm2279, %v3491, 0.0
      %v3626 = vsel %vm2280, %v3493, 0.0
      %v3627 = vsel %vm2281, %v3495, 0.0
      %v3628 = vsel %vm2282, %v3497, 0.0
      %v3629 = vsel %vm2283, %v3499, 0.0
      %v3630 = vsel %vm2284, %v3501, 0.0
      %3695 = vrot.lane.b32.xlu0 %v3567, 16
      %v3696 = vpop.permute.xlu0 %3695
      %3697 = vrot.lane.b32.xlu0 %v3568, 16
      %v3698 = vpop.permute.xlu0 %3697
      %3699 = vrot.lane.b32.xlu0 %v3569, 16
      %v3700 = vpop.permute.xlu0 %3699
      %3701 = vrot.lane.b32.xlu0 %v3570, 16
      %v3702 = vpop.permute.xlu0 %3701
      %3703 = vrot.lane.b32.xlu0 %v3571, 16
      %v3704 = vpop.permute.xlu0 %3703
      %3705 = vrot.lane.b32.xlu0 %v3572, 16
      %v3706 = vpop.permute.xlu0 %3705
      %3707 = vrot.lane.b32.xlu0 %v3573, 16
      %v3708 = vpop.permute.xlu0 %3707
      %3709 = vrot.lane.b32.xlu0 %v3574, 16
      %v3710 = vpop.permute.xlu0 %3709
      %3711 = vrot.lane.b32.xlu0 %v3575, 16
      %v3712 = vpop.permute.xlu0 %3711
      %3713 = vrot.lane.b32.xlu0 %v3576, 16
      %v3714 = vpop.permute.xlu0 %3713
      %3715 = vrot.lane.b32.xlu0 %v3577, 16
      %v3716 = vpop.permute.xlu0 %3715
      %3717 = vrot.lane.b32.xlu0 %v3578, 16
      %v3718 = vpop.permute.xlu0 %3717
      %3719 = vrot.lane.b32.xlu0 %v3579, 16
      %v3720 = vpop.permute.xlu0 %3719
      %3721 = vrot.lane.b32.xlu0 %v3580, 16
      %v3722 = vpop.permute.xlu0 %3721
      %3723 = vrot.lane.b32.xlu0 %v3581, 16
      %v3724 = vpop.permute.xlu0 %3723
      %3725 = vrot.lane.b32.xlu0 %v3582, 16
      %v3726 = vpop.permute.xlu0 %3725
      %3727 = vrot.lane.b32.xlu0 %v3583, 16
      %v3728 = vpop.permute.xlu0 %3727
      %3729 = vrot.lane.b32.xlu0 %v3584, 16
      %v3730 = vpop.permute.xlu0 %3729
      %3731 = vrot.lane.b32.xlu0 %v3585, 16
      %v3732 = vpop.permute.xlu0 %3731
      %3733 = vrot.lane.b32.xlu0 %v3586, 16
      %v3734 = vpop.permute.xlu0 %3733
      %3735 = vrot.lane.b32.xlu0 %v3587, 16
      %v3736 = vpop.permute.xlu0 %3735
      %3737 = vrot.lane.b32.xlu0 %v3588, 16
      %v3738 = vpop.permute.xlu0 %3737
      %3739 = vrot.lane.b32.xlu0 %v3589, 16
      %v3740 = vpop.permute.xlu0 %3739
      %3741 = vrot.lane.b32.xlu0 %v3590, 16
      %v3742 = vpop.permute.xlu0 %3741
      %3743 = vrot.lane.b32.xlu0 %v3591, 16
      %v3744 = vpop.permute.xlu0 %3743
      %3745 = vrot.lane.b32.xlu0 %v3592, 16
      %v3746 = vpop.permute.xlu0 %3745
      %3747 = vrot.lane.b32.xlu0 %v3593, 16
      %v3748 = vpop.permute.xlu0 %3747
      %3749 = vrot.lane.b32.xlu0 %v3594, 16
      %v3750 = vpop.permute.xlu0 %3749
      %3751 = vrot.lane.b32.xlu0 %v3595, 16
      %v3752 = vpop.permute.xlu0 %3751
      %3753 = vrot.lane.b32.xlu0 %v3596, 16
      %v3754 = vpop.permute.xlu0 %3753
      %3755 = vrot.lane.b32.xlu0 %v3597, 16
      %v3756 = vpop.permute.xlu0 %3755
      %3757 = vrot.lane.b32.xlu0 %v3598, 16
      %v3758 = vpop.permute.xlu0 %3757
      %3759 = vrot.lane.b32.xlu0 %v3599, 16
      %v3760 = vpop.permute.xlu0 %3759
      %3761 = vrot.lane.b32.xlu0 %v3600, 16
      %v3762 = vpop.permute.xlu0 %3761
      %3763 = vrot.lane.b32.xlu0 %v3601, 16
      %v3764 = vpop.permute.xlu0 %3763
      %3765 = vrot.lane.b32.xlu0 %v3602, 16
      %v3766 = vpop.permute.xlu0 %3765
      %3767 = vrot.lane.b32.xlu0 %v3603, 16
      %v3768 = vpop.permute.xlu0 %3767
      %3769 = vrot.lane.b32.xlu0 %v3604, 16
      %v3770 = vpop.permute.xlu0 %3769
      %3771 = vrot.lane.b32.xlu0 %v3605, 16
      %v3772 = vpop.permute.xlu0 %3771
      %3773 = vrot.lane.b32.xlu0 %v3606, 16
      %v3774 = vpop.permute.xlu0 %3773
      %3775 = vrot.lane.b32.xlu0 %v3607, 16
      %v3776 = vpop.permute.xlu0 %3775
      %3777 = vrot.lane.b32.xlu0 %v3608, 16
      %v3778 = vpop.permute.xlu0 %3777
      %3779 = vrot.lane.b32.xlu0 %v3609, 16
      %v3780 = vpop.permute.xlu0 %3779
      %3781 = vrot.lane.b32.xlu0 %v3610, 16
      %v3782 = vpop.permute.xlu0 %3781
      %3783 = vrot.lane.b32.xlu0 %v3611, 16
      %v3784 = vpop.permute.xlu0 %3783
      %3785 = vrot.lane.b32.xlu0 %v3612, 16
      %v3786 = vpop.permute.xlu0 %3785
      %3787 = vrot.lane.b32.xlu0 %v3613, 16
      %v3788 = vpop.permute.xlu0 %3787
      %3789 = vrot.lane.b32.xlu0 %v3614, 16
      %v3790 = vpop.permute.xlu0 %3789
      %3791 = vrot.lane.b32.xlu0 %v3615, 16
      %v3792 = vpop.permute.xlu0 %3791
      %3793 = vrot.lane.b32.xlu0 %v3616, 16
      %v3794 = vpop.permute.xlu0 %3793
      %3795 = vrot.lane.b32.xlu0 %v3617, 16
      %v3796 = vpop.permute.xlu0 %3795
      %3797 = vrot.lane.b32.xlu0 %v3618, 16
      %v3798 = vpop.permute.xlu0 %3797
      %3799 = vrot.lane.b32.xlu0 %v3619, 16
      %v3800 = vpop.permute.xlu0 %3799
      %3801 = vrot.lane.b32.xlu0 %v3620, 16
      %v3802 = vpop.permute.xlu0 %3801
      %3803 = vrot.lane.b32.xlu0 %v3621, 16
      %v3804 = vpop.permute.xlu0 %3803
      %3805 = vrot.lane.b32.xlu0 %v3622, 16
      %v3806 = vpop.permute.xlu0 %3805
      %3807 = vrot.lane.b32.xlu0 %v3623, 16
      %v3808 = vpop.permute.xlu0 %3807
      %3809 = vrot.lane.b32.xlu0 %v3624, 16
      %v3810 = vpop.permute.xlu0 %3809
      %3811 = vrot.lane.b32.xlu0 %v3625, 16
      %v3812 = vpop.permute.xlu0 %3811
      %3813 = vrot.lane.b32.xlu0 %v3626, 16
      %v3814 = vpop.permute.xlu0 %3813
      %3815 = vrot.lane.b32.xlu0 %v3627, 16
      %v3816 = vpop.permute.xlu0 %3815
      %3817 = vrot.lane.b32.xlu0 %v3628, 16
      %v3818 = vpop.permute.xlu0 %3817
      %3819 = vrot.lane.b32.xlu0 %v3629, 16
      %v3820 = vpop.permute.xlu0 %3819
      %3821 = vrot.lane.b32.xlu0 %v3630, 16
      %v3822 = vpop.permute.xlu0 %3821
      %v3887 = vadd.f32 %v652, %v3696
      %v3888 = vadd.f32 %v654, %v3698
      %v3889 = vadd.f32 %v657, %v3700
      %v3890 = vadd.f32 %v659, %v3702
      %v3891 = vadd.f32 %v662, %v3704
      %v3892 = vadd.f32 %v664, %v3706
      %v3893 = vadd.f32 %v667, %v3708
      %v3894 = vadd.f32 %v669, %v3710
      %v3895 = vadd.f32 %v672, %v3712
      %v3896 = vadd.f32 %v674, %v3714
      %v3897 = vadd.f32 %v677, %v3716
      %v3898 = vadd.f32 %v679, %v3718
      %v3899 = vadd.f32 %v682, %v3720
      %v3900 = vadd.f32 %v684, %v3722
      %v3901 = vadd.f32 %v687, %v3724
      %v3902 = vadd.f32 %v689, %v3726
      %v3903 = vadd.f32 %v692, %v3728
      %v3904 = vadd.f32 %v694, %v3730
      %v3905 = vadd.f32 %v697, %v3732
      %v3906 = vadd.f32 %v699, %v3734
      %v3907 = vadd.f32 %v702, %v3736
      %v3908 = vadd.f32 %v704, %v3738
      %v3909 = vadd.f32 %v707, %v3740
      %v3910 = vadd.f32 %v709, %v3742
      %v3911 = vadd.f32 %v712, %v3744
      %v3912 = vadd.f32 %v714, %v3746
      %v3913 = vadd.f32 %v717, %v3748
      %v3914 = vadd.f32 %v719, %v3750
      %v3915 = vadd.f32 %v722, %v3752
      %v3916 = vadd.f32 %v724, %v3754
      %v3917 = vadd.f32 %v727, %v3756
      %v3918 = vadd.f32 %v729, %v3758
      %v3919 = vadd.f32 %v732, %v3760
      %v3920 = vadd.f32 %v734, %v3762
      %v3921 = vadd.f32 %v737, %v3764
      %v3922 = vadd.f32 %v739, %v3766
      %v3923 = vadd.f32 %v742, %v3768
      %v3924 = vadd.f32 %v744, %v3770
      %v3925 = vadd.f32 %v747, %v3772
      %v3926 = vadd.f32 %v749, %v3774
      %v3927 = vadd.f32 %v752, %v3776
      %v3928 = vadd.f32 %v754, %v3778
      %v3929 = vadd.f32 %v757, %v3780
      %v3930 = vadd.f32 %v759, %v3782
      %v3931 = vadd.f32 %v762, %v3784
      %v3932 = vadd.f32 %v764, %v3786
      %v3933 = vadd.f32 %v767, %v3788
      %v3934 = vadd.f32 %v769, %v3790
      %v3935 = vadd.f32 %v772, %v3792
      %v3936 = vadd.f32 %v774, %v3794
      %v3937 = vadd.f32 %v777, %v3796
      %v3938 = vadd.f32 %v779, %v3798
      %v3939 = vadd.f32 %v782, %v3800
      %v3940 = vadd.f32 %v784, %v3802
      %v3941 = vadd.f32 %v787, %v3804
      %v3942 = vadd.f32 %v789, %v3806
      %v3943 = vadd.f32 %v792, %v3808
      %v3944 = vadd.f32 %v794, %v3810
      %v3945 = vadd.f32 %v797, %v3812
      %v3946 = vadd.f32 %v799, %v3814
      %v3947 = vadd.f32 %v802, %v3816
      %v3948 = vadd.f32 %v804, %v3818
      %v3949 = vadd.f32 %v807, %v3820
      %v3950 = vadd.f32 %v809, %v3822
      %v3951 = vadd.f32 %v3887, %v3119
      %v3952 = vadd.f32 %v3888, %v3121
      %v3953 = vadd.f32 %v3889, %v3123
      %v3954 = vadd.f32 %v3890, %v3125
      %v3955 = vadd.f32 %v3891, %v3127
      %v3956 = vadd.f32 %v3892, %v3129
      %v3957 = vadd.f32 %v3893, %v3131
      %v3958 = vadd.f32 %v3894, %v3133
      %v3959 = vadd.f32 %v3895, %v3135
      %v3960 = vadd.f32 %v3896, %v3137
      %v3961 = vadd.f32 %v3897, %v3139
      %v3962 = vadd.f32 %v3898, %v3141
      %v3963 = vadd.f32 %v3899, %v3143
      %v3964 = vadd.f32 %v3900, %v3145
      %v3965 = vadd.f32 %v3901, %v3147
      %v3966 = vadd.f32 %v3902, %v3149
      %v3967 = vadd.f32 %v3903, %v3151
      %v3968 = vadd.f32 %v3904, %v3153
      %v3969 = vadd.f32 %v3905, %v3155
      %v3970 = vadd.f32 %v3906, %v3157
      %v3971 = vadd.f32 %v3907, %v3159
      %v3972 = vadd.f32 %v3908, %v3161
      %v3973 = vadd.f32 %v3909, %v3163
      %v3974 = vadd.f32 %v3910, %v3165
      %v3975 = vadd.f32 %v3911, %v3167
      %v3976 = vadd.f32 %v3912, %v3169
      %v3977 = vadd.f32 %v3913, %v3171
      %v3978 = vadd.f32 %v3914, %v3173
      %v3979 = vadd.f32 %v3915, %v3175
      %v3980 = vadd.f32 %v3916, %v3177
      %v3981 = vadd.f32 %v3917, %v3179
      %v3982 = vadd.f32 %v3918, %v3181
      %v3983 = vadd.f32 %v3919, %v3183
      %v3984 = vadd.f32 %v3920, %v3185
      %v3985 = vadd.f32 %v3921, %v3187
      %v3986 = vadd.f32 %v3922, %v3189
      %v3987 = vadd.f32 %v3923, %v3191
      %v3988 = vadd.f32 %v3924, %v3193
      %v3989 = vadd.f32 %v3925, %v3195
      %v3990 = vadd.f32 %v3926, %v3197
      %v3991 = vadd.f32 %v3927, %v3199
      %v3992 = vadd.f32 %v3928, %v3201
      %v3993 = vadd.f32 %v3929, %v3203
      %v3994 = vadd.f32 %v3930, %v3205
      %v3995 = vadd.f32 %v3931, %v3207
      %v3996 = vadd.f32 %v3932, %v3209
      %v3997 = vadd.f32 %v3933, %v3211
      %v3998 = vadd.f32 %v3934, %v3213
      %v3999 = vadd.f32 %v3935, %v3215
      %v4000 = vadd.f32 %v3936, %v3217
      %v4001 = vadd.f32 %v3937, %v3219
      %v4002 = vadd.f32 %v3938, %v3221
      %v4003 = vadd.f32 %v3939, %v3223
      %v4004 = vadd.f32 %v3940, %v3225
      %v4005 = vadd.f32 %v3941, %v3227
      %v4006 = vadd.f32 %v3942, %v3229
      %v4007 = vadd.f32 %v3943, %v3231
      %v4008 = vadd.f32 %v3944, %v3233
      %v4009 = vadd.f32 %v3945, %v3235
      %v4010 = vadd.f32 %v3946, %v3237
      %v4011 = vadd.f32 %v3947, %v3239
      %v4012 = vadd.f32 %v3948, %v3241
      %v4013 = vadd.f32 %v3949, %v3243
      %v4014 = vadd.f32 %v3950, %v3245
      %s4015 = smul.u32 %s18, 512
      %v4016 = vstv %s4015
      %v4017 = vadd.s32 %v4016, %v812
      %v4018 = vadd.s32 %v4016, %v813
      %v4019 = vadd.s32 %v4016, %v814
      %v4020 = vadd.s32 %v4016, %v815
      %v4021 = vadd.s32 %v4016, %v816
      %v4022 = vadd.s32 %v4016, %v817
      %v4023 = vadd.s32 %v4016, %v818
      %v4024 = vadd.s32 %v4016, %v819
      %v4025 = vadd.s32 %v4016, %v820
      %v4026 = vadd.s32 %v4016, %v821
      %v4027 = vadd.s32 %v4016, %v822
      %v4028 = vadd.s32 %v4016, %v823
      %v4029 = vadd.s32 %v4016, %v824
      %v4030 = vadd.s32 %v4016, %v825
      %v4031 = vadd.s32 %v4016, %v826
      %v4032 = vadd.s32 %v4016, %v827
      %v4033 = vadd.s32 %v4016, %v828
      %v4034 = vadd.s32 %v4016, %v829
      %v4035 = vadd.s32 %v4016, %v830
      %v4036 = vadd.s32 %v4016, %v831
      %v4037 = vadd.s32 %v4016, %v832
      %v4038 = vadd.s32 %v4016, %v833
      %v4039 = vadd.s32 %v4016, %v834
      %v4040 = vadd.s32 %v4016, %v835
      %v4041 = vadd.s32 %v4016, %v836
      %v4042 = vadd.s32 %v4016, %v837
      %v4043 = vadd.s32 %v4016, %v838
      %v4044 = vadd.s32 %v4016, %v839
      %v4045 = vadd.s32 %v4016, %v840
      %v4046 = vadd.s32 %v4016, %v841
      %v4047 = vadd.s32 %v4016, %v842
      %v4048 = vadd.s32 %v4016, %v843
      %v4049 = vadd.s32 %v4016, %v844
      %v4050 = vadd.s32 %v4016, %v845
      %v4051 = vadd.s32 %v4016, %v846
      %v4052 = vadd.s32 %v4016, %v847
      %v4053 = vadd.s32 %v4016, %v848
      %v4054 = vadd.s32 %v4016, %v849
      %v4055 = vadd.s32 %v4016, %v850
      %v4056 = vadd.s32 %v4016, %v851
      %v4057 = vadd.s32 %v4016, %v852
      %v4058 = vadd.s32 %v4016, %v853
      %v4059 = vadd.s32 %v4016, %v854
      %v4060 = vadd.s32 %v4016, %v855
      %v4061 = vadd.s32 %v4016, %v856
      %v4062 = vadd.s32 %v4016, %v857
      %v4063 = vadd.s32 %v4016, %v858
      %v4064 = vadd.s32 %v4016, %v859
      %v4065 = vadd.s32 %v4016, %v860
      %v4066 = vadd.s32 %v4016, %v861
      %v4067 = vadd.s32 %v4016, %v862
      %v4068 = vadd.s32 %v4016, %v863
      %v4069 = vadd.s32 %v4016, %v864
      %v4070 = vadd.s32 %v4016, %v865
      %v4071 = vadd.s32 %v4016, %v866
      %v4072 = vadd.s32 %v4016, %v867
      %v4073 = vadd.s32 %v4016, %v868
      %v4074 = vadd.s32 %v4016, %v869
      %v4075 = vadd.s32 %v4016, %v870
      %v4076 = vadd.s32 %v4016, %v871
      %v4077 = vadd.s32 %v4016, %v872
      %v4078 = vadd.s32 %v4016, %v873
      %v4079 = vadd.s32 %v4016, %v874
      %v4080 = vadd.s32 %v4016, %v875
      %vm4081 = vcmp.lt.s32.totalorder %v4017, 1024
      %vm4082 = vcmp.lt.s32.totalorder %v4018, 1024
      %vm4083 = vcmp.lt.s32.totalorder %v4019, 1024
      %vm4084 = vcmp.lt.s32.totalorder %v4020, 1024
      %vm4085 = vcmp.lt.s32.totalorder %v4021, 1024
      %vm4086 = vcmp.lt.s32.totalorder %v4022, 1024
      %vm4087 = vcmp.lt.s32.totalorder %v4023, 1024
      %vm4088 = vcmp.lt.s32.totalorder %v4024, 1024
      %vm4089 = vcmp.lt.s32.totalorder %v4025, 1024
      %vm4090 = vcmp.lt.s32.totalorder %v4026, 1024
      %vm4091 = vcmp.lt.s32.totalorder %v4027, 1024
      %vm4092 = vcmp.lt.s32.totalorder %v4028, 1024
      %vm4093 = vcmp.lt.s32.totalorder %v4029, 1024
      %vm4094 = vcmp.lt.s32.totalorder %v4030, 1024
      %vm4095 = vcmp.lt.s32.totalorder %v4031, 1024
      %vm4096 = vcmp.lt.s32.totalorder %v4032, 1024
      %vm4097 = vcmp.lt.s32.totalorder %v4033, 1024
      %vm4098 = vcmp.lt.s32.totalorder %v4034, 1024
      %vm4099 = vcmp.lt.s32.totalorder %v4035, 1024
      %vm4100 = vcmp.lt.s32.totalorder %v4036, 1024
      %vm4101 = vcmp.lt.s32.totalorder %v4037, 1024
      %vm4102 = vcmp.lt.s32.totalorder %v4038, 1024
      %vm4103 = vcmp.lt.s32.totalorder %v4039, 1024
      %vm4104 = vcmp.lt.s32.totalorder %v4040, 1024
      %vm4105 = vcmp.lt.s32.totalorder %v4041, 1024
      %vm4106 = vcmp.lt.s32.totalorder %v4042, 1024
      %vm4107 = vcmp.lt.s32.totalorder %v4043, 1024
      %vm4108 = vcmp.lt.s32.totalorder %v4044, 1024
      %vm4109 = vcmp.lt.s32.totalorder %v4045, 1024
      %vm4110 = vcmp.lt.s32.totalorder %v4046, 1024
      %vm4111 = vcmp.lt.s32.totalorder %v4047, 1024
      %vm4112 = vcmp.lt.s32.totalorder %v4048, 1024
      %vm4113 = vcmp.lt.s32.totalorder %v4049, 1024
      %vm4114 = vcmp.lt.s32.totalorder %v4050, 1024
      %vm4115 = vcmp.lt.s32.totalorder %v4051, 1024
      %vm4116 = vcmp.lt.s32.totalorder %v4052, 1024
      %vm4117 = vcmp.lt.s32.totalorder %v4053, 1024
      %vm4118 = vcmp.lt.s32.totalorder %v4054, 1024
      %vm4119 = vcmp.lt.s32.totalorder %v4055, 1024
      %vm4120 = vcmp.lt.s32.totalorder %v4056, 1024
      %vm4121 = vcmp.lt.s32.totalorder %v4057, 1024
      %vm4122 = vcmp.lt.s32.totalorder %v4058, 1024
      %vm4123 = vcmp.lt.s32.totalorder %v4059, 1024
      %vm4124 = vcmp.lt.s32.totalorder %v4060, 1024
      %vm4125 = vcmp.lt.s32.totalorder %v4061, 1024
      %vm4126 = vcmp.lt.s32.totalorder %v4062, 1024
      %vm4127 = vcmp.lt.s32.totalorder %v4063, 1024
      %vm4128 = vcmp.lt.s32.totalorder %v4064, 1024
      %vm4129 = vcmp.lt.s32.totalorder %v4065, 1024
      %vm4130 = vcmp.lt.s32.totalorder %v4066, 1024
      %vm4131 = vcmp.lt.s32.totalorder %v4067, 1024
      %vm4132 = vcmp.lt.s32.totalorder %v4068, 1024
      %vm4133 = vcmp.lt.s32.totalorder %v4069, 1024
      %vm4134 = vcmp.lt.s32.totalorder %v4070, 1024
      %vm4135 = vcmp.lt.s32.totalorder %v4071, 1024
      %vm4136 = vcmp.lt.s32.totalorder %v4072, 1024
      %vm4137 = vcmp.lt.s32.totalorder %v4073, 1024
      %vm4138 = vcmp.lt.s32.totalorder %v4074, 1024
      %vm4139 = vcmp.lt.s32.totalorder %v4075, 1024
      %vm4140 = vcmp.lt.s32.totalorder %v4076, 1024
      %vm4141 = vcmp.lt.s32.totalorder %v4077, 1024
      %vm4142 = vcmp.lt.s32.totalorder %v4078, 1024
      %vm4143 = vcmp.lt.s32.totalorder %v4079, 1024
      %vm4144 = vcmp.lt.s32.totalorder %v4080, 1024
      %v4145 = vsel %vm4081, 1, 0
      %v4146 = vsel %vm4082, 1, 0
      %v4147 = vsel %vm4083, 1, 0
      %v4148 = vsel %vm4084, 1, 0
      %v4149 = vsel %vm4085, 1, 0
      %v4150 = vsel %vm4086, 1, 0
      %v4151 = vsel %vm4087, 1, 0
      %v4152 = vsel %vm4088, 1, 0
      %v4153 = vsel %vm4089, 1, 0
      %v4154 = vsel %vm4090, 1, 0
      %v4155 = vsel %vm4091, 1, 0
      %v4156 = vsel %vm4092, 1, 0
      %v4157 = vsel %vm4093, 1, 0
      %v4158 = vsel %vm4094, 1, 0
      %v4159 = vsel %vm4095, 1, 0
      %v4160 = vsel %vm4096, 1, 0
      %v4161 = vsel %vm4097, 1, 0
      %v4162 = vsel %vm4098, 1, 0
      %v4163 = vsel %vm4099, 1, 0
      %v4164 = vsel %vm4100, 1, 0
      %v4165 = vsel %vm4101, 1, 0
      %v4166 = vsel %vm4102, 1, 0
      %v4167 = vsel %vm4103, 1, 0
      %v4168 = vsel %vm4104, 1, 0
      %v4169 = vsel %vm4105, 1, 0
      %v4170 = vsel %vm4106, 1, 0
      %v4171 = vsel %vm4107, 1, 0
      %v4172 = vsel %vm4108, 1, 0
      %v4173 = vsel %vm4109, 1, 0
      %v4174 = vsel %vm4110, 1, 0
      %v4175 = vsel %vm4111, 1, 0
      %v4176 = vsel %vm4112, 1, 0
      %v4177 = vsel %vm4113, 1, 0
      %v4178 = vsel %vm4114, 1, 0
      %v4179 = vsel %vm4115, 1, 0
      %v4180 = vsel %vm4116, 1, 0
      %v4181 = vsel %vm4117, 1, 0
      %v4182 = vsel %vm4118, 1, 0
      %v4183 = vsel %vm4119, 1, 0
      %v4184 = vsel %vm4120, 1, 0
      %v4185 = vsel %vm4121, 1, 0
      %v4186 = vsel %vm4122, 1, 0
      %v4187 = vsel %vm4123, 1, 0
      %v4188 = vsel %vm4124, 1, 0
      %v4189 = vsel %vm4125, 1, 0
      %v4190 = vsel %vm4126, 1, 0
      %v4191 = vsel %vm4127, 1, 0
      %v4192 = vsel %vm4128, 1, 0
      %v4193 = vsel %vm4129, 1, 0
      %v4194 = vsel %vm4130, 1, 0
      %v4195 = vsel %vm4131, 1, 0
      %v4196 = vsel %vm4132, 1, 0
      %v4197 = vsel %vm4133, 1, 0
      %v4198 = vsel %vm4134, 1, 0
      %v4199 = vsel %vm4135, 1, 0
      %v4200 = vsel %vm4136, 1, 0
      %v4201 = vsel %vm4137, 1, 0
      %v4202 = vsel %vm4138, 1, 0
      %v4203 = vsel %vm4139, 1, 0
      %v4204 = vsel %vm4140, 1, 0
      %v4205 = vsel %vm4141, 1, 0
      %v4206 = vsel %vm4142, 1, 0
      %v4207 = vsel %vm4143, 1, 0
      %v4208 = vsel %vm4144, 1, 0
      %v4209 = vcvt.s32.f32 %v4145
      %v4210 = vcvt.s32.f32 %v4146
      %v4211 = vcvt.s32.f32 %v4147
      %v4212 = vcvt.s32.f32 %v4148
      %v4213 = vcvt.s32.f32 %v4149
      %v4214 = vcvt.s32.f32 %v4150
      %v4215 = vcvt.s32.f32 %v4151
      %v4216 = vcvt.s32.f32 %v4152
      %v4217 = vcvt.s32.f32 %v4153
      %v4218 = vcvt.s32.f32 %v4154
      %v4219 = vcvt.s32.f32 %v4155
      %v4220 = vcvt.s32.f32 %v4156
      %v4221 = vcvt.s32.f32 %v4157
      %v4222 = vcvt.s32.f32 %v4158
      %v4223 = vcvt.s32.f32 %v4159
      %v4224 = vcvt.s32.f32 %v4160
      %v4225 = vcvt.s32.f32 %v4161
      %v4226 = vcvt.s32.f32 %v4162
      %v4227 = vcvt.s32.f32 %v4163
      %v4228 = vcvt.s32.f32 %v4164
      %v4229 = vcvt.s32.f32 %v4165
      %v4230 = vcvt.s32.f32 %v4166
      %v4231 = vcvt.s32.f32 %v4167
      %v4232 = vcvt.s32.f32 %v4168
      %v4233 = vcvt.s32.f32 %v4169
      %v4234 = vcvt.s32.f32 %v4170
      %v4235 = vcvt.s32.f32 %v4171
      %v4236 = vcvt.s32.f32 %v4172
      %v4237 = vcvt.s32.f32 %v4173
      %v4238 = vcvt.s32.f32 %v4174
      %v4239 = vcvt.s32.f32 %v4175
      %v4240 = vcvt.s32.f32 %v4176
      %v4241 = vcvt.s32.f32 %v4177
      %v4242 = vcvt.s32.f32 %v4178
      %v4243 = vcvt.s32.f32 %v4179
      %v4244 = vcvt.s32.f32 %v4180
      %v4245 = vcvt.s32.f32 %v4181
      %v4246 = vcvt.s32.f32 %v4182
      %v4247 = vcvt.s32.f32 %v4183
      %v4248 = vcvt.s32.f32 %v4184
      %v4249 = vcvt.s32.f32 %v4185
      %v4250 = vcvt.s32.f32 %v4186
      %v4251 = vcvt.s32.f32 %v4187
      %v4252 = vcvt.s32.f32 %v4188
      %v4253 = vcvt.s32.f32 %v4189
      %v4254 = vcvt.s32.f32 %v4190
      %v4255 = vcvt.s32.f32 %v4191
      %v4256 = vcvt.s32.f32 %v4192
      %v4257 = vcvt.s32.f32 %v4193
      %v4258 = vcvt.s32.f32 %v4194
      %v4259 = vcvt.s32.f32 %v4195
      %v4260 = vcvt.s32.f32 %v4196
      %v4261 = vcvt.s32.f32 %v4197
      %v4262 = vcvt.s32.f32 %v4198
      %v4263 = vcvt.s32.f32 %v4199
      %v4264 = vcvt.s32.f32 %v4200
      %v4265 = vcvt.s32.f32 %v4201
      %v4266 = vcvt.s32.f32 %v4202
      %v4267 = vcvt.s32.f32 %v4203
      %v4268 = vcvt.s32.f32 %v4204
      %v4269 = vcvt.s32.f32 %v4205
      %v4270 = vcvt.s32.f32 %v4206
      %v4271 = vcvt.s32.f32 %v4207
      %v4272 = vcvt.s32.f32 %v4208
      %4273 = vrot.lane.b32.xlu0 %v357, 124
      %v4274 = vpop.permute.xlu0 %4273
      %v4276 = vadd.f32 %v357, %v4274
      %4277 = vrot.lane.b32.xlu0 %v357, 120
      %v4278 = vpop.permute.xlu0 %4277
      %v4280 = vadd.f32 %v4276, %v4278
      %v4281 = vsub.f32 %v652, %v364
      %v4282 = vsub.f32 %v654, %v364
      %v4283 = vsub.f32 %v657, %v364
      %v4284 = vsub.f32 %v659, %v364
      %v4285 = vsub.f32 %v662, %v364
      %v4286 = vsub.f32 %v664, %v364
      %v4287 = vsub.f32 %v667, %v364
      %v4288 = vsub.f32 %v669, %v364
      %v4289 = vsub.f32 %v672, %v364
      %v4290 = vsub.f32 %v674, %v364
      %v4291 = vsub.f32 %v677, %v364
      %v4292 = vsub.f32 %v679, %v364
      %v4293 = vsub.f32 %v682, %v364
      %v4294 = vsub.f32 %v684, %v364
      %v4295 = vsub.f32 %v687, %v364
      %v4296 = vsub.f32 %v689, %v364
      %v4297 = vsub.f32 %v692, %v364
      %v4298 = vsub.f32 %v694, %v364
      %v4299 = vsub.f32 %v697, %v364
      %v4300 = vsub.f32 %v699, %v364
      %v4301 = vsub.f32 %v702, %v364
      %v4302 = vsub.f32 %v704, %v364
      %v4303 = vsub.f32 %v707, %v364
      %v4304 = vsub.f32 %v709, %v364
      %v4305 = vsub.f32 %v712, %v364
      %v4306 = vsub.f32 %v714, %v364
      %v4307 = vsub.f32 %v717, %v364
      %v4308 = vsub.f32 %v719, %v364
      %v4309 = vsub.f32 %v722, %v364
      %v4310 = vsub.f32 %v724, %v364
      %v4311 = vsub.f32 %v727, %v364
      %v4312 = vsub.f32 %v729, %v364
      %v4313 = vsub.f32 %v732, %v364
      %v4314 = vsub.f32 %v734, %v364
      %v4315 = vsub.f32 %v737, %v364
      %v4316 = vsub.f32 %v739, %v364
      %v4317 = vsub.f32 %v742, %v364
      %v4318 = vsub.f32 %v744, %v364
      %v4319 = vsub.f32 %v747, %v364
      %v4320 = vsub.f32 %v749, %v364
      %v4321 = vsub.f32 %v752, %v364
      %v4322 = vsub.f32 %v754, %v364
      %v4323 = vsub.f32 %v757, %v364
      %v4324 = vsub.f32 %v759, %v364
      %v4325 = vsub.f32 %v762, %v364
      %v4326 = vsub.f32 %v764, %v364
      %v4327 = vsub.f32 %v767, %v364
      %v4328 = vsub.f32 %v769, %v364
      %v4329 = vsub.f32 %v772, %v364
      %v4330 = vsub.f32 %v774, %v364
      %v4331 = vsub.f32 %v777, %v364
      %v4332 = vsub.f32 %v779, %v364
      %v4333 = vsub.f32 %v782, %v364
      %v4334 = vsub.f32 %v784, %v364
      %v4335 = vsub.f32 %v787, %v364
      %v4336 = vsub.f32 %v789, %v364
      %v4337 = vsub.f32 %v792, %v364
      %v4338 = vsub.f32 %v794, %v364
      %v4339 = vsub.f32 %v797, %v364
      %v4340 = vsub.f32 %v799, %v364
      %v4341 = vsub.f32 %v802, %v364
      %v4342 = vsub.f32 %v804, %v364
      %v4343 = vsub.f32 %v807, %v364
      %v4344 = vsub.f32 %v809, %v364
      %v4345 = vmul.f32 %v4281, %v4209
      %v4346 = vmul.f32 %v4282, %v4210
      %v4347 = vmul.f32 %v4283, %v4211
      %v4348 = vmul.f32 %v4284, %v4212
      %v4349 = vmul.f32 %v4285, %v4213
      %v4350 = vmul.f32 %v4286, %v4214
      %v4351 = vmul.f32 %v4287, %v4215
      %v4352 = vmul.f32 %v4288, %v4216
      %v4353 = vmul.f32 %v4289, %v4217
      %v4354 = vmul.f32 %v4290, %v4218
      %v4355 = vmul.f32 %v4291, %v4219
      %v4356 = vmul.f32 %v4292, %v4220
      %v4357 = vmul.f32 %v4293, %v4221
      %v4358 = vmul.f32 %v4294, %v4222
      %v4359 = vmul.f32 %v4295, %v4223
      %v4360 = vmul.f32 %v4296, %v4224
      %v4361 = vmul.f32 %v4297, %v4225
      %v4362 = vmul.f32 %v4298, %v4226
      %v4363 = vmul.f32 %v4299, %v4227
      %v4364 = vmul.f32 %v4300, %v4228
      %v4365 = vmul.f32 %v4301, %v4229
      %v4366 = vmul.f32 %v4302, %v4230
      %v4367 = vmul.f32 %v4303, %v4231
      %v4368 = vmul.f32 %v4304, %v4232
      %v4369 = vmul.f32 %v4305, %v4233
      %v4370 = vmul.f32 %v4306, %v4234
      %v4371 = vmul.f32 %v4307, %v4235
      %v4372 = vmul.f32 %v4308, %v4236
      %v4373 = vmul.f32 %v4309, %v4237
      %v4374 = vmul.f32 %v4310, %v4238
      %v4375 = vmul.f32 %v4311, %v4239
      %v4376 = vmul.f32 %v4312, %v4240
      %v4377 = vmul.f32 %v4313, %v4241
      %v4378 = vmul.f32 %v4314, %v4242
      %v4379 = vmul.f32 %v4315, %v4243
      %v4380 = vmul.f32 %v4316, %v4244
      %v4381 = vmul.f32 %v4317, %v4245
      %v4382 = vmul.f32 %v4318, %v4246
      %v4383 = vmul.f32 %v4319, %v4247
      %v4384 = vmul.f32 %v4320, %v4248
      %v4385 = vmul.f32 %v4321, %v4249
      %v4386 = vmul.f32 %v4322, %v4250
      %v4387 = vmul.f32 %v4323, %v4251
      %v4388 = vmul.f32 %v4324, %v4252
      %v4389 = vmul.f32 %v4325, %v4253
      %v4390 = vmul.f32 %v4326, %v4254
      %v4391 = vmul.f32 %v4327, %v4255
      %v4392 = vmul.f32 %v4328, %v4256
      %v4393 = vmul.f32 %v4329, %v4257
      %v4394 = vmul.f32 %v4330, %v4258
      %v4395 = vmul.f32 %v4331, %v4259
      %v4396 = vmul.f32 %v4332, %v4260
      %v4397 = vmul.f32 %v4333, %v4261
      %v4398 = vmul.f32 %v4334, %v4262
      %v4399 = vmul.f32 %v4335, %v4263
      %v4400 = vmul.f32 %v4336, %v4264
      %v4401 = vmul.f32 %v4337, %v4265
      %v4402 = vmul.f32 %v4338, %v4266
      %v4403 = vmul.f32 %v4339, %v4267
      %v4404 = vmul.f32 %v4340, %v4268
      %v4405 = vmul.f32 %v4341, %v4269
      %v4406 = vmul.f32 %v4342, %v4270
      %v4407 = vmul.f32 %v4343, %v4271
      %v4408 = vmul.f32 %v4344, %v4272
      %v4409 = vsub.f32 %v3310, %v364
      %v4410 = vsub.f32 %v3311, %v364
      %v4411 = vsub.f32 %v3312, %v364
      %v4412 = vsub.f32 %v3313, %v364
      %v4413 = vsub.f32 %v3314, %v364
      %v4414 = vsub.f32 %v3315, %v364
      %v4415 = vsub.f32 %v3316, %v364
      %v4416 = vsub.f32 %v3317, %v364
      %v4417 = vsub.f32 %v3318, %v364
      %v4418 = vsub.f32 %v3319, %v364
      %v4419 = vsub.f32 %v3320, %v364
      %v4420 = vsub.f32 %v3321, %v364
      %v4421 = vsub.f32 %v3322, %v364
      %v4422 = vsub.f32 %v3323, %v364
      %v4423 = vsub.f32 %v3324, %v364
      %v4424 = vsub.f32 %v3325, %v364
      %v4425 = vsub.f32 %v3326, %v364
      %v4426 = vsub.f32 %v3327, %v364
      %v4427 = vsub.f32 %v3328, %v364
      %v4428 = vsub.f32 %v3329, %v364
      %v4429 = vsub.f32 %v3330, %v364
      %v4430 = vsub.f32 %v3331, %v364
      %v4431 = vsub.f32 %v3332, %v364
      %v4432 = vsub.f32 %v3333, %v364
      %v4433 = vsub.f32 %v3334, %v364
      %v4434 = vsub.f32 %v3335, %v364
      %v4435 = vsub.f32 %v3336, %v364
      %v4436 = vsub.f32 %v3337, %v364
      %v4437 = vsub.f32 %v3338, %v364
      %v4438 = vsub.f32 %v3339, %v364
      %v4439 = vsub.f32 %v3340, %v364
      %v4440 = vsub.f32 %v3341, %v364
      %v4441 = vsub.f32 %v3342, %v364
      %v4442 = vsub.f32 %v3343, %v364
      %v4443 = vsub.f32 %v3344, %v364
      %v4444 = vsub.f32 %v3345, %v364
      %v4445 = vsub.f32 %v3346, %v364
      %v4446 = vsub.f32 %v3347, %v364
      %v4447 = vsub.f32 %v3348, %v364
      %v4448 = vsub.f32 %v3349, %v364
      %v4449 = vsub.f32 %v3350, %v364
      %v4450 = vsub.f32 %v3351, %v364
      %v4451 = vsub.f32 %v3352, %v364
      %v4452 = vsub.f32 %v3353, %v364
      %v4453 = vsub.f32 %v3354, %v364
      %v4454 = vsub.f32 %v3355, %v364
      %v4455 = vsub.f32 %v3356, %v364
      %v4456 = vsub.f32 %v3357, %v364
      %v4457 = vsub.f32 %v3358, %v364
      %v4458 = vsub.f32 %v3359, %v364
      %v4459 = vsub.f32 %v3360, %v364
      %v4460 = vsub.f32 %v3361, %v364
      %v4461 = vsub.f32 %v3362, %v364
      %v4462 = vsub.f32 %v3363, %v364
      %v4463 = vsub.f32 %v3364, %v364
      %v4464 = vsub.f32 %v3365, %v364
      %v4465 = vsub.f32 %v3366, %v364
      %v4466 = vsub.f32 %v3367, %v364
      %v4467 = vsub.f32 %v3368, %v364
      %v4468 = vsub.f32 %v3369, %v364
      %v4469 = vsub.f32 %v3370, %v364
      %v4470 = vsub.f32 %v3371, %v364
      %v4471 = vsub.f32 %v3372, %v364
      %v4472 = vsub.f32 %v3373, %v364
      %v4473 = vmul.f32 %v4409, %v4209
      %v4474 = vmul.f32 %v4410, %v4210
      %v4475 = vmul.f32 %v4411, %v4211
      %v4476 = vmul.f32 %v4412, %v4212
      %v4477 = vmul.f32 %v4413, %v4213
      %v4478 = vmul.f32 %v4414, %v4214
      %v4479 = vmul.f32 %v4415, %v4215
      %v4480 = vmul.f32 %v4416, %v4216
      %v4481 = vmul.f32 %v4417, %v4217
      %v4482 = vmul.f32 %v4418, %v4218
      %v4483 = vmul.f32 %v4419, %v4219
      %v4484 = vmul.f32 %v4420, %v4220
      %v4485 = vmul.f32 %v4421, %v4221
      %v4486 = vmul.f32 %v4422, %v4222
      %v4487 = vmul.f32 %v4423, %v4223
      %v4488 = vmul.f32 %v4424, %v4224
      %v4489 = vmul.f32 %v4425, %v4225
      %v4490 = vmul.f32 %v4426, %v4226
      %v4491 = vmul.f32 %v4427, %v4227
      %v4492 = vmul.f32 %v4428, %v4228
      %v4493 = vmul.f32 %v4429, %v4229
      %v4494 = vmul.f32 %v4430, %v4230
      %v4495 = vmul.f32 %v4431, %v4231
      %v4496 = vmul.f32 %v4432, %v4232
      %v4497 = vmul.f32 %v4433, %v4233
      %v4498 = vmul.f32 %v4434, %v4234
      %v4499 = vmul.f32 %v4435, %v4235
      %v4500 = vmul.f32 %v4436, %v4236
      %v4501 = vmul.f32 %v4437, %v4237
      %v4502 = vmul.f32 %v4438, %v4238
      %v4503 = vmul.f32 %v4439, %v4239
      %v4504 = vmul.f32 %v4440, %v4240
      %v4505 = vmul.f32 %v4441, %v4241
      %v4506 = vmul.f32 %v4442, %v4242
      %v4507 = vmul.f32 %v4443, %v4243
      %v4508 = vmul.f32 %v4444, %v4244
      %v4509 = vmul.f32 %v4445, %v4245
      %v4510 = vmul.f32 %v4446, %v4246
      %v4511 = vmul.f32 %v4447, %v4247
      %v4512 = vmul.f32 %v4448, %v4248
      %v4513 = vmul.f32 %v4449, %v4249
      %v4514 = vmul.f32 %v4450, %v4250
      %v4515 = vmul.f32 %v4451, %v4251
      %v4516 = vmul.f32 %v4452, %v4252
      %v4517 = vmul.f32 %v4453, %v4253
      %v4518 = vmul.f32 %v4454, %v4254
      %v4519 = vmul.f32 %v4455, %v4255
      %v4520 = vmul.f32 %v4456, %v4256
      %v4521 = vmul.f32 %v4457, %v4257
      %v4522 = vmul.f32 %v4458, %v4258
      %v4523 = vmul.f32 %v4459, %v4259
      %v4524 = vmul.f32 %v4460, %v4260
      %v4525 = vmul.f32 %v4461, %v4261
      %v4526 = vmul.f32 %v4462, %v4262
      %v4527 = vmul.f32 %v4463, %v4263
      %v4528 = vmul.f32 %v4464, %v4264
      %v4529 = vmul.f32 %v4465, %v4265
      %v4530 = vmul.f32 %v4466, %v4266
      %v4531 = vmul.f32 %v4467, %v4267
      %v4532 = vmul.f32 %v4468, %v4268
      %v4533 = vmul.f32 %v4469, %v4269
      %v4534 = vmul.f32 %v4470, %v4270
      %v4535 = vmul.f32 %v4471, %v4271
      %v4536 = vmul.f32 %v4472, %v4272
      %v4538 = vperm.slane %v4280, 0
      %v4540 = vsub.f32 %v3951, %v4538
      %v4541 = vsub.f32 %v3952, %v4538
      %v4542 = vsub.f32 %v3953, %v4538
      %v4543 = vsub.f32 %v3954, %v4538
      %v4544 = vsub.f32 %v3955, %v4538
      %v4545 = vsub.f32 %v3956, %v4538
      %v4546 = vsub.f32 %v3957, %v4538
      %v4547 = vsub.f32 %v3958, %v4538
      %v4548 = vsub.f32 %v3959, %v4538
      %v4549 = vsub.f32 %v3960, %v4538
      %v4550 = vsub.f32 %v3961, %v4538
      %v4551 = vsub.f32 %v3962, %v4538
      %v4552 = vsub.f32 %v3963, %v4538
      %v4553 = vsub.f32 %v3964, %v4538
      %v4554 = vsub.f32 %v3965, %v4538
      %v4555 = vsub.f32 %v3966, %v4538
      %v4556 = vsub.f32 %v3967, %v4538
      %v4557 = vsub.f32 %v3968, %v4538
      %v4558 = vsub.f32 %v3969, %v4538
      %v4559 = vsub.f32 %v3970, %v4538
      %v4560 = vsub.f32 %v3971, %v4538
      %v4561 = vsub.f32 %v3972, %v4538
      %v4562 = vsub.f32 %v3973, %v4538
      %v4563 = vsub.f32 %v3974, %v4538
      %v4564 = vsub.f32 %v3975, %v4538
      %v4565 = vsub.f32 %v3976, %v4538
      %v4566 = vsub.f32 %v3977, %v4538
      %v4567 = vsub.f32 %v3978, %v4538
      %v4568 = vsub.f32 %v3979, %v4538
      %v4569 = vsub.f32 %v3980, %v4538
      %v4570 = vsub.f32 %v3981, %v4538
      %v4571 = vsub.f32 %v3982, %v4538
      %v4572 = vsub.f32 %v3983, %v4538
      %v4573 = vsub.f32 %v3984, %v4538
      %v4574 = vsub.f32 %v3985, %v4538
      %v4575 = vsub.f32 %v3986, %v4538
      %v4576 = vsub.f32 %v3987, %v4538
      %v4577 = vsub.f32 %v3988, %v4538
      %v4578 = vsub.f32 %v3989, %v4538
      %v4579 = vsub.f32 %v3990, %v4538
      %v4580 = vsub.f32 %v3991, %v4538
      %v4581 = vsub.f32 %v3992, %v4538
      %v4582 = vsub.f32 %v3993, %v4538
      %v4583 = vsub.f32 %v3994, %v4538
      %v4584 = vsub.f32 %v3995, %v4538
      %v4585 = vsub.f32 %v3996, %v4538
      %v4586 = vsub.f32 %v3997, %v4538
      %v4587 = vsub.f32 %v3998, %v4538
      %v4588 = vsub.f32 %v3999, %v4538
      %v4589 = vsub.f32 %v4000, %v4538
      %v4590 = vsub.f32 %v4001, %v4538
      %v4591 = vsub.f32 %v4002, %v4538
      %v4592 = vsub.f32 %v4003, %v4538
      %v4593 = vsub.f32 %v4004, %v4538
      %v4594 = vsub.f32 %v4005, %v4538
      %v4595 = vsub.f32 %v4006, %v4538
      %v4596 = vsub.f32 %v4007, %v4538
      %v4597 = vsub.f32 %v4008, %v4538
      %v4598 = vsub.f32 %v4009, %v4538
      %v4599 = vsub.f32 %v4010, %v4538
      %v4600 = vsub.f32 %v4011, %v4538
      %v4601 = vsub.f32 %v4012, %v4538
      %v4602 = vsub.f32 %v4013, %v4538
      %v4603 = vsub.f32 %v4014, %v4538
      %v4604 = vmul.f32 %v4540, %v4209
      %v4605 = vmul.f32 %v4541, %v4210
      %v4606 = vmul.f32 %v4542, %v4211
      %v4607 = vmul.f32 %v4543, %v4212
      %v4608 = vmul.f32 %v4544, %v4213
      %v4609 = vmul.f32 %v4545, %v4214
      %v4610 = vmul.f32 %v4546, %v4215
      %v4611 = vmul.f32 %v4547, %v4216
      %v4612 = vmul.f32 %v4548, %v4217
      %v4613 = vmul.f32 %v4549, %v4218
      %v4614 = vmul.f32 %v4550, %v4219
      %v4615 = vmul.f32 %v4551, %v4220
      %v4616 = vmul.f32 %v4552, %v4221
      %v4617 = vmul.f32 %v4553, %v4222
      %v4618 = vmul.f32 %v4554, %v4223
      %v4619 = vmul.f32 %v4555, %v4224
      %v4620 = vmul.f32 %v4556, %v4225
      %v4621 = vmul.f32 %v4557, %v4226
      %v4622 = vmul.f32 %v4558, %v4227
      %v4623 = vmul.f32 %v4559, %v4228
      %v4624 = vmul.f32 %v4560, %v4229
      %v4625 = vmul.f32 %v4561, %v4230
      %v4626 = vmul.f32 %v4562, %v4231
      %v4627 = vmul.f32 %v4563, %v4232
      %v4628 = vmul.f32 %v4564, %v4233
      %v4629 = vmul.f32 %v4565, %v4234
      %v4630 = vmul.f32 %v4566, %v4235
      %v4631 = vmul.f32 %v4567, %v4236
      %v4632 = vmul.f32 %v4568, %v4237
      %v4633 = vmul.f32 %v4569, %v4238
      %v4634 = vmul.f32 %v4570, %v4239
      %v4635 = vmul.f32 %v4571, %v4240
      %v4636 = vmul.f32 %v4572, %v4241
      %v4637 = vmul.f32 %v4573, %v4242
      %v4638 = vmul.f32 %v4574, %v4243
      %v4639 = vmul.f32 %v4575, %v4244
      %v4640 = vmul.f32 %v4576, %v4245
      %v4641 = vmul.f32 %v4577, %v4246
      %v4642 = vmul.f32 %v4578, %v4247
      %v4643 = vmul.f32 %v4579, %v4248
      %v4644 = vmul.f32 %v4580, %v4249
      %v4645 = vmul.f32 %v4581, %v4250
      %v4646 = vmul.f32 %v4582, %v4251
      %v4647 = vmul.f32 %v4583, %v4252
      %v4648 = vmul.f32 %v4584, %v4253
      %v4649 = vmul.f32 %v4585, %v4254
      %v4650 = vmul.f32 %v4586, %v4255
      %v4651 = vmul.f32 %v4587, %v4256
      %v4652 = vmul.f32 %v4588, %v4257
      %v4653 = vmul.f32 %v4589, %v4258
      %v4654 = vmul.f32 %v4590, %v4259
      %v4655 = vmul.f32 %v4591, %v4260
      %v4656 = vmul.f32 %v4592, %v4261
      %v4657 = vmul.f32 %v4593, %v4262
      %v4658 = vmul.f32 %v4594, %v4263
      %v4659 = vmul.f32 %v4595, %v4264
      %v4660 = vmul.f32 %v4596, %v4265
      %v4661 = vmul.f32 %v4597, %v4266
      %v4662 = vmul.f32 %v4598, %v4267
      %v4663 = vmul.f32 %v4599, %v4268
      %v4664 = vmul.f32 %v4600, %v4269
      %v4665 = vmul.f32 %v4601, %v4270
      %v4666 = vmul.f32 %v4602, %v4271
      %v4667 = vmul.f32 %v4603, %v4272
      %vm4668 = vcmask 31744
      %v4669 = vsel %vm4668, %v4345, 0.0
      %v4670 = vsel %vm4668, %v4346, 0.0
      %v4671 = vadd.f32 %v4669, %v4670
      %v4672 = vsel %vm4668, %v4347, 0.0
      %v4673 = vadd.f32 %v4671, %v4672
      %v4674 = vsel %vm4668, %v4348, 0.0
      %v4675 = vadd.f32 %v4673, %v4674
      %v4676 = vsel %vm4668, %v4349, 0.0
      %v4677 = vadd.f32 %v4675, %v4676
      %v4678 = vsel %vm4668, %v4350, 0.0
      %v4679 = vadd.f32 %v4677, %v4678
      %v4680 = vsel %vm4668, %v4351, 0.0
      %v4681 = vadd.f32 %v4679, %v4680
      %v4682 = vsel %vm4668, %v4352, 0.0
      %v4683 = vadd.f32 %v4681, %v4682
      %v4684 = vsel %vm4668, %v4353, 0.0
      %v4685 = vadd.f32 %v4683, %v4684
      %v4686 = vsel %vm4668, %v4354, 0.0
      %v4687 = vadd.f32 %v4685, %v4686
      %v4688 = vsel %vm4668, %v4355, 0.0
      %v4689 = vadd.f32 %v4687, %v4688
      %v4690 = vsel %vm4668, %v4356, 0.0
      %v4691 = vadd.f32 %v4689, %v4690
      %v4692 = vsel %vm4668, %v4357, 0.0
      %v4693 = vadd.f32 %v4691, %v4692
      %v4694 = vsel %vm4668, %v4358, 0.0
      %v4695 = vadd.f32 %v4693, %v4694
      %v4696 = vsel %vm4668, %v4359, 0.0
      %v4697 = vadd.f32 %v4695, %v4696
      %v4698 = vsel %vm4668, %v4360, 0.0
      %v4699 = vadd.f32 %v4697, %v4698
      %v4700 = vsel %vm4668, %v4361, 0.0
      %v4701 = vadd.f32 %v4699, %v4700
      %v4702 = vsel %vm4668, %v4362, 0.0
      %v4703 = vadd.f32 %v4701, %v4702
      %v4704 = vsel %vm4668, %v4363, 0.0
      %v4705 = vadd.f32 %v4703, %v4704
      %v4706 = vsel %vm4668, %v4364, 0.0
      %v4707 = vadd.f32 %v4705, %v4706
      %v4708 = vsel %vm4668, %v4365, 0.0
      %v4709 = vadd.f32 %v4707, %v4708
      %v4710 = vsel %vm4668, %v4366, 0.0
      %v4711 = vadd.f32 %v4709, %v4710
      %v4712 = vsel %vm4668, %v4367, 0.0
      %v4713 = vadd.f32 %v4711, %v4712
      %v4714 = vsel %vm4668, %v4368, 0.0
      %v4715 = vadd.f32 %v4713, %v4714
      %v4716 = vsel %vm4668, %v4369, 0.0
      %v4717 = vadd.f32 %v4715, %v4716
      %v4718 = vsel %vm4668, %v4370, 0.0
      %v4719 = vadd.f32 %v4717, %v4718
      %v4720 = vsel %vm4668, %v4371, 0.0
      %v4721 = vadd.f32 %v4719, %v4720
      %v4722 = vsel %vm4668, %v4372, 0.0
      %v4723 = vadd.f32 %v4721, %v4722
      %v4724 = vsel %vm4668, %v4373, 0.0
      %v4725 = vadd.f32 %v4723, %v4724
      %v4726 = vsel %vm4668, %v4374, 0.0
      %v4727 = vadd.f32 %v4725, %v4726
      %v4728 = vsel %vm4668, %v4375, 0.0
      %v4729 = vadd.f32 %v4727, %v4728
      %v4730 = vsel %vm4668, %v4376, 0.0
      %v4731 = vadd.f32 %v4729, %v4730
      %v4732 = vsel %vm4668, %v4377, 0.0
      %v4733 = vadd.f32 %v4731, %v4732
      %v4734 = vsel %vm4668, %v4378, 0.0
      %v4735 = vadd.f32 %v4733, %v4734
      %v4736 = vsel %vm4668, %v4379, 0.0
      %v4737 = vadd.f32 %v4735, %v4736
      %v4738 = vsel %vm4668, %v4380, 0.0
      %v4739 = vadd.f32 %v4737, %v4738
      %v4740 = vsel %vm4668, %v4381, 0.0
      %v4741 = vadd.f32 %v4739, %v4740
      %v4742 = vsel %vm4668, %v4382, 0.0
      %v4743 = vadd.f32 %v4741, %v4742
      %v4744 = vsel %vm4668, %v4383, 0.0
      %v4745 = vadd.f32 %v4743, %v4744
      %v4746 = vsel %vm4668, %v4384, 0.0
      %v4747 = vadd.f32 %v4745, %v4746
      %v4748 = vsel %vm4668, %v4385, 0.0
      %v4749 = vadd.f32 %v4747, %v4748
      %v4750 = vsel %vm4668, %v4386, 0.0
      %v4751 = vadd.f32 %v4749, %v4750
      %v4752 = vsel %vm4668, %v4387, 0.0
      %v4753 = vadd.f32 %v4751, %v4752
      %v4754 = vsel %vm4668, %v4388, 0.0
      %v4755 = vadd.f32 %v4753, %v4754
      %v4756 = vsel %vm4668, %v4389, 0.0
      %v4757 = vadd.f32 %v4755, %v4756
      %v4758 = vsel %vm4668, %v4390, 0.0
      %v4759 = vadd.f32 %v4757, %v4758
      %v4760 = vsel %vm4668, %v4391, 0.0
      %v4761 = vadd.f32 %v4759, %v4760
      %v4762 = vsel %vm4668, %v4392, 0.0
      %v4763 = vadd.f32 %v4761, %v4762
      %v4764 = vsel %vm4668, %v4393, 0.0
      %v4765 = vadd.f32 %v4763, %v4764
      %v4766 = vsel %vm4668, %v4394, 0.0
      %v4767 = vadd.f32 %v4765, %v4766
      %v4768 = vsel %vm4668, %v4395, 0.0
      %v4769 = vadd.f32 %v4767, %v4768
      %v4770 = vsel %vm4668, %v4396, 0.0
      %v4771 = vadd.f32 %v4769, %v4770
      %v4772 = vsel %vm4668, %v4397, 0.0
      %v4773 = vadd.f32 %v4771, %v4772
      %v4774 = vsel %vm4668, %v4398, 0.0
      %v4775 = vadd.f32 %v4773, %v4774
      %v4776 = vsel %vm4668, %v4399, 0.0
      %v4777 = vadd.f32 %v4775, %v4776
      %v4778 = vsel %vm4668, %v4400, 0.0
      %v4779 = vadd.f32 %v4777, %v4778
      %v4780 = vsel %vm4668, %v4401, 0.0
      %v4781 = vadd.f32 %v4779, %v4780
      %v4782 = vsel %vm4668, %v4402, 0.0
      %v4783 = vadd.f32 %v4781, %v4782
      %v4784 = vsel %vm4668, %v4403, 0.0
      %v4785 = vadd.f32 %v4783, %v4784
      %v4786 = vsel %vm4668, %v4404, 0.0
      %v4787 = vadd.f32 %v4785, %v4786
      %v4788 = vsel %vm4668, %v4405, 0.0
      %v4789 = vadd.f32 %v4787, %v4788
      %v4790 = vsel %vm4668, %v4406, 0.0
      %v4791 = vadd.f32 %v4789, %v4790
      %v4792 = vsel %vm4668, %v4407, 0.0
      %v4793 = vadd.f32 %v4791, %v4792
      %v4794 = vsel %vm4668, %v4408, 0.0
      %v4795 = vadd.f32 %v4793, %v4794
      %v4796 = vrot.slane %v4795, 4
      %v4797 = vadd.f32 %v4795, %v4796
      %v4798 = vrot.slane %v4797, 2
      %v4799 = vadd.f32 %v4797, %v4798
      %v4800 = vrot.slane %v4799, 1
      %v4801 = vadd.f32 %v4799, %v4800
      %v4802 = vmul.f32 %v4345, %v4345
      %v4803 = vmul.f32 %v4346, %v4346
      %v4804 = vmul.f32 %v4347, %v4347
      %v4805 = vmul.f32 %v4348, %v4348
      %v4806 = vmul.f32 %v4349, %v4349
      %v4807 = vmul.f32 %v4350, %v4350
      %v4808 = vmul.f32 %v4351, %v4351
      %v4809 = vmul.f32 %v4352, %v4352
      %v4810 = vmul.f32 %v4353, %v4353
      %v4811 = vmul.f32 %v4354, %v4354
      %v4812 = vmul.f32 %v4355, %v4355
      %v4813 = vmul.f32 %v4356, %v4356
      %v4814 = vmul.f32 %v4357, %v4357
      %v4815 = vmul.f32 %v4358, %v4358
      %v4816 = vmul.f32 %v4359, %v4359
      %v4817 = vmul.f32 %v4360, %v4360
      %v4818 = vmul.f32 %v4361, %v4361
      %v4819 = vmul.f32 %v4362, %v4362
      %v4820 = vmul.f32 %v4363, %v4363
      %v4821 = vmul.f32 %v4364, %v4364
      %v4822 = vmul.f32 %v4365, %v4365
      %v4823 = vmul.f32 %v4366, %v4366
      %v4824 = vmul.f32 %v4367, %v4367
      %v4825 = vmul.f32 %v4368, %v4368
      %v4826 = vmul.f32 %v4369, %v4369
      %v4827 = vmul.f32 %v4370, %v4370
      %v4828 = vmul.f32 %v4371, %v4371
      %v4829 = vmul.f32 %v4372, %v4372
      %v4830 = vmul.f32 %v4373, %v4373
      %v4831 = vmul.f32 %v4374, %v4374
      %v4832 = vmul.f32 %v4375, %v4375
      %v4833 = vmul.f32 %v4376, %v4376
      %v4834 = vmul.f32 %v4377, %v4377
      %v4835 = vmul.f32 %v4378, %v4378
      %v4836 = vmul.f32 %v4379, %v4379
      %v4837 = vmul.f32 %v4380, %v4380
      %v4838 = vmul.f32 %v4381, %v4381
      %v4839 = vmul.f32 %v4382, %v4382
      %v4840 = vmul.f32 %v4383, %v4383
      %v4841 = vmul.f32 %v4384, %v4384
      %v4842 = vmul.f32 %v4385, %v4385
      %v4843 = vmul.f32 %v4386, %v4386
      %v4844 = vmul.f32 %v4387, %v4387
      %v4845 = vmul.f32 %v4388, %v4388
      %v4846 = vmul.f32 %v4389, %v4389
      %v4847 = vmul.f32 %v4390, %v4390
      %v4848 = vmul.f32 %v4391, %v4391
      %v4849 = vmul.f32 %v4392, %v4392
      %v4850 = vmul.f32 %v4393, %v4393
      %v4851 = vmul.f32 %v4394, %v4394
      %v4852 = vmul.f32 %v4395, %v4395
      %v4853 = vmul.f32 %v4396, %v4396
      %v4854 = vmul.f32 %v4397, %v4397
      %v4855 = vmul.f32 %v4398, %v4398
      %v4856 = vmul.f32 %v4399, %v4399
      %v4857 = vmul.f32 %v4400, %v4400
      %v4858 = vmul.f32 %v4401, %v4401
      %v4859 = vmul.f32 %v4402, %v4402
      %v4860 = vmul.f32 %v4403, %v4403
      %v4861 = vmul.f32 %v4404, %v4404
      %v4862 = vmul.f32 %v4405, %v4405
      %v4863 = vmul.f32 %v4406, %v4406
      %v4864 = vmul.f32 %v4407, %v4407
      %v4865 = vmul.f32 %v4408, %v4408
      %v4866 = vsel %vm4668, %v4802, 0.0
      %v4867 = vsel %vm4668, %v4803, 0.0
      %v4868 = vadd.f32 %v4866, %v4867
      %v4869 = vsel %vm4668, %v4804, 0.0
      %v4870 = vadd.f32 %v4868, %v4869
      %v4871 = vsel %vm4668, %v4805, 0.0
      %v4872 = vadd.f32 %v4870, %v4871
      %v4873 = vsel %vm4668, %v4806, 0.0
      %v4874 = vadd.f32 %v4872, %v4873
      %v4875 = vsel %vm4668, %v4807, 0.0
      %v4876 = vadd.f32 %v4874, %v4875
      %v4877 = vsel %vm4668, %v4808, 0.0
      %v4878 = vadd.f32 %v4876, %v4877
      %v4879 = vsel %vm4668, %v4809, 0.0
      %v4880 = vadd.f32 %v4878, %v4879
      %v4881 = vsel %vm4668, %v4810, 0.0
      %v4882 = vadd.f32 %v4880, %v4881
      %v4883 = vsel %vm4668, %v4811, 0.0
      %v4884 = vadd.f32 %v4882, %v4883
      %v4885 = vsel %vm4668, %v4812, 0.0
      %v4886 = vadd.f32 %v4884, %v4885
      %v4887 = vsel %vm4668, %v4813, 0.0
      %v4888 = vadd.f32 %v4886, %v4887
      %v4889 = vsel %vm4668, %v4814, 0.0
      %v4890 = vadd.f32 %v4888, %v4889
      %v4891 = vsel %vm4668, %v4815, 0.0
      %v4892 = vadd.f32 %v4890, %v4891
      %v4893 = vsel %vm4668, %v4816, 0.0
      %v4894 = vadd.f32 %v4892, %v4893
      %v4895 = vsel %vm4668, %v4817, 0.0
      %v4896 = vadd.f32 %v4894, %v4895
      %v4897 = vsel %vm4668, %v4818, 0.0
      %v4898 = vadd.f32 %v4896, %v4897
      %v4899 = vsel %vm4668, %v4819, 0.0
      %v4900 = vadd.f32 %v4898, %v4899
      %v4901 = vsel %vm4668, %v4820, 0.0
      %v4902 = vadd.f32 %v4900, %v4901
      %v4903 = vsel %vm4668, %v4821, 0.0
      %v4904 = vadd.f32 %v4902, %v4903
      %v4905 = vsel %vm4668, %v4822, 0.0
      %v4906 = vadd.f32 %v4904, %v4905
      %v4907 = vsel %vm4668, %v4823, 0.0
      %v4908 = vadd.f32 %v4906, %v4907
      %v4909 = vsel %vm4668, %v4824, 0.0
      %v4910 = vadd.f32 %v4908, %v4909
      %v4911 = vsel %vm4668, %v4825, 0.0
      %v4912 = vadd.f32 %v4910, %v4911
      %v4913 = vsel %vm4668, %v4826, 0.0
      %v4914 = vadd.f32 %v4912, %v4913
      %v4915 = vsel %vm4668, %v4827, 0.0
      %v4916 = vadd.f32 %v4914, %v4915
      %v4917 = vsel %vm4668, %v4828, 0.0
      %v4918 = vadd.f32 %v4916, %v4917
      %v4919 = vsel %vm4668, %v4829, 0.0
      %v4920 = vadd.f32 %v4918, %v4919
      %v4921 = vsel %vm4668, %v4830, 0.0
      %v4922 = vadd.f32 %v4920, %v4921
      %v4923 = vsel %vm4668, %v4831, 0.0
      %v4924 = vadd.f32 %v4922, %v4923
      %v4925 = vsel %vm4668, %v4832, 0.0
      %v4926 = vadd.f32 %v4924, %v4925
      %v4927 = vsel %vm4668, %v4833, 0.0
      %v4928 = vadd.f32 %v4926, %v4927
      %v4929 = vsel %vm4668, %v4834, 0.0
      %v4930 = vadd.f32 %v4928, %v4929
      %v4931 = vsel %vm4668, %v4835, 0.0
      %v4932 = vadd.f32 %v4930, %v4931
      %v4933 = vsel %vm4668, %v4836, 0.0
      %v4934 = vadd.f32 %v4932, %v4933
      %v4935 = vsel %vm4668, %v4837, 0.0
      %v4936 = vadd.f32 %v4934, %v4935
      %v4937 = vsel %vm4668, %v4838, 0.0
      %v4938 = vadd.f32 %v4936, %v4937
      %v4939 = vsel %vm4668, %v4839, 0.0
      %v4940 = vadd.f32 %v4938, %v4939
      %v4941 = vsel %vm4668, %v4840, 0.0
      %v4942 = vadd.f32 %v4940, %v4941
      %v4943 = vsel %vm4668, %v4841, 0.0
      %v4944 = vadd.f32 %v4942, %v4943
      %v4945 = vsel %vm4668, %v4842, 0.0
      %v4946 = vadd.f32 %v4944, %v4945
      %v4947 = vsel %vm4668, %v4843, 0.0
      %v4948 = vadd.f32 %v4946, %v4947
      %v4949 = vsel %vm4668, %v4844, 0.0
      %v4950 = vadd.f32 %v4948, %v4949
      %v4951 = vsel %vm4668, %v4845, 0.0
      %v4952 = vadd.f32 %v4950, %v4951
      %v4953 = vsel %vm4668, %v4846, 0.0
      %v4954 = vadd.f32 %v4952, %v4953
      %v4955 = vsel %vm4668, %v4847, 0.0
      %v4956 = vadd.f32 %v4954, %v4955
      %v4957 = vsel %vm4668, %v4848, 0.0
      %v4958 = vadd.f32 %v4956, %v4957
      %v4959 = vsel %vm4668, %v4849, 0.0
      %v4960 = vadd.f32 %v4958, %v4959
      %v4961 = vsel %vm4668, %v4850, 0.0
      %v4962 = vadd.f32 %v4960, %v4961
      %v4963 = vsel %vm4668, %v4851, 0.0
      %v4964 = vadd.f32 %v4962, %v4963
      %v4965 = vsel %vm4668, %v4852, 0.0
      %v4966 = vadd.f32 %v4964, %v4965
      %v4967 = vsel %vm4668, %v4853, 0.0
      %v4968 = vadd.f32 %v4966, %v4967
      %v4969 = vsel %vm4668, %v4854, 0.0
      %v4970 = vadd.f32 %v4968, %v4969
      %v4971 = vsel %vm4668, %v4855, 0.0
      %v4972 = vadd.f32 %v4970, %v4971
      %v4973 = vsel %vm4668, %v4856, 0.0
      %v4974 = vadd.f32 %v4972, %v4973
      %v4975 = vsel %vm4668, %v4857, 0.0
      %v4976 = vadd.f32 %v4974, %v4975
      %v4977 = vsel %vm4668, %v4858, 0.0
      %v4978 = vadd.f32 %v4976, %v4977
      %v4979 = vsel %vm4668, %v4859, 0.0
      %v4980 = vadd.f32 %v4978, %v4979
      %v4981 = vsel %vm4668, %v4860, 0.0
      %v4982 = vadd.f32 %v4980, %v4981
      %v4983 = vsel %vm4668, %v4861, 0.0
      %v4984 = vadd.f32 %v4982, %v4983
      %v4985 = vsel %vm4668, %v4862, 0.0
      %v4986 = vadd.f32 %v4984, %v4985
      %v4987 = vsel %vm4668, %v4863, 0.0
      %v4988 = vadd.f32 %v4986, %v4987
      %v4989 = vsel %vm4668, %v4864, 0.0
      %v4990 = vadd.f32 %v4988, %v4989
      %v4991 = vsel %vm4668, %v4865, 0.0
      %v4992 = vadd.f32 %v4990, %v4991
      %v4993 = vrot.slane %v4992, 4
      %v4994 = vadd.f32 %v4992, %v4993
      %v4995 = vrot.slane %v4994, 2
      %v4996 = vadd.f32 %v4994, %v4995
      %v4997 = vrot.slane %v4996, 1
      %v4998 = vadd.f32 %v4996, %v4997
      %vm4999 = vcmask 64544
      %v5000 = vsel %vm4999, %v4473, 0.0
      %v5001 = vsel %vm4999, %v4474, 0.0
      %v5002 = vadd.f32 %v5000, %v5001
      %v5003 = vsel %vm4999, %v4475, 0.0
      %v5004 = vadd.f32 %v5002, %v5003
      %v5005 = vsel %vm4999, %v4476, 0.0
      %v5006 = vadd.f32 %v5004, %v5005
      %v5007 = vsel %vm4999, %v4477, 0.0
      %v5008 = vadd.f32 %v5006, %v5007
      %v5009 = vsel %vm4999, %v4478, 0.0
      %v5010 = vadd.f32 %v5008, %v5009
      %v5011 = vsel %vm4999, %v4479, 0.0
      %v5012 = vadd.f32 %v5010, %v5011
      %v5013 = vsel %vm4999, %v4480, 0.0
      %v5014 = vadd.f32 %v5012, %v5013
      %v5015 = vsel %vm4999, %v4481, 0.0
      %v5016 = vadd.f32 %v5014, %v5015
      %v5017 = vsel %vm4999, %v4482, 0.0
      %v5018 = vadd.f32 %v5016, %v5017
      %v5019 = vsel %vm4999, %v4483, 0.0
      %v5020 = vadd.f32 %v5018, %v5019
      %v5021 = vsel %vm4999, %v4484, 0.0
      %v5022 = vadd.f32 %v5020, %v5021
      %v5023 = vsel %vm4999, %v4485, 0.0
      %v5024 = vadd.f32 %v5022, %v5023
      %v5025 = vsel %vm4999, %v4486, 0.0
      %v5026 = vadd.f32 %v5024, %v5025
      %v5027 = vsel %vm4999, %v4487, 0.0
      %v5028 = vadd.f32 %v5026, %v5027
      %v5029 = vsel %vm4999, %v4488, 0.0
      %v5030 = vadd.f32 %v5028, %v5029
      %v5031 = vsel %vm4999, %v4489, 0.0
      %v5032 = vadd.f32 %v5030, %v5031
      %v5033 = vsel %vm4999, %v4490, 0.0
      %v5034 = vadd.f32 %v5032, %v5033
      %v5035 = vsel %vm4999, %v4491, 0.0
      %v5036 = vadd.f32 %v5034, %v5035
      %v5037 = vsel %vm4999, %v4492, 0.0
      %v5038 = vadd.f32 %v5036, %v5037
      %v5039 = vsel %vm4999, %v4493, 0.0
      %v5040 = vadd.f32 %v5038, %v5039
      %v5041 = vsel %vm4999, %v4494, 0.0
      %v5042 = vadd.f32 %v5040, %v5041
      %v5043 = vsel %vm4999, %v4495, 0.0
      %v5044 = vadd.f32 %v5042, %v5043
      %v5045 = vsel %vm4999, %v4496, 0.0
      %v5046 = vadd.f32 %v5044, %v5045
      %v5047 = vsel %vm4999, %v4497, 0.0
      %v5048 = vadd.f32 %v5046, %v5047
      %v5049 = vsel %vm4999, %v4498, 0.0
      %v5050 = vadd.f32 %v5048, %v5049
      %v5051 = vsel %vm4999, %v4499, 0.0
      %v5052 = vadd.f32 %v5050, %v5051
      %v5053 = vsel %vm4999, %v4500, 0.0
      %v5054 = vadd.f32 %v5052, %v5053
      %v5055 = vsel %vm4999, %v4501, 0.0
      %v5056 = vadd.f32 %v5054, %v5055
      %v5057 = vsel %vm4999, %v4502, 0.0
      %v5058 = vadd.f32 %v5056, %v5057
      %v5059 = vsel %vm4999, %v4503, 0.0
      %v5060 = vadd.f32 %v5058, %v5059
      %v5061 = vsel %vm4999, %v4504, 0.0
      %v5062 = vadd.f32 %v5060, %v5061
      %v5063 = vsel %vm4999, %v4505, 0.0
      %v5064 = vadd.f32 %v5062, %v5063
      %v5065 = vsel %vm4999, %v4506, 0.0
      %v5066 = vadd.f32 %v5064, %v5065
      %v5067 = vsel %vm4999, %v4507, 0.0
      %v5068 = vadd.f32 %v5066, %v5067
      %v5069 = vsel %vm4999, %v4508, 0.0
      %v5070 = vadd.f32 %v5068, %v5069
      %v5071 = vsel %vm4999, %v4509, 0.0
      %v5072 = vadd.f32 %v5070, %v5071
      %v5073 = vsel %vm4999, %v4510, 0.0
      %v5074 = vadd.f32 %v5072, %v5073
      %v5075 = vsel %vm4999, %v4511, 0.0
      %v5076 = vadd.f32 %v5074, %v5075
      %v5077 = vsel %vm4999, %v4512, 0.0
      %v5078 = vadd.f32 %v5076, %v5077
      %v5079 = vsel %vm4999, %v4513, 0.0
      %v5080 = vadd.f32 %v5078, %v5079
      %v5081 = vsel %vm4999, %v4514, 0.0
      %v5082 = vadd.f32 %v5080, %v5081
      %v5083 = vsel %vm4999, %v4515, 0.0
      %v5084 = vadd.f32 %v5082, %v5083
      %v5085 = vsel %vm4999, %v4516, 0.0
      %v5086 = vadd.f32 %v5084, %v5085
      %v5087 = vsel %vm4999, %v4517, 0.0
      %v5088 = vadd.f32 %v5086, %v5087
      %v5089 = vsel %vm4999, %v4518, 0.0
      %v5090 = vadd.f32 %v5088, %v5089
      %v5091 = vsel %vm4999, %v4519, 0.0
      %v5092 = vadd.f32 %v5090, %v5091
      %v5093 = vsel %vm4999, %v4520, 0.0
      %v5094 = vadd.f32 %v5092, %v5093
      %v5095 = vsel %vm4999, %v4521, 0.0
      %v5096 = vadd.f32 %v5094, %v5095
      %v5097 = vsel %vm4999, %v4522, 0.0
      %v5098 = vadd.f32 %v5096, %v5097
      %v5099 = vsel %vm4999, %v4523, 0.0
      %v5100 = vadd.f32 %v5098, %v5099
      %v5101 = vsel %vm4999, %v4524, 0.0
      %v5102 = vadd.f32 %v5100, %v5101
      %v5103 = vsel %vm4999, %v4525, 0.0
      %v5104 = vadd.f32 %v5102, %v5103
      %v5105 = vsel %vm4999, %v4526, 0.0
      %v5106 = vadd.f32 %v5104, %v5105
      %v5107 = vsel %vm4999, %v4527, 0.0
      %v5108 = vadd.f32 %v5106, %v5107
      %v5109 = vsel %vm4999, %v4528, 0.0
      %v5110 = vadd.f32 %v5108, %v5109
      %v5111 = vsel %vm4999, %v4529, 0.0
      %v5112 = vadd.f32 %v5110, %v5111
      %v5113 = vsel %vm4999, %v4530, 0.0
      %v5114 = vadd.f32 %v5112, %v5113
      %v5115 = vsel %vm4999, %v4531, 0.0
      %v5116 = vadd.f32 %v5114, %v5115
      %v5117 = vsel %vm4999, %v4532, 0.0
      %v5118 = vadd.f32 %v5116, %v5117
      %v5119 = vsel %vm4999, %v4533, 0.0
      %v5120 = vadd.f32 %v5118, %v5119
      %v5121 = vsel %vm4999, %v4534, 0.0
      %v5122 = vadd.f32 %v5120, %v5121
      %v5123 = vsel %vm4999, %v4535, 0.0
      %v5124 = vadd.f32 %v5122, %v5123
      %v5125 = vsel %vm4999, %v4536, 0.0
      %v5126 = vadd.f32 %v5124, %v5125
      %v5127 = vrot.slane %v5126, 4
      %v5128 = vadd.f32 %v5126, %v5127
      %v5129 = vrot.slane %v5128, 2
      %v5130 = vadd.f32 %v5128, %v5129
      %v5131 = vrot.slane %v5130, 1
      %v5132 = vadd.f32 %v5130, %v5131
      %v5133 = vmul.f32 %v4473, %v4473
      %v5134 = vmul.f32 %v4474, %v4474
      %v5135 = vmul.f32 %v4475, %v4475
      %v5136 = vmul.f32 %v4476, %v4476
      %v5137 = vmul.f32 %v4477, %v4477
      %v5138 = vmul.f32 %v4478, %v4478
      %v5139 = vmul.f32 %v4479, %v4479
      %v5140 = vmul.f32 %v4480, %v4480
      %v5141 = vmul.f32 %v4481, %v4481
      %v5142 = vmul.f32 %v4482, %v4482
      %v5143 = vmul.f32 %v4483, %v4483
      %v5144 = vmul.f32 %v4484, %v4484
      %v5145 = vmul.f32 %v4485, %v4485
      %v5146 = vmul.f32 %v4486, %v4486
      %v5147 = vmul.f32 %v4487, %v4487
      %v5148 = vmul.f32 %v4488, %v4488
      %v5149 = vmul.f32 %v4489, %v4489
      %v5150 = vmul.f32 %v4490, %v4490
      %v5151 = vmul.f32 %v4491, %v4491
      %v5152 = vmul.f32 %v4492, %v4492
      %v5153 = vmul.f32 %v4493, %v4493
      %v5154 = vmul.f32 %v4494, %v4494
      %v5155 = vmul.f32 %v4495, %v4495
      %v5156 = vmul.f32 %v4496, %v4496
      %v5157 = vmul.f32 %v4497, %v4497
      %v5158 = vmul.f32 %v4498, %v4498
      %v5159 = vmul.f32 %v4499, %v4499
      %v5160 = vmul.f32 %v4500, %v4500
      %v5161 = vmul.f32 %v4501, %v4501
      %v5162 = vmul.f32 %v4502, %v4502
      %v5163 = vmul.f32 %v4503, %v4503
      %v5164 = vmul.f32 %v4504, %v4504
      %v5165 = vmul.f32 %v4505, %v4505
      %v5166 = vmul.f32 %v4506, %v4506
      %v5167 = vmul.f32 %v4507, %v4507
      %v5168 = vmul.f32 %v4508, %v4508
      %v5169 = vmul.f32 %v4509, %v4509
      %v5170 = vmul.f32 %v4510, %v4510
      %v5171 = vmul.f32 %v4511, %v4511
      %v5172 = vmul.f32 %v4512, %v4512
      %v5173 = vmul.f32 %v4513, %v4513
      %v5174 = vmul.f32 %v4514, %v4514
      %v5175 = vmul.f32 %v4515, %v4515
      %v5176 = vmul.f32 %v4516, %v4516
      %v5177 = vmul.f32 %v4517, %v4517
      %v5178 = vmul.f32 %v4518, %v4518
      %v5179 = vmul.f32 %v4519, %v4519
      %v5180 = vmul.f32 %v4520, %v4520
      %v5181 = vmul.f32 %v4521, %v4521
      %v5182 = vmul.f32 %v4522, %v4522
      %v5183 = vmul.f32 %v4523, %v4523
      %v5184 = vmul.f32 %v4524, %v4524
      %v5185 = vmul.f32 %v4525, %v4525
      %v5186 = vmul.f32 %v4526, %v4526
      %v5187 = vmul.f32 %v4527, %v4527
      %v5188 = vmul.f32 %v4528, %v4528
      %v5189 = vmul.f32 %v4529, %v4529
      %v5190 = vmul.f32 %v4530, %v4530
      %v5191 = vmul.f32 %v4531, %v4531
      %v5192 = vmul.f32 %v4532, %v4532
      %v5193 = vmul.f32 %v4533, %v4533
      %v5194 = vmul.f32 %v4534, %v4534
      %v5195 = vmul.f32 %v4535, %v4535
      %v5196 = vmul.f32 %v4536, %v4536
      %v5197 = vsel %vm4999, %v5133, 0.0
      %v5198 = vsel %vm4999, %v5134, 0.0
      %v5199 = vadd.f32 %v5197, %v5198
      %v5200 = vsel %vm4999, %v5135, 0.0
      %v5201 = vadd.f32 %v5199, %v5200
      %v5202 = vsel %vm4999, %v5136, 0.0
      %v5203 = vadd.f32 %v5201, %v5202
      %v5204 = vsel %vm4999, %v5137, 0.0
      %v5205 = vadd.f32 %v5203, %v5204
      %v5206 = vsel %vm4999, %v5138, 0.0
      %v5207 = vadd.f32 %v5205, %v5206
      %v5208 = vsel %vm4999, %v5139, 0.0
      %v5209 = vadd.f32 %v5207, %v5208
      %v5210 = vsel %vm4999, %v5140, 0.0
      %v5211 = vadd.f32 %v5209, %v5210
      %v5212 = vsel %vm4999, %v5141, 0.0
      %v5213 = vadd.f32 %v5211, %v5212
      %v5214 = vsel %vm4999, %v5142, 0.0
      %v5215 = vadd.f32 %v5213, %v5214
      %v5216 = vsel %vm4999, %v5143, 0.0
      %v5217 = vadd.f32 %v5215, %v5216
      %v5218 = vsel %vm4999, %v5144, 0.0
      %v5219 = vadd.f32 %v5217, %v5218
      %v5220 = vsel %vm4999, %v5145, 0.0
      %v5221 = vadd.f32 %v5219, %v5220
      %v5222 = vsel %vm4999, %v5146, 0.0
      %v5223 = vadd.f32 %v5221, %v5222
      %v5224 = vsel %vm4999, %v5147, 0.0
      %v5225 = vadd.f32 %v5223, %v5224
      %v5226 = vsel %vm4999, %v5148, 0.0
      %v5227 = vadd.f32 %v5225, %v5226
      %v5228 = vsel %vm4999, %v5149, 0.0
      %v5229 = vadd.f32 %v5227, %v5228
      %v5230 = vsel %vm4999, %v5150, 0.0
      %v5231 = vadd.f32 %v5229, %v5230
      %v5232 = vsel %vm4999, %v5151, 0.0
      %v5233 = vadd.f32 %v5231, %v5232
      %v5234 = vsel %vm4999, %v5152, 0.0
      %v5235 = vadd.f32 %v5233, %v5234
      %v5236 = vsel %vm4999, %v5153, 0.0
      %v5237 = vadd.f32 %v5235, %v5236
      %v5238 = vsel %vm4999, %v5154, 0.0
      %v5239 = vadd.f32 %v5237, %v5238
      %v5240 = vsel %vm4999, %v5155, 0.0
      %v5241 = vadd.f32 %v5239, %v5240
      %v5242 = vsel %vm4999, %v5156, 0.0
      %v5243 = vadd.f32 %v5241, %v5242
      %v5244 = vsel %vm4999, %v5157, 0.0
      %v5245 = vadd.f32 %v5243, %v5244
      %v5246 = vsel %vm4999, %v5158, 0.0
      %v5247 = vadd.f32 %v5245, %v5246
      %v5248 = vsel %vm4999, %v5159, 0.0
      %v5249 = vadd.f32 %v5247, %v5248
      %v5250 = vsel %vm4999, %v5160, 0.0
      %v5251 = vadd.f32 %v5249, %v5250
      %v5252 = vsel %vm4999, %v5161, 0.0
      %v5253 = vadd.f32 %v5251, %v5252
      %v5254 = vsel %vm4999, %v5162, 0.0
      %v5255 = vadd.f32 %v5253, %v5254
      %v5256 = vsel %vm4999, %v5163, 0.0
      %v5257 = vadd.f32 %v5255, %v5256
      %v5258 = vsel %vm4999, %v5164, 0.0
      %v5259 = vadd.f32 %v5257, %v5258
      %v5260 = vsel %vm4999, %v5165, 0.0
      %v5261 = vadd.f32 %v5259, %v5260
      %v5262 = vsel %vm4999, %v5166, 0.0
      %v5263 = vadd.f32 %v5261, %v5262
      %v5264 = vsel %vm4999, %v5167, 0.0
      %v5265 = vadd.f32 %v5263, %v5264
      %v5266 = vsel %vm4999, %v5168, 0.0
      %v5267 = vadd.f32 %v5265, %v5266
      %v5268 = vsel %vm4999, %v5169, 0.0
      %v5269 = vadd.f32 %v5267, %v5268
      %v5270 = vsel %vm4999, %v5170, 0.0
      %v5271 = vadd.f32 %v5269, %v5270
      %v5272 = vsel %vm4999, %v5171, 0.0
      %v5273 = vadd.f32 %v5271, %v5272
      %v5274 = vsel %vm4999, %v5172, 0.0
      %v5275 = vadd.f32 %v5273, %v5274
      %v5276 = vsel %vm4999, %v5173, 0.0
      %v5277 = vadd.f32 %v5275, %v5276
      %v5278 = vsel %vm4999, %v5174, 0.0
      %v5279 = vadd.f32 %v5277, %v5278
      %v5280 = vsel %vm4999, %v5175, 0.0
      %v5281 = vadd.f32 %v5279, %v5280
      %v5282 = vsel %vm4999, %v5176, 0.0
      %v5283 = vadd.f32 %v5281, %v5282
      %v5284 = vsel %vm4999, %v5177, 0.0
      %v5285 = vadd.f32 %v5283, %v5284
      %v5286 = vsel %vm4999, %v5178, 0.0
      %v5287 = vadd.f32 %v5285, %v5286
      %v5288 = vsel %vm4999, %v5179, 0.0
      %v5289 = vadd.f32 %v5287, %v5288
      %v5290 = vsel %vm4999, %v5180, 0.0
      %v5291 = vadd.f32 %v5289, %v5290
      %v5292 = vsel %vm4999, %v5181, 0.0
      %v5293 = vadd.f32 %v5291, %v5292
      %v5294 = vsel %vm4999, %v5182, 0.0
      %v5295 = vadd.f32 %v5293, %v5294
      %v5296 = vsel %vm4999, %v5183, 0.0
      %v5297 = vadd.f32 %v5295, %v5296
      %v5298 = vsel %vm4999, %v5184, 0.0
      %v5299 = vadd.f32 %v5297, %v5298
      %v5300 = vsel %vm4999, %v5185, 0.0
      %v5301 = vadd.f32 %v5299, %v5300
      %v5302 = vsel %vm4999, %v5186, 0.0
      %v5303 = vadd.f32 %v5301, %v5302
      %v5304 = vsel %vm4999, %v5187, 0.0
      %v5305 = vadd.f32 %v5303, %v5304
      %v5306 = vsel %vm4999, %v5188, 0.0
      %v5307 = vadd.f32 %v5305, %v5306
      %v5308 = vsel %vm4999, %v5189, 0.0
      %v5309 = vadd.f32 %v5307, %v5308
      %v5310 = vsel %vm4999, %v5190, 0.0
      %v5311 = vadd.f32 %v5309, %v5310
      %v5312 = vsel %vm4999, %v5191, 0.0
      %v5313 = vadd.f32 %v5311, %v5312
      %v5314 = vsel %vm4999, %v5192, 0.0
      %v5315 = vadd.f32 %v5313, %v5314
      %v5316 = vsel %vm4999, %v5193, 0.0
      %v5317 = vadd.f32 %v5315, %v5316
      %v5318 = vsel %vm4999, %v5194, 0.0
      %v5319 = vadd.f32 %v5317, %v5318
      %v5320 = vsel %vm4999, %v5195, 0.0
      %v5321 = vadd.f32 %v5319, %v5320
      %v5322 = vsel %vm4999, %v5196, 0.0
      %v5323 = vadd.f32 %v5321, %v5322
      %v5324 = vrot.slane %v5323, 4
      %v5325 = vadd.f32 %v5323, %v5324
      %v5326 = vrot.slane %v5325, 2
      %v5327 = vadd.f32 %v5325, %v5326
      %v5328 = vrot.slane %v5327, 1
      %v5329 = vadd.f32 %v5327, %v5328
      %vm5330 = vcmask 162944
      %v5331 = vsel %vm5330, %v4604, 0.0
      %v5332 = vsel %vm5330, %v4605, 0.0
      %v5333 = vadd.f32 %v5331, %v5332
      %v5334 = vsel %vm5330, %v4606, 0.0
      %v5335 = vadd.f32 %v5333, %v5334
      %v5336 = vsel %vm5330, %v4607, 0.0
      %v5337 = vadd.f32 %v5335, %v5336
      %v5338 = vsel %vm5330, %v4608, 0.0
      %v5339 = vadd.f32 %v5337, %v5338
      %v5340 = vsel %vm5330, %v4609, 0.0
      %v5341 = vadd.f32 %v5339, %v5340
      %v5342 = vsel %vm5330, %v4610, 0.0
      %v5343 = vadd.f32 %v5341, %v5342
      %v5344 = vsel %vm5330, %v4611, 0.0
      %v5345 = vadd.f32 %v5343, %v5344
      %v5346 = vsel %vm5330, %v4612, 0.0
      %v5347 = vadd.f32 %v5345, %v5346
      %v5348 = vsel %vm5330, %v4613, 0.0
      %v5349 = vadd.f32 %v5347, %v5348
      %v5350 = vsel %vm5330, %v4614, 0.0
      %v5351 = vadd.f32 %v5349, %v5350
      %v5352 = vsel %vm5330, %v4615, 0.0
      %v5353 = vadd.f32 %v5351, %v5352
      %v5354 = vsel %vm5330, %v4616, 0.0
      %v5355 = vadd.f32 %v5353, %v5354
      %v5356 = vsel %vm5330, %v4617, 0.0
      %v5357 = vadd.f32 %v5355, %v5356
      %v5358 = vsel %vm5330, %v4618, 0.0
      %v5359 = vadd.f32 %v5357, %v5358
      %v5360 = vsel %vm5330, %v4619, 0.0
      %v5361 = vadd.f32 %v5359, %v5360
      %v5362 = vsel %vm5330, %v4620, 0.0
      %v5363 = vadd.f32 %v5361, %v5362
      %v5364 = vsel %vm5330, %v4621, 0.0
      %v5365 = vadd.f32 %v5363, %v5364
      %v5366 = vsel %vm5330, %v4622, 0.0
      %v5367 = vadd.f32 %v5365, %v5366
      %v5368 = vsel %vm5330, %v4623, 0.0
      %v5369 = vadd.f32 %v5367, %v5368
      %v5370 = vsel %vm5330, %v4624, 0.0
      %v5371 = vadd.f32 %v5369, %v5370
      %v5372 = vsel %vm5330, %v4625, 0.0
      %v5373 = vadd.f32 %v5371, %v5372
      %v5374 = vsel %vm5330, %v4626, 0.0
      %v5375 = vadd.f32 %v5373, %v5374
      %v5376 = vsel %vm5330, %v4627, 0.0
      %v5377 = vadd.f32 %v5375, %v5376
      %v5378 = vsel %vm5330, %v4628, 0.0
      %v5379 = vadd.f32 %v5377, %v5378
      %v5380 = vsel %vm5330, %v4629, 0.0
      %v5381 = vadd.f32 %v5379, %v5380
      %v5382 = vsel %vm5330, %v4630, 0.0
      %v5383 = vadd.f32 %v5381, %v5382
      %v5384 = vsel %vm5330, %v4631, 0.0
      %v5385 = vadd.f32 %v5383, %v5384
      %v5386 = vsel %vm5330, %v4632, 0.0
      %v5387 = vadd.f32 %v5385, %v5386
      %v5388 = vsel %vm5330, %v4633, 0.0
      %v5389 = vadd.f32 %v5387, %v5388
      %v5390 = vsel %vm5330, %v4634, 0.0
      %v5391 = vadd.f32 %v5389, %v5390
      %v5392 = vsel %vm5330, %v4635, 0.0
      %v5393 = vadd.f32 %v5391, %v5392
      %v5394 = vsel %vm5330, %v4636, 0.0
      %v5395 = vadd.f32 %v5393, %v5394
      %v5396 = vsel %vm5330, %v4637, 0.0
      %v5397 = vadd.f32 %v5395, %v5396
      %v5398 = vsel %vm5330, %v4638, 0.0
      %v5399 = vadd.f32 %v5397, %v5398
      %v5400 = vsel %vm5330, %v4639, 0.0
      %v5401 = vadd.f32 %v5399, %v5400
      %v5402 = vsel %vm5330, %v4640, 0.0
      %v5403 = vadd.f32 %v5401, %v5402
      %v5404 = vsel %vm5330, %v4641, 0.0
      %v5405 = vadd.f32 %v5403, %v5404
      %v5406 = vsel %vm5330, %v4642, 0.0
      %v5407 = vadd.f32 %v5405, %v5406
      %v5408 = vsel %vm5330, %v4643, 0.0
      %v5409 = vadd.f32 %v5407, %v5408
      %v5410 = vsel %vm5330, %v4644, 0.0
      %v5411 = vadd.f32 %v5409, %v5410
      %v5412 = vsel %vm5330, %v4645, 0.0
      %v5413 = vadd.f32 %v5411, %v5412
      %v5414 = vsel %vm5330, %v4646, 0.0
      %v5415 = vadd.f32 %v5413, %v5414
      %v5416 = vsel %vm5330, %v4647, 0.0
      %v5417 = vadd.f32 %v5415, %v5416
      %v5418 = vsel %vm5330, %v4648, 0.0
      %v5419 = vadd.f32 %v5417, %v5418
      %v5420 = vsel %vm5330, %v4649, 0.0
      %v5421 = vadd.f32 %v5419, %v5420
      %v5422 = vsel %vm5330, %v4650, 0.0
      %v5423 = vadd.f32 %v5421, %v5422
      %v5424 = vsel %vm5330, %v4651, 0.0
      %v5425 = vadd.f32 %v5423, %v5424
      %v5426 = vsel %vm5330, %v4652, 0.0
      %v5427 = vadd.f32 %v5425, %v5426
      %v5428 = vsel %vm5330, %v4653, 0.0
      %v5429 = vadd.f32 %v5427, %v5428
      %v5430 = vsel %vm5330, %v4654, 0.0
      %v5431 = vadd.f32 %v5429, %v5430
      %v5432 = vsel %vm5330, %v4655, 0.0
      %v5433 = vadd.f32 %v5431, %v5432
      %v5434 = vsel %vm5330, %v4656, 0.0
      %v5435 = vadd.f32 %v5433, %v5434
      %v5436 = vsel %vm5330, %v4657, 0.0
      %v5437 = vadd.f32 %v5435, %v5436
      %v5438 = vsel %vm5330, %v4658, 0.0
      %v5439 = vadd.f32 %v5437, %v5438
      %v5440 = vsel %vm5330, %v4659, 0.0
      %v5441 = vadd.f32 %v5439, %v5440
      %v5442 = vsel %vm5330, %v4660, 0.0
      %v5443 = vadd.f32 %v5441, %v5442
      %v5444 = vsel %vm5330, %v4661, 0.0
      %v5445 = vadd.f32 %v5443, %v5444
      %v5446 = vsel %vm5330, %v4662, 0.0
      %v5447 = vadd.f32 %v5445, %v5446
      %v5448 = vsel %vm5330, %v4663, 0.0
      %v5449 = vadd.f32 %v5447, %v5448
      %v5450 = vsel %vm5330, %v4664, 0.0
      %v5451 = vadd.f32 %v5449, %v5450
      %v5452 = vsel %vm5330, %v4665, 0.0
      %v5453 = vadd.f32 %v5451, %v5452
      %v5454 = vsel %vm5330, %v4666, 0.0
      %v5455 = vadd.f32 %v5453, %v5454
      %v5456 = vsel %vm5330, %v4667, 0.0
      %v5457 = vadd.f32 %v5455, %v5456
      %v5458 = vrot.slane %v5457, 4
      %v5459 = vadd.f32 %v5457, %v5458
      %v5460 = vrot.slane %v5459, 2
      %v5461 = vadd.f32 %v5459, %v5460
      %v5462 = vrot.slane %v5461, 1
      %v5463 = vadd.f32 %v5461, %v5462
      %v5464 = vmul.f32 %v4604, %v4604
      %v5465 = vmul.f32 %v4605, %v4605
      %v5466 = vmul.f32 %v4606, %v4606
      %v5467 = vmul.f32 %v4607, %v4607
      %v5468 = vmul.f32 %v4608, %v4608
      %v5469 = vmul.f32 %v4609, %v4609
      %v5470 = vmul.f32 %v4610, %v4610
      %v5471 = vmul.f32 %v4611, %v4611
      %v5472 = vmul.f32 %v4612, %v4612
      %v5473 = vmul.f32 %v4613, %v4613
      %v5474 = vmul.f32 %v4614, %v4614
      %v5475 = vmul.f32 %v4615, %v4615
      %v5476 = vmul.f32 %v4616, %v4616
      %v5477 = vmul.f32 %v4617, %v4617
      %v5478 = vmul.f32 %v4618, %v4618
      %v5479 = vmul.f32 %v4619, %v4619
      %v5480 = vmul.f32 %v4620, %v4620
      %v5481 = vmul.f32 %v4621, %v4621
      %v5482 = vmul.f32 %v4622, %v4622
      %v5483 = vmul.f32 %v4623, %v4623
      %v5484 = vmul.f32 %v4624, %v4624
      %v5485 = vmul.f32 %v4625, %v4625
      %v5486 = vmul.f32 %v4626, %v4626
      %v5487 = vmul.f32 %v4627, %v4627
      %v5488 = vmul.f32 %v4628, %v4628
      %v5489 = vmul.f32 %v4629, %v4629
      %v5490 = vmul.f32 %v4630, %v4630
      %v5491 = vmul.f32 %v4631, %v4631
      %v5492 = vmul.f32 %v4632, %v4632
      %v5493 = vmul.f32 %v4633, %v4633
      %v5494 = vmul.f32 %v4634, %v4634
      %v5495 = vmul.f32 %v4635, %v4635
      %v5496 = vmul.f32 %v4636, %v4636
      %v5497 = vmul.f32 %v4637, %v4637
      %v5498 = vmul.f32 %v4638, %v4638
      %v5499 = vmul.f32 %v4639, %v4639
      %v5500 = vmul.f32 %v4640, %v4640
      %v5501 = vmul.f32 %v4641, %v4641
      %v5502 = vmul.f32 %v4642, %v4642
      %v5503 = vmul.f32 %v4643, %v4643
      %v5504 = vmul.f32 %v4644, %v4644
      %v5505 = vmul.f32 %v4645, %v4645
      %v5506 = vmul.f32 %v4646, %v4646
      %v5507 = vmul.f32 %v4647, %v4647
      %v5508 = vmul.f32 %v4648, %v4648
      %v5509 = vmul.f32 %v4649, %v4649
      %v5510 = vmul.f32 %v4650, %v4650
      %v5511 = vmul.f32 %v4651, %v4651
      %v5512 = vmul.f32 %v4652, %v4652
      %v5513 = vmul.f32 %v4653, %v4653
      %v5514 = vmul.f32 %v4654, %v4654
      %v5515 = vmul.f32 %v4655, %v4655
      %v5516 = vmul.f32 %v4656, %v4656
      %v5517 = vmul.f32 %v4657, %v4657
      %v5518 = vmul.f32 %v4658, %v4658
      %v5519 = vmul.f32 %v4659, %v4659
      %v5520 = vmul.f32 %v4660, %v4660
      %v5521 = vmul.f32 %v4661, %v4661
      %v5522 = vmul.f32 %v4662, %v4662
      %v5523 = vmul.f32 %v4663, %v4663
      %v5524 = vmul.f32 %v4664, %v4664
      %v5525 = vmul.f32 %v4665, %v4665
      %v5526 = vmul.f32 %v4666, %v4666
      %v5527 = vmul.f32 %v4667, %v4667
      %v5528 = vsel %vm5330, %v5464, 0.0
      %v5529 = vsel %vm5330, %v5465, 0.0
      %v5530 = vadd.f32 %v5528, %v5529
      %v5531 = vsel %vm5330, %v5466, 0.0
      %v5532 = vadd.f32 %v5530, %v5531
      %v5533 = vsel %vm5330, %v5467, 0.0
      %v5534 = vadd.f32 %v5532, %v5533
      %v5535 = vsel %vm5330, %v5468, 0.0
      %v5536 = vadd.f32 %v5534, %v5535
      %v5537 = vsel %vm5330, %v5469, 0.0
      %v5538 = vadd.f32 %v5536, %v5537
      %v5539 = vsel %vm5330, %v5470, 0.0
      %v5540 = vadd.f32 %v5538, %v5539
      %v5541 = vsel %vm5330, %v5471, 0.0
      %v5542 = vadd.f32 %v5540, %v5541
      %v5543 = vsel %vm5330, %v5472, 0.0
      %v5544 = vadd.f32 %v5542, %v5543
      %v5545 = vsel %vm5330, %v5473, 0.0
      %v5546 = vadd.f32 %v5544, %v5545
      %v5547 = vsel %vm5330, %v5474, 0.0
      %v5548 = vadd.f32 %v5546, %v5547
      %v5549 = vsel %vm5330, %v5475, 0.0
      %v5550 = vadd.f32 %v5548, %v5549
      %v5551 = vsel %vm5330, %v5476, 0.0
      %v5552 = vadd.f32 %v5550, %v5551
      %v5553 = vsel %vm5330, %v5477, 0.0
      %v5554 = vadd.f32 %v5552, %v5553
      %v5555 = vsel %vm5330, %v5478, 0.0
      %v5556 = vadd.f32 %v5554, %v5555
      %v5557 = vsel %vm5330, %v5479, 0.0
      %v5558 = vadd.f32 %v5556, %v5557
      %v5559 = vsel %vm5330, %v5480, 0.0
      %v5560 = vadd.f32 %v5558, %v5559
      %v5561 = vsel %vm5330, %v5481, 0.0
      %v5562 = vadd.f32 %v5560, %v5561
      %v5563 = vsel %vm5330, %v5482, 0.0
      %v5564 = vadd.f32 %v5562, %v5563
      %v5565 = vsel %vm5330, %v5483, 0.0
      %v5566 = vadd.f32 %v5564, %v5565
      %v5567 = vsel %vm5330, %v5484, 0.0
      %v5568 = vadd.f32 %v5566, %v5567
      %v5569 = vsel %vm5330, %v5485, 0.0
      %v5570 = vadd.f32 %v5568, %v5569
      %v5571 = vsel %vm5330, %v5486, 0.0
      %v5572 = vadd.f32 %v5570, %v5571
      %v5573 = vsel %vm5330, %v5487, 0.0
      %v5574 = vadd.f32 %v5572, %v5573
      %v5575 = vsel %vm5330, %v5488, 0.0
      %v5576 = vadd.f32 %v5574, %v5575
      %v5577 = vsel %vm5330, %v5489, 0.0
      %v5578 = vadd.f32 %v5576, %v5577
      %v5579 = vsel %vm5330, %v5490, 0.0
      %v5580 = vadd.f32 %v5578, %v5579
      %v5581 = vsel %vm5330, %v5491, 0.0
      %v5582 = vadd.f32 %v5580, %v5581
      %v5583 = vsel %vm5330, %v5492, 0.0
      %v5584 = vadd.f32 %v5582, %v5583
      %v5585 = vsel %vm5330, %v5493, 0.0
      %v5586 = vadd.f32 %v5584, %v5585
      %v5587 = vsel %vm5330, %v5494, 0.0
      %v5588 = vadd.f32 %v5586, %v5587
      %v5589 = vsel %vm5330, %v5495, 0.0
      %v5590 = vadd.f32 %v5588, %v5589
      %v5591 = vsel %vm5330, %v5496, 0.0
      %v5592 = vadd.f32 %v5590, %v5591
      %v5593 = vsel %vm5330, %v5497, 0.0
      %v5594 = vadd.f32 %v5592, %v5593
      %v5595 = vsel %vm5330, %v5498, 0.0
      %v5596 = vadd.f32 %v5594, %v5595
      %v5597 = vsel %vm5330, %v5499, 0.0
      %v5598 = vadd.f32 %v5596, %v5597
      %v5599 = vsel %vm5330, %v5500, 0.0
      %v5600 = vadd.f32 %v5598, %v5599
      %v5601 = vsel %vm5330, %v5501, 0.0
      %v5602 = vadd.f32 %v5600, %v5601
      %v5603 = vsel %vm5330, %v5502, 0.0
      %v5604 = vadd.f32 %v5602, %v5603
      %v5605 = vsel %vm5330, %v5503, 0.0
      %v5606 = vadd.f32 %v5604, %v5605
      %v5607 = vsel %vm5330, %v5504, 0.0
      %v5608 = vadd.f32 %v5606, %v5607
      %v5609 = vsel %vm5330, %v5505, 0.0
      %v5610 = vadd.f32 %v5608, %v5609
      %v5611 = vsel %vm5330, %v5506, 0.0
      %v5612 = vadd.f32 %v5610, %v5611
      %v5613 = vsel %vm5330, %v5507, 0.0
      %v5614 = vadd.f32 %v5612, %v5613
      %v5615 = vsel %vm5330, %v5508, 0.0
      %v5616 = vadd.f32 %v5614, %v5615
      %v5617 = vsel %vm5330, %v5509, 0.0
      %v5618 = vadd.f32 %v5616, %v5617
      %v5619 = vsel %vm5330, %v5510, 0.0
      %v5620 = vadd.f32 %v5618, %v5619
      %v5621 = vsel %vm5330, %v5511, 0.0
      %v5622 = vadd.f32 %v5620, %v5621
      %v5623 = vsel %vm5330, %v5512, 0.0
      %v5624 = vadd.f32 %v5622, %v5623
      %v5625 = vsel %vm5330, %v5513, 0.0
      %v5626 = vadd.f32 %v5624, %v5625
      %v5627 = vsel %vm5330, %v5514, 0.0
      %v5628 = vadd.f32 %v5626, %v5627
      %v5629 = vsel %vm5330, %v5515, 0.0
      %v5630 = vadd.f32 %v5628, %v5629
      %v5631 = vsel %vm5330, %v5516, 0.0
      %v5632 = vadd.f32 %v5630, %v5631
      %v5633 = vsel %vm5330, %v5517, 0.0
      %v5634 = vadd.f32 %v5632, %v5633
      %v5635 = vsel %vm5330, %v5518, 0.0
      %v5636 = vadd.f32 %v5634, %v5635
      %v5637 = vsel %vm5330, %v5519, 0.0
      %v5638 = vadd.f32 %v5636, %v5637
      %v5639 = vsel %vm5330, %v5520, 0.0
      %v5640 = vadd.f32 %v5638, %v5639
      %v5641 = vsel %vm5330, %v5521, 0.0
      %v5642 = vadd.f32 %v5640, %v5641
      %v5643 = vsel %vm5330, %v5522, 0.0
      %v5644 = vadd.f32 %v5642, %v5643
      %v5645 = vsel %vm5330, %v5523, 0.0
      %v5646 = vadd.f32 %v5644, %v5645
      %v5647 = vsel %vm5330, %v5524, 0.0
      %v5648 = vadd.f32 %v5646, %v5647
      %v5649 = vsel %vm5330, %v5525, 0.0
      %v5650 = vadd.f32 %v5648, %v5649
      %v5651 = vsel %vm5330, %v5526, 0.0
      %v5652 = vadd.f32 %v5650, %v5651
      %v5653 = vsel %vm5330, %v5527, 0.0
      %v5654 = vadd.f32 %v5652, %v5653
      %v5655 = vrot.slane %v5654, 4
      %v5656 = vadd.f32 %v5654, %v5655
      %v5657 = vrot.slane %v5656, 2
      %v5658 = vadd.f32 %v5656, %v5657
      %v5659 = vrot.slane %v5658, 1
      %v5660 = vadd.f32 %v5658, %v5659
      %5662 = vrot.lane.b32.xlu0 %v5132, 124
      %v5663 = vpop.permute.xlu0 %5662
      %5666 = vrot.lane.b32.xlu0 %v5329, 124
      %v5667 = vpop.permute.xlu0 %5666
      %5670 = vrot.lane.b32.xlu0 %v5463, 112
      %v5671 = vpop.permute.xlu0 %5670
      %5674 = vrot.lane.b32.xlu0 %v5660, 112
      %v5675 = vpop.permute.xlu0 %5674
      %v5677 = vsel %vm1836, %v4801, %v4998
      %v5678 = vsel %vm638, %v5677, %v5663
      %vm5679 = vcmask 1042432
      %v5680 = vsel %vm5679, %v5678, %v5667
      %vm5681 = vcmask 1043456
      %v5682 = vsel %vm5681, %v5680, %v5671
      %vm5683 = vcmask 1044480
      %v5684 = vsel %vm5683, %v5682, %v5675
      %vm5685 = vcmask 29696
      %5686 = vst.msk [vmem:[%s291] sm:$0x3f] %vm5685, %v5684
      %v5687 = vpack.c.bf16 %v652, %v652
      %v5688 = vpack.c.bf16 %v654, %v654
      %v5689 = vpack.c.bf16 %v657, %v657
      %v5690 = vpack.c.bf16 %v659, %v659
      %v5691 = vpack.c.bf16 %v662, %v662
      %v5692 = vpack.c.bf16 %v664, %v664
      %v5693 = vpack.c.bf16 %v667, %v667
      %v5694 = vpack.c.bf16 %v669, %v669
      %v5695 = vpack.c.bf16 %v672, %v672
      %v5696 = vpack.c.bf16 %v674, %v674
      %v5697 = vpack.c.bf16 %v677, %v677
      %v5698 = vpack.c.bf16 %v679, %v679
      %v5699 = vpack.c.bf16 %v682, %v682
      %v5700 = vpack.c.bf16 %v684, %v684
      %v5701 = vpack.c.bf16 %v687, %v687
      %v5702 = vpack.c.bf16 %v689, %v689
      %v5703 = vpack.c.bf16 %v692, %v692
      %v5704 = vpack.c.bf16 %v694, %v694
      %v5705 = vpack.c.bf16 %v697, %v697
      %v5706 = vpack.c.bf16 %v699, %v699
      %v5707 = vpack.c.bf16 %v702, %v702
      %v5708 = vpack.c.bf16 %v704, %v704
      %v5709 = vpack.c.bf16 %v707, %v707
      %v5710 = vpack.c.bf16 %v709, %v709
      %v5711 = vpack.c.bf16 %v712, %v712
      %v5712 = vpack.c.bf16 %v714, %v714
      %v5713 = vpack.c.bf16 %v717, %v717
      %v5714 = vpack.c.bf16 %v719, %v719
      %v5715 = vpack.c.bf16 %v722, %v722
      %v5716 = vpack.c.bf16 %v724, %v724
      %v5717 = vpack.c.bf16 %v727, %v727
      %v5718 = vpack.c.bf16 %v729, %v729
      %v5719 = vpack.c.bf16 %v732, %v732
      %v5720 = vpack.c.bf16 %v734, %v734
      %v5721 = vpack.c.bf16 %v737, %v737
      %v5722 = vpack.c.bf16 %v739, %v739
      %v5723 = vpack.c.bf16 %v742, %v742
      %v5724 = vpack.c.bf16 %v744, %v744
      %v5725 = vpack.c.bf16 %v747, %v747
      %v5726 = vpack.c.bf16 %v749, %v749
      %v5727 = vpack.c.bf16 %v752, %v752
      %v5728 = vpack.c.bf16 %v754, %v754
      %v5729 = vpack.c.bf16 %v757, %v757
      %v5730 = vpack.c.bf16 %v759, %v759
      %v5731 = vpack.c.bf16 %v762, %v762
      %v5732 = vpack.c.bf16 %v764, %v764
      %v5733 = vpack.c.bf16 %v767, %v767
      %v5734 = vpack.c.bf16 %v769, %v769
      %v5735 = vpack.c.bf16 %v772, %v772
      %v5736 = vpack.c.bf16 %v774, %v774
      %v5737 = vpack.c.bf16 %v777, %v777
      %v5738 = vpack.c.bf16 %v779, %v779
      %v5739 = vpack.c.bf16 %v782, %v782
      %v5740 = vpack.c.bf16 %v784, %v784
      %v5741 = vpack.c.bf16 %v787, %v787
      %v5742 = vpack.c.bf16 %v789, %v789
      %v5743 = vpack.c.bf16 %v792, %v792
      %v5744 = vpack.c.bf16 %v794, %v794
      %v5745 = vpack.c.bf16 %v797, %v797
      %v5746 = vpack.c.bf16 %v799, %v799
      %v5747 = vpack.c.bf16 %v802, %v802
      %v5748 = vpack.c.bf16 %v804, %v804
      %v5749 = vpack.c.bf16 %v807, %v807
      %v5750 = vpack.c.bf16 %v809, %v809
      %vm5751 = vcmask 27648
      %5752 = vst.msk [vmem:[%s274] sm:$0xf] %vm5751, %v5687
      %5753 = vst.msk [vmem:[%s274 + $0x4] sm:$0xf] %vm5751, %v5688
      %5754 = vst.msk [vmem:[%s274 + $0x8] sm:$0xf] %vm5751, %v5689
      %5755 = vst.msk [vmem:[%s274 + $0xc] sm:$0xf] %vm5751, %v5690
      %5756 = vst.msk [vmem:[%s274 + $0x10] sm:$0xf] %vm5751, %v5691
      %5757 = vst.msk [vmem:[%s274 + $0x14] sm:$0xf] %vm5751, %v5692
      %5758 = vst.msk [vmem:[%s274 + $0x18] sm:$0xf] %vm5751, %v5693
      %5759 = vst.msk [vmem:[%s274 + $0x1c] sm:$0xf] %vm5751, %v5694
      %5760 = vst.msk [vmem:[%s274 + $0x20] sm:$0xf] %vm5751, %v5695
      %5761 = vst.msk [vmem:[%s274 + $0x24] sm:$0xf] %vm5751, %v5696
      %5762 = vst.msk [vmem:[%s274 + $0x28] sm:$0xf] %vm5751, %v5697
      %5763 = vst.msk [vmem:[%s274 + $0x2c] sm:$0xf] %vm5751, %v5698
      %5764 = vst.msk [vmem:[%s274 + $0x30] sm:$0xf] %vm5751, %v5699
      %5765 = vst.msk [vmem:[%s274 + $0x34] sm:$0xf] %vm5751, %v5700
      %5766 = vst.msk [vmem:[%s274 + $0x38] sm:$0xf] %vm5751, %v5701
      %5767 = vst.msk [vmem:[%s274 + $0x3c] sm:$0xf] %vm5751, %v5702
      %5768 = vst.msk [vmem:[%s274 + $0x40] sm:$0xf] %vm5751, %v5703
      %5769 = vst.msk [vmem:[%s274 + $0x44] sm:$0xf] %vm5751, %v5704
      %5770 = vst.msk [vmem:[%s274 + $0x48] sm:$0xf] %vm5751, %v5705
      %5771 = vst.msk [vmem:[%s274 + $0x4c] sm:$0xf] %vm5751, %v5706
      %5772 = vst.msk [vmem:[%s274 + $0x50] sm:$0xf] %vm5751, %v5707
      %5773 = vst.msk [vmem:[%s274 + $0x54] sm:$0xf] %vm5751, %v5708
      %5774 = vst.msk [vmem:[%s274 + $0x58] sm:$0xf] %vm5751, %v5709
      %5775 = vst.msk [vmem:[%s274 + $0x5c] sm:$0xf] %vm5751, %v5710
      %5776 = vst.msk [vmem:[%s274 + $0x60] sm:$0xf] %vm5751, %v5711
      %5777 = vst.msk [vmem:[%s274 + $0x64] sm:$0xf] %vm5751, %v5712
      %5778 = vst.msk [vmem:[%s274 + $0x68] sm:$0xf] %vm5751, %v5713
      %5779 = vst.msk [vmem:[%s274 + $0x6c] sm:$0xf] %vm5751, %v5714
      %5780 = vst.msk [vmem:[%s274 + $0x70] sm:$0xf] %vm5751, %v5715
      %5781 = vst.msk [vmem:[%s274 + $0x74] sm:$0xf] %vm5751, %v5716
      %5782 = vst.msk [vmem:[%s274 + $0x78] sm:$0xf] %vm5751, %v5717
      %5783 = vst.msk [vmem:[%s274 + $0x7c] sm:$0xf] %vm5751, %v5718
      %5784 = vst.msk [vmem:[%s274 + $0x80] sm:$0xf] %vm5751, %v5719
      %5785 = vst.msk [vmem:[%s274 + $0x84] sm:$0xf] %vm5751, %v5720
      %5786 = vst.msk [vmem:[%s274 + $0x88] sm:$0xf] %vm5751, %v5721
      %5787 = vst.msk [vmem:[%s274 + $0x8c] sm:$0xf] %vm5751, %v5722
      %5788 = vst.msk [vmem:[%s274 + $0x90] sm:$0xf] %vm5751, %v5723
      %5789 = vst.msk [vmem:[%s274 + $0x94] sm:$0xf] %vm5751, %v5724
      %5790 = vst.msk [vmem:[%s274 + $0x98] sm:$0xf] %vm5751, %v5725
      %5791 = vst.msk [vmem:[%s274 + $0x9c] sm:$0xf] %vm5751, %v5726
      %5792 = vst.msk [vmem:[%s274 + $0xa0] sm:$0xf] %vm5751, %v5727
      %5793 = vst.msk [vmem:[%s274 + $0xa4] sm:$0xf] %vm5751, %v5728
      %5794 = vst.msk [vmem:[%s274 + $0xa8] sm:$0xf] %vm5751, %v5729
      %5795 = vst.msk [vmem:[%s274 + $0xac] sm:$0xf] %vm5751, %v5730
      %5796 = vst.msk [vmem:[%s274 + $0xb0] sm:$0xf] %vm5751, %v5731
      %5797 = vst.msk [vmem:[%s274 + $0xb4] sm:$0xf] %vm5751, %v5732
      %5798 = vst.msk [vmem:[%s274 + $0xb8] sm:$0xf] %vm5751, %v5733
      %5799 = vst.msk [vmem:[%s274 + $0xbc] sm:$0xf] %vm5751, %v5734
      %5800 = vst.msk [vmem:[%s274 + $0xc0] sm:$0xf] %vm5751, %v5735
      %5801 = vst.msk [vmem:[%s274 + $0xc4] sm:$0xf] %vm5751, %v5736
      %5802 = vst.msk [vmem:[%s274 + $0xc8] sm:$0xf] %vm5751, %v5737
      %5803 = vst.msk [vmem:[%s274 + $0xcc] sm:$0xf] %vm5751, %v5738
      %5804 = vst.msk [vmem:[%s274 + $0xd0] sm:$0xf] %vm5751, %v5739
      %5805 = vst.msk [vmem:[%s274 + $0xd4] sm:$0xf] %vm5751, %v5740
      %5806 = vst.msk [vmem:[%s274 + $0xd8] sm:$0xf] %vm5751, %v5741
      %5807 = vst.msk [vmem:[%s274 + $0xdc] sm:$0xf] %vm5751, %v5742
      %5808 = vst.msk [vmem:[%s274 + $0xe0] sm:$0xf] %vm5751, %v5743
      %5809 = vst.msk [vmem:[%s274 + $0xe4] sm:$0xf] %vm5751, %v5744
      %5810 = vst.msk [vmem:[%s274 + $0xe8] sm:$0xf] %vm5751, %v5745
      %5811 = vst.msk [vmem:[%s274 + $0xec] sm:$0xf] %vm5751, %v5746
      %5812 = vst.msk [vmem:[%s274 + $0xf0] sm:$0xf] %vm5751, %v5747
      %5813 = vst.msk [vmem:[%s274 + $0xf4] sm:$0xf] %vm5751, %v5748
      %5814 = vst.msk [vmem:[%s274 + $0xf8] sm:$0xf] %vm5751, %v5749
      %5815 = vst.msk [vmem:[%s274 + $0xfc] sm:$0xf] %vm5751, %v5750
      %v5816 = vpack.c.bf16 %v3310, %v3310
      %v5817 = vpack.c.bf16 %v3311, %v3311
      %v5818 = vpack.c.bf16 %v3312, %v3312
      %v5819 = vpack.c.bf16 %v3313, %v3313
      %v5820 = vpack.c.bf16 %v3314, %v3314
      %v5821 = vpack.c.bf16 %v3315, %v3315
      %v5822 = vpack.c.bf16 %v3316, %v3316
      %v5823 = vpack.c.bf16 %v3317, %v3317
      %v5824 = vpack.c.bf16 %v3318, %v3318
      %v5825 = vpack.c.bf16 %v3319, %v3319
      %v5826 = vpack.c.bf16 %v3320, %v3320
      %v5827 = vpack.c.bf16 %v3321, %v3321
      %v5828 = vpack.c.bf16 %v3322, %v3322
      %v5829 = vpack.c.bf16 %v3323, %v3323
      %v5830 = vpack.c.bf16 %v3324, %v3324
      %v5831 = vpack.c.bf16 %v3325, %v3325
      %v5832 = vpack.c.bf16 %v3326, %v3326
      %v5833 = vpack.c.bf16 %v3327, %v3327
      %v5834 = vpack.c.bf16 %v3328, %v3328
      %v5835 = vpack.c.bf16 %v3329, %v3329
      %v5836 = vpack.c.bf16 %v3330, %v3330
      %v5837 = vpack.c.bf16 %v3331, %v3331
      %v5838 = vpack.c.bf16 %v3332, %v3332
      %v5839 = vpack.c.bf16 %v3333, %v3333
      %v5840 = vpack.c.bf16 %v3334, %v3334
      %v5841 = vpack.c.bf16 %v3335, %v3335
      %v5842 = vpack.c.bf16 %v3336, %v3336
      %v5843 = vpack.c.bf16 %v3337, %v3337
      %v5844 = vpack.c.bf16 %v3338, %v3338
      %v5845 = vpack.c.bf16 %v3339, %v3339
      %v5846 = vpack.c.bf16 %v3340, %v3340
      %v5847 = vpack.c.bf16 %v3341, %v3341
      %v5848 = vpack.c.bf16 %v3342, %v3342
      %v5849 = vpack.c.bf16 %v3343, %v3343
      %v5850 = vpack.c.bf16 %v3344, %v3344
      %v5851 = vpack.c.bf16 %v3345, %v3345
      %v5852 = vpack.c.bf16 %v3346, %v3346
      %v5853 = vpack.c.bf16 %v3347, %v3347
      %v5854 = vpack.c.bf16 %v3348, %v3348
      %v5855 = vpack.c.bf16 %v3349, %v3349
      %v5856 = vpack.c.bf16 %v3350, %v3350
      %v5857 = vpack.c.bf16 %v3351, %v3351
      %v5858 = vpack.c.bf16 %v3352, %v3352
      %v5859 = vpack.c.bf16 %v3353, %v3353
      %v5860 = vpack.c.bf16 %v3354, %v3354
      %v5861 = vpack.c.bf16 %v3355, %v3355
      %v5862 = vpack.c.bf16 %v3356, %v3356
      %v5863 = vpack.c.bf16 %v3357, %v3357
      %v5864 = vpack.c.bf16 %v3358, %v3358
      %v5865 = vpack.c.bf16 %v3359, %v3359
      %v5866 = vpack.c.bf16 %v3360, %v3360
      %v5867 = vpack.c.bf16 %v3361, %v3361
      %v5868 = vpack.c.bf16 %v3362, %v3362
      %v5869 = vpack.c.bf16 %v3363, %v3363
      %v5870 = vpack.c.bf16 %v3364, %v3364
      %v5871 = vpack.c.bf16 %v3365, %v3365
      %v5872 = vpack.c.bf16 %v3366, %v3366
      %v5873 = vpack.c.bf16 %v3367, %v3367
      %v5874 = vpack.c.bf16 %v3368, %v3368
      %v5875 = vpack.c.bf16 %v3369, %v3369
      %v5876 = vpack.c.bf16 %v3370, %v3370
      %v5877 = vpack.c.bf16 %v3371, %v3371
      %v5878 = vpack.c.bf16 %v3372, %v3372
      %v5879 = vpack.c.bf16 %v3373, %v3373
      %5944 = vrot.lane.b32.xlu0 %v5816, 124
      %v5945 = vpop.permute.xlu0 %5944
      %5946 = vrot.lane.b32.xlu0 %v5817, 124
      %v5947 = vpop.permute.xlu0 %5946
      %5948 = vrot.lane.b32.xlu0 %v5818, 124
      %v5949 = vpop.permute.xlu0 %5948
      %5950 = vrot.lane.b32.xlu0 %v5819, 124
      %v5951 = vpop.permute.xlu0 %5950
      %5952 = vrot.lane.b32.xlu0 %v5820, 124
      %v5953 = vpop.permute.xlu0 %5952
      %5954 = vrot.lane.b32.xlu0 %v5821, 124
      %v5955 = vpop.permute.xlu0 %5954
      %5956 = vrot.lane.b32.xlu0 %v5822, 124
      %v5957 = vpop.permute.xlu0 %5956
      %5958 = vrot.lane.b32.xlu0 %v5823, 124
      %v5959 = vpop.permute.xlu0 %5958
      %5960 = vrot.lane.b32.xlu0 %v5824, 124
      %v5961 = vpop.permute.xlu0 %5960
      %5962 = vrot.lane.b32.xlu0 %v5825, 124
      %v5963 = vpop.permute.xlu0 %5962
      %5964 = vrot.lane.b32.xlu0 %v5826, 124
      %v5965 = vpop.permute.xlu0 %5964
      %5966 = vrot.lane.b32.xlu0 %v5827, 124
      %v5967 = vpop.permute.xlu0 %5966
      %5968 = vrot.lane.b32.xlu0 %v5828, 124
      %v5969 = vpop.permute.xlu0 %5968
      %5970 = vrot.lane.b32.xlu0 %v5829, 124
      %v5971 = vpop.permute.xlu0 %5970
      %5972 = vrot.lane.b32.xlu0 %v5830, 124
      %v5973 = vpop.permute.xlu0 %5972
      %5974 = vrot.lane.b32.xlu0 %v5831, 124
      %v5975 = vpop.permute.xlu0 %5974
      %5976 = vrot.lane.b32.xlu0 %v5832, 124
      %v5977 = vpop.permute.xlu0 %5976
      %5978 = vrot.lane.b32.xlu0 %v5833, 124
      %v5979 = vpop.permute.xlu0 %5978
      %5980 = vrot.lane.b32.xlu0 %v5834, 124
      %v5981 = vpop.permute.xlu0 %5980
      %5982 = vrot.lane.b32.xlu0 %v5835, 124
      %v5983 = vpop.permute.xlu0 %5982
      %5984 = vrot.lane.b32.xlu0 %v5836, 124
      %v5985 = vpop.permute.xlu0 %5984
      %5986 = vrot.lane.b32.xlu0 %v5837, 124
      %v5987 = vpop.permute.xlu0 %5986
      %5988 = vrot.lane.b32.xlu0 %v5838, 124
      %v5989 = vpop.permute.xlu0 %5988
      %5990 = vrot.lane.b32.xlu0 %v5839, 124
      %v5991 = vpop.permute.xlu0 %5990
      %5992 = vrot.lane.b32.xlu0 %v5840, 124
      %v5993 = vpop.permute.xlu0 %5992
      %5994 = vrot.lane.b32.xlu0 %v5841, 124
      %v5995 = vpop.permute.xlu0 %5994
      %5996 = vrot.lane.b32.xlu0 %v5842, 124
      %v5997 = vpop.permute.xlu0 %5996
      %5998 = vrot.lane.b32.xlu0 %v5843, 124
      %v5999 = vpop.permute.xlu0 %5998
      %6000 = vrot.lane.b32.xlu0 %v5844, 124
      %v6001 = vpop.permute.xlu0 %6000
      %6002 = vrot.lane.b32.xlu0 %v5845, 124
      %v6003 = vpop.permute.xlu0 %6002
      %6004 = vrot.lane.b32.xlu0 %v5846, 124
      %v6005 = vpop.permute.xlu0 %6004
      %6006 = vrot.lane.b32.xlu0 %v5847, 124
      %v6007 = vpop.permute.xlu0 %6006
      %6008 = vrot.lane.b32.xlu0 %v5848, 124
      %v6009 = vpop.permute.xlu0 %6008
      %6010 = vrot.lane.b32.xlu0 %v5849, 124
      %v6011 = vpop.permute.xlu0 %6010
      %6012 = vrot.lane.b32.xlu0 %v5850, 124
      %v6013 = vpop.permute.xlu0 %6012
      %6014 = vrot.lane.b32.xlu0 %v5851, 124
      %v6015 = vpop.permute.xlu0 %6014
      %6016 = vrot.lane.b32.xlu0 %v5852, 124
      %v6017 = vpop.permute.xlu0 %6016
      %6018 = vrot.lane.b32.xlu0 %v5853, 124
      %v6019 = vpop.permute.xlu0 %6018
      %6020 = vrot.lane.b32.xlu0 %v5854, 124
      %v6021 = vpop.permute.xlu0 %6020
      %6022 = vrot.lane.b32.xlu0 %v5855, 124
      %v6023 = vpop.permute.xlu0 %6022
      %6024 = vrot.lane.b32.xlu0 %v5856, 124
      %v6025 = vpop.permute.xlu0 %6024
      %6026 = vrot.lane.b32.xlu0 %v5857, 124
      %v6027 = vpop.permute.xlu0 %6026
      %6028 = vrot.lane.b32.xlu0 %v5858, 124
      %v6029 = vpop.permute.xlu0 %6028
      %6030 = vrot.lane.b32.xlu0 %v5859, 124
      %v6031 = vpop.permute.xlu0 %6030
      %6032 = vrot.lane.b32.xlu0 %v5860, 124
      %v6033 = vpop.permute.xlu0 %6032
      %6034 = vrot.lane.b32.xlu0 %v5861, 124
      %v6035 = vpop.permute.xlu0 %6034
      %6036 = vrot.lane.b32.xlu0 %v5862, 124
      %v6037 = vpop.permute.xlu0 %6036
      %6038 = vrot.lane.b32.xlu0 %v5863, 124
      %v6039 = vpop.permute.xlu0 %6038
      %6040 = vrot.lane.b32.xlu0 %v5864, 124
      %v6041 = vpop.permute.xlu0 %6040
      %6042 = vrot.lane.b32.xlu0 %v5865, 124
      %v6043 = vpop.permute.xlu0 %6042
      %6044 = vrot.lane.b32.xlu0 %v5866, 124
      %v6045 = vpop.permute.xlu0 %6044
      %6046 = vrot.lane.b32.xlu0 %v5867, 124
      %v6047 = vpop.permute.xlu0 %6046
      %6048 = vrot.lane.b32.xlu0 %v5868, 124
      %v6049 = vpop.permute.xlu0 %6048
      %6050 = vrot.lane.b32.xlu0 %v5869, 124
      %v6051 = vpop.permute.xlu0 %6050
      %6052 = vrot.lane.b32.xlu0 %v5870, 124
      %v6053 = vpop.permute.xlu0 %6052
      %6054 = vrot.lane.b32.xlu0 %v5871, 124
      %v6055 = vpop.permute.xlu0 %6054
      %6056 = vrot.lane.b32.xlu0 %v5872, 124
      %v6057 = vpop.permute.xlu0 %6056
      %6058 = vrot.lane.b32.xlu0 %v5873, 124
      %v6059 = vpop.permute.xlu0 %6058
      %6060 = vrot.lane.b32.xlu0 %v5874, 124
      %v6061 = vpop.permute.xlu0 %6060
      %6062 = vrot.lane.b32.xlu0 %v5875, 124
      %v6063 = vpop.permute.xlu0 %6062
      %6064 = vrot.lane.b32.xlu0 %v5876, 124
      %v6065 = vpop.permute.xlu0 %6064
      %6066 = vrot.lane.b32.xlu0 %v5877, 124
      %v6067 = vpop.permute.xlu0 %6066
      %6068 = vrot.lane.b32.xlu0 %v5878, 124
      %v6069 = vpop.permute.xlu0 %6068
      %6070 = vrot.lane.b32.xlu0 %v5879, 124
      %v6071 = vpop.permute.xlu0 %6070
      %6136 = vst.msk [vmem:[%s280] sm:$0xf] %vm5751, %v5945
      %6137 = vst.msk [vmem:[%s280 + $0x4] sm:$0xf] %vm5751, %v5947
      %6138 = vst.msk [vmem:[%s280 + $0x8] sm:$0xf] %vm5751, %v5949
      %6139 = vst.msk [vmem:[%s280 + $0xc] sm:$0xf] %vm5751, %v5951
      %6140 = vst.msk [vmem:[%s280 + $0x10] sm:$0xf] %vm5751, %v5953
      %6141 = vst.msk [vmem:[%s280 + $0x14] sm:$0xf] %vm5751, %v5955
      %6142 = vst.msk [vmem:[%s280 + $0x18] sm:$0xf] %vm5751, %v5957
      %6143 = vst.msk [vmem:[%s280 + $0x1c] sm:$0xf] %vm5751, %v5959
      %6144 = vst.msk [vmem:[%s280 + $0x20] sm:$0xf] %vm5751, %v5961
      %6145 = vst.msk [vmem:[%s280 + $0x24] sm:$0xf] %vm5751, %v5963
      %6146 = vst.msk [vmem:[%s280 + $0x28] sm:$0xf] %vm5751, %v5965
      %6147 = vst.msk [vmem:[%s280 + $0x2c] sm:$0xf] %vm5751, %v5967
      %6148 = vst.msk [vmem:[%s280 + $0x30] sm:$0xf] %vm5751, %v5969
      %6149 = vst.msk [vmem:[%s280 + $0x34] sm:$0xf] %vm5751, %v5971
      %6150 = vst.msk [vmem:[%s280 + $0x38] sm:$0xf] %vm5751, %v5973
      %6151 = vst.msk [vmem:[%s280 + $0x3c] sm:$0xf] %vm5751, %v5975
      %6152 = vst.msk [vmem:[%s280 + $0x40] sm:$0xf] %vm5751, %v5977
      %6153 = vst.msk [vmem:[%s280 + $0x44] sm:$0xf] %vm5751, %v5979
      %6154 = vst.msk [vmem:[%s280 + $0x48] sm:$0xf] %vm5751, %v5981
      %6155 = vst.msk [vmem:[%s280 + $0x4c] sm:$0xf] %vm5751, %v5983
      %6156 = vst.msk [vmem:[%s280 + $0x50] sm:$0xf] %vm5751, %v5985
      %6157 = vst.msk [vmem:[%s280 + $0x54] sm:$0xf] %vm5751, %v5987
      %6158 = vst.msk [vmem:[%s280 + $0x58] sm:$0xf] %vm5751, %v5989
      %6159 = vst.msk [vmem:[%s280 + $0x5c] sm:$0xf] %vm5751, %v5991
      %6160 = vst.msk [vmem:[%s280 + $0x60] sm:$0xf] %vm5751, %v5993
      %6161 = vst.msk [vmem:[%s280 + $0x64] sm:$0xf] %vm5751, %v5995
      %6162 = vst.msk [vmem:[%s280 + $0x68] sm:$0xf] %vm5751, %v5997
      %6163 = vst.msk [vmem:[%s280 + $0x6c] sm:$0xf] %vm5751, %v5999
      %6164 = vst.msk [vmem:[%s280 + $0x70] sm:$0xf] %vm5751, %v6001
      %6165 = vst.msk [vmem:[%s280 + $0x74] sm:$0xf] %vm5751, %v6003
      %6166 = vst.msk [vmem:[%s280 + $0x78] sm:$0xf] %vm5751, %v6005
      %6167 = vst.msk [vmem:[%s280 + $0x7c] sm:$0xf] %vm5751, %v6007
      %6168 = vst.msk [vmem:[%s280 + $0x80] sm:$0xf] %vm5751, %v6009
      %6169 = vst.msk [vmem:[%s280 + $0x84] sm:$0xf] %vm5751, %v6011
      %6170 = vst.msk [vmem:[%s280 + $0x88] sm:$0xf] %vm5751, %v6013
      %6171 = vst.msk [vmem:[%s280 + $0x8c] sm:$0xf] %vm5751, %v6015
      %6172 = vst.msk [vmem:[%s280 + $0x90] sm:$0xf] %vm5751, %v6017
      %6173 = vst.msk [vmem:[%s280 + $0x94] sm:$0xf] %vm5751, %v6019
      %6174 = vst.msk [vmem:[%s280 + $0x98] sm:$0xf] %vm5751, %v6021
      %6175 = vst.msk [vmem:[%s280 + $0x9c] sm:$0xf] %vm5751, %v6023
      %6176 = vst.msk [vmem:[%s280 + $0xa0] sm:$0xf] %vm5751, %v6025
      %6177 = vst.msk [vmem:[%s280 + $0xa4] sm:$0xf] %vm5751, %v6027
      %6178 = vst.msk [vmem:[%s280 + $0xa8] sm:$0xf] %vm5751, %v6029
      %6179 = vst.msk [vmem:[%s280 + $0xac] sm:$0xf] %vm5751, %v6031
      %6180 = vst.msk [vmem:[%s280 + $0xb0] sm:$0xf] %vm5751, %v6033
      %6181 = vst.msk [vmem:[%s280 + $0xb4] sm:$0xf] %vm5751, %v6035
      %6182 = vst.msk [vmem:[%s280 + $0xb8] sm:$0xf] %vm5751, %v6037
      %6183 = vst.msk [vmem:[%s280 + $0xbc] sm:$0xf] %vm5751, %v6039
      %6184 = vst.msk [vmem:[%s280 + $0xc0] sm:$0xf] %vm5751, %v6041
      %6185 = vst.msk [vmem:[%s280 + $0xc4] sm:$0xf] %vm5751, %v6043
      %6186 = vst.msk [vmem:[%s280 + $0xc8] sm:$0xf] %vm5751, %v6045
      %6187 = vst.msk [vmem:[%s280 + $0xcc] sm:$0xf] %vm5751, %v6047
      %6188 = vst.msk [vmem:[%s280 + $0xd0] sm:$0xf] %vm5751, %v6049
      %6189 = vst.msk [vmem:[%s280 + $0xd4] sm:$0xf] %vm5751, %v6051
      %6190 = vst.msk [vmem:[%s280 + $0xd8] sm:$0xf] %vm5751, %v6053
      %6191 = vst.msk [vmem:[%s280 + $0xdc] sm:$0xf] %vm5751, %v6055
      %6192 = vst.msk [vmem:[%s280 + $0xe0] sm:$0xf] %vm5751, %v6057
      %6193 = vst.msk [vmem:[%s280 + $0xe4] sm:$0xf] %vm5751, %v6059
      %6194 = vst.msk [vmem:[%s280 + $0xe8] sm:$0xf] %vm5751, %v6061
      %6195 = vst.msk [vmem:[%s280 + $0xec] sm:$0xf] %vm5751, %v6063
      %6196 = vst.msk [vmem:[%s280 + $0xf0] sm:$0xf] %vm5751, %v6065
      %6197 = vst.msk [vmem:[%s280 + $0xf4] sm:$0xf] %vm5751, %v6067
      %6198 = vst.msk [vmem:[%s280 + $0xf8] sm:$0xf] %vm5751, %v6069
      %6199 = vst.msk [vmem:[%s280 + $0xfc] sm:$0xf] %vm5751, %v6071
      %v6200 = vpack.c.bf16 %v3951, %v3951
      %v6201 = vpack.c.bf16 %v3952, %v3952
      %v6202 = vpack.c.bf16 %v3953, %v3953
      %v6203 = vpack.c.bf16 %v3954, %v3954
      %v6204 = vpack.c.bf16 %v3955, %v3955
      %v6205 = vpack.c.bf16 %v3956, %v3956
      %v6206 = vpack.c.bf16 %v3957, %v3957
      %v6207 = vpack.c.bf16 %v3958, %v3958
      %v6208 = vpack.c.bf16 %v3959, %v3959
      %v6209 = vpack.c.bf16 %v3960, %v3960
      %v6210 = vpack.c.bf16 %v3961, %v3961
      %v6211 = vpack.c.bf16 %v3962, %v3962
      %v6212 = vpack.c.bf16 %v3963, %v3963
      %v6213 = vpack.c.bf16 %v3964, %v3964
      %v6214 = vpack.c.bf16 %v3965, %v3965
      %v6215 = vpack.c.bf16 %v3966, %v3966
      %v6216 = vpack.c.bf16 %v3967, %v3967
      %v6217 = vpack.c.bf16 %v3968, %v3968
      %v6218 = vpack.c.bf16 %v3969, %v3969
      %v6219 = vpack.c.bf16 %v3970, %v3970
      %v6220 = vpack.c.bf16 %v3971, %v3971
      %v6221 = vpack.c.bf16 %v3972, %v3972
      %v6222 = vpack.c.bf16 %v3973, %v3973
      %v6223 = vpack.c.bf16 %v3974, %v3974
      %v6224 = vpack.c.bf16 %v3975, %v3975
      %v6225 = vpack.c.bf16 %v3976, %v3976
      %v6226 = vpack.c.bf16 %v3977, %v3977
      %v6227 = vpack.c.bf16 %v3978, %v3978
      %v6228 = vpack.c.bf16 %v3979, %v3979
      %v6229 = vpack.c.bf16 %v3980, %v3980
      %v6230 = vpack.c.bf16 %v3981, %v3981
      %v6231 = vpack.c.bf16 %v3982, %v3982
      %v6232 = vpack.c.bf16 %v3983, %v3983
      %v6233 = vpack.c.bf16 %v3984, %v3984
      %v6234 = vpack.c.bf16 %v3985, %v3985
      %v6235 = vpack.c.bf16 %v3986, %v3986
      %v6236 = vpack.c.bf16 %v3987, %v3987
      %v6237 = vpack.c.bf16 %v3988, %v3988
      %v6238 = vpack.c.bf16 %v3989, %v3989
      %v6239 = vpack.c.bf16 %v3990, %v3990
      %v6240 = vpack.c.bf16 %v3991, %v3991
      %v6241 = vpack.c.bf16 %v3992, %v3992
      %v6242 = vpack.c.bf16 %v3993, %v3993
      %v6243 = vpack.c.bf16 %v3994, %v3994
      %v6244 = vpack.c.bf16 %v3995, %v3995
      %v6245 = vpack.c.bf16 %v3996, %v3996
      %v6246 = vpack.c.bf16 %v3997, %v3997
      %v6247 = vpack.c.bf16 %v3998, %v3998
      %v6248 = vpack.c.bf16 %v3999, %v3999
      %v6249 = vpack.c.bf16 %v4000, %v4000
      %v6250 = vpack.c.bf16 %v4001, %v4001
      %v6251 = vpack.c.bf16 %v4002, %v4002
      %v6252 = vpack.c.bf16 %v4003, %v4003
      %v6253 = vpack.c.bf16 %v4004, %v4004
      %v6254 = vpack.c.bf16 %v4005, %v4005
      %v6255 = vpack.c.bf16 %v4006, %v4006
      %v6256 = vpack.c.bf16 %v4007, %v4007
      %v6257 = vpack.c.bf16 %v4008, %v4008
      %v6258 = vpack.c.bf16 %v4009, %v4009
      %v6259 = vpack.c.bf16 %v4010, %v4010
      %v6260 = vpack.c.bf16 %v4011, %v4011
      %v6261 = vpack.c.bf16 %v4012, %v4012
      %v6262 = vpack.c.bf16 %v4013, %v4013
      %v6263 = vpack.c.bf16 %v4014, %v4014
      %6328 = vrot.lane.b32.xlu0 %v6200, 112
      %v6329 = vpop.permute.xlu0 %6328
      %6330 = vrot.lane.b32.xlu0 %v6201, 112
      %v6331 = vpop.permute.xlu0 %6330
      %6332 = vrot.lane.b32.xlu0 %v6202, 112
      %v6333 = vpop.permute.xlu0 %6332
      %6334 = vrot.lane.b32.xlu0 %v6203, 112
      %v6335 = vpop.permute.xlu0 %6334
      %6336 = vrot.lane.b32.xlu0 %v6204, 112
      %v6337 = vpop.permute.xlu0 %6336
      %6338 = vrot.lane.b32.xlu0 %v6205, 112
      %v6339 = vpop.permute.xlu0 %6338
      %6340 = vrot.lane.b32.xlu0 %v6206, 112
      %v6341 = vpop.permute.xlu0 %6340
      %6342 = vrot.lane.b32.xlu0 %v6207, 112
      %v6343 = vpop.permute.xlu0 %6342
      %6344 = vrot.lane.b32.xlu0 %v6208, 112
      %v6345 = vpop.permute.xlu0 %6344
      %6346 = vrot.lane.b32.xlu0 %v6209, 112
      %v6347 = vpop.permute.xlu0 %6346
      %6348 = vrot.lane.b32.xlu0 %v6210, 112
      %v6349 = vpop.permute.xlu0 %6348
      %6350 = vrot.lane.b32.xlu0 %v6211, 112
      %v6351 = vpop.permute.xlu0 %6350
      %6352 = vrot.lane.b32.xlu0 %v6212, 112
      %v6353 = vpop.permute.xlu0 %6352
      %6354 = vrot.lane.b32.xlu0 %v6213, 112
      %v6355 = vpop.permute.xlu0 %6354
      %6356 = vrot.lane.b32.xlu0 %v6214, 112
      %v6357 = vpop.permute.xlu0 %6356
      %6358 = vrot.lane.b32.xlu0 %v6215, 112
      %v6359 = vpop.permute.xlu0 %6358
      %6360 = vrot.lane.b32.xlu0 %v6216, 112
      %v6361 = vpop.permute.xlu0 %6360
      %6362 = vrot.lane.b32.xlu0 %v6217, 112
      %v6363 = vpop.permute.xlu0 %6362
      %6364 = vrot.lane.b32.xlu0 %v6218, 112
      %v6365 = vpop.permute.xlu0 %6364
      %6366 = vrot.lane.b32.xlu0 %v6219, 112
      %v6367 = vpop.permute.xlu0 %6366
      %6368 = vrot.lane.b32.xlu0 %v6220, 112
      %v6369 = vpop.permute.xlu0 %6368
      %6370 = vrot.lane.b32.xlu0 %v6221, 112
      %v6371 = vpop.permute.xlu0 %6370
      %6372 = vrot.lane.b32.xlu0 %v6222, 112
      %v6373 = vpop.permute.xlu0 %6372
      %6374 = vrot.lane.b32.xlu0 %v6223, 112
      %v6375 = vpop.permute.xlu0 %6374
      %6376 = vrot.lane.b32.xlu0 %v6224, 112
      %v6377 = vpop.permute.xlu0 %6376
      %6378 = vrot.lane.b32.xlu0 %v6225, 112
      %v6379 = vpop.permute.xlu0 %6378
      %6380 = vrot.lane.b32.xlu0 %v6226, 112
      %v6381 = vpop.permute.xlu0 %6380
      %6382 = vrot.lane.b32.xlu0 %v6227, 112
      %v6383 = vpop.permute.xlu0 %6382
      %6384 = vrot.lane.b32.xlu0 %v6228, 112
      %v6385 = vpop.permute.xlu0 %6384
      %6386 = vrot.lane.b32.xlu0 %v6229, 112
      %v6387 = vpop.permute.xlu0 %6386
      %6388 = vrot.lane.b32.xlu0 %v6230, 112
      %v6389 = vpop.permute.xlu0 %6388
      %6390 = vrot.lane.b32.xlu0 %v6231, 112
      %v6391 = vpop.permute.xlu0 %6390
      %6392 = vrot.lane.b32.xlu0 %v6232, 112
      %v6393 = vpop.permute.xlu0 %6392
      %6394 = vrot.lane.b32.xlu0 %v6233, 112
      %v6395 = vpop.permute.xlu0 %6394
      %6396 = vrot.lane.b32.xlu0 %v6234, 112
      %v6397 = vpop.permute.xlu0 %6396
      %6398 = vrot.lane.b32.xlu0 %v6235, 112
      %v6399 = vpop.permute.xlu0 %6398
      %6400 = vrot.lane.b32.xlu0 %v6236, 112
      %v6401 = vpop.permute.xlu0 %6400
      %6402 = vrot.lane.b32.xlu0 %v6237, 112
      %v6403 = vpop.permute.xlu0 %6402
      %6404 = vrot.lane.b32.xlu0 %v6238, 112
      %v6405 = vpop.permute.xlu0 %6404
      %6406 = vrot.lane.b32.xlu0 %v6239, 112
      %v6407 = vpop.permute.xlu0 %6406
      %6408 = vrot.lane.b32.xlu0 %v6240, 112
      %v6409 = vpop.permute.xlu0 %6408
      %6410 = vrot.lane.b32.xlu0 %v6241, 112
      %v6411 = vpop.permute.xlu0 %6410
      %6412 = vrot.lane.b32.xlu0 %v6242, 112
      %v6413 = vpop.permute.xlu0 %6412
      %6414 = vrot.lane.b32.xlu0 %v6243, 112
      %v6415 = vpop.permute.xlu0 %6414
      %6416 = vrot.lane.b32.xlu0 %v6244, 112
      %v6417 = vpop.permute.xlu0 %6416
      %6418 = vrot.lane.b32.xlu0 %v6245, 112
      %v6419 = vpop.permute.xlu0 %6418
      %6420 = vrot.lane.b32.xlu0 %v6246, 112
      %v6421 = vpop.permute.xlu0 %6420
      %6422 = vrot.lane.b32.xlu0 %v6247, 112
      %v6423 = vpop.permute.xlu0 %6422
      %6424 = vrot.lane.b32.xlu0 %v6248, 112
      %v6425 = vpop.permute.xlu0 %6424
      %6426 = vrot.lane.b32.xlu0 %v6249, 112
      %v6427 = vpop.permute.xlu0 %6426
      %6428 = vrot.lane.b32.xlu0 %v6250, 112
      %v6429 = vpop.permute.xlu0 %6428
      %6430 = vrot.lane.b32.xlu0 %v6251, 112
      %v6431 = vpop.permute.xlu0 %6430
      %6432 = vrot.lane.b32.xlu0 %v6252, 112
      %v6433 = vpop.permute.xlu0 %6432
      %6434 = vrot.lane.b32.xlu0 %v6253, 112
      %v6435 = vpop.permute.xlu0 %6434
      %6436 = vrot.lane.b32.xlu0 %v6254, 112
      %v6437 = vpop.permute.xlu0 %6436
      %6438 = vrot.lane.b32.xlu0 %v6255, 112
      %v6439 = vpop.permute.xlu0 %6438
      %6440 = vrot.lane.b32.xlu0 %v6256, 112
      %v6441 = vpop.permute.xlu0 %6440
      %6442 = vrot.lane.b32.xlu0 %v6257, 112
      %v6443 = vpop.permute.xlu0 %6442
      %6444 = vrot.lane.b32.xlu0 %v6258, 112
      %v6445 = vpop.permute.xlu0 %6444
      %6446 = vrot.lane.b32.xlu0 %v6259, 112
      %v6447 = vpop.permute.xlu0 %6446
      %6448 = vrot.lane.b32.xlu0 %v6260, 112
      %v6449 = vpop.permute.xlu0 %6448
      %6450 = vrot.lane.b32.xlu0 %v6261, 112
      %v6451 = vpop.permute.xlu0 %6450
      %6452 = vrot.lane.b32.xlu0 %v6262, 112
      %v6453 = vpop.permute.xlu0 %6452
      %6454 = vrot.lane.b32.xlu0 %v6263, 112
      %v6455 = vpop.permute.xlu0 %6454
      %6520 = vst.msk [vmem:[%s286] sm:$0xf] %vm5751, %v6329
      %6521 = vst.msk [vmem:[%s286 + $0x4] sm:$0xf] %vm5751, %v6331
      %6522 = vst.msk [vmem:[%s286 + $0x8] sm:$0xf] %vm5751, %v6333
      %6523 = vst.msk [vmem:[%s286 + $0xc] sm:$0xf] %vm5751, %v6335
      %6524 = vst.msk [vmem:[%s286 + $0x10] sm:$0xf] %vm5751, %v6337
      %6525 = vst.msk [vmem:[%s286 + $0x14] sm:$0xf] %vm5751, %v6339
      %6526 = vst.msk [vmem:[%s286 + $0x18] sm:$0xf] %vm5751, %v6341
      %6527 = vst.msk [vmem:[%s286 + $0x1c] sm:$0xf] %vm5751, %v6343
      %6528 = vst.msk [vmem:[%s286 + $0x20] sm:$0xf] %vm5751, %v6345
      %6529 = vst.msk [vmem:[%s286 + $0x24] sm:$0xf] %vm5751, %v6347
      %6530 = vst.msk [vmem:[%s286 + $0x28] sm:$0xf] %vm5751, %v6349
      %6531 = vst.msk [vmem:[%s286 + $0x2c] sm:$0xf] %vm5751, %v6351
      %6532 = vst.msk [vmem:[%s286 + $0x30] sm:$0xf] %vm5751, %v6353
      %6533 = vst.msk [vmem:[%s286 + $0x34] sm:$0xf] %vm5751, %v6355
      %6534 = vst.msk [vmem:[%s286 + $0x38] sm:$0xf] %vm5751, %v6357
      %6535 = vst.msk [vmem:[%s286 + $0x3c] sm:$0xf] %vm5751, %v6359
      %6536 = vst.msk [vmem:[%s286 + $0x40] sm:$0xf] %vm5751, %v6361
      %6537 = vst.msk [vmem:[%s286 + $0x44] sm:$0xf] %vm5751, %v6363
      %6538 = vst.msk [vmem:[%s286 + $0x48] sm:$0xf] %vm5751, %v6365
      %6539 = vst.msk [vmem:[%s286 + $0x4c] sm:$0xf] %vm5751, %v6367
      %6540 = vst.msk [vmem:[%s286 + $0x50] sm:$0xf] %vm5751, %v6369
      %6541 = vst.msk [vmem:[%s286 + $0x54] sm:$0xf] %vm5751, %v6371
      %6542 = vst.msk [vmem:[%s286 + $0x58] sm:$0xf] %vm5751, %v6373
      %6543 = vst.msk [vmem:[%s286 + $0x5c] sm:$0xf] %vm5751, %v6375
      %6544 = vst.msk [vmem:[%s286 + $0x60] sm:$0xf] %vm5751, %v6377
      %6545 = vst.msk [vmem:[%s286 + $0x64] sm:$0xf] %vm5751, %v6379
      %6546 = vst.msk [vmem:[%s286 + $0x68] sm:$0xf] %vm5751, %v6381
      %6547 = vst.msk [vmem:[%s286 + $0x6c] sm:$0xf] %vm5751, %v6383
      %6548 = vst.msk [vmem:[%s286 + $0x70] sm:$0xf] %vm5751, %v6385
      %6549 = vst.msk [vmem:[%s286 + $0x74] sm:$0xf] %vm5751, %v6387
      %6550 = vst.msk [vmem:[%s286 + $0x78] sm:$0xf] %vm5751, %v6389
      %6551 = vst.msk [vmem:[%s286 + $0x7c] sm:$0xf] %vm5751, %v6391
      %6552 = vst.msk [vmem:[%s286 + $0x80] sm:$0xf] %vm5751, %v6393
      %6553 = vst.msk [vmem:[%s286 + $0x84] sm:$0xf] %vm5751, %v6395
      %6554 = vst.msk [vmem:[%s286 + $0x88] sm:$0xf] %vm5751, %v6397
      %6555 = vst.msk [vmem:[%s286 + $0x8c] sm:$0xf] %vm5751, %v6399
      %6556 = vst.msk [vmem:[%s286 + $0x90] sm:$0xf] %vm5751, %v6401
      %6557 = vst.msk [vmem:[%s286 + $0x94] sm:$0xf] %vm5751, %v6403
      %6558 = vst.msk [vmem:[%s286 + $0x98] sm:$0xf] %vm5751, %v6405
      %6559 = vst.msk [vmem:[%s286 + $0x9c] sm:$0xf] %vm5751, %v6407
      %6560 = vst.msk [vmem:[%s286 + $0xa0] sm:$0xf] %vm5751, %v6409
      %6561 = vst.msk [vmem:[%s286 + $0xa4] sm:$0xf] %vm5751, %v6411
      %6562 = vst.msk [vmem:[%s286 + $0xa8] sm:$0xf] %vm5751, %v6413
      %6563 = vst.msk [vmem:[%s286 + $0xac] sm:$0xf] %vm5751, %v6415
      %6564 = vst.msk [vmem:[%s286 + $0xb0] sm:$0xf] %vm5751, %v6417
      %6565 = vst.msk [vmem:[%s286 + $0xb4] sm:$0xf] %vm5751, %v6419
      %6566 = vst.msk [vmem:[%s286 + $0xb8] sm:$0xf] %vm5751, %v6421
      %6567 = vst.msk [vmem:[%s286 + $0xbc] sm:$0xf] %vm5751, %v6423
      %6568 = vst.msk [vmem:[%s286 + $0xc0] sm:$0xf] %vm5751, %v6425
      %6569 = vst.msk [vmem:[%s286 + $0xc4] sm:$0xf] %vm5751, %v6427
      %6570 = vst.msk [vmem:[%s286 + $0xc8] sm:$0xf] %vm5751, %v6429
      %6571 = vst.msk [vmem:[%s286 + $0xcc] sm:$0xf] %vm5751, %v6431
      %6572 = vst.msk [vmem:[%s286 + $0xd0] sm:$0xf] %vm5751, %v6433
      %6573 = vst.msk [vmem:[%s286 + $0xd4] sm:$0xf] %vm5751, %v6435
      %6574 = vst.msk [vmem:[%s286 + $0xd8] sm:$0xf] %vm5751, %v6437
      %6575 = vst.msk [vmem:[%s286 + $0xdc] sm:$0xf] %vm5751, %v6439
      %6576 = vst.msk [vmem:[%s286 + $0xe0] sm:$0xf] %vm5751, %v6441
      %6577 = vst.msk [vmem:[%s286 + $0xe4] sm:$0xf] %vm5751, %v6443
      %6578 = vst.msk [vmem:[%s286 + $0xe8] sm:$0xf] %vm5751, %v6445
      %6579 = vst.msk [vmem:[%s286 + $0xec] sm:$0xf] %vm5751, %v6447
      %6580 = vst.msk [vmem:[%s286 + $0xf0] sm:$0xf] %vm5751, %v6449
      %6581 = vst.msk [vmem:[%s286 + $0xf4] sm:$0xf] %vm5751, %v6451
      %6582 = vst.msk [vmem:[%s286 + $0xf8] sm:$0xf] %vm5751, %v6453
      %6583 = vst.msk [vmem:[%s286 + $0xfc] sm:$0xf] %vm5751, %v6455
      %s6584 = smul.u32 64, %s18
      %p6585 = scmp.lt.s32.totalorder %s6584, 127
      %s6586 = scalar_select %p6585, %s6584, 127
      %s6587 = smul.addr %s6586, 4
      %s6588 = scalar_lea.vmem %s3, %s6587
      %s6589 = smul.u32 64, %s18
      %p6590 = scmp.lt.s32.totalorder %s6589, 127
      %s6591 = scalar_select %p6590, %s6589, 127
      %s6592 = smul.addr %s6591, 4
      %s6593 = scalar_lea.vmem %s4, %s6592
      %s6594 = smul.u32 64, %s18
      %p6595 = scmp.lt.s32.totalorder %s6594, 127
      %s6596 = scalar_select %p6595, %s6594, 127
      %s6597 = smul.addr %s6596, 4
      %s6598 = scalar_lea.vmem %s5, %s6597
      %p6599 = scmp.lt.s32.totalorder %s18, 1
      %s6600 = scalar_select %p6599, %s18, 1
      %s6601 = smul.addr %s6600, 8
      %s6602 = scalar_lea.vmem %s6, %s6601
      // Predicated region
      $region33: #{encoder_forward.2} parent=31 // pred_check
        %p6603 = pneg %p104
      $region34: #{encoder_forward.2} parent=31 // pred_check_branch
        %6605 = sbr.rel (%p6603) target = $region36
      $region35: #{encoder_forward.2} parent=31 // pred_region
        %s6606 = smul.u32 64, %s18
      $region36: #{encoder_forward.2} parent=31 // pred_fallthru
        _
      // Predicated region
      $region37: #{encoder_forward.2} parent=31 // pred_check
        %p6607 = pneg %p130
      $region38: #{encoder_forward.2} parent=31 // pred_check_branch
        %6609 = sbr.rel (%p6607) target = $region40
      $region39: #{encoder_forward.2} parent=31 // pred_region
        %s6610 = smul.u32 64, %s18
      $region40: #{encoder_forward.2} parent=31 // pred_fallthru
        _
      // Predicated region
      $region41: #{encoder_forward.2} parent=31 // pred_check
        %p6611 = pneg %p156
      $region42: #{encoder_forward.2} parent=31 // pred_check_branch
        %6613 = sbr.rel (%p6611) target = $region44
      $region43: #{encoder_forward.2} parent=31 // pred_region
        %s6614 = smul.u32 64, %s18
      $region44: #{encoder_forward.2} parent=31 // pred_fallthru
        _
      // Predicated region
      $region45: #{encoder_forward.2} parent=31 // pred_check
        %p6615 = pneg %p182
      $region46: #{encoder_forward.2} parent=31 // pred_check_branch
        %6617 = sbr.rel (%p6615) target = $region48
      $region47: #{encoder_forward.2} parent=31 // pred_region
        _
      $region48: #{encoder_forward.2} parent=31 // pred_fallthru
        _
    $region32: #{encoder_forward.2} parent=5 // pred_fallthru
      _
    %p6618 = scmp.le.s32.totalorder 2, %s13
    // Predicated region
    $region49: #{encoder_forward.2} parent=5 // pred_check
      %p6619 = pneg %p6618
    $region50: #{encoder_forward.2} parent=5 // pred_check_branch
      %6621 = sbr.rel (%p6619) target = $region52
    $region51: #{encoder_forward.2} parent=5 // pred_region
      %s6622 = ssub.s32 %s13, 2
      // Predicated region
      $region53: #{encoder_forward.2} parent=51 // pred_check
        %p6623 = pneg %p110
      $region54: #{encoder_forward.2} parent=51 // pred_check_branch
        %6625 = sbr.rel (%p6623) target = $region56
      $region55: #{encoder_forward.2} parent=51 // pred_region
        %s6626 = smul.u32 64, %s19
        %p6627 = scmp.lt.s32.totalorder %s6626, 127
        %s6628 = scalar_select %p6627, %s6626, 127
        %s6629 = smul.addr %s6628, 4
        %s6630 = scalar_lea.vmem %s3, %s6629
      $region56: #{encoder_forward.2} parent=51 // pred_fallthru
        _
      // Predicated region
      $region57: #{encoder_forward.2} parent=51 // pred_check
        %p6631 = pneg %p136
      $region58: #{encoder_forward.2} parent=51 // pred_check_branch
        %6633 = sbr.rel (%p6631) target = $region60
      $region59: #{encoder_forward.2} parent=51 // pred_region
        %s6634 = smul.u32 64, %s19
        %p6635 = scmp.lt.s32.totalorder %s6634, 127
        %s6636 = scalar_select %p6635, %s6634, 127
        %s6637 = smul.addr %s6636, 4
        %s6638 = scalar_lea.vmem %s4, %s6637
      $region60: #{encoder_forward.2} parent=51 // pred_fallthru
        _
      // Predicated region
      $region61: #{encoder_forward.2} parent=51 // pred_check
        %p6639 = pneg %p162
      $region62: #{encoder_forward.2} parent=51 // pred_check_branch
        %6641 = sbr.rel (%p6639) target = $region64
      $region63: #{encoder_forward.2} parent=51 // pred_region
        %s6642 = smul.u32 64, %s19
        %p6643 = scmp.lt.s32.totalorder %s6642, 127
        %s6644 = scalar_select %p6643, %s6642, 127
        %s6645 = smul.addr %s6644, 4
        %s6646 = scalar_lea.vmem %s5, %s6645
      $region64: #{encoder_forward.2} parent=51 // pred_fallthru
        _
      // Predicated region
      $region65: #{encoder_forward.2} parent=51 // pred_check
        %p6647 = pneg %p188
      $region66: #{encoder_forward.2} parent=51 // pred_check_branch
        %6649 = sbr.rel (%p6647) target = $region68
      $region67: #{encoder_forward.2} parent=51 // pred_region
        %p6650 = scmp.lt.s32.totalorder %s19, 1
        %s6651 = scalar_select %p6650, %s19, 1
        %s6652 = smul.addr %s6651, 8
        %s6653 = scalar_lea.vmem %s6, %s6652
      $region68: #{encoder_forward.2} parent=51 // pred_fallthru
        _
    $region52: #{encoder_forward.2} parent=5 // pred_fallthru
      _
  $region6: #{encoder_forward.2} parent=0 // loop_footer
    %s17 = sadd.s32 1, %s13
  $region7: #{encoder_forward.2} parent=0 // loop_footer_branch
    %12 = sbr.rel target = $region3
  $region8: #{encoder_forward.2} parent=0 // loop_exit
    _

</llo_original>
